<compile_context>
chip_gen: v7x
topology: tpu7x:2x2x1
jax: 0.10.0
libtpu: 0.0.40
codegen_flags: <defaults>
</compile_context>

<pallas_src>
import functools

import jax
import jax.numpy as jnp
from jax.experimental import pallas as pl
from jax.experimental.pallas import tpu as pltpu


# ----------------------------------------------------------------------------
# Pallas kernel: one image (HW, C) per grid step.
# ----------------------------------------------------------------------------
def _cbam_kernel(x_ref, w1_ref, b1_ref, w2_ref, b2_ref,
                 wdt_ref, wu_ref, wsa_ref, o_ref,
                 bufc_ref, buf2_ref, *, H, W, PAD):
    HW = H * W
    C = x_ref.shape[-1]          # inplanes == planes (identity residual)

    # Zero the halo rows every grid step (cheap; safe under a megacore split
    # where each core owns its own scratch instance).
    bufc_ref[pl.ds(0, PAD), :] = jnp.zeros((PAD, C), jnp.float32)
    bufc_ref[pl.ds(PAD + HW, PAD), :] = jnp.zeros((PAD, C), jnp.float32)
    buf2_ref[pl.ds(0, PAD), :] = jnp.zeros((PAD, 2), jnp.float32)
    buf2_ref[pl.ds(PAD + HW, PAD), :] = jnp.zeros((PAD, 2), jnp.float32)

    # W-boundary masks, built once and reused by all taps of both convs.
    col = jax.lax.broadcasted_iota(jnp.int32, (HW, C), 0) % W
    mask_l = (col >= 1).astype(jnp.float32)        # valid for dx = -1
    mask_r = (col <= W - 2).astype(jnp.float32)    # valid for dx = +1
    col2 = jax.lax.broadcasted_iota(jnp.int32, (HW, 2), 0) % W
    mask_l2 = (col2 >= 1).astype(jnp.float32)
    mask_r2 = (col2 <= W - 2).astype(jnp.float32)

    def conv3x3(x2, w_ref, b_ref):
        """3x3 'same' conv as 9 accumulated per-tap MXU dots (bf16 x bf16)."""
        bufc_ref[pl.ds(PAD, HW), :] = x2
        acc = jnp.zeros((HW, C), jnp.float32)
        t = 0
        for dy in (-1, 0, 1):
            base = PAD + dy * W           # H boundary handled by the zero halo
            for dx in (-1, 0, 1):
                tap = bufc_ref[pl.ds(base + dx, HW), :]
                if dx == -1:
                    tap = tap * mask_l
                elif dx == 1:
                    tap = tap * mask_r
                acc = acc + jnp.dot(tap.astype(jnp.bfloat16), w_ref[t],
                                    preferred_element_type=jnp.float32)
                t += 1
        return acc + b_ref[...]           # folded BN bias, (1, C)

    x2 = x_ref[...]                                         # (HW, C) f32

    # conv1 + bn1 (folded) + ReLU
    o1 = jnp.maximum(conv3x3(x2, w1_ref, b1_ref), 0.0)
    # conv2 + bn2 (folded), no ReLU before the attention blocks
    o2 = conv3x3(o1, w2_ref, b2_ref)

    # ---- ChannelAttention: x * sigmoid(fc(avgpool) + fc(maxpool)) ----------
    avg_c = jnp.mean(o2, axis=0, keepdims=True)             # (1, C)
    max_c = jnp.max(o2, axis=0, keepdims=True)              # (1, C)
    ym = jnp.concatenate([avg_c, max_c], axis=0)            # (2, C)
    hid = jnp.maximum(
        jnp.dot(ym, wdt_ref[...], preferred_element_type=jnp.float32), 0.0)
    logits = jnp.dot(hid, wu_ref[...], preferred_element_type=jnp.float32)
    ca = jax.nn.sigmoid(logits[0:1, :] + logits[1:2, :])    # (1, C)
    o_ca = o2 * ca

    # ---- SpatialAttention: x * sigmoid(conv3x3([mean_c, max_c])) -----------
    sa_avg = jnp.mean(o_ca, axis=-1, keepdims=True)         # (HW, 1)
    sa_max = jnp.max(o_ca, axis=-1, keepdims=True)          # (HW, 1)
    buf2_ref[pl.ds(PAD, HW), :] = jnp.concatenate([sa_avg, sa_max], axis=-1)

    acc2 = jnp.zeros((HW, 2), jnp.float32)
    t = 0
    for dy in (-1, 0, 1):
        base = PAD + dy * W
        for dx in (-1, 0, 1):
            tap = buf2_ref[pl.ds(base + dx, HW), :]          # (HW, 2)
            if dx == -1:
                tap = tap * mask_l2
            elif dx == 1:
                tap = tap * mask_r2
            acc2 = acc2 + tap * wsa_ref[t]                   # (1, 2) weights
            t += 1
    sa_logit = jnp.sum(acc2, axis=-1, keepdims=True)         # single 2-lane reduce
    o_sa = o_ca * jax.nn.sigmoid(sa_logit)

    # ---- identity residual (downsample=None, stride=1) + ReLU --------------
    o_ref[...] = jnp.maximum(o_sa + x2, 0.0)


# ----------------------------------------------------------------------------
# Wrapper: batch-parallel grid, (N*H*W, C) I/O, aliased output.
# ----------------------------------------------------------------------------
def _vmem_limit_bytes():
    try:
        cap = int(pltpu.get_tpu_info().vmem_capacity_bytes)
    except Exception:
        cap = 64 * 1024 * 1024            # conservative (v7x-sized) fallback
    return max(32 * 1024 * 1024, min(cap * 3 // 4, 112 * 1024 * 1024))


def _const_spec(w):
    zeros = (0,) * w.ndim
    return pl.BlockSpec(w.shape, lambda n, z=zeros: z)


def cbam_basic_block_pallas(x_nchw, kp):
    N, C, H, W = x_nchw.shape
    HW = H * W
    assert kp["w1"].shape[-1] == C, \
        "identity residual needs inplanes == planes (downsample=None)"
    PAD = max(8, -(-(W + 1) // 8) * 8)     # halo rows, sublane-aligned

    x_2d = jnp.transpose(x_nchw, (0, 2, 3, 1)).reshape(N * HW, C)

    kern = functools.partial(_cbam_kernel, H=H, W=W, PAD=PAD)
    weights = (kp["w1"], kp["b1"], kp["w2"], kp["b2"],
               kp["wdt"], kp["wu"], kp["wsa"])

    cost = pl.CostEstimate(
        flops=int(N * (2 * HW * 9 * C * C * 2 + 4 * C * (C // 16 + 1)
                       + 2 * HW * 18 + 12 * HW * C)),
        transcendentals=int(N * (HW + C)),
        bytes_accessed=int(2 * x_2d.size * 4
                           + sum(int(w.size) * w.dtype.itemsize
                                 for w in weights)),
    )

    out_2d = pl.pallas_call(
        kern,
        grid=(N,),
        in_specs=[pl.BlockSpec((HW, C), lambda n: (n, 0))]
                 + [_const_spec(w) for w in weights],
        out_specs=pl.BlockSpec((HW, C), lambda n: (n, 0)),
        out_shape=jax.ShapeDtypeStruct((N * HW, C), jnp.float32),
        scratch_shapes=[pltpu.VMEM((HW + 2 * PAD, C), jnp.float32),
                        pltpu.VMEM((HW + 2 * PAD, 2), jnp.float32)],
        input_output_aliases={0: 0},
        compiler_params=pltpu.CompilerParams(
            dimension_semantics=("parallel",),
            vmem_limit_bytes=_vmem_limit_bytes()),
        cost_estimate=cost,
    )(x_2d, *weights)

    return jnp.transpose(out_2d.reshape(N, H, W, C), (0, 3, 1, 2))


# ----------------------------------------------------------------------------
# Deterministic parameters (PyTorch __init__ shapes) + folded kernel params.
# ----------------------------------------------------------------------------
def make_params(key, inplanes, planes, ca_reduction=16):
    assert inplanes == planes
    mid = planes // ca_reduction
    assert mid >= 1, "ChannelAttention needs planes >= reduction (16)"
    ks = jax.random.split(key, 13)

    def nrm(k, shape, scale=0.1):
        return (scale * jax.random.normal(k, shape)).astype(jnp.float32)

    tp = {  # torch-layout params (for the reference)
        "conv1_w": nrm(ks[0], (planes, inplanes, 3, 3)),
        "conv2_w": nrm(ks[1], (planes, planes, 3, 3)),
        "bn1": (1.0 + nrm(ks[2], (planes,)), nrm(ks[3], (planes,)),
                nrm(ks[4], (planes,)),
                jax.random.uniform(ks[5], (planes,), minval=0.5,
                                   maxval=1.5).astype(jnp.float32)),
        "bn2": (1.0 + nrm(ks[6], (planes,)), nrm(ks[7], (planes,)),
                nrm(ks[8], (planes,)),
                jax.random.uniform(ks[9], (planes,), minval=0.5,
                                   maxval=1.5).astype(jnp.float32)),
        "ca_fc1_w": nrm(ks[10], (mid, planes, 1, 1)),
        "ca_fc2_w": nrm(ks[11], (planes, mid, 1, 1)),
        "sa_w": nrm(ks[12], (1, 2, 3, 3)),
    }

    eps = 1e-5

    def fold(bn):
        g, b, m, v = bn
        s = g / jnp.sqrt(v + eps)
        return s, b - m * s

    def to_taps(w_oihw, s):
        o, i = w_oihw.shape[0], w_oihw.shape[1]
        # (O,I,ky,kx) -> (ky,kx,I,O) -> (9,I,O); BN scale folded per out-chan.
        wt = jnp.transpose(w_oihw, (2, 3, 1, 0)).reshape(9, i, o)
        return (wt * s[None, None, :]).astype(jnp.bfloat16)

    s1, b1 = fold(tp["bn1"])
    s2, b2 = fold(tp["bn2"])
    kp = {  # kernel-layout params
        "w1": to_taps(tp["conv1_w"], s1),                               # (9,C,C) bf16
        "b1": b1.reshape(1, -1).astype(jnp.float32),                    # (1,C)
        "w2": to_taps(tp["conv2_w"], s2),
        "b2": b2.reshape(1, -1).astype(jnp.float32),
        "wdt": jnp.transpose(tp["ca_fc1_w"][:, :, 0, 0], (1, 0)).astype(jnp.float32),  # (C,mid)
        "wu": jnp.transpose(tp["ca_fc2_w"][:, :, 0, 0], (1, 0)).astype(jnp.float32),   # (mid,C)
        "wsa": jnp.transpose(tp["sa_w"][0], (1, 2, 0)).reshape(9, 1, 2).astype(jnp.float32),
    }
    return tp, kp


# ----------------------------------------------------------------------------
# Pure-JAX NCHW reference (same semantics as the PyTorch forward, eval mode).
# ----------------------------------------------------------------------------
def reference_nchw(x, tp):
    eps = 1e-5
    dn = ("NCHW", "OIHW", "NCHW")
    hi = jax.lax.Precision.HIGHEST

    def conv(v, w, pad):
        return jax.lax.conv_general_dilated(v, w, (1, 1), pad,
                                            dimension_numbers=dn, precision=hi)

    def bn(v, p):
        g, b, m, var = p
        sh = (1, -1, 1, 1)
        return ((v - m.reshape(sh)) / jnp.sqrt(var.reshape(sh) + eps)
                * g.reshape(sh) + b.reshape(sh))

    same = ((1, 1), (1, 1))
    out = jax.nn.relu(bn(conv(x, tp["conv1_w"], same), tp["bn1"]))
    out = bn(conv(out, tp["conv2_w"], same), tp["bn2"])

    # ChannelAttention
    def fc(y):
        return conv(jax.nn.relu(conv(y, tp["ca_fc1_w"], "VALID")),
                    tp["ca_fc2_w"], "VALID")

    avg = jnp.mean(out, axis=(2, 3), keepdims=True)
    mx = jnp.max(out, axis=(2, 3), keepdims=True)
    out = out * jax.nn.sigmoid(fc(avg) + fc(mx))

    # SpatialAttention
    sa_in = jnp.concatenate([jnp.mean(out, axis=1, keepdims=True),
                             jnp.max(out, axis=1, keepdims=True)], axis=1)
    out = out * jax.nn.sigmoid(conv(sa_in, tp["sa_w"], same))

    out = out + x                      # downsample=None -> identity residual
    return jax.nn.relu(out)


if __name__ == "__main__":
    # Identity residual needs inplanes == planes; ChannelAttention (reduction
    # 16) needs planes >= 16; planes=32 keeps >=32 active lanes per vreg.
    N, H, W = 2, 16, 16
    planes = 32
    inplanes = planes

    key = jax.random.PRNGKey(0)
    kx, kw = jax.random.split(key)
    x_nchw = jax.random.normal(kx, (N, inplanes, H, W), dtype=jnp.float32)
    torch_params, kern_params = make_params(kw, inplanes, planes)

    out = jax.jit(cbam_basic_block_pallas)(x_nchw, kern_params)
    jax.block_until_ready(out)

    ref = reference_nchw(x_nchw, torch_params)
    assert out.shape == ref.shape
    # bf16 conv operands (MXU-native) -> relaxed tolerance vs the f32 HIGHEST
    # precision reference.
    err_max = float(jnp.max(jnp.abs(out - ref)))
    rel_rms = float(jnp.sqrt(jnp.mean((out - ref) ** 2)
                             / (jnp.mean(ref ** 2) + 1e-12)))
    assert err_max < 0.5 and rel_rms < 0.05, (err_max, rel_rms)

    print("KERNEL_OK")
</pallas_src>

<mosaic_0001>
module attributes {stable_mosaic.version = 11 : i64} {
  func.func @_cbam_kernel(%arg0: i32, %arg1: memref<256x32xf32, #tpu.memory_space<vmem>>, %arg2: memref<9x32x32xbf16, #tpu.memory_space<vmem>>, %arg3: memref<1x32xf32, #tpu.memory_space<vmem>>, %arg4: memref<9x32x32xbf16, #tpu.memory_space<vmem>>, %arg5: memref<1x32xf32, #tpu.memory_space<vmem>>, %arg6: memref<32x2xf32, #tpu.memory_space<vmem>>, %arg7: memref<2x32xf32, #tpu.memory_space<vmem>>, %arg8: memref<9x1x2xf32, #tpu.memory_space<vmem>>, %arg9: memref<256x32xf32, #tpu.memory_space<vmem>>, %arg10: memref<304x32xf32, #tpu.memory_space<vmem>>, %arg11: memref<304x2xf32, #tpu.memory_space<vmem>>) attributes {dimension_semantics = [#tpu.dimension_semantics<parallel>], iteration_bounds = array<i64: 2>, scalar_prefetch = 0 : i64, scratch_operands = 2 : i64, tpu.core_type = #tpu.core_type<tc>, window_params = [{transform_indices = @transform_0, window_bounds = array<i64: 256, 32>}, {pipeline_mode = #tpu.pipeline_mode<synchronous>, transform_indices = @transform_1, window_bounds = array<i64: 9, 32, 32>}, {pipeline_mode = #tpu.pipeline_mode<synchronous>, transform_indices = @transform_2, window_bounds = array<i64: 1, 32>}, {pipeline_mode = #tpu.pipeline_mode<synchronous>, transform_indices = @transform_3, window_bounds = array<i64: 9, 32, 32>}, {pipeline_mode = #tpu.pipeline_mode<synchronous>, transform_indices = @transform_4, window_bounds = array<i64: 1, 32>}, {pipeline_mode = #tpu.pipeline_mode<synchronous>, transform_indices = @transform_5, window_bounds = array<i64: 32, 2>}, {pipeline_mode = #tpu.pipeline_mode<synchronous>, transform_indices = @transform_6, window_bounds = array<i64: 2, 32>}, {pipeline_mode = #tpu.pipeline_mode<synchronous>, transform_indices = @transform_7, window_bounds = array<i64: 9, 1, 2>}, {transform_indices = @transform_8, window_bounds = array<i64: 256, 32>}]} {
    %cst = arith.constant 0.000000e+00 : f32
    %0 = vector.broadcast %cst : f32 to vector<24x32xf32>
    %c0 = arith.constant 0 : index
    %c0_0 = arith.constant 0 : index
    %1 = vector.load %arg10[%c0, %c0_0] : memref<304x32xf32, #tpu.memory_space<vmem>>, vector<24x32xf32>
    tpu.vector_store %arg10[%c0, %c0_0], %0 {strides = array<i32>} : memref<304x32xf32, #tpu.memory_space<vmem>>, vector<24x32xf32>,
    %cst_1 = arith.constant 0.000000e+00 : f32
    %2 = vector.broadcast %cst_1 : f32 to vector<24x32xf32>
    %c280 = arith.constant 280 : index
    %c0_2 = arith.constant 0 : index
    %3 = vector.load %arg10[%c280, %c0_2] : memref<304x32xf32, #tpu.memory_space<vmem>>, vector<24x32xf32>
    tpu.vector_store %arg10[%c280, %c0_2], %2 {strides = array<i32>} : memref<304x32xf32, #tpu.memory_space<vmem>>, vector<24x32xf32>,
    %cst_3 = arith.constant 0.000000e+00 : f32
    %4 = vector.broadcast %cst_3 : f32 to vector<24x2xf32>
    %c0_4 = arith.constant 0 : index
    %c0_5 = arith.constant 0 : index
    %5 = vector.load %arg11[%c0_4, %c0_5] : memref<304x2xf32, #tpu.memory_space<vmem>>, vector<24x2xf32>
    tpu.vector_store %arg11[%c0_4, %c0_5], %4 {strides = array<i32>} : memref<304x2xf32, #tpu.memory_space<vmem>>, vector<24x2xf32>,
    %cst_6 = arith.constant 0.000000e+00 : f32
    %6 = vector.broadcast %cst_6 : f32 to vector<24x2xf32>
    %c280_7 = arith.constant 280 : index
    %c0_8 = arith.constant 0 : index
    %7 = vector.load %arg11[%c280_7, %c0_8] : memref<304x2xf32, #tpu.memory_space<vmem>>, vector<24x2xf32>
    tpu.vector_store %arg11[%c280_7, %c0_8], %6 {strides = array<i32>} : memref<304x2xf32, #tpu.memory_space<vmem>>, vector<24x2xf32>,
    %8 = tpu.iota {dimensions = array<i32: 0>} : vector<256x32xi32>
    %c16_i32 = arith.constant 16 : i32
    %c0_i32 = arith.constant 0 : i32
    %9 = arith.cmpi eq, %c16_i32, %c0_i32 : i32
    %c1_i32 = arith.constant 1 : i32
    %10 = arith.select %9, %c1_i32, %c16_i32 : i32
    %11 = vector.broadcast %10 : i32 to vector<256x32xi32>
    %12 = arith.remsi %8, %11 : vector<256x32xi32>
    %c0_i32_9 = arith.constant 0 : i32
    %13 = vector.broadcast %c0_i32_9 : i32 to vector<256x32xi32>
    %14 = arith.cmpi ne, %12, %13 : vector<256x32xi32>
    %c0_i32_10 = arith.constant 0 : i32
    %15 = vector.broadcast %c0_i32_10 : i32 to vector<256x32xi32>
    %16 = arith.cmpi slt, %12, %15 : vector<256x32xi32>
    %c0_i32_11 = arith.constant 0 : i32
    %17 = arith.cmpi slt, %10, %c0_i32_11 : i32
    %18 = vector.broadcast %17 : i1 to vector<256x32xi1>
    %19 = vector.broadcast %18 : vector<256x32xi1> to vector<256x32xi1>
    %20 = arith.xori %16, %19 : vector<256x32xi1>
    %21 = arith.andi %20, %14 : vector<256x32xi1>
    %22 = vector.broadcast %10 : i32 to vector<256x32xi32>
    %23 = arith.addi %12, %22 : vector<256x32xi32>
    %24 = arith.select %21, %23, %12 : vector<256x32xi1>, vector<256x32xi32>
    %c1_i32_12 = arith.constant 1 : i32
    %25 = vector.broadcast %c1_i32_12 : i32 to vector<256x32xi32>
    %26 = arith.cmpi sge, %24, %25 : vector<256x32xi32>
    %27 = arith.extui %26 : vector<256x32xi1> to vector<256x32xi32>
    %28 = arith.sitofp %27 : vector<256x32xi32> to vector<256x32xf32>
    %c14_i32 = arith.constant 14 : i32
    %29 = vector.broadcast %c14_i32 : i32 to vector<256x32xi32>
    %30 = arith.cmpi sle, %24, %29 : vector<256x32xi32>
    %31 = arith.extui %30 : vector<256x32xi1> to vector<256x32xi32>
    %32 = arith.sitofp %31 : vector<256x32xi32> to vector<256x32xf32>
    %33 = tpu.iota {dimensions = array<i32: 0>} : vector<256x2xi32>
    %c16_i32_13 = arith.constant 16 : i32
    %c0_i32_14 = arith.constant 0 : i32
    %34 = arith.cmpi eq, %c16_i32_13, %c0_i32_14 : i32
    %c1_i32_15 = arith.constant 1 : i32
    %35 = arith.select %34, %c1_i32_15, %c16_i32_13 : i32
    %36 = vector.broadcast %35 : i32 to vector<256x2xi32>
    %37 = arith.remsi %33, %36 : vector<256x2xi32>
    %c0_i32_16 = arith.constant 0 : i32
    %38 = vector.broadcast %c0_i32_16 : i32 to vector<256x2xi32>
    %39 = arith.cmpi ne, %37, %38 : vector<256x2xi32>
    %c0_i32_17 = arith.constant 0 : i32
    %40 = vector.broadcast %c0_i32_17 : i32 to vector<256x2xi32>
    %41 = arith.cmpi slt, %37, %40 : vector<256x2xi32>
    %c0_i32_18 = arith.constant 0 : i32
    %42 = arith.cmpi slt, %35, %c0_i32_18 : i32
    %43 = vector.broadcast %42 : i1 to vector<256x2xi1>
    %44 = vector.broadcast %43 : vector<256x2xi1> to vector<256x2xi1>
    %45 = arith.xori %41, %44 : vector<256x2xi1>
    %46 = arith.andi %45, %39 : vector<256x2xi1>
    %47 = vector.broadcast %35 : i32 to vector<256x2xi32>
    %48 = arith.addi %37, %47 : vector<256x2xi32>
    %49 = arith.select %46, %48, %37 : vector<256x2xi1>, vector<256x2xi32>
    %c1_i32_19 = arith.constant 1 : i32
    %50 = vector.broadcast %c1_i32_19 : i32 to vector<256x2xi32>
    %51 = arith.cmpi sge, %49, %50 : vector<256x2xi32>
    %52 = arith.extui %51 : vector<256x2xi1> to vector<256x2xi32>
    %53 = arith.sitofp %52 : vector<256x2xi32> to vector<256x2xf32>
    %c14_i32_20 = arith.constant 14 : i32
    %54 = vector.broadcast %c14_i32_20 : i32 to vector<256x2xi32>
    %55 = arith.cmpi sle, %49, %54 : vector<256x2xi32>
    %56 = arith.extui %55 : vector<256x2xi1> to vector<256x2xi32>
    %57 = arith.sitofp %56 : vector<256x2xi32> to vector<256x2xf32>
    %c0_21 = arith.constant 0 : index
    %c0_22 = arith.constant 0 : index
    %58 = vector.load %arg1[%c0_21, %c0_22] : memref<256x32xf32, #tpu.memory_space<vmem>>, vector<256x32xf32>
    %c24 = arith.constant 24 : index
    %c0_23 = arith.constant 0 : index
    %59 = vector.load %arg10[%c24, %c0_23] : memref<304x32xf32, #tpu.memory_space<vmem>>, vector<256x32xf32>
    tpu.vector_store %arg10[%c24, %c0_23], %58 {strides = array<i32>} : memref<304x32xf32, #tpu.memory_space<vmem>>, vector<256x32xf32>,
    %cst_24 = arith.constant 0.000000e+00 : f32
    %60 = vector.broadcast %cst_24 : f32 to vector<256x32xf32>
    %c7 = arith.constant 7 : index
    %c0_25 = arith.constant 0 : index
    %61 = vector.load %arg10[%c7, %c0_25] : memref<304x32xf32, #tpu.memory_space<vmem>>, vector<256x32xf32>
    %62 = arith.mulf %61, %28 : vector<256x32xf32>
    %63 = arith.truncf %62 : vector<256x32xf32> to vector<256x32xbf16>
    %c0_26 = arith.constant 0 : index
    %c0_27 = arith.constant 0 : index
    %c0_28 = arith.constant 0 : index
    %64 = vector.load %arg2[%c0_26, %c0_27, %c0_28] : memref<9x32x32xbf16, #tpu.memory_space<vmem>>, vector<1x32x32xbf16>
    %65 = vector.shape_cast %64 : vector<1x32x32xbf16> to vector<32x32xbf16>
    %cst_29 = arith.constant dense<0.000000e+00> : vector<256x32xf32>
    %66 = tpu.matmul %63, %65, %cst_29 {dimension_numbers = #tpu.dot_dimension_numbers<[1], [0], [0], [1], [0, 0, 1, 1], [], []>} : vector<256x32xbf16>, vector<32x32xbf16>, vector<256x32xf32> -> vector<256x32xf32>
    %67 = arith.addf %60, %66 : vector<256x32xf32>
    %c8 = arith.constant 8 : index
    %c0_30 = arith.constant 0 : index
    %68 = vector.load %arg10[%c8, %c0_30] : memref<304x32xf32, #tpu.memory_space<vmem>>, vector<256x32xf32>
    %69 = arith.truncf %68 : vector<256x32xf32> to vector<256x32xbf16>
    %c1 = arith.constant 1 : index
    %c0_31 = arith.constant 0 : index
    %c0_32 = arith.constant 0 : index
    %70 = vector.load %arg2[%c1, %c0_31, %c0_32] : memref<9x32x32xbf16, #tpu.memory_space<vmem>>, vector<1x32x32xbf16>
    %71 = vector.shape_cast %70 : vector<1x32x32xbf16> to vector<32x32xbf16>
    %cst_33 = arith.constant dense<0.000000e+00> : vector<256x32xf32>
    %72 = tpu.matmul %69, %71, %cst_33 {dimension_numbers = #tpu.dot_dimension_numbers<[1], [0], [0], [1], [0, 0, 1, 1], [], []>} : vector<256x32xbf16>, vector<32x32xbf16>, vector<256x32xf32> -> vector<256x32xf32>
    %73 = arith.addf %67, %72 : vector<256x32xf32>
    %c9 = arith.constant 9 : index
    %c0_34 = arith.constant 0 : index
    %74 = vector.load %arg10[%c9, %c0_34] : memref<304x32xf32, #tpu.memory_space<vmem>>, vector<256x32xf32>
    %75 = arith.mulf %74, %32 : vector<256x32xf32>
    %76 = arith.truncf %75 : vector<256x32xf32> to vector<256x32xbf16>
    %c2 = arith.constant 2 : index
    %c0_35 = arith.constant 0 : index
    %c0_36 = arith.constant 0 : index
    %77 = vector.load %arg2[%c2, %c0_35, %c0_36] : memref<9x32x32xbf16, #tpu.memory_space<vmem>>, vector<1x32x32xbf16>
    %78 = vector.shape_cast %77 : vector<1x32x32xbf16> to vector<32x32xbf16>
    %cst_37 = arith.constant dense<0.000000e+00> : vector<256x32xf32>
    %79 = tpu.matmul %76, %78, %cst_37 {dimension_numbers = #tpu.dot_dimension_numbers<[1], [0], [0], [1], [0, 0, 1, 1], [], []>} : vector<256x32xbf16>, vector<32x32xbf16>, vector<256x32xf32> -> vector<256x32xf32>
    %80 = arith.addf %73, %79 : vector<256x32xf32>
    %c23 = arith.constant 23 : index
    %c0_38 = arith.constant 0 : index
    %81 = vector.load %arg10[%c23, %c0_38] : memref<304x32xf32, #tpu.memory_space<vmem>>, vector<256x32xf32>
    %82 = arith.mulf %81, %28 : vector<256x32xf32>
    %83 = arith.truncf %82 : vector<256x32xf32> to vector<256x32xbf16>
    %c3 = arith.constant 3 : index
    %c0_39 = arith.constant 0 : index
    %c0_40 = arith.constant 0 : index
    %84 = vector.load %arg2[%c3, %c0_39, %c0_40] : memref<9x32x32xbf16, #tpu.memory_space<vmem>>, vector<1x32x32xbf16>
    %85 = vector.shape_cast %84 : vector<1x32x32xbf16> to vector<32x32xbf16>
    %cst_41 = arith.constant dense<0.000000e+00> : vector<256x32xf32>
    %86 = tpu.matmul %83, %85, %cst_41 {dimension_numbers = #tpu.dot_dimension_numbers<[1], [0], [0], [1], [0, 0, 1, 1], [], []>} : vector<256x32xbf16>, vector<32x32xbf16>, vector<256x32xf32> -> vector<256x32xf32>
    %87 = arith.addf %80, %86 : vector<256x32xf32>
    %c24_42 = arith.constant 24 : index
    %c0_43 = arith.constant 0 : index
    %88 = vector.load %arg10[%c24_42, %c0_43] : memref<304x32xf32, #tpu.memory_space<vmem>>, vector<256x32xf32>
    %89 = arith.truncf %88 : vector<256x32xf32> to vector<256x32xbf16>
    %c4 = arith.constant 4 : index
    %c0_44 = arith.constant 0 : index
    %c0_45 = arith.constant 0 : index
    %90 = vector.load %arg2[%c4, %c0_44, %c0_45] : memref<9x32x32xbf16, #tpu.memory_space<vmem>>, vector<1x32x32xbf16>
    %91 = vector.shape_cast %90 : vector<1x32x32xbf16> to vector<32x32xbf16>
    %cst_46 = arith.constant dense<0.000000e+00> : vector<256x32xf32>
    %92 = tpu.matmul %89, %91, %cst_46 {dimension_numbers = #tpu.dot_dimension_numbers<[1], [0], [0], [1], [0, 0, 1, 1], [], []>} : vector<256x32xbf16>, vector<32x32xbf16>, vector<256x32xf32> -> vector<256x32xf32>
    %93 = arith.addf %87, %92 : vector<256x32xf32>
    %c25 = arith.constant 25 : index
    %c0_47 = arith.constant 0 : index
    %94 = vector.load %arg10[%c25, %c0_47] : memref<304x32xf32, #tpu.memory_space<vmem>>, vector<256x32xf32>
    %95 = arith.mulf %94, %32 : vector<256x32xf32>
    %96 = arith.truncf %95 : vector<256x32xf32> to vector<256x32xbf16>
    %c5 = arith.constant 5 : index
    %c0_48 = arith.constant 0 : index
    %c0_49 = arith.constant 0 : index
    %97 = vector.load %arg2[%c5, %c0_48, %c0_49] : memref<9x32x32xbf16, #tpu.memory_space<vmem>>, vector<1x32x32xbf16>
    %98 = vector.shape_cast %97 : vector<1x32x32xbf16> to vector<32x32xbf16>
    %cst_50 = arith.constant dense<0.000000e+00> : vector<256x32xf32>
    %99 = tpu.matmul %96, %98, %cst_50 {dimension_numbers = #tpu.dot_dimension_numbers<[1], [0], [0], [1], [0, 0, 1, 1], [], []>} : vector<256x32xbf16>, vector<32x32xbf16>, vector<256x32xf32> -> vector<256x32xf32>
    %100 = arith.addf %93, %99 : vector<256x32xf32>
    %c39 = arith.constant 39 : index
    %c0_51 = arith.constant 0 : index
    %101 = vector.load %arg10[%c39, %c0_51] : memref<304x32xf32, #tpu.memory_space<vmem>>, vector<256x32xf32>
    %102 = arith.mulf %101, %28 : vector<256x32xf32>
    %103 = arith.truncf %102 : vector<256x32xf32> to vector<256x32xbf16>
    %c6 = arith.constant 6 : index
    %c0_52 = arith.constant 0 : index
    %c0_53 = arith.constant 0 : index
    %104 = vector.load %arg2[%c6, %c0_52, %c0_53] : memref<9x32x32xbf16, #tpu.memory_space<vmem>>, vector<1x32x32xbf16>
    %105 = vector.shape_cast %104 : vector<1x32x32xbf16> to vector<32x32xbf16>
    %cst_54 = arith.constant dense<0.000000e+00> : vector<256x32xf32>
    %106 = tpu.matmul %103, %105, %cst_54 {dimension_numbers = #tpu.dot_dimension_numbers<[1], [0], [0], [1], [0, 0, 1, 1], [], []>} : vector<256x32xbf16>, vector<32x32xbf16>, vector<256x32xf32> -> vector<256x32xf32>
    %107 = arith.addf %100, %106 : vector<256x32xf32>
    %c40 = arith.constant 40 : index
    %c0_55 = arith.constant 0 : index
    %108 = vector.load %arg10[%c40, %c0_55] : memref<304x32xf32, #tpu.memory_space<vmem>>, vector<256x32xf32>
    %109 = arith.truncf %108 : vector<256x32xf32> to vector<256x32xbf16>
    %c7_56 = arith.constant 7 : index
    %c0_57 = arith.constant 0 : index
    %c0_58 = arith.constant 0 : index
    %110 = vector.load %arg2[%c7_56, %c0_57, %c0_58] : memref<9x32x32xbf16, #tpu.memory_space<vmem>>, vector<1x32x32xbf16>
    %111 = vector.shape_cast %110 : vector<1x32x32xbf16> to vector<32x32xbf16>
    %cst_59 = arith.constant dense<0.000000e+00> : vector<256x32xf32>
    %112 = tpu.matmul %109, %111, %cst_59 {dimension_numbers = #tpu.dot_dimension_numbers<[1], [0], [0], [1], [0, 0, 1, 1], [], []>} : vector<256x32xbf16>, vector<32x32xbf16>, vector<256x32xf32> -> vector<256x32xf32>
    %113 = arith.addf %107, %112 : vector<256x32xf32>
    %c41 = arith.constant 41 : index
    %c0_60 = arith.constant 0 : index
    %114 = vector.load %arg10[%c41, %c0_60] : memref<304x32xf32, #tpu.memory_space<vmem>>, vector<256x32xf32>
    %115 = arith.mulf %114, %32 : vector<256x32xf32>
    %116 = arith.truncf %115 : vector<256x32xf32> to vector<256x32xbf16>
    %c8_61 = arith.constant 8 : index
    %c0_62 = arith.constant 0 : index
    %c0_63 = arith.constant 0 : index
    %117 = vector.load %arg2[%c8_61, %c0_62, %c0_63] : memref<9x32x32xbf16, #tpu.memory_space<vmem>>, vector<1x32x32xbf16>
    %118 = vector.shape_cast %117 : vector<1x32x32xbf16> to vector<32x32xbf16>
    %cst_64 = arith.constant dense<0.000000e+00> : vector<256x32xf32>
    %119 = tpu.matmul %116, %118, %cst_64 {dimension_numbers = #tpu.dot_dimension_numbers<[1], [0], [0], [1], [0, 0, 1, 1], [], []>} : vector<256x32xbf16>, vector<32x32xbf16>, vector<256x32xf32> -> vector<256x32xf32>
    %120 = arith.addf %113, %119 : vector<256x32xf32>
    %c0_65 = arith.constant 0 : index
    %c0_66 = arith.constant 0 : index
    %121 = vector.load %arg3[%c0_65, %c0_66] : memref<1x32xf32, #tpu.memory_space<vmem>>, vector<1x32xf32>
    %122 = vector.broadcast %121 : vector<1x32xf32> to vector<256x32xf32>
    %123 = arith.addf %120, %122 : vector<256x32xf32>
    %cst_67 = arith.constant 0.000000e+00 : f32
    %124 = vector.broadcast %cst_67 : f32 to vector<256x32xf32>
    %125 = arith.maximumf %123, %124 : vector<256x32xf32>
    %c24_68 = arith.constant 24 : index
    %c0_69 = arith.constant 0 : index
    %126 = vector.load %arg10[%c24_68, %c0_69] : memref<304x32xf32, #tpu.memory_space<vmem>>, vector<256x32xf32>
    tpu.vector_store %arg10[%c24_68, %c0_69], %125 {strides = array<i32>} : memref<304x32xf32, #tpu.memory_space<vmem>>, vector<256x32xf32>,
    %cst_70 = arith.constant 0.000000e+00 : f32
    %127 = vector.broadcast %cst_70 : f32 to vector<256x32xf32>
    %c7_71 = arith.constant 7 : index
    %c0_72 = arith.constant 0 : index
    %128 = vector.load %arg10[%c7_71, %c0_72] : memref<304x32xf32, #tpu.memory_space<vmem>>, vector<256x32xf32>
    %129 = arith.mulf %128, %28 : vector<256x32xf32>
    %130 = arith.truncf %129 : vector<256x32xf32> to vector<256x32xbf16>
    %c0_73 = arith.constant 0 : index
    %c0_74 = arith.constant 0 : index
    %c0_75 = arith.constant 0 : index
    %131 = vector.load %arg4[%c0_73, %c0_74, %c0_75] : memref<9x32x32xbf16, #tpu.memory_space<vmem>>, vector<1x32x32xbf16>
    %132 = vector.shape_cast %131 : vector<1x32x32xbf16> to vector<32x32xbf16>
    %cst_76 = arith.constant dense<0.000000e+00> : vector<256x32xf32>
    %133 = tpu.matmul %130, %132, %cst_76 {dimension_numbers = #tpu.dot_dimension_numbers<[1], [0], [0], [1], [0, 0, 1, 1], [], []>} : vector<256x32xbf16>, vector<32x32xbf16>, vector<256x32xf32> -> vector<256x32xf32>
    %134 = arith.addf %127, %133 : vector<256x32xf32>
    %c8_77 = arith.constant 8 : index
    %c0_78 = arith.constant 0 : index
    %135 = vector.load %arg10[%c8_77, %c0_78] : memref<304x32xf32, #tpu.memory_space<vmem>>, vector<256x32xf32>
    %136 = arith.truncf %135 : vector<256x32xf32> to vector<256x32xbf16>
    %c1_79 = arith.constant 1 : index
    %c0_80 = arith.constant 0 : index
    %c0_81 = arith.constant 0 : index
    %137 = vector.load %arg4[%c1_79, %c0_80, %c0_81] : memref<9x32x32xbf16, #tpu.memory_space<vmem>>, vector<1x32x32xbf16>
    %138 = vector.shape_cast %137 : vector<1x32x32xbf16> to vector<32x32xbf16>
    %cst_82 = arith.constant dense<0.000000e+00> : vector<256x32xf32>
    %139 = tpu.matmul %136, %138, %cst_82 {dimension_numbers = #tpu.dot_dimension_numbers<[1], [0], [0], [1], [0, 0, 1, 1], [], []>} : vector<256x32xbf16>, vector<32x32xbf16>, vector<256x32xf32> -> vector<256x32xf32>
    %140 = arith.addf %134, %139 : vector<256x32xf32>
    %c9_83 = arith.constant 9 : index
    %c0_84 = arith.constant 0 : index
    %141 = vector.load %arg10[%c9_83, %c0_84] : memref<304x32xf32, #tpu.memory_space<vmem>>, vector<256x32xf32>
    %142 = arith.mulf %141, %32 : vector<256x32xf32>
    %143 = arith.truncf %142 : vector<256x32xf32> to vector<256x32xbf16>
    %c2_85 = arith.constant 2 : index
    %c0_86 = arith.constant 0 : index
    %c0_87 = arith.constant 0 : index
    %144 = vector.load %arg4[%c2_85, %c0_86, %c0_87] : memref<9x32x32xbf16, #tpu.memory_space<vmem>>, vector<1x32x32xbf16>
    %145 = vector.shape_cast %144 : vector<1x32x32xbf16> to vector<32x32xbf16>
    %cst_88 = arith.constant dense<0.000000e+00> : vector<256x32xf32>
    %146 = tpu.matmul %143, %145, %cst_88 {dimension_numbers = #tpu.dot_dimension_numbers<[1], [0], [0], [1], [0, 0, 1, 1], [], []>} : vector<256x32xbf16>, vector<32x32xbf16>, vector<256x32xf32> -> vector<256x32xf32>
    %147 = arith.addf %140, %146 : vector<256x32xf32>
    %c23_89 = arith.constant 23 : index
    %c0_90 = arith.constant 0 : index
    %148 = vector.load %arg10[%c23_89, %c0_90] : memref<304x32xf32, #tpu.memory_space<vmem>>, vector<256x32xf32>
    %149 = arith.mulf %148, %28 : vector<256x32xf32>
    %150 = arith.truncf %149 : vector<256x32xf32> to vector<256x32xbf16>
    %c3_91 = arith.constant 3 : index
    %c0_92 = arith.constant 0 : index
    %c0_93 = arith.constant 0 : index
    %151 = vector.load %arg4[%c3_91, %c0_92, %c0_93] : memref<9x32x32xbf16, #tpu.memory_space<vmem>>, vector<1x32x32xbf16>
    %152 = vector.shape_cast %151 : vector<1x32x32xbf16> to vector<32x32xbf16>
    %cst_94 = arith.constant dense<0.000000e+00> : vector<256x32xf32>
    %153 = tpu.matmul %150, %152, %cst_94 {dimension_numbers = #tpu.dot_dimension_numbers<[1], [0], [0], [1], [0, 0, 1, 1], [], []>} : vector<256x32xbf16>, vector<32x32xbf16>, vector<256x32xf32> -> vector<256x32xf32>
    %154 = arith.addf %147, %153 : vector<256x32xf32>
    %c24_95 = arith.constant 24 : index
    %c0_96 = arith.constant 0 : index
    %155 = vector.load %arg10[%c24_95, %c0_96] : memref<304x32xf32, #tpu.memory_space<vmem>>, vector<256x32xf32>
    %156 = arith.truncf %155 : vector<256x32xf32> to vector<256x32xbf16>
    %c4_97 = arith.constant 4 : index
    %c0_98 = arith.constant 0 : index
    %c0_99 = arith.constant 0 : index
    %157 = vector.load %arg4[%c4_97, %c0_98, %c0_99] : memref<9x32x32xbf16, #tpu.memory_space<vmem>>, vector<1x32x32xbf16>
    %158 = vector.shape_cast %157 : vector<1x32x32xbf16> to vector<32x32xbf16>
    %cst_100 = arith.constant dense<0.000000e+00> : vector<256x32xf32>
    %159 = tpu.matmul %156, %158, %cst_100 {dimension_numbers = #tpu.dot_dimension_numbers<[1], [0], [0], [1], [0, 0, 1, 1], [], []>} : vector<256x32xbf16>, vector<32x32xbf16>, vector<256x32xf32> -> vector<256x32xf32>
    %160 = arith.addf %154, %159 : vector<256x32xf32>
    %c25_101 = arith.constant 25 : index
    %c0_102 = arith.constant 0 : index
    %161 = vector.load %arg10[%c25_101, %c0_102] : memref<304x32xf32, #tpu.memory_space<vmem>>, vector<256x32xf32>
    %162 = arith.mulf %161, %32 : vector<256x32xf32>
    %163 = arith.truncf %162 : vector<256x32xf32> to vector<256x32xbf16>
    %c5_103 = arith.constant 5 : index
    %c0_104 = arith.constant 0 : index
    %c0_105 = arith.constant 0 : index
    %164 = vector.load %arg4[%c5_103, %c0_104, %c0_105] : memref<9x32x32xbf16, #tpu.memory_space<vmem>>, vector<1x32x32xbf16>
    %165 = vector.shape_cast %164 : vector<1x32x32xbf16> to vector<32x32xbf16>
    %cst_106 = arith.constant dense<0.000000e+00> : vector<256x32xf32>
    %166 = tpu.matmul %163, %165, %cst_106 {dimension_numbers = #tpu.dot_dimension_numbers<[1], [0], [0], [1], [0, 0, 1, 1], [], []>} : vector<256x32xbf16>, vector<32x32xbf16>, vector<256x32xf32> -> vector<256x32xf32>
    %167 = arith.addf %160, %166 : vector<256x32xf32>
    %c39_107 = arith.constant 39 : index
    %c0_108 = arith.constant 0 : index
    %168 = vector.load %arg10[%c39_107, %c0_108] : memref<304x32xf32, #tpu.memory_space<vmem>>, vector<256x32xf32>
    %169 = arith.mulf %168, %28 : vector<256x32xf32>
    %170 = arith.truncf %169 : vector<256x32xf32> to vector<256x32xbf16>
    %c6_109 = arith.constant 6 : index
    %c0_110 = arith.constant 0 : index
    %c0_111 = arith.constant 0 : index
    %171 = vector.load %arg4[%c6_109, %c0_110, %c0_111] : memref<9x32x32xbf16, #tpu.memory_space<vmem>>, vector<1x32x32xbf16>
    %172 = vector.shape_cast %171 : vector<1x32x32xbf16> to vector<32x32xbf16>
    %cst_112 = arith.constant dense<0.000000e+00> : vector<256x32xf32>
    %173 = tpu.matmul %170, %172, %cst_112 {dimension_numbers = #tpu.dot_dimension_numbers<[1], [0], [0], [1], [0, 0, 1, 1], [], []>} : vector<256x32xbf16>, vector<32x32xbf16>, vector<256x32xf32> -> vector<256x32xf32>
    %174 = arith.addf %167, %173 : vector<256x32xf32>
    %c40_113 = arith.constant 40 : index
    %c0_114 = arith.constant 0 : index
    %175 = vector.load %arg10[%c40_113, %c0_114] : memref<304x32xf32, #tpu.memory_space<vmem>>, vector<256x32xf32>
    %176 = arith.truncf %175 : vector<256x32xf32> to vector<256x32xbf16>
    %c7_115 = arith.constant 7 : index
    %c0_116 = arith.constant 0 : index
    %c0_117 = arith.constant 0 : index
    %177 = vector.load %arg4[%c7_115, %c0_116, %c0_117] : memref<9x32x32xbf16, #tpu.memory_space<vmem>>, vector<1x32x32xbf16>
    %178 = vector.shape_cast %177 : vector<1x32x32xbf16> to vector<32x32xbf16>
    %cst_118 = arith.constant dense<0.000000e+00> : vector<256x32xf32>
    %179 = tpu.matmul %176, %178, %cst_118 {dimension_numbers = #tpu.dot_dimension_numbers<[1], [0], [0], [1], [0, 0, 1, 1], [], []>} : vector<256x32xbf16>, vector<32x32xbf16>, vector<256x32xf32> -> vector<256x32xf32>
    %180 = arith.addf %174, %179 : vector<256x32xf32>
    %c41_119 = arith.constant 41 : index
    %c0_120 = arith.constant 0 : index
    %181 = vector.load %arg10[%c41_119, %c0_120] : memref<304x32xf32, #tpu.memory_space<vmem>>, vector<256x32xf32>
    %182 = arith.mulf %181, %32 : vector<256x32xf32>
    %183 = arith.truncf %182 : vector<256x32xf32> to vector<256x32xbf16>
    %c8_121 = arith.constant 8 : index
    %c0_122 = arith.constant 0 : index
    %c0_123 = arith.constant 0 : index
    %184 = vector.load %arg4[%c8_121, %c0_122, %c0_123] : memref<9x32x32xbf16, #tpu.memory_space<vmem>>, vector<1x32x32xbf16>
    %185 = vector.shape_cast %184 : vector<1x32x32xbf16> to vector<32x32xbf16>
    %cst_124 = arith.constant dense<0.000000e+00> : vector<256x32xf32>
    %186 = tpu.matmul %183, %185, %cst_124 {dimension_numbers = #tpu.dot_dimension_numbers<[1], [0], [0], [1], [0, 0, 1, 1], [], []>} : vector<256x32xbf16>, vector<32x32xbf16>, vector<256x32xf32> -> vector<256x32xf32>
    %187 = arith.addf %180, %186 : vector<256x32xf32>
    %c0_125 = arith.constant 0 : index
    %c0_126 = arith.constant 0 : index
    %188 = vector.load %arg5[%c0_125, %c0_126] : memref<1x32xf32, #tpu.memory_space<vmem>>, vector<1x32xf32>
    %189 = vector.broadcast %188 : vector<1x32xf32> to vector<256x32xf32>
    %190 = arith.addf %187, %189 : vector<256x32xf32>
    %cst_127 = arith.constant dense<0.000000e+00> : vector<32xf32>
    %191 = vector.multi_reduction <add>, %190, %cst_127 [0] : vector<256x32xf32> to vector<32xf32>
    %192 = vector.shape_cast %191 : vector<32xf32> to vector<1x32xf32>
    %cst_128 = arith.constant 2.560000e+02 : f32
    %193 = vector.broadcast %cst_128 : f32 to vector<1x32xf32>
    %194 = arith.divf %192, %193 : vector<1x32xf32>
    %cst_129 = arith.constant dense<0xFF800000> : vector<32xf32>
    %195 = vector.multi_reduction <maximumf>, %190, %cst_129 [0] : vector<256x32xf32> to vector<32xf32>
    %196 = vector.shape_cast %195 : vector<32xf32> to vector<1x32xf32>
    %197 = tpu.concatenate %194, %196 in 0 : vector<1x32xf32>, vector<1x32xf32> -> vector<2x32xf32>
    %c0_130 = arith.constant 0 : index
    %c0_131 = arith.constant 0 : index
    %198 = vector.load %arg6[%c0_130, %c0_131] : memref<32x2xf32, #tpu.memory_space<vmem>>, vector<32x2xf32>
    %cst_132 = arith.constant dense<0.000000e+00> : vector<2x2xf32>
    %199 = tpu.matmul %197, %198, %cst_132 {dimension_numbers = #tpu.dot_dimension_numbers<[1], [0], [0], [1], [0, 0, 1, 1], [], []>} : vector<2x32xf32>, vector<32x2xf32>, vector<2x2xf32> -> vector<2x2xf32>
    %cst_133 = arith.constant 0.000000e+00 : f32
    %200 = vector.broadcast %cst_133 : f32 to vector<2x2xf32>
    %201 = arith.maximumf %199, %200 : vector<2x2xf32>
    %c0_134 = arith.constant 0 : index
    %c0_135 = arith.constant 0 : index
    %202 = vector.load %arg7[%c0_134, %c0_135] : memref<2x32xf32, #tpu.memory_space<vmem>>, vector<2x32xf32>
    %cst_136 = arith.constant dense<0.000000e+00> : vector<2x32xf32>
    %203 = tpu.matmul %201, %202, %cst_136 {dimension_numbers = #tpu.dot_dimension_numbers<[1], [0], [0], [1], [0, 0, 1, 1], [], []>} : vector<2x2xf32>, vector<2x32xf32>, vector<2x32xf32> -> vector<2x32xf32>
    %204 = vector.extract_strided_slice %203 {offsets = [0, 0], sizes = [1, 32], strides = [1, 1]} : vector<2x32xf32> to vector<1x32xf32>
    %205 = vector.extract_strided_slice %203 {offsets = [1, 0], sizes = [1, 32], strides = [1, 1]} : vector<2x32xf32> to vector<1x32xf32>
    %206 = arith.addf %204, %205 : vector<1x32xf32>
    %207 = arith.negf %206 : vector<1x32xf32>
    %208 = math.exp %207 : vector<1x32xf32>
    %cst_137 = arith.constant 1.000000e+00 : f32
    %209 = vector.broadcast %cst_137 : f32 to vector<1x32xf32>
    %210 = arith.addf %209, %208 : vector<1x32xf32>
    %211 = arith.divf %209, %210 : vector<1x32xf32>
    %212 = vector.broadcast %211 : vector<1x32xf32> to vector<256x32xf32>
    %213 = arith.mulf %190, %212 : vector<256x32xf32>
    %cst_138 = arith.constant dense<0.000000e+00> : vector<256xf32>
    %214 = vector.multi_reduction <add>, %213, %cst_138 [1] : vector<256x32xf32> to vector<256xf32>
    %215 = vector.shape_cast %214 : vector<256xf32> to vector<256x1xf32>
    %cst_139 = arith.constant 3.200000e+01 : f32
    %216 = vector.broadcast %cst_139 : f32 to vector<256x1xf32>
    %217 = arith.divf %215, %216 : vector<256x1xf32>
    %cst_140 = arith.constant dense<0xFF800000> : vector<256xf32>
    %218 = vector.multi_reduction <maximumf>, %213, %cst_140 [1] : vector<256x32xf32> to vector<256xf32>
    %219 = vector.shape_cast %218 : vector<256xf32> to vector<256x1xf32>
    %220 = tpu.concatenate %217, %219 in 1 : vector<256x1xf32>, vector<256x1xf32> -> vector<256x2xf32>
    %c24_141 = arith.constant 24 : index
    %c0_142 = arith.constant 0 : index
    %221 = vector.load %arg11[%c24_141, %c0_142] : memref<304x2xf32, #tpu.memory_space<vmem>>, vector<256x2xf32>
    tpu.vector_store %arg11[%c24_141, %c0_142], %220 {strides = array<i32>} : memref<304x2xf32, #tpu.memory_space<vmem>>, vector<256x2xf32>,
    %cst_143 = arith.constant 0.000000e+00 : f32
    %222 = vector.broadcast %cst_143 : f32 to vector<256x2xf32>
    %c7_144 = arith.constant 7 : index
    %c0_145 = arith.constant 0 : index
    %223 = vector.load %arg11[%c7_144, %c0_145] : memref<304x2xf32, #tpu.memory_space<vmem>>, vector<256x2xf32>
    %224 = arith.mulf %223, %53 : vector<256x2xf32>
    %c0_146 = arith.constant 0 : index
    %c0_147 = arith.constant 0 : index
    %c0_148 = arith.constant 0 : index
    %225 = vector.load %arg8[%c0_146, %c0_147, %c0_148] : memref<9x1x2xf32, #tpu.memory_space<vmem>>, vector<1x1x2xf32>
    %226 = vector.shape_cast %225 : vector<1x1x2xf32> to vector<1x2xf32>
    %227 = vector.broadcast %226 : vector<1x2xf32> to vector<256x2xf32>
    %228 = arith.mulf %224, %227 : vector<256x2xf32>
    %229 = arith.addf %222, %228 : vector<256x2xf32>
    %c8_149 = arith.constant 8 : index
    %c0_150 = arith.constant 0 : index
    %230 = vector.load %arg11[%c8_149, %c0_150] : memref<304x2xf32, #tpu.memory_space<vmem>>, vector<256x2xf32>
    %c1_151 = arith.constant 1 : index
    %c0_152 = arith.constant 0 : index
    %c0_153 = arith.constant 0 : index
    %231 = vector.load %arg8[%c1_151, %c0_152, %c0_153] : memref<9x1x2xf32, #tpu.memory_space<vmem>>, vector<1x1x2xf32>
    %232 = vector.shape_cast %231 : vector<1x1x2xf32> to vector<1x2xf32>
    %233 = vector.broadcast %232 : vector<1x2xf32> to vector<256x2xf32>
    %234 = arith.mulf %230, %233 : vector<256x2xf32>
    %235 = arith.addf %229, %234 : vector<256x2xf32>
    %c9_154 = arith.constant 9 : index
    %c0_155 = arith.constant 0 : index
    %236 = vector.load %arg11[%c9_154, %c0_155] : memref<304x2xf32, #tpu.memory_space<vmem>>, vector<256x2xf32>
    %237 = arith.mulf %236, %57 : vector<256x2xf32>
    %c2_156 = arith.constant 2 : index
    %c0_157 = arith.constant 0 : index
    %c0_158 = arith.constant 0 : index
    %238 = vector.load %arg8[%c2_156, %c0_157, %c0_158] : memref<9x1x2xf32, #tpu.memory_space<vmem>>, vector<1x1x2xf32>
    %239 = vector.shape_cast %238 : vector<1x1x2xf32> to vector<1x2xf32>
    %240 = vector.broadcast %239 : vector<1x2xf32> to vector<256x2xf32>
    %241 = arith.mulf %237, %240 : vector<256x2xf32>
    %242 = arith.addf %235, %241 : vector<256x2xf32>
    %c23_159 = arith.constant 23 : index
    %c0_160 = arith.constant 0 : index
    %243 = vector.load %arg11[%c23_159, %c0_160] : memref<304x2xf32, #tpu.memory_space<vmem>>, vector<256x2xf32>
    %244 = arith.mulf %243, %53 : vector<256x2xf32>
    %c3_161 = arith.constant 3 : index
    %c0_162 = arith.constant 0 : index
    %c0_163 = arith.constant 0 : index
    %245 = vector.load %arg8[%c3_161, %c0_162, %c0_163] : memref<9x1x2xf32, #tpu.memory_space<vmem>>, vector<1x1x2xf32>
    %246 = vector.shape_cast %245 : vector<1x1x2xf32> to vector<1x2xf32>
    %247 = vector.broadcast %246 : vector<1x2xf32> to vector<256x2xf32>
    %248 = arith.mulf %244, %247 : vector<256x2xf32>
    %249 = arith.addf %242, %248 : vector<256x2xf32>
    %c24_164 = arith.constant 24 : index
    %c0_165 = arith.constant 0 : index
    %250 = vector.load %arg11[%c24_164, %c0_165] : memref<304x2xf32, #tpu.memory_space<vmem>>, vector<256x2xf32>
    %c4_166 = arith.constant 4 : index
    %c0_167 = arith.constant 0 : index
    %c0_168 = arith.constant 0 : index
    %251 = vector.load %arg8[%c4_166, %c0_167, %c0_168] : memref<9x1x2xf32, #tpu.memory_space<vmem>>, vector<1x1x2xf32>
    %252 = vector.shape_cast %251 : vector<1x1x2xf32> to vector<1x2xf32>
    %253 = vector.broadcast %252 : vector<1x2xf32> to vector<256x2xf32>
    %254 = arith.mulf %250, %253 : vector<256x2xf32>
    %255 = arith.addf %249, %254 : vector<256x2xf32>
    %c25_169 = arith.constant 25 : index
    %c0_170 = arith.constant 0 : index
    %256 = vector.load %arg11[%c25_169, %c0_170] : memref<304x2xf32, #tpu.memory_space<vmem>>, vector<256x2xf32>
    %257 = arith.mulf %256, %57 : vector<256x2xf32>
    %c5_171 = arith.constant 5 : index
    %c0_172 = arith.constant 0 : index
    %c0_173 = arith.constant 0 : index
    %258 = vector.load %arg8[%c5_171, %c0_172, %c0_173] : memref<9x1x2xf32, #tpu.memory_space<vmem>>, vector<1x1x2xf32>
    %259 = vector.shape_cast %258 : vector<1x1x2xf32> to vector<1x2xf32>
    %260 = vector.broadcast %259 : vector<1x2xf32> to vector<256x2xf32>
    %261 = arith.mulf %257, %260 : vector<256x2xf32>
    %262 = arith.addf %255, %261 : vector<256x2xf32>
    %c39_174 = arith.constant 39 : index
    %c0_175 = arith.constant 0 : index
    %263 = vector.load %arg11[%c39_174, %c0_175] : memref<304x2xf32, #tpu.memory_space<vmem>>, vector<256x2xf32>
    %264 = arith.mulf %263, %53 : vector<256x2xf32>
    %c6_176 = arith.constant 6 : index
    %c0_177 = arith.constant 0 : index
    %c0_178 = arith.constant 0 : index
    %265 = vector.load %arg8[%c6_176, %c0_177, %c0_178] : memref<9x1x2xf32, #tpu.memory_space<vmem>>, vector<1x1x2xf32>
    %266 = vector.shape_cast %265 : vector<1x1x2xf32> to vector<1x2xf32>
    %267 = vector.broadcast %266 : vector<1x2xf32> to vector<256x2xf32>
    %268 = arith.mulf %264, %267 : vector<256x2xf32>
    %269 = arith.addf %262, %268 : vector<256x2xf32>
    %c40_179 = arith.constant 40 : index
    %c0_180 = arith.constant 0 : index
    %270 = vector.load %arg11[%c40_179, %c0_180] : memref<304x2xf32, #tpu.memory_space<vmem>>, vector<256x2xf32>
    %c7_181 = arith.constant 7 : index
    %c0_182 = arith.constant 0 : index
    %c0_183 = arith.constant 0 : index
    %271 = vector.load %arg8[%c7_181, %c0_182, %c0_183] : memref<9x1x2xf32, #tpu.memory_space<vmem>>, vector<1x1x2xf32>
    %272 = vector.shape_cast %271 : vector<1x1x2xf32> to vector<1x2xf32>
    %273 = vector.broadcast %272 : vector<1x2xf32> to vector<256x2xf32>
    %274 = arith.mulf %270, %273 : vector<256x2xf32>
    %275 = arith.addf %269, %274 : vector<256x2xf32>
    %c41_184 = arith.constant 41 : index
    %c0_185 = arith.constant 0 : index
    %276 = vector.load %arg11[%c41_184, %c0_185] : memref<304x2xf32, #tpu.memory_space<vmem>>, vector<256x2xf32>
    %277 = arith.mulf %276, %57 : vector<256x2xf32>
    %c8_186 = arith.constant 8 : index
    %c0_187 = arith.constant 0 : index
    %c0_188 = arith.constant 0 : index
    %278 = vector.load %arg8[%c8_186, %c0_187, %c0_188] : memref<9x1x2xf32, #tpu.memory_space<vmem>>, vector<1x1x2xf32>
    %279 = vector.shape_cast %278 : vector<1x1x2xf32> to vector<1x2xf32>
    %280 = vector.broadcast %279 : vector<1x2xf32> to vector<256x2xf32>
    %281 = arith.mulf %277, %280 : vector<256x2xf32>
    %282 = arith.addf %275, %281 : vector<256x2xf32>
    %cst_189 = arith.constant dense<0.000000e+00> : vector<256xf32>
    %283 = vector.multi_reduction <add>, %282, %cst_189 [1] : vector<256x2xf32> to vector<256xf32>
    %284 = vector.shape_cast %283 : vector<256xf32> to vector<256x1xf32>
    %285 = arith.negf %284 : vector<256x1xf32>
    %286 = math.exp %285 : vector<256x1xf32>
    %cst_190 = arith.constant 1.000000e+00 : f32
    %287 = vector.broadcast %cst_190 : f32 to vector<256x1xf32>
    %288 = arith.addf %287, %286 : vector<256x1xf32>
    %289 = arith.divf %287, %288 : vector<256x1xf32>
    %290 = vector.broadcast %289 : vector<256x1xf32> to vector<256x32xf32>
    %291 = arith.mulf %213, %290 : vector<256x32xf32>
    %292 = arith.addf %291, %58 : vector<256x32xf32>
    %cst_191 = arith.constant 0.000000e+00 : f32
    %293 = vector.broadcast %cst_191 : f32 to vector<256x32xf32>
    %294 = arith.maximumf %292, %293 : vector<256x32xf32>
    %c0_192 = arith.constant 0 : index
    %c0_193 = arith.constant 0 : index
    %295 = vector.load %arg9[%c0_192, %c0_193] : memref<256x32xf32, #tpu.memory_space<vmem>>, vector<256x32xf32>
    tpu.vector_store %arg9[%c0_192, %c0_193], %294 {strides = array<i32>} : memref<256x32xf32, #tpu.memory_space<vmem>>, vector<256x32xf32>,
    return
  }
  func.func @transform_0(%arg0: i32) -> (i32, i32) {
    %c0_i32 = arith.constant 0 : i32
    %c0_i32_0 = arith.constant 0 : i32
    return %arg0, %c0_i32 : i32, i32
  }
  func.func @transform_1(%arg0: i32) -> (i32, i32, i32) {
    %c0_i32 = arith.constant 0 : i32
    %c0_i32_0 = arith.constant 0 : i32
    %c0_i32_1 = arith.constant 0 : i32
    %c0_i32_2 = arith.constant 0 : i32
    return %c0_i32, %c0_i32_0, %c0_i32_1 : i32, i32, i32
  }
  func.func @transform_2(%arg0: i32) -> (i32, i32) {
    %c0_i32 = arith.constant 0 : i32
    %c0_i32_0 = arith.constant 0 : i32
    %c0_i32_1 = arith.constant 0 : i32
    return %c0_i32, %c0_i32_0 : i32, i32
  }
  func.func @transform_3(%arg0: i32) -> (i32, i32, i32) {
    %c0_i32 = arith.constant 0 : i32
    %c0_i32_0 = arith.constant 0 : i32
    %c0_i32_1 = arith.constant 0 : i32
    %c0_i32_2 = arith.constant 0 : i32
    return %c0_i32, %c0_i32_0, %c0_i32_1 : i32, i32, i32
  }
  func.func @transform_4(%arg0: i32) -> (i32, i32) {
    %c0_i32 = arith.constant 0 : i32
    %c0_i32_0 = arith.constant 0 : i32
    %c0_i32_1 = arith.constant 0 : i32
    return %c0_i32, %c0_i32_0 : i32, i32
  }
  func.func @transform_5(%arg0: i32) -> (i32, i32) {
    %c0_i32 = arith.constant 0 : i32
    %c0_i32_0 = arith.constant 0 : i32
    %c0_i32_1 = arith.constant 0 : i32
    return %c0_i32, %c0_i32_0 : i32, i32
  }
  func.func @transform_6(%arg0: i32) -> (i32, i32) {
    %c0_i32 = arith.constant 0 : i32
    %c0_i32_0 = arith.constant 0 : i32
    %c0_i32_1 = arith.constant 0 : i32
    return %c0_i32, %c0_i32_0 : i32, i32
  }
  func.func @transform_7(%arg0: i32) -> (i32, i32, i32) {
    %c0_i32 = arith.constant 0 : i32
    %c0_i32_0 = arith.constant 0 : i32
    %c0_i32_1 = arith.constant 0 : i32
    %c0_i32_2 = arith.constant 0 : i32
    return %c0_i32, %c0_i32_0, %c0_i32_1 : i32, i32, i32
  }
  func.func @transform_8(%arg0: i32) -> (i32, i32) {
    %c0_i32 = arith.constant 0 : i32
    %c0_i32_0 = arith.constant 0 : i32
    return %arg0, %c0_i32 : i32, i32
  }
}

</mosaic_0001>

<llo_original>
// kernel: cbam_basic_block_pallas.1
$region0: #{cbam_basic_block_pallas.1}
  #allocation0 [shape = 'u32[]', space=smem, size = 0x4, offset = 0x4, fixed_abs, tag = 'smem constant byte address 0x4 - core index']
  #allocation1 [shape = 'u32[144,128]{1,0:T(1,128)}', space=vmem, size = 0x12000, scoped, tag = 'internal scratch']
  #allocation2 [shape = 'f32[304,32]{1,0:T(8,128)}', space=vmem, size = 0x26000, scoped, tag = 'scratch operand']
  #allocation3 [shape = 'f32[304,2]{1,0:T(8,128)}', space=vmem, size = 0x26000, scoped, tag = 'scratch operand']
  %s0 = inlined_call_operand.vmem [shape: f32[512,32], index: 0, kind: input, shape index: {}, may-alias: {0,8}]
  %s1 = inlined_call_operand.vmem [shape: bf16[9,32,32], index: 1, kind: input, shape index: {}]
  %s2 = inlined_call_operand.vmem [shape: f32[1,32], index: 2, kind: input, shape index: {}]
  %s3 = inlined_call_operand.vmem [shape: bf16[9,32,32], index: 3, kind: input, shape index: {}]
  %s4 = inlined_call_operand.vmem [shape: f32[1,32], index: 4, kind: input, shape index: {}]
  %s5 = inlined_call_operand.vmem [shape: f32[32,2], index: 5, kind: input, shape index: {}]
  %s6 = inlined_call_operand.vmem [shape: f32[2,32], index: 6, kind: input, shape index: {}]
  %s7 = inlined_call_operand.vmem [shape: f32[9,1,2], index: 7, kind: input, shape index: {}]
  %s8 = inlined_call_operand.vmem [shape: f32[512,32], index: 8, kind: output, shape index: {}, may-alias: {0,8}]
  %s9 = sld [smem:[#allocation0]]
  $region65: #{cbam_basic_block_pallas.1} parent=0
    _
  %s11 = ssub.s32 1, %s9
  %s12 = scalar_select 0, %s11, %s9
  loop: start=0, step=1, limit=4
  $region2: #{cbam_basic_block_pallas.1} parent=0 // loop_pre_header
    _
  $region3: #{cbam_basic_block_pallas.1} parent=0 // loop_header
    %s14 = sphi 0, %s18
    %p15 = scmp.ge.s32.totalorder %s14, 4
    %s24 = sphi 0, %s26
    %s27 = sphi 0, %s24
    %s28 = sphi 0, %s27
    %s44 = sphi 0, %s28
    %s48 = sphi 0, %s48
    %s50 = sphi 0, %s48
    %s51 = sphi 0, %s50
    %s65 = sphi 0, %s51
    %s69 = sphi 0, %s69
    %s71 = sphi 0, %s69
    %s72 = sphi 0, %s71
    %s86 = sphi 0, %s72
    %s90 = sphi 0, %s90
    %s92 = sphi 0, %s90
    %s93 = sphi 0, %s92
    %s107 = sphi 0, %s93
    %s111 = sphi 0, %s111
    %s113 = sphi 0, %s111
    %s114 = sphi 0, %s113
    %s128 = sphi 0, %s114
    %s132 = sphi 0, %s132
    %s134 = sphi 0, %s132
    %s135 = sphi 0, %s134
    %s149 = sphi 0, %s135
    %s153 = sphi 0, %s153
    %s155 = sphi 0, %s153
    %s156 = sphi 0, %s155
    %s170 = sphi 0, %s156
    %s174 = sphi 0, %s174
    %s176 = sphi 0, %s174
    %s177 = sphi 0, %s176
    %s191 = sphi 0, %s177
    %s197 = sphi 0, %s199
    %s200 = sphi 0, %s197
    %s201 = sphi 0, %s200
    %s217 = sphi 0, %s201
  $region4: #{cbam_basic_block_pallas.1} parent=0 // loop_header_branch
    %17 = sbr.rel (%p15) target = $region8
  $region5: #{cbam_basic_block_pallas.1} parent=0 // loop_body
    %s19 = ssub.s32 %s14, 1
    %s20 = ssub.s32 %s14, 2
    %s21 = sadd.s32 %s14, 1
    %s22 = ssub.s32 %s14, %s21
    %p23 = scmp.eq.s32.totalorder %s22, 0
    %s25 = sadd.s32 %s24, 1
    %s26 = scalar_select %p23, %s24, %s25
    %p29 = pneg %p23
    %p30 = scmp.eq.s32.totalorder %s14, 1
    %p31 = por %p29, %p30
    %p32 = scmp.ne.s32.totalorder %s24, %s27
    %p33 = scmp.eq.s32.totalorder %s14, 0
    %p34 = por %p32, %p33
    %p35 = scmp.ne.s32.totalorder %s24, %s27
    %p36 = scmp.eq.s32.totalorder %s19, 1
    %p37 = por %p35, %p36
    %p38 = scmp.ne.s32.totalorder %s27, %s28
    %p39 = scmp.eq.s32.totalorder %s19, 0
    %p40 = por %p38, %p39
    %p41 = scmp.ne.s32.totalorder %s27, %s28
    %p42 = scmp.eq.s32.totalorder %s20, 1
    %p43 = por %p41, %p42
    %p45 = scmp.ne.s32.totalorder %s28, %s44
    %p46 = scmp.eq.s32.totalorder %s20, 0
    %p47 = por %p45, %p46
    %s49 = sadd.s32 %s48, 1
    %p52 = scmp.eq.s32.totalorder %s14, 1
    %p53 = scmp.ne.s32.totalorder %s48, %s50
    %p54 = scmp.eq.s32.totalorder %s14, 0
    %p55 = por %p53, %p54
    %p56 = scmp.ne.s32.totalorder %s48, %s50
    %p57 = scmp.eq.s32.totalorder %s19, 1
    %p58 = por %p56, %p57
    %p59 = scmp.ne.s32.totalorder %s50, %s51
    %p60 = scmp.eq.s32.totalorder %s19, 0
    %p61 = por %p59, %p60
    %p62 = scmp.ne.s32.totalorder %s50, %s51
    %p63 = scmp.eq.s32.totalorder %s20, 1
    %p64 = por %p62, %p63
    %p66 = scmp.ne.s32.totalorder %s51, %s65
    %p67 = scmp.eq.s32.totalorder %s20, 0
    %p68 = por %p66, %p67
    %s70 = sadd.s32 %s69, 1
    %p73 = scmp.eq.s32.totalorder %s14, 1
    %p74 = scmp.ne.s32.totalorder %s69, %s71
    %p75 = scmp.eq.s32.totalorder %s14, 0
    %p76 = por %p74, %p75
    %p77 = scmp.ne.s32.totalorder %s69, %s71
    %p78 = scmp.eq.s32.totalorder %s19, 1
    %p79 = por %p77, %p78
    %p80 = scmp.ne.s32.totalorder %s71, %s72
    %p81 = scmp.eq.s32.totalorder %s19, 0
    %p82 = por %p80, %p81
    %p83 = scmp.ne.s32.totalorder %s71, %s72
    %p84 = scmp.eq.s32.totalorder %s20, 1
    %p85 = por %p83, %p84
    %p87 = scmp.ne.s32.totalorder %s72, %s86
    %p88 = scmp.eq.s32.totalorder %s20, 0
    %p89 = por %p87, %p88
    %s91 = sadd.s32 %s90, 1
    %p94 = scmp.eq.s32.totalorder %s14, 1
    %p95 = scmp.ne.s32.totalorder %s90, %s92
    %p96 = scmp.eq.s32.totalorder %s14, 0
    %p97 = por %p95, %p96
    %p98 = scmp.ne.s32.totalorder %s90, %s92
    %p99 = scmp.eq.s32.totalorder %s19, 1
    %p100 = por %p98, %p99
    %p101 = scmp.ne.s32.totalorder %s92, %s93
    %p102 = scmp.eq.s32.totalorder %s19, 0
    %p103 = por %p101, %p102
    %p104 = scmp.ne.s32.totalorder %s92, %s93
    %p105 = scmp.eq.s32.totalorder %s20, 1
    %p106 = por %p104, %p105
    %p108 = scmp.ne.s32.totalorder %s93, %s107
    %p109 = scmp.eq.s32.totalorder %s20, 0
    %p110 = por %p108, %p109
    %s112 = sadd.s32 %s111, 1
    %p115 = scmp.eq.s32.totalorder %s14, 1
    %p116 = scmp.ne.s32.totalorder %s111, %s113
    %p117 = scmp.eq.s32.totalorder %s14, 0
    %p118 = por %p116, %p117
    %p119 = scmp.ne.s32.totalorder %s111, %s113
    %p120 = scmp.eq.s32.totalorder %s19, 1
    %p121 = por %p119, %p120
    %p122 = scmp.ne.s32.totalorder %s113, %s114
    %p123 = scmp.eq.s32.totalorder %s19, 0
    %p124 = por %p122, %p123
    %p125 = scmp.ne.s32.totalorder %s113, %s114
    %p126 = scmp.eq.s32.totalorder %s20, 1
    %p127 = por %p125, %p126
    %p129 = scmp.ne.s32.totalorder %s114, %s128
    %p130 = scmp.eq.s32.totalorder %s20, 0
    %p131 = por %p129, %p130
    %s133 = sadd.s32 %s132, 1
    %p136 = scmp.eq.s32.totalorder %s14, 1
    %p137 = scmp.ne.s32.totalorder %s132, %s134
    %p138 = scmp.eq.s32.totalorder %s14, 0
    %p139 = por %p137, %p138
    %p140 = scmp.ne.s32.totalorder %s132, %s134
    %p141 = scmp.eq.s32.totalorder %s19, 1
    %p142 = por %p140, %p141
    %p143 = scmp.ne.s32.totalorder %s134, %s135
    %p144 = scmp.eq.s32.totalorder %s19, 0
    %p145 = por %p143, %p144
    %p146 = scmp.ne.s32.totalorder %s134, %s135
    %p147 = scmp.eq.s32.totalorder %s20, 1
    %p148 = por %p146, %p147
    %p150 = scmp.ne.s32.totalorder %s135, %s149
    %p151 = scmp.eq.s32.totalorder %s20, 0
    %p152 = por %p150, %p151
    %s154 = sadd.s32 %s153, 1
    %p157 = scmp.eq.s32.totalorder %s14, 1
    %p158 = scmp.ne.s32.totalorder %s153, %s155
    %p159 = scmp.eq.s32.totalorder %s14, 0
    %p160 = por %p158, %p159
    %p161 = scmp.ne.s32.totalorder %s153, %s155
    %p162 = scmp.eq.s32.totalorder %s19, 1
    %p163 = por %p161, %p162
    %p164 = scmp.ne.s32.totalorder %s155, %s156
    %p165 = scmp.eq.s32.totalorder %s19, 0
    %p166 = por %p164, %p165
    %p167 = scmp.ne.s32.totalorder %s155, %s156
    %p168 = scmp.eq.s32.totalorder %s20, 1
    %p169 = por %p167, %p168
    %p171 = scmp.ne.s32.totalorder %s156, %s170
    %p172 = scmp.eq.s32.totalorder %s20, 0
    %p173 = por %p171, %p172
    %s175 = sadd.s32 %s174, 1
    %p178 = scmp.eq.s32.totalorder %s14, 1
    %p179 = scmp.ne.s32.totalorder %s174, %s176
    %p180 = scmp.eq.s32.totalorder %s14, 0
    %p181 = por %p179, %p180
    %p182 = scmp.ne.s32.totalorder %s174, %s176
    %p183 = scmp.eq.s32.totalorder %s19, 1
    %p184 = por %p182, %p183
    %p185 = scmp.ne.s32.totalorder %s176, %s177
    %p186 = scmp.eq.s32.totalorder %s19, 0
    %p187 = por %p185, %p186
    %p188 = scmp.ne.s32.totalorder %s176, %s177
    %p189 = scmp.eq.s32.totalorder %s20, 1
    %p190 = por %p188, %p189
    %p192 = scmp.ne.s32.totalorder %s177, %s191
    %p193 = scmp.eq.s32.totalorder %s20, 0
    %p194 = por %p192, %p193
    %s195 = ssub.s32 %s14, %s21
    %p196 = scmp.eq.s32.totalorder %s195, 0
    %s198 = sadd.s32 %s197, 1
    %s199 = scalar_select %p196, %s197, %s198
    %p202 = pneg %p196
    %p203 = scmp.eq.s32.totalorder %s14, 1
    %p204 = por %p202, %p203
    %p205 = scmp.ne.s32.totalorder %s197, %s200
    %p206 = scmp.eq.s32.totalorder %s14, 0
    %p207 = por %p205, %p206
    %p208 = scmp.ne.s32.totalorder %s197, %s200
    %p209 = scmp.eq.s32.totalorder %s19, 1
    %p210 = por %p208, %p209
    %p211 = scmp.ne.s32.totalorder %s200, %s201
    %p212 = scmp.eq.s32.totalorder %s19, 0
    %p213 = por %p211, %p212
    %p214 = scmp.ne.s32.totalorder %s200, %s201
    %p215 = scmp.eq.s32.totalorder %s20, 1
    %p216 = por %p214, %p215
    %p218 = scmp.ne.s32.totalorder %s201, %s217
    %p219 = scmp.eq.s32.totalorder %s20, 0
    %p220 = por %p218, %p219
    %p221 = scmp.le.s32.totalorder 1, %s14
    %p222 = scmp.lt.s32.totalorder %s14, 3
    %p223 = pnand %p221, %p222
    %p224 = pneg %p223
    // Predicated region
    $region9: #{cbam_basic_block_pallas.1} parent=5 // pred_check
      _
    $region10: #{cbam_basic_block_pallas.1} parent=5 // pred_check_branch
      %226 = sbr.rel (%p223) target = $region12
    $region11: #{cbam_basic_block_pallas.1} parent=5 // pred_region
      %s227 = ssub.s32 %s14, 1
      // Predicated region
      $region13: #{cbam_basic_block_pallas.1} parent=11 // pred_check
        %p228 = pneg %p61
      $region14: #{cbam_basic_block_pallas.1} parent=11 // pred_check_branch
        %230 = sbr.rel (%p228) target = $region16
      $region15: #{cbam_basic_block_pallas.1} parent=11 // pred_region
        _
      $region16: #{cbam_basic_block_pallas.1} parent=11 // pred_fallthru
        _
      // Predicated region
      $region17: #{cbam_basic_block_pallas.1} parent=11 // pred_check
        %p231 = pneg %p82
      $region18: #{cbam_basic_block_pallas.1} parent=11 // pred_check_branch
        %233 = sbr.rel (%p231) target = $region20
      $region19: #{cbam_basic_block_pallas.1} parent=11 // pred_region
        _
      $region20: #{cbam_basic_block_pallas.1} parent=11 // pred_fallthru
        _
      // Predicated region
      $region21: #{cbam_basic_block_pallas.1} parent=11 // pred_check
        %p234 = pneg %p103
      $region22: #{cbam_basic_block_pallas.1} parent=11 // pred_check_branch
        %236 = sbr.rel (%p234) target = $region24
      $region23: #{cbam_basic_block_pallas.1} parent=11 // pred_region
        _
      $region24: #{cbam_basic_block_pallas.1} parent=11 // pred_fallthru
        _
      // Predicated region
      $region25: #{cbam_basic_block_pallas.1} parent=11 // pred_check
        %p237 = pneg %p124
      $region26: #{cbam_basic_block_pallas.1} parent=11 // pred_check_branch
        %239 = sbr.rel (%p237) target = $region28
      $region27: #{cbam_basic_block_pallas.1} parent=11 // pred_region
        _
      $region28: #{cbam_basic_block_pallas.1} parent=11 // pred_fallthru
        _
      // Predicated region
      $region29: #{cbam_basic_block_pallas.1} parent=11 // pred_check
        %p240 = pneg %p145
      $region30: #{cbam_basic_block_pallas.1} parent=11 // pred_check_branch
        %242 = sbr.rel (%p240) target = $region32
      $region31: #{cbam_basic_block_pallas.1} parent=11 // pred_region
        _
      $region32: #{cbam_basic_block_pallas.1} parent=11 // pred_fallthru
        _
      // Predicated region
      $region33: #{cbam_basic_block_pallas.1} parent=11 // pred_check
        %p243 = pneg %p166
      $region34: #{cbam_basic_block_pallas.1} parent=11 // pred_check_branch
        %245 = sbr.rel (%p243) target = $region36
      $region35: #{cbam_basic_block_pallas.1} parent=11 // pred_region
        _
      $region36: #{cbam_basic_block_pallas.1} parent=11 // pred_fallthru
        _
      // Predicated region
      $region37: #{cbam_basic_block_pallas.1} parent=11 // pred_check
        %p246 = pneg %p187
      $region38: #{cbam_basic_block_pallas.1} parent=11 // pred_check_branch
        %248 = sbr.rel (%p246) target = $region40
      $region39: #{cbam_basic_block_pallas.1} parent=11 // pred_region
        _
      $region40: #{cbam_basic_block_pallas.1} parent=11 // pred_fallthru
        _
    $region12: #{cbam_basic_block_pallas.1} parent=5 // pred_fallthru
      _
    %p249 = scmp.lt.s32.totalorder %s14, 2
    // Predicated region
    $region41: #{cbam_basic_block_pallas.1} parent=5 // pred_check
      %p250 = pneg %p249
    $region42: #{cbam_basic_block_pallas.1} parent=5 // pred_check_branch
      %252 = sbr.rel (%p250) target = $region44
    $region43: #{cbam_basic_block_pallas.1} parent=5 // pred_region
      // Predicated region
      $region45: #{cbam_basic_block_pallas.1} parent=43 // pred_check
        %p253 = pneg %p34
      $region46: #{cbam_basic_block_pallas.1} parent=43 // pred_check_branch
        %255 = sbr.rel (%p253) target = $region48
      $region47: #{cbam_basic_block_pallas.1} parent=43 // pred_region
        %s256 = smul.u32 32, %s14
        %p257 = scmp.lt.s32.totalorder %s256, 63
        %s258 = scalar_select %p257, %s256, 63
        %s259 = smul.addr %s258, 8
        %s260 = scalar_lea.vmem %s0, %s259
        %s261 = smul.u32 32, %s14
      $region48: #{cbam_basic_block_pallas.1} parent=43 // pred_fallthru
        _
    $region44: #{cbam_basic_block_pallas.1} parent=5 // pred_fallthru
      _
    %p262 = scmp.le.s32.totalorder 1, %s14
    %p263 = scmp.lt.s32.totalorder %s14, 3
    %p264 = pnand %p262, %p263
    %p265 = pneg %p264
    // Predicated region
    $region49: #{cbam_basic_block_pallas.1} parent=5 // pred_check
      _
    $region50: #{cbam_basic_block_pallas.1} parent=5 // pred_check_branch
      %267 = sbr.rel (%p264) target = $region52
    $region51: #{cbam_basic_block_pallas.1} parent=5 // pred_region
      %s268 = ssub.s32 %s14, 1
      %s269 = smul.u32 32, %s19
      %p270 = scmp.lt.s32.totalorder %s269, 63
      %s271 = scalar_select %p270, %s269, 63
      %s272 = smul.addr %s271, 8
      %s273 = scalar_lea.vmem %s0, %s272
      %p274 = pneg %p40
      %p275 = pneg %p37
      %p276 = pneg %p61
      %p277 = pneg %p58
      %p278 = pneg %p82
      %p279 = pneg %p79
      %p280 = pneg %p103
      %p281 = pneg %p100
      %p282 = pneg %p124
      %p283 = pneg %p121
      %p284 = pneg %p145
      %p285 = pneg %p142
      %p286 = pneg %p166
      %p287 = pneg %p163
      %p288 = pneg %p187
      %p289 = pneg %p184
      %p290 = pneg %p213
      %p291 = pneg %p210
      %s292 = smul.u32 32, %s19
      %p293 = scmp.lt.s32.totalorder %s292, 63
      %s294 = scalar_select %p293, %s292, 63
      %s295 = smul.addr %s294, 8
      %s296 = scalar_lea.vmem %s8, %s295
      %s297 = smul.u32 32, %s19
      %p298 = scmp.lt.s32.totalorder %s297, 63
      %s299 = scalar_select %p298, %s297, 63
      %s300 = smul.addr %s299, 8
      %s301 = scalar_lea.vmem %s0, %s300
      %s302 = smul.u32 32, %s19
      %s303 = smul.u32 32, %s19
      %p304 = scmp.lt.s32.totalorder %s303, 63
      %s305 = scalar_select %p304, %s303, 63
      %s306 = smul.addr %s305, 8
      %s307 = scalar_lea.vmem %s8, %s306
      %s308 = smul.u32 32, %s19
      %vm310 = vcmask 261120
      %311 = vst.msk [vmem:[#allocation2] sm:$0xff] %vm310, 0.0
      %312 = vst.msk [vmem:[#allocation2 + $0x8] sm:$0xff] %vm310, 0.0
      %313 = vst.msk [vmem:[#allocation2 + $0x10] sm:$0xff] %vm310, 0.0
      %314 = vst.msk [vmem:[#allocation2 + $0x118] sm:$0xff] %vm310, 0.0
      %315 = vst.msk [vmem:[#allocation2 + $0x120] sm:$0xff] %vm310, 0.0
      %316 = vst.msk [vmem:[#allocation2 + $0x128] sm:$0xff] %vm310, 0.0
      %vm317 = vcmask 15360
      %318 = vst.msk [vmem:[#allocation3] sm:$0xff] %vm317, 0.0
      %319 = vst.msk [vmem:[#allocation3 + $0x8] sm:$0xff] %vm317, 0.0
      %320 = vst.msk [vmem:[#allocation3 + $0x10] sm:$0xff] %vm317, 0.0
      %321 = vst.msk [vmem:[#allocation3 + $0x118] sm:$0xff] %vm317, 0.0
      %322 = vst.msk [vmem:[#allocation3 + $0x120] sm:$0xff] %vm317, 0.0
      %323 = vst.msk [vmem:[#allocation3 + $0x128] sm:$0xff] %vm317, 0.0
      %v324 = vlaneseq
      %v325 = vshrl.u32 %v324, 7
      %v326 = vadd.s32 %v325, 8
      %v327 = vadd.s32 %v325, 16
      %v328 = vadd.s32 %v325, 24
      %v329 = vadd.s32 %v325, 32
      %v330 = vadd.s32 %v325, 40
      %v331 = vadd.s32 %v325, 48
      %v332 = vadd.s32 %v325, 56
      %v333 = vadd.s32 %v325, 64
      %v334 = vadd.s32 %v325, 72
      %v335 = vadd.s32 %v325, 80
      %v336 = vadd.s32 %v325, 88
      %v337 = vadd.s32 %v325, 96
      %v338 = vadd.s32 %v325, 104
      %v339 = vadd.s32 %v325, 112
      %v340 = vadd.s32 %v325, 120
      %v341 = vadd.s32 %v325, 128
      %v342 = vadd.s32 %v325, 136
      %v343 = vadd.s32 %v325, 144
      %v344 = vadd.s32 %v325, 152
      %v345 = vadd.s32 %v325, 160
      %v346 = vadd.s32 %v325, 168
      %v347 = vadd.s32 %v325, 176
      %v348 = vadd.s32 %v325, 184
      %v349 = vadd.s32 %v325, 192
      %v350 = vadd.s32 %v325, 200
      %v351 = vadd.s32 %v325, 208
      %v352 = vadd.s32 %v325, 216
      %v353 = vadd.s32 %v325, 224
      %v354 = vadd.s32 %v325, 232
      %v355 = vadd.s32 %v325, 240
      %v356 = vadd.s32 %v325, 248
      %vm357 = vcmp.lt.s32.totalorder %v325, 0
      %v358 = vsub.s32 0, %v325
      %v359 = vsel %vm357, %v358, %v325
      %v360 = vshrl.u32 %v359, 4
      %v361 = vand.u32 %v359, 15
      %v362 = vsub.s32 0, %v361
      %v363 = vsel %vm357, %v362, %v361
      %vm364 = vcmp.lt.s32.totalorder %v326, 0
      %v365 = vsub.s32 0, %v326
      %v366 = vsel %vm364, %v365, %v326
      %v367 = vshrl.u32 %v366, 4
      %v368 = vand.u32 %v366, 15
      %v369 = vsub.s32 0, %v368
      %v370 = vsel %vm364, %v369, %v368
      %vm371 = vcmp.lt.s32.totalorder %v327, 0
      %v372 = vsub.s32 0, %v327
      %v373 = vsel %vm371, %v372, %v327
      %v374 = vshrl.u32 %v373, 4
      %v375 = vand.u32 %v373, 15
      %v376 = vsub.s32 0, %v375
      %v377 = vsel %vm371, %v376, %v375
      %vm378 = vcmp.lt.s32.totalorder %v328, 0
      %v379 = vsub.s32 0, %v328
      %v380 = vsel %vm378, %v379, %v328
      %v381 = vshrl.u32 %v380, 4
      %v382 = vand.u32 %v380, 15
      %v383 = vsub.s32 0, %v382
      %v384 = vsel %vm378, %v383, %v382
      %vm385 = vcmp.lt.s32.totalorder %v329, 0
      %v386 = vsub.s32 0, %v329
      %v387 = vsel %vm385, %v386, %v329
      %v388 = vshrl.u32 %v387, 4
      %v389 = vand.u32 %v387, 15
      %v390 = vsub.s32 0, %v389
      %v391 = vsel %vm385, %v390, %v389
      %vm392 = vcmp.lt.s32.totalorder %v330, 0
      %v393 = vsub.s32 0, %v330
      %v394 = vsel %vm392, %v393, %v330
      %v395 = vshrl.u32 %v394, 4
      %v396 = vand.u32 %v394, 15
      %v397 = vsub.s32 0, %v396
      %v398 = vsel %vm392, %v397, %v396
      %vm399 = vcmp.lt.s32.totalorder %v331, 0
      %v400 = vsub.s32 0, %v331
      %v401 = vsel %vm399, %v400, %v331
      %v402 = vshrl.u32 %v401, 4
      %v403 = vand.u32 %v401, 15
      %v404 = vsub.s32 0, %v403
      %v405 = vsel %vm399, %v404, %v403
      %vm406 = vcmp.lt.s32.totalorder %v332, 0
      %v407 = vsub.s32 0, %v332
      %v408 = vsel %vm406, %v407, %v332
      %v409 = vshrl.u32 %v408, 4
      %v410 = vand.u32 %v408, 15
      %v411 = vsub.s32 0, %v410
      %v412 = vsel %vm406, %v411, %v410
      %vm413 = vcmp.lt.s32.totalorder %v333, 0
      %v414 = vsub.s32 0, %v333
      %v415 = vsel %vm413, %v414, %v333
      %v416 = vshrl.u32 %v415, 4
      %v417 = vand.u32 %v415, 15
      %v418 = vsub.s32 0, %v417
      %v419 = vsel %vm413, %v418, %v417
      %vm420 = vcmp.lt.s32.totalorder %v334, 0
      %v421 = vsub.s32 0, %v334
      %v422 = vsel %vm420, %v421, %v334
      %v423 = vshrl.u32 %v422, 4
      %v424 = vand.u32 %v422, 15
      %v425 = vsub.s32 0, %v424
      %v426 = vsel %vm420, %v425, %v424
      %vm427 = vcmp.lt.s32.totalorder %v335, 0
      %v428 = vsub.s32 0, %v335
      %v429 = vsel %vm427, %v428, %v335
      %v430 = vshrl.u32 %v429, 4
      %v431 = vand.u32 %v429, 15
      %v432 = vsub.s32 0, %v431
      %v433 = vsel %vm427, %v432, %v431
      %vm434 = vcmp.lt.s32.totalorder %v336, 0
      %v435 = vsub.s32 0, %v336
      %v436 = vsel %vm434, %v435, %v336
      %v437 = vshrl.u32 %v436, 4
      %v438 = vand.u32 %v436, 15
      %v439 = vsub.s32 0, %v438
      %v440 = vsel %vm434, %v439, %v438
      %vm441 = vcmp.lt.s32.totalorder %v337, 0
      %v442 = vsub.s32 0, %v337
      %v443 = vsel %vm441, %v442, %v337
      %v444 = vshrl.u32 %v443, 4
      %v445 = vand.u32 %v443, 15
      %v446 = vsub.s32 0, %v445
      %v447 = vsel %vm441, %v446, %v445
      %vm448 = vcmp.lt.s32.totalorder %v338, 0
      %v449 = vsub.s32 0, %v338
      %v450 = vsel %vm448, %v449, %v338
      %v451 = vshrl.u32 %v450, 4
      %v452 = vand.u32 %v450, 15
      %v453 = vsub.s32 0, %v452
      %v454 = vsel %vm448, %v453, %v452
      %vm455 = vcmp.lt.s32.totalorder %v339, 0
      %v456 = vsub.s32 0, %v339
      %v457 = vsel %vm455, %v456, %v339
      %v458 = vshrl.u32 %v457, 4
      %v459 = vand.u32 %v457, 15
      %v460 = vsub.s32 0, %v459
      %v461 = vsel %vm455, %v460, %v459
      %vm462 = vcmp.lt.s32.totalorder %v340, 0
      %v463 = vsub.s32 0, %v340
      %v464 = vsel %vm462, %v463, %v340
      %v465 = vshrl.u32 %v464, 4
      %v466 = vand.u32 %v464, 15
      %v467 = vsub.s32 0, %v466
      %v468 = vsel %vm462, %v467, %v466
      %vm469 = vcmp.lt.s32.totalorder %v341, 0
      %v470 = vsub.s32 0, %v341
      %v471 = vsel %vm469, %v470, %v341
      %v472 = vshrl.u32 %v471, 4
      %v473 = vand.u32 %v471, 15
      %v474 = vsub.s32 0, %v473
      %v475 = vsel %vm469, %v474, %v473
      %vm476 = vcmp.lt.s32.totalorder %v342, 0
      %v477 = vsub.s32 0, %v342
      %v478 = vsel %vm476, %v477, %v342
      %v479 = vshrl.u32 %v478, 4
      %v480 = vand.u32 %v478, 15
      %v481 = vsub.s32 0, %v480
      %v482 = vsel %vm476, %v481, %v480
      %vm483 = vcmp.lt.s32.totalorder %v343, 0
      %v484 = vsub.s32 0, %v343
      %v485 = vsel %vm483, %v484, %v343
      %v486 = vshrl.u32 %v485, 4
      %v487 = vand.u32 %v485, 15
      %v488 = vsub.s32 0, %v487
      %v489 = vsel %vm483, %v488, %v487
      %vm490 = vcmp.lt.s32.totalorder %v344, 0
      %v491 = vsub.s32 0, %v344
      %v492 = vsel %vm490, %v491, %v344
      %v493 = vshrl.u32 %v492, 4
      %v494 = vand.u32 %v492, 15
      %v495 = vsub.s32 0, %v494
      %v496 = vsel %vm490, %v495, %v494
      %vm497 = vcmp.lt.s32.totalorder %v345, 0
      %v498 = vsub.s32 0, %v345
      %v499 = vsel %vm497, %v498, %v345
      %v500 = vshrl.u32 %v499, 4
      %v501 = vand.u32 %v499, 15
      %v502 = vsub.s32 0, %v501
      %v503 = vsel %vm497, %v502, %v501
      %vm504 = vcmp.lt.s32.totalorder %v346, 0
      %v505 = vsub.s32 0, %v346
      %v506 = vsel %vm504, %v505, %v346
      %v507 = vshrl.u32 %v506, 4
      %v508 = vand.u32 %v506, 15
      %v509 = vsub.s32 0, %v508
      %v510 = vsel %vm504, %v509, %v508
      %vm511 = vcmp.lt.s32.totalorder %v347, 0
      %v512 = vsub.s32 0, %v347
      %v513 = vsel %vm511, %v512, %v347
      %v514 = vshrl.u32 %v513, 4
      %v515 = vand.u32 %v513, 15
      %v516 = vsub.s32 0, %v515
      %v517 = vsel %vm511, %v516, %v515
      %vm518 = vcmp.lt.s32.totalorder %v348, 0
      %v519 = vsub.s32 0, %v348
      %v520 = vsel %vm518, %v519, %v348
      %v521 = vshrl.u32 %v520, 4
      %v522 = vand.u32 %v520, 15
      %v523 = vsub.s32 0, %v522
      %v524 = vsel %vm518, %v523, %v522
      %vm525 = vcmp.lt.s32.totalorder %v349, 0
      %v526 = vsub.s32 0, %v349
      %v527 = vsel %vm525, %v526, %v349
      %v528 = vshrl.u32 %v527, 4
      %v529 = vand.u32 %v527, 15
      %v530 = vsub.s32 0, %v529
      %v531 = vsel %vm525, %v530, %v529
      %vm532 = vcmp.lt.s32.totalorder %v350, 0
      %v533 = vsub.s32 0, %v350
      %v534 = vsel %vm532, %v533, %v350
      %v535 = vshrl.u32 %v534, 4
      %v536 = vand.u32 %v534, 15
      %v537 = vsub.s32 0, %v536
      %v538 = vsel %vm532, %v537, %v536
      %vm539 = vcmp.lt.s32.totalorder %v351, 0
      %v540 = vsub.s32 0, %v351
      %v541 = vsel %vm539, %v540, %v351
      %v542 = vshrl.u32 %v541, 4
      %v543 = vand.u32 %v541, 15
      %v544 = vsub.s32 0, %v543
      %v545 = vsel %vm539, %v544, %v543
      %vm546 = vcmp.lt.s32.totalorder %v352, 0
      %v547 = vsub.s32 0, %v352
      %v548 = vsel %vm546, %v547, %v352
      %v549 = vshrl.u32 %v548, 4
      %v550 = vand.u32 %v548, 15
      %v551 = vsub.s32 0, %v550
      %v552 = vsel %vm546, %v551, %v550
      %vm553 = vcmp.lt.s32.totalorder %v353, 0
      %v554 = vsub.s32 0, %v353
      %v555 = vsel %vm553, %v554, %v353
      %v556 = vshrl.u32 %v555, 4
      %v557 = vand.u32 %v555, 15
      %v558 = vsub.s32 0, %v557
      %v559 = vsel %vm553, %v558, %v557
      %vm560 = vcmp.lt.s32.totalorder %v354, 0
      %v561 = vsub.s32 0, %v354
      %v562 = vsel %vm560, %v561, %v354
      %v563 = vshrl.u32 %v562, 4
      %v564 = vand.u32 %v562, 15
      %v565 = vsub.s32 0, %v564
      %v566 = vsel %vm560, %v565, %v564
      %vm567 = vcmp.lt.s32.totalorder %v355, 0
      %v568 = vsub.s32 0, %v355
      %v569 = vsel %vm567, %v568, %v355
      %v570 = vshrl.u32 %v569, 4
      %v571 = vand.u32 %v569, 15
      %v572 = vsub.s32 0, %v571
      %v573 = vsel %vm567, %v572, %v571
      %vm574 = vcmp.lt.s32.totalorder %v356, 0
      %v575 = vsub.s32 0, %v356
      %v576 = vsel %vm574, %v575, %v356
      %v577 = vshrl.u32 %v576, 4
      %v578 = vand.u32 %v576, 15
      %v579 = vsub.s32 0, %v578
      %v580 = vsel %vm574, %v579, %v578
      %vm581 = vcmp.ne.s32.totalorder %v363, 0
      %vm582 = vcmp.ne.s32.totalorder %v370, 0
      %vm583 = vcmp.ne.s32.totalorder %v377, 0
      %vm584 = vcmp.ne.s32.totalorder %v384, 0
      %vm585 = vcmp.ne.s32.totalorder %v391, 0
      %vm586 = vcmp.ne.s32.totalorder %v398, 0
      %vm587 = vcmp.ne.s32.totalorder %v405, 0
      %vm588 = vcmp.ne.s32.totalorder %v412, 0
      %vm589 = vcmp.ne.s32.totalorder %v419, 0
      %vm590 = vcmp.ne.s32.totalorder %v426, 0
      %vm591 = vcmp.ne.s32.totalorder %v433, 0
      %vm592 = vcmp.ne.s32.totalorder %v440, 0
      %vm593 = vcmp.ne.s32.totalorder %v447, 0
      %vm594 = vcmp.ne.s32.totalorder %v454, 0
      %vm595 = vcmp.ne.s32.totalorder %v461, 0
      %vm596 = vcmp.ne.s32.totalorder %v468, 0
      %vm597 = vcmp.ne.s32.totalorder %v475, 0
      %vm598 = vcmp.ne.s32.totalorder %v482, 0
      %vm599 = vcmp.ne.s32.totalorder %v489, 0
      %vm600 = vcmp.ne.s32.totalorder %v496, 0
      %vm601 = vcmp.ne.s32.totalorder %v503, 0
      %vm602 = vcmp.ne.s32.totalorder %v510, 0
      %vm603 = vcmp.ne.s32.totalorder %v517, 0
      %vm604 = vcmp.ne.s32.totalorder %v524, 0
      %vm605 = vcmp.ne.s32.totalorder %v531, 0
      %vm606 = vcmp.ne.s32.totalorder %v538, 0
      %vm607 = vcmp.ne.s32.totalorder %v545, 0
      %vm608 = vcmp.ne.s32.totalorder %v552, 0
      %vm609 = vcmp.ne.s32.totalorder %v559, 0
      %vm610 = vcmp.ne.s32.totalorder %v566, 0
      %vm611 = vcmp.ne.s32.totalorder %v573, 0
      %vm612 = vcmp.ne.s32.totalorder %v580, 0
      %vm613 = vcmp.lt.s32.totalorder %v363, 0
      %vm614 = vcmp.lt.s32.totalorder %v370, 0
      %vm615 = vcmp.lt.s32.totalorder %v377, 0
      %vm616 = vcmp.lt.s32.totalorder %v384, 0
      %vm617 = vcmp.lt.s32.totalorder %v391, 0
      %vm618 = vcmp.lt.s32.totalorder %v398, 0
      %vm619 = vcmp.lt.s32.totalorder %v405, 0
      %vm620 = vcmp.lt.s32.totalorder %v412, 0
      %vm621 = vcmp.lt.s32.totalorder %v419, 0
      %vm622 = vcmp.lt.s32.totalorder %v426, 0
      %vm623 = vcmp.lt.s32.totalorder %v433, 0
      %vm624 = vcmp.lt.s32.totalorder %v440, 0
      %vm625 = vcmp.lt.s32.totalorder %v447, 0
      %vm626 = vcmp.lt.s32.totalorder %v454, 0
      %vm627 = vcmp.lt.s32.totalorder %v461, 0
      %vm628 = vcmp.lt.s32.totalorder %v468, 0
      %vm629 = vcmp.lt.s32.totalorder %v475, 0
      %vm630 = vcmp.lt.s32.totalorder %v482, 0
      %vm631 = vcmp.lt.s32.totalorder %v489, 0
      %vm632 = vcmp.lt.s32.totalorder %v496, 0
      %vm633 = vcmp.lt.s32.totalorder %v503, 0
      %vm634 = vcmp.lt.s32.totalorder %v510, 0
      %vm635 = vcmp.lt.s32.totalorder %v517, 0
      %vm636 = vcmp.lt.s32.totalorder %v524, 0
      %vm637 = vcmp.lt.s32.totalorder %v531, 0
      %vm638 = vcmp.lt.s32.totalorder %v538, 0
      %vm639 = vcmp.lt.s32.totalorder %v545, 0
      %vm640 = vcmp.lt.s32.totalorder %v552, 0
      %vm641 = vcmp.lt.s32.totalorder %v559, 0
      %vm642 = vcmp.lt.s32.totalorder %v566, 0
      %vm643 = vcmp.lt.s32.totalorder %v573, 0
      %vm644 = vcmp.lt.s32.totalorder %v580, 0
      %vm645 = vmand %vm613, %vm581
      %vm646 = vmand %vm614, %vm582
      %vm647 = vmand %vm615, %vm583
      %vm648 = vmand %vm616, %vm584
      %vm649 = vmand %vm617, %vm585
      %vm650 = vmand %vm618, %vm586
      %vm651 = vmand %vm619, %vm587
      %vm652 = vmand %vm620, %vm588
      %vm653 = vmand %vm621, %vm589
      %vm654 = vmand %vm622, %vm590
      %vm655 = vmand %vm623, %vm591
      %vm656 = vmand %vm624, %vm592
      %vm657 = vmand %vm625, %vm593
      %vm658 = vmand %vm626, %vm594
      %vm659 = vmand %vm627, %vm595
      %vm660 = vmand %vm628, %vm596
      %vm661 = vmand %vm629, %vm597
      %vm662 = vmand %vm630, %vm598
      %vm663 = vmand %vm631, %vm599
      %vm664 = vmand %vm632, %vm600
      %vm665 = vmand %vm633, %vm601
      %vm666 = vmand %vm634, %vm602
      %vm667 = vmand %vm635, %vm603
      %vm668 = vmand %vm636, %vm604
      %vm669 = vmand %vm637, %vm605
      %vm670 = vmand %vm638, %vm606
      %vm671 = vmand %vm639, %vm607
      %vm672 = vmand %vm640, %vm608
      %vm673 = vmand %vm641, %vm609
      %vm674 = vmand %vm642, %vm610
      %vm675 = vmand %vm643, %vm611
      %vm676 = vmand %vm644, %vm612
      %v677 = vadd.s32 %v363, 16
      %v678 = vadd.s32 %v370, 16
      %v679 = vadd.s32 %v377, 16
      %v680 = vadd.s32 %v384, 16
      %v681 = vadd.s32 %v391, 16
      %v682 = vadd.s32 %v398, 16
      %v683 = vadd.s32 %v405, 16
      %v684 = vadd.s32 %v412, 16
      %v685 = vadd.s32 %v419, 16
      %v686 = vadd.s32 %v426, 16
      %v687 = vadd.s32 %v433, 16
      %v688 = vadd.s32 %v440, 16
      %v689 = vadd.s32 %v447, 16
      %v690 = vadd.s32 %v454, 16
      %v691 = vadd.s32 %v461, 16
      %v692 = vadd.s32 %v468, 16
      %v693 = vadd.s32 %v475, 16
      %v694 = vadd.s32 %v482, 16
      %v695 = vadd.s32 %v489, 16
      %v696 = vadd.s32 %v496, 16
      %v697 = vadd.s32 %v503, 16
      %v698 = vadd.s32 %v510, 16
      %v699 = vadd.s32 %v517, 16
      %v700 = vadd.s32 %v524, 16
      %v701 = vadd.s32 %v531, 16
      %v702 = vadd.s32 %v538, 16
      %v703 = vadd.s32 %v545, 16
      %v704 = vadd.s32 %v552, 16
      %v705 = vadd.s32 %v559, 16
      %v706 = vadd.s32 %v566, 16
      %v707 = vadd.s32 %v573, 16
      %v708 = vadd.s32 %v580, 16
      %v709 = vsel %vm645, %v677, %v363
      %v710 = vsel %vm646, %v678, %v370
      %v711 = vsel %vm647, %v679, %v377
      %v712 = vsel %vm648, %v680, %v384
      %v713 = vsel %vm649, %v681, %v391
      %v714 = vsel %vm650, %v682, %v398
      %v715 = vsel %vm651, %v683, %v405
      %v716 = vsel %vm652, %v684, %v412
      %v717 = vsel %vm653, %v685, %v419
      %v718 = vsel %vm654, %v686, %v426
      %v719 = vsel %vm655, %v687, %v433
      %v720 = vsel %vm656, %v688, %v440
      %v721 = vsel %vm657, %v689, %v447
      %v722 = vsel %vm658, %v690, %v454
      %v723 = vsel %vm659, %v691, %v461
      %v724 = vsel %vm660, %v692, %v468
      %v725 = vsel %vm661, %v693, %v475
      %v726 = vsel %vm662, %v694, %v482
      %v727 = vsel %vm663, %v695, %v489
      %v728 = vsel %vm664, %v696, %v496
      %v729 = vsel %vm665, %v697, %v503
      %v730 = vsel %vm666, %v698, %v510
      %v731 = vsel %vm667, %v699, %v517
      %v732 = vsel %vm668, %v700, %v524
      %v733 = vsel %vm669, %v701, %v531
      %v734 = vsel %vm670, %v702, %v538
      %v735 = vsel %vm671, %v703, %v545
      %v736 = vsel %vm672, %v704, %v552
      %v737 = vsel %vm673, %v705, %v559
      %v738 = vsel %vm674, %v706, %v566
      %v739 = vsel %vm675, %v707, %v573
      %v740 = vsel %vm676, %v708, %v580
      %vm741 = vcmp.ge.s32.totalorder %v709, 1
      %vm742 = vcmp.ge.s32.totalorder %v710, 1
      %vm743 = vcmp.ge.s32.totalorder %v711, 1
      %vm744 = vcmp.ge.s32.totalorder %v712, 1
      %vm745 = vcmp.ge.s32.totalorder %v713, 1
      %vm746 = vcmp.ge.s32.totalorder %v714, 1
      %vm747 = vcmp.ge.s32.totalorder %v715, 1
      %vm748 = vcmp.ge.s32.totalorder %v716, 1
      %vm749 = vcmp.ge.s32.totalorder %v717, 1
      %vm750 = vcmp.ge.s32.totalorder %v718, 1
      %vm751 = vcmp.ge.s32.totalorder %v719, 1
      %vm752 = vcmp.ge.s32.totalorder %v720, 1
      %vm753 = vcmp.ge.s32.totalorder %v721, 1
      %vm754 = vcmp.ge.s32.totalorder %v722, 1
      %vm755 = vcmp.ge.s32.totalorder %v723, 1
      %vm756 = vcmp.ge.s32.totalorder %v724, 1
      %vm757 = vcmp.ge.s32.totalorder %v725, 1
      %vm758 = vcmp.ge.s32.totalorder %v726, 1
      %vm759 = vcmp.ge.s32.totalorder %v727, 1
      %vm760 = vcmp.ge.s32.totalorder %v728, 1
      %vm761 = vcmp.ge.s32.totalorder %v729, 1
      %vm762 = vcmp.ge.s32.totalorder %v730, 1
      %vm763 = vcmp.ge.s32.totalorder %v731, 1
      %vm764 = vcmp.ge.s32.totalorder %v732, 1
      %vm765 = vcmp.ge.s32.totalorder %v733, 1
      %vm766 = vcmp.ge.s32.totalorder %v734, 1
      %vm767 = vcmp.ge.s32.totalorder %v735, 1
      %vm768 = vcmp.ge.s32.totalorder %v736, 1
      %vm769 = vcmp.ge.s32.totalorder %v737, 1
      %vm770 = vcmp.ge.s32.totalorder %v738, 1
      %vm771 = vcmp.ge.s32.totalorder %v739, 1
      %vm772 = vcmp.ge.s32.totalorder %v740, 1
      %v773 = vsel %vm741, 1, 0
      %v774 = vsel %vm742, 1, 0
      %v775 = vsel %vm743, 1, 0
      %v776 = vsel %vm744, 1, 0
      %v777 = vsel %vm745, 1, 0
      %v778 = vsel %vm746, 1, 0
      %v779 = vsel %vm747, 1, 0
      %v780 = vsel %vm748, 1, 0
      %v781 = vsel %vm749, 1, 0
      %v782 = vsel %vm750, 1, 0
      %v783 = vsel %vm751, 1, 0
      %v784 = vsel %vm752, 1, 0
      %v785 = vsel %vm753, 1, 0
      %v786 = vsel %vm754, 1, 0
      %v787 = vsel %vm755, 1, 0
      %v788 = vsel %vm756, 1, 0
      %v789 = vsel %vm757, 1, 0
      %v790 = vsel %vm758, 1, 0
      %v791 = vsel %vm759, 1, 0
      %v792 = vsel %vm760, 1, 0
      %v793 = vsel %vm761, 1, 0
      %v794 = vsel %vm762, 1, 0
      %v795 = vsel %vm763, 1, 0
      %v796 = vsel %vm764, 1, 0
      %v797 = vsel %vm765, 1, 0
      %v798 = vsel %vm766, 1, 0
      %v799 = vsel %vm767, 1, 0
      %v800 = vsel %vm768, 1, 0
      %v801 = vsel %vm769, 1, 0
      %v802 = vsel %vm770, 1, 0
      %v803 = vsel %vm771, 1, 0
      %v804 = vsel %vm772, 1, 0
      %v805 = vcvt.s32.f32 %v773
      %v806 = vcvt.s32.f32 %v774
      %v807 = vcvt.s32.f32 %v775
      %v808 = vcvt.s32.f32 %v776
      %v809 = vcvt.s32.f32 %v777
      %v810 = vcvt.s32.f32 %v778
      %v811 = vcvt.s32.f32 %v779
      %v812 = vcvt.s32.f32 %v780
      %v813 = vcvt.s32.f32 %v781
      %v814 = vcvt.s32.f32 %v782
      %v815 = vcvt.s32.f32 %v783
      %v816 = vcvt.s32.f32 %v784
      %v817 = vcvt.s32.f32 %v785
      %v818 = vcvt.s32.f32 %v786
      %v819 = vcvt.s32.f32 %v787
      %v820 = vcvt.s32.f32 %v788
      %v821 = vcvt.s32.f32 %v789
      %v822 = vcvt.s32.f32 %v790
      %v823 = vcvt.s32.f32 %v791
      %v824 = vcvt.s32.f32 %v792
      %v825 = vcvt.s32.f32 %v793
      %v826 = vcvt.s32.f32 %v794
      %v827 = vcvt.s32.f32 %v795
      %v828 = vcvt.s32.f32 %v796
      %v829 = vcvt.s32.f32 %v797
      %v830 = vcvt.s32.f32 %v798
      %v831 = vcvt.s32.f32 %v799
      %v832 = vcvt.s32.f32 %v800
      %v833 = vcvt.s32.f32 %v801
      %v834 = vcvt.s32.f32 %v802
      %v835 = vcvt.s32.f32 %v803
      %v836 = vcvt.s32.f32 %v804
      %vm837 = vcmp.le.s32.totalorder %v709, 14
      %vm838 = vcmp.le.s32.totalorder %v710, 14
      %vm839 = vcmp.le.s32.totalorder %v711, 14
      %vm840 = vcmp.le.s32.totalorder %v712, 14
      %vm841 = vcmp.le.s32.totalorder %v713, 14
      %vm842 = vcmp.le.s32.totalorder %v714, 14
      %vm843 = vcmp.le.s32.totalorder %v715, 14
      %vm844 = vcmp.le.s32.totalorder %v716, 14
      %vm845 = vcmp.le.s32.totalorder %v717, 14
      %vm846 = vcmp.le.s32.totalorder %v718, 14
      %vm847 = vcmp.le.s32.totalorder %v719, 14
      %vm848 = vcmp.le.s32.totalorder %v720, 14
      %vm849 = vcmp.le.s32.totalorder %v721, 14
      %vm850 = vcmp.le.s32.totalorder %v722, 14
      %vm851 = vcmp.le.s32.totalorder %v723, 14
      %vm852 = vcmp.le.s32.totalorder %v724, 14
      %vm853 = vcmp.le.s32.totalorder %v725, 14
      %vm854 = vcmp.le.s32.totalorder %v726, 14
      %vm855 = vcmp.le.s32.totalorder %v727, 14
      %vm856 = vcmp.le.s32.totalorder %v728, 14
      %vm857 = vcmp.le.s32.totalorder %v729, 14
      %vm858 = vcmp.le.s32.totalorder %v730, 14
      %vm859 = vcmp.le.s32.totalorder %v731, 14
      %vm860 = vcmp.le.s32.totalorder %v732, 14
      %vm861 = vcmp.le.s32.totalorder %v733, 14
      %vm862 = vcmp.le.s32.totalorder %v734, 14
      %vm863 = vcmp.le.s32.totalorder %v735, 14
      %vm864 = vcmp.le.s32.totalorder %v736, 14
      %vm865 = vcmp.le.s32.totalorder %v737, 14
      %vm866 = vcmp.le.s32.totalorder %v738, 14
      %vm867 = vcmp.le.s32.totalorder %v739, 14
      %vm868 = vcmp.le.s32.totalorder %v740, 14
      %v869 = vsel %vm837, 1, 0
      %v870 = vsel %vm838, 1, 0
      %v871 = vsel %vm839, 1, 0
      %v872 = vsel %vm840, 1, 0
      %v873 = vsel %vm841, 1, 0
      %v874 = vsel %vm842, 1, 0
      %v875 = vsel %vm843, 1, 0
      %v876 = vsel %vm844, 1, 0
      %v877 = vsel %vm845, 1, 0
      %v878 = vsel %vm846, 1, 0
      %v879 = vsel %vm847, 1, 0
      %v880 = vsel %vm848, 1, 0
      %v881 = vsel %vm849, 1, 0
      %v882 = vsel %vm850, 1, 0
      %v883 = vsel %vm851, 1, 0
      %v884 = vsel %vm852, 1, 0
      %v885 = vsel %vm853, 1, 0
      %v886 = vsel %vm854, 1, 0
      %v887 = vsel %vm855, 1, 0
      %v888 = vsel %vm856, 1, 0
      %v889 = vsel %vm857, 1, 0
      %v890 = vsel %vm858, 1, 0
      %v891 = vsel %vm859, 1, 0
      %v892 = vsel %vm860, 1, 0
      %v893 = vsel %vm861, 1, 0
      %v894 = vsel %vm862, 1, 0
      %v895 = vsel %vm863, 1, 0
      %v896 = vsel %vm864, 1, 0
      %v897 = vsel %vm865, 1, 0
      %v898 = vsel %vm866, 1, 0
      %v899 = vsel %vm867, 1, 0
      %v900 = vsel %vm868, 1, 0
      %v901 = vcvt.s32.f32 %v869
      %v902 = vcvt.s32.f32 %v870
      %v903 = vcvt.s32.f32 %v871
      %v904 = vcvt.s32.f32 %v872
      %v905 = vcvt.s32.f32 %v873
      %v906 = vcvt.s32.f32 %v874
      %v907 = vcvt.s32.f32 %v875
      %v908 = vcvt.s32.f32 %v876
      %v909 = vcvt.s32.f32 %v877
      %v910 = vcvt.s32.f32 %v878
      %v911 = vcvt.s32.f32 %v879
      %v912 = vcvt.s32.f32 %v880
      %v913 = vcvt.s32.f32 %v881
      %v914 = vcvt.s32.f32 %v882
      %v915 = vcvt.s32.f32 %v883
      %v916 = vcvt.s32.f32 %v884
      %v917 = vcvt.s32.f32 %v885
      %v918 = vcvt.s32.f32 %v886
      %v919 = vcvt.s32.f32 %v887
      %v920 = vcvt.s32.f32 %v888
      %v921 = vcvt.s32.f32 %v889
      %v922 = vcvt.s32.f32 %v890
      %v923 = vcvt.s32.f32 %v891
      %v924 = vcvt.s32.f32 %v892
      %v925 = vcvt.s32.f32 %v893
      %v926 = vcvt.s32.f32 %v894
      %v927 = vcvt.s32.f32 %v895
      %v928 = vcvt.s32.f32 %v896
      %v929 = vcvt.s32.f32 %v897
      %v930 = vcvt.s32.f32 %v898
      %v931 = vcvt.s32.f32 %v899
      %v932 = vcvt.s32.f32 %v900
      %v933 = vld [vmem:[%s301] sm:$0xff]
      %v934 = vld [vmem:[%s301 + $0x8] sm:$0xff]
      %v935 = vld [vmem:[%s301 + $0x10] sm:$0xff]
      %v936 = vld [vmem:[%s301 + $0x18] sm:$0xff]
      %v937 = vld [vmem:[%s301 + $0x20] sm:$0xff]
      %v938 = vld [vmem:[%s301 + $0x28] sm:$0xff]
      %v939 = vld [vmem:[%s301 + $0x30] sm:$0xff]
      %v940 = vld [vmem:[%s301 + $0x38] sm:$0xff]
      %v941 = vld [vmem:[%s301 + $0x40] sm:$0xff]
      %v942 = vld [vmem:[%s301 + $0x48] sm:$0xff]
      %v943 = vld [vmem:[%s301 + $0x50] sm:$0xff]
      %v944 = vld [vmem:[%s301 + $0x58] sm:$0xff]
      %v945 = vld [vmem:[%s301 + $0x60] sm:$0xff]
      %v946 = vld [vmem:[%s301 + $0x68] sm:$0xff]
      %v947 = vld [vmem:[%s301 + $0x70] sm:$0xff]
      %v948 = vld [vmem:[%s301 + $0x78] sm:$0xff]
      %v949 = vld [vmem:[%s301 + $0x80] sm:$0xff]
      %v950 = vld [vmem:[%s301 + $0x88] sm:$0xff]
      %v951 = vld [vmem:[%s301 + $0x90] sm:$0xff]
      %v952 = vld [vmem:[%s301 + $0x98] sm:$0xff]
      %v953 = vld [vmem:[%s301 + $0xa0] sm:$0xff]
      %v954 = vld [vmem:[%s301 + $0xa8] sm:$0xff]
      %v955 = vld [vmem:[%s301 + $0xb0] sm:$0xff]
      %v956 = vld [vmem:[%s301 + $0xb8] sm:$0xff]
      %v957 = vld [vmem:[%s301 + $0xc0] sm:$0xff]
      %v958 = vld [vmem:[%s301 + $0xc8] sm:$0xff]
      %v959 = vld [vmem:[%s301 + $0xd0] sm:$0xff]
      %v960 = vld [vmem:[%s301 + $0xd8] sm:$0xff]
      %v961 = vld [vmem:[%s301 + $0xe0] sm:$0xff]
      %v962 = vld [vmem:[%s301 + $0xe8] sm:$0xff]
      %v963 = vld [vmem:[%s301 + $0xf0] sm:$0xff]
      %v964 = vld [vmem:[%s301 + $0xf8] sm:$0xff]
      %965 = vst.msk [vmem:[#allocation2 + $0x18] sm:$0xff] %vm310, %v933
      %966 = vst.msk [vmem:[#allocation2 + $0x20] sm:$0xff] %vm310, %v934
      %967 = vst.msk [vmem:[#allocation2 + $0x28] sm:$0xff] %vm310, %v935
      %968 = vst.msk [vmem:[#allocation2 + $0x30] sm:$0xff] %vm310, %v936
      %969 = vst.msk [vmem:[#allocation2 + $0x38] sm:$0xff] %vm310, %v937
      %970 = vst.msk [vmem:[#allocation2 + $0x40] sm:$0xff] %vm310, %v938
      %971 = vst.msk [vmem:[#allocation2 + $0x48] sm:$0xff] %vm310, %v939
      %972 = vst.msk [vmem:[#allocation2 + $0x50] sm:$0xff] %vm310, %v940
      %973 = vst.msk [vmem:[#allocation2 + $0x58] sm:$0xff] %vm310, %v941
      %974 = vst.msk [vmem:[#allocation2 + $0x60] sm:$0xff] %vm310, %v942
      %975 = vst.msk [vmem:[#allocation2 + $0x68] sm:$0xff] %vm310, %v943
      %976 = vst.msk [vmem:[#allocation2 + $0x70] sm:$0xff] %vm310, %v944
      %977 = vst.msk [vmem:[#allocation2 + $0x78] sm:$0xff] %vm310, %v945
      %978 = vst.msk [vmem:[#allocation2 + $0x80] sm:$0xff] %vm310, %v946
      %979 = vst.msk [vmem:[#allocation2 + $0x88] sm:$0xff] %vm310, %v947
      %980 = vst.msk [vmem:[#allocation2 + $0x90] sm:$0xff] %vm310, %v948
      %981 = vst.msk [vmem:[#allocation2 + $0x98] sm:$0xff] %vm310, %v949
      %982 = vst.msk [vmem:[#allocation2 + $0xa0] sm:$0xff] %vm310, %v950
      %983 = vst.msk [vmem:[#allocation2 + $0xa8] sm:$0xff] %vm310, %v951
      %984 = vst.msk [vmem:[#allocation2 + $0xb0] sm:$0xff] %vm310, %v952
      %985 = vst.msk [vmem:[#allocation2 + $0xb8] sm:$0xff] %vm310, %v953
      %986 = vst.msk [vmem:[#allocation2 + $0xc0] sm:$0xff] %vm310, %v954
      %987 = vst.msk [vmem:[#allocation2 + $0xc8] sm:$0xff] %vm310, %v955
      %988 = vst.msk [vmem:[#allocation2 + $0xd0] sm:$0xff] %vm310, %v956
      %989 = vst.msk [vmem:[#allocation2 + $0xd8] sm:$0xff] %vm310, %v957
      %990 = vst.msk [vmem:[#allocation2 + $0xe0] sm:$0xff] %vm310, %v958
      %991 = vst.msk [vmem:[#allocation2 + $0xe8] sm:$0xff] %vm310, %v959
      %992 = vst.msk [vmem:[#allocation2 + $0xf0] sm:$0xff] %vm310, %v960
      %993 = vst.msk [vmem:[#allocation2 + $0xf8] sm:$0xff] %vm310, %v961
      %994 = vst.msk [vmem:[#allocation2 + $0x100] sm:$0xff] %vm310, %v962
      %995 = vst.msk [vmem:[#allocation2 + $0x108] sm:$0xff] %vm310, %v963
      %996 = vst.msk [vmem:[#allocation2 + $0x110] sm:$0xff] %vm310, %v964
      %v997 = vld [vmem:[#allocation2 + $0x7] sm:$0xff]
      %v998 = vld [vmem:[#allocation2 + $0xf] sm:$0xff]
      %v999 = vld [vmem:[#allocation2 + $0x17] sm:$0xff]
      %v1000 = vld [vmem:[#allocation2 + $0x1f] sm:$0xff]
      %v1001 = vld [vmem:[#allocation2 + $0x27] sm:$0xff]
      %v1002 = vld [vmem:[#allocation2 + $0x2f] sm:$0xff]
      %v1003 = vld [vmem:[#allocation2 + $0x37] sm:$0xff]
      %v1004 = vld [vmem:[#allocation2 + $0x3f] sm:$0xff]
      %v1005 = vld [vmem:[#allocation2 + $0x47] sm:$0xff]
      %v1006 = vld [vmem:[#allocation2 + $0x4f] sm:$0xff]
      %v1007 = vld [vmem:[#allocation2 + $0x57] sm:$0xff]
      %v1008 = vld [vmem:[#allocation2 + $0x5f] sm:$0xff]
      %v1009 = vld [vmem:[#allocation2 + $0x67] sm:$0xff]
      %v1010 = vld [vmem:[#allocation2 + $0x6f] sm:$0xff]
      %v1011 = vld [vmem:[#allocation2 + $0x77] sm:$0xff]
      %v1012 = vld [vmem:[#allocation2 + $0x7f] sm:$0xff]
      %v1013 = vld [vmem:[#allocation2 + $0x87] sm:$0xff]
      %v1014 = vld [vmem:[#allocation2 + $0x8f] sm:$0xff]
      %v1015 = vld [vmem:[#allocation2 + $0x97] sm:$0xff]
      %v1016 = vld [vmem:[#allocation2 + $0x9f] sm:$0xff]
      %v1017 = vld [vmem:[#allocation2 + $0xa7] sm:$0xff]
      %v1018 = vld [vmem:[#allocation2 + $0xaf] sm:$0xff]
      %v1019 = vld [vmem:[#allocation2 + $0xb7] sm:$0xff]
      %v1020 = vld [vmem:[#allocation2 + $0xbf] sm:$0xff]
      %v1021 = vld [vmem:[#allocation2 + $0xc7] sm:$0xff]
      %v1022 = vld [vmem:[#allocation2 + $0xcf] sm:$0xff]
      %v1023 = vld [vmem:[#allocation2 + $0xd7] sm:$0xff]
      %v1024 = vld [vmem:[#allocation2 + $0xdf] sm:$0xff]
      %v1025 = vld [vmem:[#allocation2 + $0xe7] sm:$0xff]
      %v1026 = vld [vmem:[#allocation2 + $0xef] sm:$0xff]
      %v1027 = vld [vmem:[#allocation2 + $0xf7] sm:$0xff]
      %v1028 = vld [vmem:[#allocation2 + $0xff] sm:$0xff]
      %v1029 = vmul.f32 %v997, %v805
      %v1030 = vmul.f32 %v998, %v806
      %v1031 = vmul.f32 %v999, %v807
      %v1032 = vmul.f32 %v1000, %v808
      %v1033 = vmul.f32 %v1001, %v809
      %v1034 = vmul.f32 %v1002, %v810
      %v1035 = vmul.f32 %v1003, %v811
      %v1036 = vmul.f32 %v1004, %v812
      %v1037 = vmul.f32 %v1005, %v813
      %v1038 = vmul.f32 %v1006, %v814
      %v1039 = vmul.f32 %v1007, %v815
      %v1040 = vmul.f32 %v1008, %v816
      %v1041 = vmul.f32 %v1009, %v817
      %v1042 = vmul.f32 %v1010, %v818
      %v1043 = vmul.f32 %v1011, %v819
      %v1044 = vmul.f32 %v1012, %v820
      %v1045 = vmul.f32 %v1013, %v821
      %v1046 = vmul.f32 %v1014, %v822
      %v1047 = vmul.f32 %v1015, %v823
      %v1048 = vmul.f32 %v1016, %v824
      %v1049 = vmul.f32 %v1017, %v825
      %v1050 = vmul.f32 %v1018, %v826
      %v1051 = vmul.f32 %v1019, %v827
      %v1052 = vmul.f32 %v1020, %v828
      %v1053 = vmul.f32 %v1021, %v829
      %v1054 = vmul.f32 %v1022, %v830
      %v1055 = vmul.f32 %v1023, %v831
      %v1056 = vmul.f32 %v1024, %v832
      %v1057 = vmul.f32 %v1025, %v833
      %v1058 = vmul.f32 %v1026, %v834
      %v1059 = vmul.f32 %v1027, %v835
      %v1060 = vmul.f32 %v1028, %v836
      %v1061 = vpack.c.bf16 %v1030, %v1029
      %v1062 = vpack.c.bf16 %v1032, %v1031
      %v1063 = vpack.c.bf16 %v1034, %v1033
      %v1064 = vpack.c.bf16 %v1036, %v1035
      %v1065 = vpack.c.bf16 %v1038, %v1037
      %v1066 = vpack.c.bf16 %v1040, %v1039
      %v1067 = vpack.c.bf16 %v1042, %v1041
      %v1068 = vpack.c.bf16 %v1044, %v1043
      %v1069 = vpack.c.bf16 %v1046, %v1045
      %v1070 = vpack.c.bf16 %v1048, %v1047
      %v1071 = vpack.c.bf16 %v1050, %v1049
      %v1072 = vpack.c.bf16 %v1052, %v1051
      %v1073 = vpack.c.bf16 %v1054, %v1053
      %v1074 = vpack.c.bf16 %v1056, %v1055
      %v1075 = vpack.c.bf16 %v1058, %v1057
      %v1076 = vpack.c.bf16 %v1060, %v1059
      %v1077 = vld [vmem:[%s1] sm:$0xf]
      %v1078 = vld [vmem:[%s1 + $0x4] sm:$0xf]
      %v1079 = vld [vmem:[%s1 + $0x8] sm:$0xf]
      %v1080 = vld [vmem:[%s1 + $0xc] sm:$0xf]
      %v1081 = vld [vmem:[#allocation2 + $0x8] sm:$0xff]
      %v1082 = vld [vmem:[#allocation2 + $0x10] sm:$0xff]
      %v1083 = vld [vmem:[#allocation2 + $0x18] sm:$0xff]
      %v1084 = vld [vmem:[#allocation2 + $0x20] sm:$0xff]
      %v1085 = vld [vmem:[#allocation2 + $0x28] sm:$0xff]
      %v1086 = vld [vmem:[#allocation2 + $0x30] sm:$0xff]
      %v1087 = vld [vmem:[#allocation2 + $0x38] sm:$0xff]
      %v1088 = vld [vmem:[#allocation2 + $0x40] sm:$0xff]
      %v1089 = vld [vmem:[#allocation2 + $0x48] sm:$0xff]
      %v1090 = vld [vmem:[#allocation2 + $0x50] sm:$0xff]
      %v1091 = vld [vmem:[#allocation2 + $0x58] sm:$0xff]
      %v1092 = vld [vmem:[#allocation2 + $0x60] sm:$0xff]
      %v1093 = vld [vmem:[#allocation2 + $0x68] sm:$0xff]
      %v1094 = vld [vmem:[#allocation2 + $0x70] sm:$0xff]
      %v1095 = vld [vmem:[#allocation2 + $0x78] sm:$0xff]
      %v1096 = vld [vmem:[#allocation2 + $0x80] sm:$0xff]
      %v1097 = vld [vmem:[#allocation2 + $0x88] sm:$0xff]
      %v1098 = vld [vmem:[#allocation2 + $0x90] sm:$0xff]
      %v1099 = vld [vmem:[#allocation2 + $0x98] sm:$0xff]
      %v1100 = vld [vmem:[#allocation2 + $0xa0] sm:$0xff]
      %v1101 = vld [vmem:[#allocation2 + $0xa8] sm:$0xff]
      %v1102 = vld [vmem:[#allocation2 + $0xb0] sm:$0xff]
      %v1103 = vld [vmem:[#allocation2 + $0xb8] sm:$0xff]
      %v1104 = vld [vmem:[#allocation2 + $0xc0] sm:$0xff]
      %v1105 = vld [vmem:[#allocation2 + $0xc8] sm:$0xff]
      %v1106 = vld [vmem:[#allocation2 + $0xd0] sm:$0xff]
      %v1107 = vld [vmem:[#allocation2 + $0xd8] sm:$0xff]
      %v1108 = vld [vmem:[#allocation2 + $0xe0] sm:$0xff]
      %v1109 = vld [vmem:[#allocation2 + $0xe8] sm:$0xff]
      %v1110 = vld [vmem:[#allocation2 + $0xf0] sm:$0xff]
      %v1111 = vld [vmem:[#allocation2 + $0xf8] sm:$0xff]
      %v1112 = vld [vmem:[#allocation2 + $0x100] sm:$0xff]
      %v1113 = vpack.c.bf16 %v1082, %v1081
      %v1114 = vpack.c.bf16 %v1084, %v1083
      %v1115 = vpack.c.bf16 %v1086, %v1085
      %v1116 = vpack.c.bf16 %v1088, %v1087
      %v1117 = vpack.c.bf16 %v1090, %v1089
      %v1118 = vpack.c.bf16 %v1092, %v1091
      %v1119 = vpack.c.bf16 %v1094, %v1093
      %v1120 = vpack.c.bf16 %v1096, %v1095
      %v1121 = vpack.c.bf16 %v1098, %v1097
      %v1122 = vpack.c.bf16 %v1100, %v1099
      %v1123 = vpack.c.bf16 %v1102, %v1101
      %v1124 = vpack.c.bf16 %v1104, %v1103
      %v1125 = vpack.c.bf16 %v1106, %v1105
      %v1126 = vpack.c.bf16 %v1108, %v1107
      %v1127 = vpack.c.bf16 %v1110, %v1109
      %v1128 = vpack.c.bf16 %v1112, %v1111
      %s1129 = scalar_lea.vmem %s1, 16
      %v1130 = vld [vmem:[%s1129] sm:$0xf]
      %v1131 = vld [vmem:[%s1129 + $0x4] sm:$0xf]
      %v1132 = vld [vmem:[%s1129 + $0x8] sm:$0xf]
      %v1133 = vld [vmem:[%s1129 + $0xc] sm:$0xf]
      %v1138 = vunpack.c.l.b16 %v1130
      %v1139 = vunpack.c.l.b16 %v1131
      %v1140 = vunpack.c.l.b16 %v1132
      %v1141 = vunpack.c.l.b16 %v1133
      %v1142 = vpack.c.b16 %v1139, %v1138
      %v1143 = vpack.c.b16 %v1141, %v1140
      %v1147 = vsel %vm310, %v1113, 0
      %v1150 = vsel %vm310, %v1114, 0
      %v1153 = vsel %vm310, %v1115, 0
      %v1156 = vsel %vm310, %v1116, 0
      %v1159 = vsel %vm310, %v1117, 0
      %v1162 = vsel %vm310, %v1118, 0
      %v1165 = vsel %vm310, %v1119, 0
      %v1168 = vsel %vm310, %v1120, 0
      %v1171 = vsel %vm310, %v1121, 0
      %v1174 = vsel %vm310, %v1122, 0
      %v1177 = vsel %vm310, %v1123, 0
      %v1180 = vsel %vm310, %v1124, 0
      %v1183 = vsel %vm310, %v1125, 0
      %v1186 = vsel %vm310, %v1126, 0
      %v1189 = vsel %vm310, %v1127, 0
      %v1192 = vsel %vm310, %v1128, 0
      %1194 = vmatprep.subr.bf16.mxu0 0
      %1195 = vmatpush1.bf16.msra.mxu0 %v1142
      %1196 = vmatprep.subr.bf16.mxu0 0
      %1197 = vmatpush1.bf16.msra.mxu0 %v1143
      %1198 = vmatprep.subr.bf16.mxu0 0
      %1199 = vmatpush1.bf16.msra.mxu0 0
      %1200 = vmatprep.subr.bf16.mxu0 0
      %1201 = vmatpush1.bf16.msra.mxu0 0
      %1202 = vmatprep.subr.bf16.mxu0 0
      %1203 = vmatpush1.bf16.msra.mxu0 0
      %1204 = vmatprep.subr.bf16.mxu0 0
      %1205 = vmatpush1.bf16.msra.mxu0 0
      %1206 = vmatprep.subr.bf16.mxu0 0
      %1207 = vmatpush1.bf16.msra.mxu0 0
      %1208 = vmatprep.subr.bf16.mxu0 0
      %1209 = vmatpush1.bf16.msra.mxu0 0
      %1210 = vmatprep.subr.bf16.mxu0 0
      %1211 = vmatpush1.bf16.msra.mxu0 0
      %1212 = vmatprep.subr.bf16.mxu0 0
      %1213 = vmatpush1.bf16.msra.mxu0 0
      %1214 = vmatprep.subr.bf16.mxu0 0
      %1215 = vmatpush1.bf16.msra.mxu0 0
      %1216 = vmatprep.subr.bf16.mxu0 0
      %1217 = vmatpush1.bf16.msra.mxu0 0
      %1218 = vmatprep.subr.bf16.mxu0 0
      %1219 = vmatpush1.bf16.msra.mxu0 0
      %1220 = vmatprep.subr.bf16.mxu0 0
      %1221 = vmatpush1.bf16.msra.mxu0 0
      %1222 = vmatprep.subr.bf16.mxu0 0
      %1223 = vmatpush1.bf16.msra.mxu0 0
      %1224 = vmatprep.subr.bf16.mxu0 0
      %1225 = vmatpush1.bf16.msra.mxu0 0
      %1226 = vmatprep.mubr.bf16.mxu0 0
      %1227 = vmatmul.mubr.bf16.gmra.mrb[0].mxu0 %v1147
      %v1228 = vpop.f32.mrb[0].mxu0
      %v1229 = vadd.f32 0.0, %v1228
      %v1230 = vpop.f32.mrb[0].mxu0
      %v1231 = vpop.f32.mrb[0].mxu0
      %v1232 = vadd.f32 0.0, %v1231
      %v1233 = vpop.f32.mrb[0].mxu0
      %1234 = vmatprep.mubr.bf16.mxu0 0
      %1235 = vmatmul.mubr.bf16.gmra.mrb[0].mxu0 %v1150
      %v1236 = vpop.f32.mrb[0].mxu0
      %v1237 = vadd.f32 0.0, %v1236
      %v1238 = vpop.f32.mrb[0].mxu0
      %v1239 = vpop.f32.mrb[0].mxu0
      %v1240 = vadd.f32 0.0, %v1239
      %v1241 = vpop.f32.mrb[0].mxu0
      %1242 = vmatprep.mubr.bf16.mxu0 0
      %1243 = vmatmul.mubr.bf16.gmra.mrb[0].mxu0 %v1153
      %v1244 = vpop.f32.mrb[0].mxu0
      %v1245 = vadd.f32 0.0, %v1244
      %v1246 = vpop.f32.mrb[0].mxu0
      %v1247 = vpop.f32.mrb[0].mxu0
      %v1248 = vadd.f32 0.0, %v1247
      %v1249 = vpop.f32.mrb[0].mxu0
      %1250 = vmatprep.mubr.bf16.mxu0 0
      %1251 = vmatmul.mubr.bf16.gmra.mrb[0].mxu0 %v1156
      %v1252 = vpop.f32.mrb[0].mxu0
      %v1253 = vadd.f32 0.0, %v1252
      %v1254 = vpop.f32.mrb[0].mxu0
      %v1255 = vpop.f32.mrb[0].mxu0
      %v1256 = vadd.f32 0.0, %v1255
      %v1257 = vpop.f32.mrb[0].mxu0
      %1258 = vmatprep.mubr.bf16.mxu0 0
      %1259 = vmatmul.mubr.bf16.gmra.mrb[0].mxu0 %v1159
      %v1260 = vpop.f32.mrb[0].mxu0
      %v1261 = vadd.f32 0.0, %v1260
      %v1262 = vpop.f32.mrb[0].mxu0
      %v1263 = vpop.f32.mrb[0].mxu0
      %v1264 = vadd.f32 0.0, %v1263
      %v1265 = vpop.f32.mrb[0].mxu0
      %1266 = vmatprep.mubr.bf16.mxu0 0
      %1267 = vmatmul.mubr.bf16.gmra.mrb[0].mxu0 %v1162
      %v1268 = vpop.f32.mrb[0].mxu0
      %v1269 = vadd.f32 0.0, %v1268
      %v1270 = vpop.f32.mrb[0].mxu0
      %v1271 = vpop.f32.mrb[0].mxu0
      %v1272 = vadd.f32 0.0, %v1271
      %v1273 = vpop.f32.mrb[0].mxu0
      %1274 = vmatprep.mubr.bf16.mxu0 0
      %1275 = vmatmul.mubr.bf16.gmra.mrb[0].mxu0 %v1165
      %v1276 = vpop.f32.mrb[0].mxu0
      %v1277 = vadd.f32 0.0, %v1276
      %v1278 = vpop.f32.mrb[0].mxu0
      %v1279 = vpop.f32.mrb[0].mxu0
      %v1280 = vadd.f32 0.0, %v1279
      %v1281 = vpop.f32.mrb[0].mxu0
      %1282 = vmatprep.mubr.bf16.mxu0 0
      %1283 = vmatmul.mubr.bf16.gmra.mrb[0].mxu0 %v1168
      %v1284 = vpop.f32.mrb[0].mxu0
      %v1285 = vadd.f32 0.0, %v1284
      %v1286 = vpop.f32.mrb[0].mxu0
      %v1287 = vpop.f32.mrb[0].mxu0
      %v1288 = vadd.f32 0.0, %v1287
      %v1289 = vpop.f32.mrb[0].mxu0
      %1290 = vmatprep.mubr.bf16.mxu0 0
      %1291 = vmatmul.mubr.bf16.gmra.mrb[0].mxu0 %v1171
      %v1292 = vpop.f32.mrb[0].mxu0
      %v1293 = vadd.f32 0.0, %v1292
      %v1294 = vpop.f32.mrb[0].mxu0
      %v1295 = vpop.f32.mrb[0].mxu0
      %v1296 = vadd.f32 0.0, %v1295
      %v1297 = vpop.f32.mrb[0].mxu0
      %1298 = vmatprep.mubr.bf16.mxu0 0
      %1299 = vmatmul.mubr.bf16.gmra.mrb[0].mxu0 %v1174
      %v1300 = vpop.f32.mrb[0].mxu0
      %v1301 = vadd.f32 0.0, %v1300
      %v1302 = vpop.f32.mrb[0].mxu0
      %v1303 = vpop.f32.mrb[0].mxu0
      %v1304 = vadd.f32 0.0, %v1303
      %v1305 = vpop.f32.mrb[0].mxu0
      %1306 = vmatprep.mubr.bf16.mxu0 0
      %1307 = vmatmul.mubr.bf16.gmra.mrb[0].mxu0 %v1177
      %v1308 = vpop.f32.mrb[0].mxu0
      %v1309 = vadd.f32 0.0, %v1308
      %v1310 = vpop.f32.mrb[0].mxu0
      %v1311 = vpop.f32.mrb[0].mxu0
      %v1312 = vadd.f32 0.0, %v1311
      %v1313 = vpop.f32.mrb[0].mxu0
      %1314 = vmatprep.mubr.bf16.mxu0 0
      %1315 = vmatmul.mubr.bf16.gmra.mrb[0].mxu0 %v1180
      %v1316 = vpop.f32.mrb[0].mxu0
      %v1317 = vadd.f32 0.0, %v1316
      %v1318 = vpop.f32.mrb[0].mxu0
      %v1319 = vpop.f32.mrb[0].mxu0
      %v1320 = vadd.f32 0.0, %v1319
      %v1321 = vpop.f32.mrb[0].mxu0
      %1322 = vmatprep.mubr.bf16.mxu0 0
      %1323 = vmatmul.mubr.bf16.gmra.mrb[0].mxu0 %v1183
      %v1324 = vpop.f32.mrb[0].mxu0
      %v1325 = vadd.f32 0.0, %v1324
      %v1326 = vpop.f32.mrb[0].mxu0
      %v1327 = vpop.f32.mrb[0].mxu0
      %v1328 = vadd.f32 0.0, %v1327
      %v1329 = vpop.f32.mrb[0].mxu0
      %1330 = vmatprep.mubr.bf16.mxu0 0
      %1331 = vmatmul.mubr.bf16.gmra.mrb[0].mxu0 %v1186
      %v1332 = vpop.f32.mrb[0].mxu0
      %v1333 = vadd.f32 0.0, %v1332
      %v1334 = vpop.f32.mrb[0].mxu0
      %v1335 = vpop.f32.mrb[0].mxu0
      %v1336 = vadd.f32 0.0, %v1335
      %v1337 = vpop.f32.mrb[0].mxu0
      %1338 = vmatprep.mubr.bf16.mxu0 0
      %1339 = vmatmul.mubr.bf16.gmra.mrb[0].mxu0 %v1189
      %v1340 = vpop.f32.mrb[0].mxu0
      %v1341 = vadd.f32 0.0, %v1340
      %v1342 = vpop.f32.mrb[0].mxu0
      %v1343 = vpop.f32.mrb[0].mxu0
      %v1344 = vadd.f32 0.0, %v1343
      %v1345 = vpop.f32.mrb[0].mxu0
      %1346 = vmatprep.mubr.bf16.mxu0 0
      %1347 = vmatmul.mubr.bf16.gmra.mrb[0].mxu0 %v1192
      %v1348 = vpop.f32.mrb[0].mxu0
      %v1349 = vadd.f32 0.0, %v1348
      %v1350 = vpop.f32.mrb[0].mxu0
      %v1351 = vpop.f32.mrb[0].mxu0
      %v1352 = vadd.f32 0.0, %v1351
      %v1353 = vpop.f32.mrb[0].mxu0
      %1354 = vdwg.mxu0
      %v1359 = vunpack.c.l.b16 %v1077
      %v1360 = vunpack.c.l.b16 %v1078
      %v1361 = vunpack.c.l.b16 %v1079
      %v1362 = vunpack.c.l.b16 %v1080
      %v1363 = vpack.c.b16 %v1360, %v1359
      %v1364 = vpack.c.b16 %v1362, %v1361
      %v1368 = vsel %vm310, %v1061, 0
      %v1371 = vsel %vm310, %v1062, 0
      %v1374 = vsel %vm310, %v1063, 0
      %v1377 = vsel %vm310, %v1064, 0
      %v1380 = vsel %vm310, %v1065, 0
      %v1383 = vsel %vm310, %v1066, 0
      %v1386 = vsel %vm310, %v1067, 0
      %v1389 = vsel %vm310, %v1068, 0
      %v1392 = vsel %vm310, %v1069, 0
      %v1395 = vsel %vm310, %v1070, 0
      %v1398 = vsel %vm310, %v1071, 0
      %v1401 = vsel %vm310, %v1072, 0
      %v1404 = vsel %vm310, %v1073, 0
      %v1407 = vsel %vm310, %v1074, 0
      %v1410 = vsel %vm310, %v1075, 0
      %v1413 = vsel %vm310, %v1076, 0
      %1415 = vmatprep.subr.bf16.mxu0 0
      %1416 = vmatpush1.bf16.msra.mxu0 %v1363
      %1417 = vmatprep.subr.bf16.mxu0 0
      %1418 = vmatpush1.bf16.msra.mxu0 %v1364
      %1419 = vmatprep.subr.bf16.mxu0 0
      %1420 = vmatpush1.bf16.msra.mxu0 0
      %1421 = vmatprep.subr.bf16.mxu0 0
      %1422 = vmatpush1.bf16.msra.mxu0 0
      %1423 = vmatprep.subr.bf16.mxu0 0
      %1424 = vmatpush1.bf16.msra.mxu0 0
      %1425 = vmatprep.subr.bf16.mxu0 0
      %1426 = vmatpush1.bf16.msra.mxu0 0
      %1427 = vmatprep.subr.bf16.mxu0 0
      %1428 = vmatpush1.bf16.msra.mxu0 0
      %1429 = vmatprep.subr.bf16.mxu0 0
      %1430 = vmatpush1.bf16.msra.mxu0 0
      %1431 = vmatprep.subr.bf16.mxu0 0
      %1432 = vmatpush1.bf16.msra.mxu0 0
      %1433 = vmatprep.subr.bf16.mxu0 0
      %1434 = vmatpush1.bf16.msra.mxu0 0
      %1435 = vmatprep.subr.bf16.mxu0 0
      %1436 = vmatpush1.bf16.msra.mxu0 0
      %1437 = vmatprep.subr.bf16.mxu0 0
      %1438 = vmatpush1.bf16.msra.mxu0 0
      %1439 = vmatprep.subr.bf16.mxu0 0
      %1440 = vmatpush1.bf16.msra.mxu0 0
      %1441 = vmatprep.subr.bf16.mxu0 0
      %1442 = vmatpush1.bf16.msra.mxu0 0
      %1443 = vmatprep.subr.bf16.mxu0 0
      %1444 = vmatpush1.bf16.msra.mxu0 0
      %1445 = vmatprep.subr.bf16.mxu0 0
      %1446 = vmatpush1.bf16.msra.mxu0 0
      %1447 = vmatprep.mubr.bf16.mxu0 0
      %1448 = vmatmul.mubr.bf16.gmra.mrb[0].mxu0 %v1368
      %v1449 = vpop.f32.mrb[0].mxu0
      %v1450 = vadd.f32 %v1229, %v1449
      %v1451 = vpop.f32.mrb[0].mxu0
      %v1452 = vpop.f32.mrb[0].mxu0
      %v1453 = vadd.f32 %v1232, %v1452
      %v1454 = vpop.f32.mrb[0].mxu0
      %1455 = vmatprep.mubr.bf16.mxu0 0
      %1456 = vmatmul.mubr.bf16.gmra.mrb[0].mxu0 %v1371
      %v1457 = vpop.f32.mrb[0].mxu0
      %v1458 = vadd.f32 %v1237, %v1457
      %v1459 = vpop.f32.mrb[0].mxu0
      %v1460 = vpop.f32.mrb[0].mxu0
      %v1461 = vadd.f32 %v1240, %v1460
      %v1462 = vpop.f32.mrb[0].mxu0
      %1463 = vmatprep.mubr.bf16.mxu0 0
      %1464 = vmatmul.mubr.bf16.gmra.mrb[0].mxu0 %v1374
      %v1465 = vpop.f32.mrb[0].mxu0
      %v1466 = vadd.f32 %v1245, %v1465
      %v1467 = vpop.f32.mrb[0].mxu0
      %v1468 = vpop.f32.mrb[0].mxu0
      %v1469 = vadd.f32 %v1248, %v1468
      %v1470 = vpop.f32.mrb[0].mxu0
      %1471 = vmatprep.mubr.bf16.mxu0 0
      %1472 = vmatmul.mubr.bf16.gmra.mrb[0].mxu0 %v1377
      %v1473 = vpop.f32.mrb[0].mxu0
      %v1474 = vadd.f32 %v1253, %v1473
      %v1475 = vpop.f32.mrb[0].mxu0
      %v1476 = vpop.f32.mrb[0].mxu0
      %v1477 = vadd.f32 %v1256, %v1476
      %v1478 = vpop.f32.mrb[0].mxu0
      %1479 = vmatprep.mubr.bf16.mxu0 0
      %1480 = vmatmul.mubr.bf16.gmra.mrb[0].mxu0 %v1380
      %v1481 = vpop.f32.mrb[0].mxu0
      %v1482 = vadd.f32 %v1261, %v1481
      %v1483 = vpop.f32.mrb[0].mxu0
      %v1484 = vpop.f32.mrb[0].mxu0
      %v1485 = vadd.f32 %v1264, %v1484
      %v1486 = vpop.f32.mrb[0].mxu0
      %1487 = vmatprep.mubr.bf16.mxu0 0
      %1488 = vmatmul.mubr.bf16.gmra.mrb[0].mxu0 %v1383
      %v1489 = vpop.f32.mrb[0].mxu0
      %v1490 = vadd.f32 %v1269, %v1489
      %v1491 = vpop.f32.mrb[0].mxu0
      %v1492 = vpop.f32.mrb[0].mxu0
      %v1493 = vadd.f32 %v1272, %v1492
      %v1494 = vpop.f32.mrb[0].mxu0
      %1495 = vmatprep.mubr.bf16.mxu0 0
      %1496 = vmatmul.mubr.bf16.gmra.mrb[0].mxu0 %v1386
      %v1497 = vpop.f32.mrb[0].mxu0
      %v1498 = vadd.f32 %v1277, %v1497
      %v1499 = vpop.f32.mrb[0].mxu0
      %v1500 = vpop.f32.mrb[0].mxu0
      %v1501 = vadd.f32 %v1280, %v1500
      %v1502 = vpop.f32.mrb[0].mxu0
      %1503 = vmatprep.mubr.bf16.mxu0 0
      %1504 = vmatmul.mubr.bf16.gmra.mrb[0].mxu0 %v1389
      %v1505 = vpop.f32.mrb[0].mxu0
      %v1506 = vadd.f32 %v1285, %v1505
      %v1507 = vpop.f32.mrb[0].mxu0
      %v1508 = vpop.f32.mrb[0].mxu0
      %v1509 = vadd.f32 %v1288, %v1508
      %v1510 = vpop.f32.mrb[0].mxu0
      %1511 = vmatprep.mubr.bf16.mxu0 0
      %1512 = vmatmul.mubr.bf16.gmra.mrb[0].mxu0 %v1392
      %v1513 = vpop.f32.mrb[0].mxu0
      %v1514 = vadd.f32 %v1293, %v1513
      %v1515 = vpop.f32.mrb[0].mxu0
      %v1516 = vpop.f32.mrb[0].mxu0
      %v1517 = vadd.f32 %v1296, %v1516
      %v1518 = vpop.f32.mrb[0].mxu0
      %1519 = vmatprep.mubr.bf16.mxu0 0
      %1520 = vmatmul.mubr.bf16.gmra.mrb[0].mxu0 %v1395
      %v1521 = vpop.f32.mrb[0].mxu0
      %v1522 = vadd.f32 %v1301, %v1521
      %v1523 = vpop.f32.mrb[0].mxu0
      %v1524 = vpop.f32.mrb[0].mxu0
      %v1525 = vadd.f32 %v1304, %v1524
      %v1526 = vpop.f32.mrb[0].mxu0
      %1527 = vmatprep.mubr.bf16.mxu0 0
      %1528 = vmatmul.mubr.bf16.gmra.mrb[0].mxu0 %v1398
      %v1529 = vpop.f32.mrb[0].mxu0
      %v1530 = vadd.f32 %v1309, %v1529
      %v1531 = vpop.f32.mrb[0].mxu0
      %v1532 = vpop.f32.mrb[0].mxu0
      %v1533 = vadd.f32 %v1312, %v1532
      %v1534 = vpop.f32.mrb[0].mxu0
      %1535 = vmatprep.mubr.bf16.mxu0 0
      %1536 = vmatmul.mubr.bf16.gmra.mrb[0].mxu0 %v1401
      %v1537 = vpop.f32.mrb[0].mxu0
      %v1538 = vadd.f32 %v1317, %v1537
      %v1539 = vpop.f32.mrb[0].mxu0
      %v1540 = vpop.f32.mrb[0].mxu0
      %v1541 = vadd.f32 %v1320, %v1540
      %v1542 = vpop.f32.mrb[0].mxu0
      %1543 = vmatprep.mubr.bf16.mxu0 0
      %1544 = vmatmul.mubr.bf16.gmra.mrb[0].mxu0 %v1404
      %v1545 = vpop.f32.mrb[0].mxu0
      %v1546 = vadd.f32 %v1325, %v1545
      %v1547 = vpop.f32.mrb[0].mxu0
      %v1548 = vpop.f32.mrb[0].mxu0
      %v1549 = vadd.f32 %v1328, %v1548
      %v1550 = vpop.f32.mrb[0].mxu0
      %1551 = vmatprep.mubr.bf16.mxu0 0
      %1552 = vmatmul.mubr.bf16.gmra.mrb[0].mxu0 %v1407
      %v1553 = vpop.f32.mrb[0].mxu0
      %v1554 = vadd.f32 %v1333, %v1553
      %v1555 = vpop.f32.mrb[0].mxu0
      %v1556 = vpop.f32.mrb[0].mxu0
      %v1557 = vadd.f32 %v1336, %v1556
      %v1558 = vpop.f32.mrb[0].mxu0
      %1559 = vmatprep.mubr.bf16.mxu0 0
      %1560 = vmatmul.mubr.bf16.gmra.mrb[0].mxu0 %v1410
      %v1561 = vpop.f32.mrb[0].mxu0
      %v1562 = vadd.f32 %v1341, %v1561
      %v1563 = vpop.f32.mrb[0].mxu0
      %v1564 = vpop.f32.mrb[0].mxu0
      %v1565 = vadd.f32 %v1344, %v1564
      %v1566 = vpop.f32.mrb[0].mxu0
      %1567 = vmatprep.mubr.bf16.mxu0 0
      %1568 = vmatmul.mubr.bf16.gmra.mrb[0].mxu0 %v1413
      %v1569 = vpop.f32.mrb[0].mxu0
      %v1570 = vadd.f32 %v1349, %v1569
      %v1571 = vpop.f32.mrb[0].mxu0
      %v1572 = vpop.f32.mrb[0].mxu0
      %v1573 = vadd.f32 %v1352, %v1572
      %v1574 = vpop.f32.mrb[0].mxu0
      %1575 = vdwg.mxu0
      %v1576 = vld [vmem:[#allocation2 + $0x9] sm:$0xff]
      %v1577 = vld [vmem:[#allocation2 + $0x11] sm:$0xff]
      %v1578 = vld [vmem:[#allocation2 + $0x19] sm:$0xff]
      %v1579 = vld [vmem:[#allocation2 + $0x21] sm:$0xff]
      %v1580 = vld [vmem:[#allocation2 + $0x29] sm:$0xff]
      %v1581 = vld [vmem:[#allocation2 + $0x31] sm:$0xff]
      %v1582 = vld [vmem:[#allocation2 + $0x39] sm:$0xff]
      %v1583 = vld [vmem:[#allocation2 + $0x41] sm:$0xff]
      %v1584 = vld [vmem:[#allocation2 + $0x49] sm:$0xff]
      %v1585 = vld [vmem:[#allocation2 + $0x51] sm:$0xff]
      %v1586 = vld [vmem:[#allocation2 + $0x59] sm:$0xff]
      %v1587 = vld [vmem:[#allocation2 + $0x61] sm:$0xff]
      %v1588 = vld [vmem:[#allocation2 + $0x69] sm:$0xff]
      %v1589 = vld [vmem:[#allocation2 + $0x71] sm:$0xff]
      %v1590 = vld [vmem:[#allocation2 + $0x79] sm:$0xff]
      %v1591 = vld [vmem:[#allocation2 + $0x81] sm:$0xff]
      %v1592 = vld [vmem:[#allocation2 + $0x89] sm:$0xff]
      %v1593 = vld [vmem:[#allocation2 + $0x91] sm:$0xff]
      %v1594 = vld [vmem:[#allocation2 + $0x99] sm:$0xff]
      %v1595 = vld [vmem:[#allocation2 + $0xa1] sm:$0xff]
      %v1596 = vld [vmem:[#allocation2 + $0xa9] sm:$0xff]
      %v1597 = vld [vmem:[#allocation2 + $0xb1] sm:$0xff]
      %v1598 = vld [vmem:[#allocation2 + $0xb9] sm:$0xff]
      %v1599 = vld [vmem:[#allocation2 + $0xc1] sm:$0xff]
      %v1600 = vld [vmem:[#allocation2 + $0xc9] sm:$0xff]
      %v1601 = vld [vmem:[#allocation2 + $0xd1] sm:$0xff]
      %v1602 = vld [vmem:[#allocation2 + $0xd9] sm:$0xff]
      %v1603 = vld [vmem:[#allocation2 + $0xe1] sm:$0xff]
      %v1604 = vld [vmem:[#allocation2 + $0xe9] sm:$0xff]
      %v1605 = vld [vmem:[#allocation2 + $0xf1] sm:$0xff]
      %v1606 = vld [vmem:[#allocation2 + $0xf9] sm:$0xff]
      %v1607 = vld [vmem:[#allocation2 + $0x101] sm:$0xff]
      %v1608 = vmul.f32 %v1576, %v901
      %v1609 = vmul.f32 %v1577, %v902
      %v1610 = vmul.f32 %v1578, %v903
      %v1611 = vmul.f32 %v1579, %v904
      %v1612 = vmul.f32 %v1580, %v905
      %v1613 = vmul.f32 %v1581, %v906
      %v1614 = vmul.f32 %v1582, %v907
      %v1615 = vmul.f32 %v1583, %v908
      %v1616 = vmul.f32 %v1584, %v909
      %v1617 = vmul.f32 %v1585, %v910
      %v1618 = vmul.f32 %v1586, %v911
      %v1619 = vmul.f32 %v1587, %v912
      %v1620 = vmul.f32 %v1588, %v913
      %v1621 = vmul.f32 %v1589, %v914
      %v1622 = vmul.f32 %v1590, %v915
      %v1623 = vmul.f32 %v1591, %v916
      %v1624 = vmul.f32 %v1592, %v917
      %v1625 = vmul.f32 %v1593, %v918
      %v1626 = vmul.f32 %v1594, %v919
      %v1627 = vmul.f32 %v1595, %v920
      %v1628 = vmul.f32 %v1596, %v921
      %v1629 = vmul.f32 %v1597, %v922
      %v1630 = vmul.f32 %v1598, %v923
      %v1631 = vmul.f32 %v1599, %v924
      %v1632 = vmul.f32 %v1600, %v925
      %v1633 = vmul.f32 %v1601, %v926
      %v1634 = vmul.f32 %v1602, %v927
      %v1635 = vmul.f32 %v1603, %v928
      %v1636 = vmul.f32 %v1604, %v929
      %v1637 = vmul.f32 %v1605, %v930
      %v1638 = vmul.f32 %v1606, %v931
      %v1639 = vmul.f32 %v1607, %v932
      %v1640 = vpack.c.bf16 %v1609, %v1608
      %v1641 = vpack.c.bf16 %v1611, %v1610
      %v1642 = vpack.c.bf16 %v1613, %v1612
      %v1643 = vpack.c.bf16 %v1615, %v1614
      %v1644 = vpack.c.bf16 %v1617, %v1616
      %v1645 = vpack.c.bf16 %v1619, %v1618
      %v1646 = vpack.c.bf16 %v1621, %v1620
      %v1647 = vpack.c.bf16 %v1623, %v1622
      %v1648 = vpack.c.bf16 %v1625, %v1624
      %v1649 = vpack.c.bf16 %v1627, %v1626
      %v1650 = vpack.c.bf16 %v1629, %v1628
      %v1651 = vpack.c.bf16 %v1631, %v1630
      %v1652 = vpack.c.bf16 %v1633, %v1632
      %v1653 = vpack.c.bf16 %v1635, %v1634
      %v1654 = vpack.c.bf16 %v1637, %v1636
      %v1655 = vpack.c.bf16 %v1639, %v1638
      %s1656 = scalar_lea.vmem %s1, 32
      %v1657 = vld [vmem:[%s1656] sm:$0xf]
      %v1658 = vld [vmem:[%s1656 + $0x4] sm:$0xf]
      %v1659 = vld [vmem:[%s1656 + $0x8] sm:$0xf]
      %v1660 = vld [vmem:[%s1656 + $0xc] sm:$0xf]
      %v1665 = vunpack.c.l.b16 %v1657
      %v1666 = vunpack.c.l.b16 %v1658
      %v1667 = vunpack.c.l.b16 %v1659
      %v1668 = vunpack.c.l.b16 %v1660
      %v1669 = vpack.c.b16 %v1666, %v1665
      %v1670 = vpack.c.b16 %v1668, %v1667
      %v1674 = vsel %vm310, %v1640, 0
      %v1677 = vsel %vm310, %v1641, 0
      %v1680 = vsel %vm310, %v1642, 0
      %v1683 = vsel %vm310, %v1643, 0
      %v1686 = vsel %vm310, %v1644, 0
      %v1689 = vsel %vm310, %v1645, 0
      %v1692 = vsel %vm310, %v1646, 0
      %v1695 = vsel %vm310, %v1647, 0
      %v1698 = vsel %vm310, %v1648, 0
      %v1701 = vsel %vm310, %v1649, 0
      %v1704 = vsel %vm310, %v1650, 0
      %v1707 = vsel %vm310, %v1651, 0
      %v1710 = vsel %vm310, %v1652, 0
      %v1713 = vsel %vm310, %v1653, 0
      %v1716 = vsel %vm310, %v1654, 0
      %v1719 = vsel %vm310, %v1655, 0
      %1721 = vmatprep.subr.bf16.mxu0 0
      %1722 = vmatpush1.bf16.msra.mxu0 %v1669
      %1723 = vmatprep.subr.bf16.mxu0 0
      %1724 = vmatpush1.bf16.msra.mxu0 %v1670
      %1725 = vmatprep.subr.bf16.mxu0 0
      %1726 = vmatpush1.bf16.msra.mxu0 0
      %1727 = vmatprep.subr.bf16.mxu0 0
      %1728 = vmatpush1.bf16.msra.mxu0 0
      %1729 = vmatprep.subr.bf16.mxu0 0
      %1730 = vmatpush1.bf16.msra.mxu0 0
      %1731 = vmatprep.subr.bf16.mxu0 0
      %1732 = vmatpush1.bf16.msra.mxu0 0
      %1733 = vmatprep.subr.bf16.mxu0 0
      %1734 = vmatpush1.bf16.msra.mxu0 0
      %1735 = vmatprep.subr.bf16.mxu0 0
      %1736 = vmatpush1.bf16.msra.mxu0 0
      %1737 = vmatprep.subr.bf16.mxu0 0
      %1738 = vmatpush1.bf16.msra.mxu0 0
      %1739 = vmatprep.subr.bf16.mxu0 0
      %1740 = vmatpush1.bf16.msra.mxu0 0
      %1741 = vmatprep.subr.bf16.mxu0 0
      %1742 = vmatpush1.bf16.msra.mxu0 0
      %1743 = vmatprep.subr.bf16.mxu0 0
      %1744 = vmatpush1.bf16.msra.mxu0 0
      %1745 = vmatprep.subr.bf16.mxu0 0
      %1746 = vmatpush1.bf16.msra.mxu0 0
      %1747 = vmatprep.subr.bf16.mxu0 0
      %1748 = vmatpush1.bf16.msra.mxu0 0
      %1749 = vmatprep.subr.bf16.mxu0 0
      %1750 = vmatpush1.bf16.msra.mxu0 0
      %1751 = vmatprep.subr.bf16.mxu0 0
      %1752 = vmatpush1.bf16.msra.mxu0 0
      %1753 = vmatprep.mubr.bf16.mxu0 0
      %1754 = vmatmul.mubr.bf16.gmra.mrb[0].mxu0 %v1674
      %v1755 = vpop.f32.mrb[0].mxu0
      %v1756 = vadd.f32 0.0, %v1755
      %v1757 = vpop.f32.mrb[0].mxu0
      %v1758 = vpop.f32.mrb[0].mxu0
      %v1759 = vadd.f32 0.0, %v1758
      %v1760 = vpop.f32.mrb[0].mxu0
      %1761 = vmatprep.mubr.bf16.mxu0 0
      %1762 = vmatmul.mubr.bf16.gmra.mrb[0].mxu0 %v1677
      %v1763 = vpop.f32.mrb[0].mxu0
      %v1764 = vadd.f32 0.0, %v1763
      %v1765 = vpop.f32.mrb[0].mxu0
      %v1766 = vpop.f32.mrb[0].mxu0
      %v1767 = vadd.f32 0.0, %v1766
      %v1768 = vpop.f32.mrb[0].mxu0
      %1769 = vmatprep.mubr.bf16.mxu0 0
      %1770 = vmatmul.mubr.bf16.gmra.mrb[0].mxu0 %v1680
      %v1771 = vpop.f32.mrb[0].mxu0
      %v1772 = vadd.f32 0.0, %v1771
      %v1773 = vpop.f32.mrb[0].mxu0
      %v1774 = vpop.f32.mrb[0].mxu0
      %v1775 = vadd.f32 0.0, %v1774
      %v1776 = vpop.f32.mrb[0].mxu0
      %1777 = vmatprep.mubr.bf16.mxu0 0
      %1778 = vmatmul.mubr.bf16.gmra.mrb[0].mxu0 %v1683
      %v1779 = vpop.f32.mrb[0].mxu0
      %v1780 = vadd.f32 0.0, %v1779
      %v1781 = vpop.f32.mrb[0].mxu0
      %v1782 = vpop.f32.mrb[0].mxu0
      %v1783 = vadd.f32 0.0, %v1782
      %v1784 = vpop.f32.mrb[0].mxu0
      %1785 = vmatprep.mubr.bf16.mxu0 0
      %1786 = vmatmul.mubr.bf16.gmra.mrb[0].mxu0 %v1686
      %v1787 = vpop.f32.mrb[0].mxu0
      %v1788 = vadd.f32 0.0, %v1787
      %v1789 = vpop.f32.mrb[0].mxu0
      %v1790 = vpop.f32.mrb[0].mxu0
      %v1791 = vadd.f32 0.0, %v1790
      %v1792 = vpop.f32.mrb[0].mxu0
      %1793 = vmatprep.mubr.bf16.mxu0 0
      %1794 = vmatmul.mubr.bf16.gmra.mrb[0].mxu0 %v1689
      %v1795 = vpop.f32.mrb[0].mxu0
      %v1796 = vadd.f32 0.0, %v1795
      %v1797 = vpop.f32.mrb[0].mxu0
      %v1798 = vpop.f32.mrb[0].mxu0
      %v1799 = vadd.f32 0.0, %v1798
      %v1800 = vpop.f32.mrb[0].mxu0
      %1801 = vmatprep.mubr.bf16.mxu0 0
      %1802 = vmatmul.mubr.bf16.gmra.mrb[0].mxu0 %v1692
      %v1803 = vpop.f32.mrb[0].mxu0
      %v1804 = vadd.f32 0.0, %v1803
      %v1805 = vpop.f32.mrb[0].mxu0
      %v1806 = vpop.f32.mrb[0].mxu0
      %v1807 = vadd.f32 0.0, %v1806
      %v1808 = vpop.f32.mrb[0].mxu0
      %1809 = vmatprep.mubr.bf16.mxu0 0
      %1810 = vmatmul.mubr.bf16.gmra.mrb[0].mxu0 %v1695
      %v1811 = vpop.f32.mrb[0].mxu0
      %v1812 = vadd.f32 0.0, %v1811
      %v1813 = vpop.f32.mrb[0].mxu0
      %v1814 = vpop.f32.mrb[0].mxu0
      %v1815 = vadd.f32 0.0, %v1814
      %v1816 = vpop.f32.mrb[0].mxu0
      %1817 = vmatprep.mubr.bf16.mxu0 0
      %1818 = vmatmul.mubr.bf16.gmra.mrb[0].mxu0 %v1698
      %v1819 = vpop.f32.mrb[0].mxu0
      %v1820 = vadd.f32 0.0, %v1819
      %v1821 = vpop.f32.mrb[0].mxu0
      %v1822 = vpop.f32.mrb[0].mxu0
      %v1823 = vadd.f32 0.0, %v1822
      %v1824 = vpop.f32.mrb[0].mxu0
      %1825 = vmatprep.mubr.bf16.mxu0 0
      %1826 = vmatmul.mubr.bf16.gmra.mrb[0].mxu0 %v1701
      %v1827 = vpop.f32.mrb[0].mxu0
      %v1828 = vadd.f32 0.0, %v1827
      %v1829 = vpop.f32.mrb[0].mxu0
      %v1830 = vpop.f32.mrb[0].mxu0
      %v1831 = vadd.f32 0.0, %v1830
      %v1832 = vpop.f32.mrb[0].mxu0
      %1833 = vmatprep.mubr.bf16.mxu0 0
      %1834 = vmatmul.mubr.bf16.gmra.mrb[0].mxu0 %v1704
      %v1835 = vpop.f32.mrb[0].mxu0
      %v1836 = vadd.f32 0.0, %v1835
      %v1837 = vpop.f32.mrb[0].mxu0
      %v1838 = vpop.f32.mrb[0].mxu0
      %v1839 = vadd.f32 0.0, %v1838
      %v1840 = vpop.f32.mrb[0].mxu0
      %1841 = vmatprep.mubr.bf16.mxu0 0
      %1842 = vmatmul.mubr.bf16.gmra.mrb[0].mxu0 %v1707
      %v1843 = vpop.f32.mrb[0].mxu0
      %v1844 = vadd.f32 0.0, %v1843
      %v1845 = vpop.f32.mrb[0].mxu0
      %v1846 = vpop.f32.mrb[0].mxu0
      %v1847 = vadd.f32 0.0, %v1846
      %v1848 = vpop.f32.mrb[0].mxu0
      %1849 = vmatprep.mubr.bf16.mxu0 0
      %1850 = vmatmul.mubr.bf16.gmra.mrb[0].mxu0 %v1710
      %v1851 = vpop.f32.mrb[0].mxu0
      %v1852 = vadd.f32 0.0, %v1851
      %v1853 = vpop.f32.mrb[0].mxu0
      %v1854 = vpop.f32.mrb[0].mxu0
      %v1855 = vadd.f32 0.0, %v1854
      %v1856 = vpop.f32.mrb[0].mxu0
      %1857 = vmatprep.mubr.bf16.mxu0 0
      %1858 = vmatmul.mubr.bf16.gmra.mrb[0].mxu0 %v1713
      %v1859 = vpop.f32.mrb[0].mxu0
      %v1860 = vadd.f32 0.0, %v1859
      %v1861 = vpop.f32.mrb[0].mxu0
      %v1862 = vpop.f32.mrb[0].mxu0
      %v1863 = vadd.f32 0.0, %v1862
      %v1864 = vpop.f32.mrb[0].mxu0
      %1865 = vmatprep.mubr.bf16.mxu0 0
      %1866 = vmatmul.mubr.bf16.gmra.mrb[0].mxu0 %v1716
      %v1867 = vpop.f32.mrb[0].mxu0
      %v1868 = vadd.f32 0.0, %v1867
      %v1869 = vpop.f32.mrb[0].mxu0
      %v1870 = vpop.f32.mrb[0].mxu0
      %v1871 = vadd.f32 0.0, %v1870
      %v1872 = vpop.f32.mrb[0].mxu0
      %1873 = vmatprep.mubr.bf16.mxu0 0
      %1874 = vmatmul.mubr.bf16.gmra.mrb[0].mxu0 %v1719
      %v1875 = vpop.f32.mrb[0].mxu0
      %v1876 = vadd.f32 0.0, %v1875
      %v1877 = vpop.f32.mrb[0].mxu0
      %v1878 = vpop.f32.mrb[0].mxu0
      %v1879 = vadd.f32 0.0, %v1878
      %v1880 = vpop.f32.mrb[0].mxu0
      %1881 = vdwg.mxu0
      %v1882 = vadd.f32 %v1450, %v1756
      %v1883 = vadd.f32 %v1453, %v1759
      %v1884 = vadd.f32 %v1458, %v1764
      %v1885 = vadd.f32 %v1461, %v1767
      %v1886 = vadd.f32 %v1466, %v1772
      %v1887 = vadd.f32 %v1469, %v1775
      %v1888 = vadd.f32 %v1474, %v1780
      %v1889 = vadd.f32 %v1477, %v1783
      %v1890 = vadd.f32 %v1482, %v1788
      %v1891 = vadd.f32 %v1485, %v1791
      %v1892 = vadd.f32 %v1490, %v1796
      %v1893 = vadd.f32 %v1493, %v1799
      %v1894 = vadd.f32 %v1498, %v1804
      %v1895 = vadd.f32 %v1501, %v1807
      %v1896 = vadd.f32 %v1506, %v1812
      %v1897 = vadd.f32 %v1509, %v1815
      %v1898 = vadd.f32 %v1514, %v1820
      %v1899 = vadd.f32 %v1517, %v1823
      %v1900 = vadd.f32 %v1522, %v1828
      %v1901 = vadd.f32 %v1525, %v1831
      %v1902 = vadd.f32 %v1530, %v1836
      %v1903 = vadd.f32 %v1533, %v1839
      %v1904 = vadd.f32 %v1538, %v1844
      %v1905 = vadd.f32 %v1541, %v1847
      %v1906 = vadd.f32 %v1546, %v1852
      %v1907 = vadd.f32 %v1549, %v1855
      %v1908 = vadd.f32 %v1554, %v1860
      %v1909 = vadd.f32 %v1557, %v1863
      %v1910 = vadd.f32 %v1562, %v1868
      %v1911 = vadd.f32 %v1565, %v1871
      %v1912 = vadd.f32 %v1570, %v1876
      %v1913 = vadd.f32 %v1573, %v1879
      %v1914 = vld [vmem:[#allocation2 + $0x17] sm:$0xff]
      %v1915 = vld [vmem:[#allocation2 + $0x1f] sm:$0xff]
      %v1916 = vld [vmem:[#allocation2 + $0x27] sm:$0xff]
      %v1917 = vld [vmem:[#allocation2 + $0x2f] sm:$0xff]
      %v1918 = vld [vmem:[#allocation2 + $0x37] sm:$0xff]
      %v1919 = vld [vmem:[#allocation2 + $0x3f] sm:$0xff]
      %v1920 = vld [vmem:[#allocation2 + $0x47] sm:$0xff]
      %v1921 = vld [vmem:[#allocation2 + $0x4f] sm:$0xff]
      %v1922 = vld [vmem:[#allocation2 + $0x57] sm:$0xff]
      %v1923 = vld [vmem:[#allocation2 + $0x5f] sm:$0xff]
      %v1924 = vld [vmem:[#allocation2 + $0x67] sm:$0xff]
      %v1925 = vld [vmem:[#allocation2 + $0x6f] sm:$0xff]
      %v1926 = vld [vmem:[#allocation2 + $0x77] sm:$0xff]
      %v1927 = vld [vmem:[#allocation2 + $0x7f] sm:$0xff]
      %v1928 = vld [vmem:[#allocation2 + $0x87] sm:$0xff]
      %v1929 = vld [vmem:[#allocation2 + $0x8f] sm:$0xff]
      %v1930 = vld [vmem:[#allocation2 + $0x97] sm:$0xff]
      %v1931 = vld [vmem:[#allocation2 + $0x9f] sm:$0xff]
      %v1932 = vld [vmem:[#allocation2 + $0xa7] sm:$0xff]
      %v1933 = vld [vmem:[#allocation2 + $0xaf] sm:$0xff]
      %v1934 = vld [vmem:[#allocation2 + $0xb7] sm:$0xff]
      %v1935 = vld [vmem:[#allocation2 + $0xbf] sm:$0xff]
      %v1936 = vld [vmem:[#allocation2 + $0xc7] sm:$0xff]
      %v1937 = vld [vmem:[#allocation2 + $0xcf] sm:$0xff]
      %v1938 = vld [vmem:[#allocation2 + $0xd7] sm:$0xff]
      %v1939 = vld [vmem:[#allocation2 + $0xdf] sm:$0xff]
      %v1940 = vld [vmem:[#allocation2 + $0xe7] sm:$0xff]
      %v1941 = vld [vmem:[#allocation2 + $0xef] sm:$0xff]
      %v1942 = vld [vmem:[#allocation2 + $0xf7] sm:$0xff]
      %v1943 = vld [vmem:[#allocation2 + $0xff] sm:$0xff]
      %v1944 = vld [vmem:[#allocation2 + $0x107] sm:$0xff]
      %v1945 = vld [vmem:[#allocation2 + $0x10f] sm:$0xff]
      %v1946 = vmul.f32 %v1914, %v805
      %v1947 = vmul.f32 %v1915, %v806
      %v1948 = vmul.f32 %v1916, %v807
      %v1949 = vmul.f32 %v1917, %v808
      %v1950 = vmul.f32 %v1918, %v809
      %v1951 = vmul.f32 %v1919, %v810
      %v1952 = vmul.f32 %v1920, %v811
      %v1953 = vmul.f32 %v1921, %v812
      %v1954 = vmul.f32 %v1922, %v813
      %v1955 = vmul.f32 %v1923, %v814
      %v1956 = vmul.f32 %v1924, %v815
      %v1957 = vmul.f32 %v1925, %v816
      %v1958 = vmul.f32 %v1926, %v817
      %v1959 = vmul.f32 %v1927, %v818
      %v1960 = vmul.f32 %v1928, %v819
      %v1961 = vmul.f32 %v1929, %v820
      %v1962 = vmul.f32 %v1930, %v821
      %v1963 = vmul.f32 %v1931, %v822
      %v1964 = vmul.f32 %v1932, %v823
      %v1965 = vmul.f32 %v1933, %v824
      %v1966 = vmul.f32 %v1934, %v825
      %v1967 = vmul.f32 %v1935, %v826
      %v1968 = vmul.f32 %v1936, %v827
      %v1969 = vmul.f32 %v1937, %v828
      %v1970 = vmul.f32 %v1938, %v829
      %v1971 = vmul.f32 %v1939, %v830
      %v1972 = vmul.f32 %v1940, %v831
      %v1973 = vmul.f32 %v1941, %v832
      %v1974 = vmul.f32 %v1942, %v833
      %v1975 = vmul.f32 %v1943, %v834
      %v1976 = vmul.f32 %v1944, %v835
      %v1977 = vmul.f32 %v1945, %v836
      %v1978 = vpack.c.bf16 %v1947, %v1946
      %v1979 = vpack.c.bf16 %v1949, %v1948
      %v1980 = vpack.c.bf16 %v1951, %v1950
      %v1981 = vpack.c.bf16 %v1953, %v1952
      %v1982 = vpack.c.bf16 %v1955, %v1954
      %v1983 = vpack.c.bf16 %v1957, %v1956
      %v1984 = vpack.c.bf16 %v1959, %v1958
      %v1985 = vpack.c.bf16 %v1961, %v1960
      %v1986 = vpack.c.bf16 %v1963, %v1962
      %v1987 = vpack.c.bf16 %v1965, %v1964
      %v1988 = vpack.c.bf16 %v1967, %v1966
      %v1989 = vpack.c.bf16 %v1969, %v1968
      %v1990 = vpack.c.bf16 %v1971, %v1970
      %v1991 = vpack.c.bf16 %v1973, %v1972
      %v1992 = vpack.c.bf16 %v1975, %v1974
      %v1993 = vpack.c.bf16 %v1977, %v1976
      %s1994 = scalar_lea.vmem %s1, 48
      %v1995 = vld [vmem:[%s1994] sm:$0xf]
      %v1996 = vld [vmem:[%s1994 + $0x4] sm:$0xf]
      %v1997 = vld [vmem:[%s1994 + $0x8] sm:$0xf]
      %v1998 = vld [vmem:[%s1994 + $0xc] sm:$0xf]
      %v2003 = vunpack.c.l.b16 %v1995
      %v2004 = vunpack.c.l.b16 %v1996
      %v2005 = vunpack.c.l.b16 %v1997
      %v2006 = vunpack.c.l.b16 %v1998
      %v2007 = vpack.c.b16 %v2004, %v2003
      %v2008 = vpack.c.b16 %v2006, %v2005
      %v2012 = vsel %vm310, %v1978, 0
      %v2015 = vsel %vm310, %v1979, 0
      %v2018 = vsel %vm310, %v1980, 0
      %v2021 = vsel %vm310, %v1981, 0
      %v2024 = vsel %vm310, %v1982, 0
      %v2027 = vsel %vm310, %v1983, 0
      %v2030 = vsel %vm310, %v1984, 0
      %v2033 = vsel %vm310, %v1985, 0
      %v2036 = vsel %vm310, %v1986, 0
      %v2039 = vsel %vm310, %v1987, 0
      %v2042 = vsel %vm310, %v1988, 0
      %v2045 = vsel %vm310, %v1989, 0
      %v2048 = vsel %vm310, %v1990, 0
      %v2051 = vsel %vm310, %v1991, 0
      %v2054 = vsel %vm310, %v1992, 0
      %v2057 = vsel %vm310, %v1993, 0
      %2059 = vmatprep.subr.bf16.mxu0 0
      %2060 = vmatpush1.bf16.msra.mxu0 %v2007
      %2061 = vmatprep.subr.bf16.mxu0 0
      %2062 = vmatpush1.bf16.msra.mxu0 %v2008
      %2063 = vmatprep.subr.bf16.mxu0 0
      %2064 = vmatpush1.bf16.msra.mxu0 0
      %2065 = vmatprep.subr.bf16.mxu0 0
      %2066 = vmatpush1.bf16.msra.mxu0 0
      %2067 = vmatprep.subr.bf16.mxu0 0
      %2068 = vmatpush1.bf16.msra.mxu0 0
      %2069 = vmatprep.subr.bf16.mxu0 0
      %2070 = vmatpush1.bf16.msra.mxu0 0
      %2071 = vmatprep.subr.bf16.mxu0 0
      %2072 = vmatpush1.bf16.msra.mxu0 0
      %2073 = vmatprep.subr.bf16.mxu0 0
      %2074 = vmatpush1.bf16.msra.mxu0 0
      %2075 = vmatprep.subr.bf16.mxu0 0
      %2076 = vmatpush1.bf16.msra.mxu0 0
      %2077 = vmatprep.subr.bf16.mxu0 0
      %2078 = vmatpush1.bf16.msra.mxu0 0
      %2079 = vmatprep.subr.bf16.mxu0 0
      %2080 = vmatpush1.bf16.msra.mxu0 0
      %2081 = vmatprep.subr.bf16.mxu0 0
      %2082 = vmatpush1.bf16.msra.mxu0 0
      %2083 = vmatprep.subr.bf16.mxu0 0
      %2084 = vmatpush1.bf16.msra.mxu0 0
      %2085 = vmatprep.subr.bf16.mxu0 0
      %2086 = vmatpush1.bf16.msra.mxu0 0
      %2087 = vmatprep.subr.bf16.mxu0 0
      %2088 = vmatpush1.bf16.msra.mxu0 0
      %2089 = vmatprep.subr.bf16.mxu0 0
      %2090 = vmatpush1.bf16.msra.mxu0 0
      %2091 = vmatprep.mubr.bf16.mxu0 0
      %2092 = vmatmul.mubr.bf16.gmra.mrb[0].mxu0 %v2012
      %v2093 = vpop.f32.mrb[0].mxu0
      %v2094 = vadd.f32 0.0, %v2093
      %v2095 = vpop.f32.mrb[0].mxu0
      %v2096 = vpop.f32.mrb[0].mxu0
      %v2097 = vadd.f32 0.0, %v2096
      %v2098 = vpop.f32.mrb[0].mxu0
      %2099 = vmatprep.mubr.bf16.mxu0 0
      %2100 = vmatmul.mubr.bf16.gmra.mrb[0].mxu0 %v2015
      %v2101 = vpop.f32.mrb[0].mxu0
      %v2102 = vadd.f32 0.0, %v2101
      %v2103 = vpop.f32.mrb[0].mxu0
      %v2104 = vpop.f32.mrb[0].mxu0
      %v2105 = vadd.f32 0.0, %v2104
      %v2106 = vpop.f32.mrb[0].mxu0
      %2107 = vmatprep.mubr.bf16.mxu0 0
      %2108 = vmatmul.mubr.bf16.gmra.mrb[0].mxu0 %v2018
      %v2109 = vpop.f32.mrb[0].mxu0
      %v2110 = vadd.f32 0.0, %v2109
      %v2111 = vpop.f32.mrb[0].mxu0
      %v2112 = vpop.f32.mrb[0].mxu0
      %v2113 = vadd.f32 0.0, %v2112
      %v2114 = vpop.f32.mrb[0].mxu0
      %2115 = vmatprep.mubr.bf16.mxu0 0
      %2116 = vmatmul.mubr.bf16.gmra.mrb[0].mxu0 %v2021
      %v2117 = vpop.f32.mrb[0].mxu0
      %v2118 = vadd.f32 0.0, %v2117
      %v2119 = vpop.f32.mrb[0].mxu0
      %v2120 = vpop.f32.mrb[0].mxu0
      %v2121 = vadd.f32 0.0, %v2120
      %v2122 = vpop.f32.mrb[0].mxu0
      %2123 = vmatprep.mubr.bf16.mxu0 0
      %2124 = vmatmul.mubr.bf16.gmra.mrb[0].mxu0 %v2024
      %v2125 = vpop.f32.mrb[0].mxu0
      %v2126 = vadd.f32 0.0, %v2125
      %v2127 = vpop.f32.mrb[0].mxu0
      %v2128 = vpop.f32.mrb[0].mxu0
      %v2129 = vadd.f32 0.0, %v2128
      %v2130 = vpop.f32.mrb[0].mxu0
      %2131 = vmatprep.mubr.bf16.mxu0 0
      %2132 = vmatmul.mubr.bf16.gmra.mrb[0].mxu0 %v2027
      %v2133 = vpop.f32.mrb[0].mxu0
      %v2134 = vadd.f32 0.0, %v2133
      %v2135 = vpop.f32.mrb[0].mxu0
      %v2136 = vpop.f32.mrb[0].mxu0
      %v2137 = vadd.f32 0.0, %v2136
      %v2138 = vpop.f32.mrb[0].mxu0
      %2139 = vmatprep.mubr.bf16.mxu0 0
      %2140 = vmatmul.mubr.bf16.gmra.mrb[0].mxu0 %v2030
      %v2141 = vpop.f32.mrb[0].mxu0
      %v2142 = vadd.f32 0.0, %v2141
      %v2143 = vpop.f32.mrb[0].mxu0
      %v2144 = vpop.f32.mrb[0].mxu0
      %v2145 = vadd.f32 0.0, %v2144
      %v2146 = vpop.f32.mrb[0].mxu0
      %2147 = vmatprep.mubr.bf16.mxu0 0
      %2148 = vmatmul.mubr.bf16.gmra.mrb[0].mxu0 %v2033
      %v2149 = vpop.f32.mrb[0].mxu0
      %v2150 = vadd.f32 0.0, %v2149
      %v2151 = vpop.f32.mrb[0].mxu0
      %v2152 = vpop.f32.mrb[0].mxu0
      %v2153 = vadd.f32 0.0, %v2152
      %v2154 = vpop.f32.mrb[0].mxu0
      %2155 = vmatprep.mubr.bf16.mxu0 0
      %2156 = vmatmul.mubr.bf16.gmra.mrb[0].mxu0 %v2036
      %v2157 = vpop.f32.mrb[0].mxu0
      %v2158 = vadd.f32 0.0, %v2157
      %v2159 = vpop.f32.mrb[0].mxu0
      %v2160 = vpop.f32.mrb[0].mxu0
      %v2161 = vadd.f32 0.0, %v2160
      %v2162 = vpop.f32.mrb[0].mxu0
      %2163 = vmatprep.mubr.bf16.mxu0 0
      %2164 = vmatmul.mubr.bf16.gmra.mrb[0].mxu0 %v2039
      %v2165 = vpop.f32.mrb[0].mxu0
      %v2166 = vadd.f32 0.0, %v2165
      %v2167 = vpop.f32.mrb[0].mxu0
      %v2168 = vpop.f32.mrb[0].mxu0
      %v2169 = vadd.f32 0.0, %v2168
      %v2170 = vpop.f32.mrb[0].mxu0
      %2171 = vmatprep.mubr.bf16.mxu0 0
      %2172 = vmatmul.mubr.bf16.gmra.mrb[0].mxu0 %v2042
      %v2173 = vpop.f32.mrb[0].mxu0
      %v2174 = vadd.f32 0.0, %v2173
      %v2175 = vpop.f32.mrb[0].mxu0
      %v2176 = vpop.f32.mrb[0].mxu0
      %v2177 = vadd.f32 0.0, %v2176
      %v2178 = vpop.f32.mrb[0].mxu0
      %2179 = vmatprep.mubr.bf16.mxu0 0
      %2180 = vmatmul.mubr.bf16.gmra.mrb[0].mxu0 %v2045
      %v2181 = vpop.f32.mrb[0].mxu0
      %v2182 = vadd.f32 0.0, %v2181
      %v2183 = vpop.f32.mrb[0].mxu0
      %v2184 = vpop.f32.mrb[0].mxu0
      %v2185 = vadd.f32 0.0, %v2184
      %v2186 = vpop.f32.mrb[0].mxu0
      %2187 = vmatprep.mubr.bf16.mxu0 0
      %2188 = vmatmul.mubr.bf16.gmra.mrb[0].mxu0 %v2048
      %v2189 = vpop.f32.mrb[0].mxu0
      %v2190 = vadd.f32 0.0, %v2189
      %v2191 = vpop.f32.mrb[0].mxu0
      %v2192 = vpop.f32.mrb[0].mxu0
      %v2193 = vadd.f32 0.0, %v2192
      %v2194 = vpop.f32.mrb[0].mxu0
      %2195 = vmatprep.mubr.bf16.mxu0 0
      %2196 = vmatmul.mubr.bf16.gmra.mrb[0].mxu0 %v2051
      %v2197 = vpop.f32.mrb[0].mxu0
      %v2198 = vadd.f32 0.0, %v2197
      %v2199 = vpop.f32.mrb[0].mxu0
      %v2200 = vpop.f32.mrb[0].mxu0
      %v2201 = vadd.f32 0.0, %v2200
      %v2202 = vpop.f32.mrb[0].mxu0
      %2203 = vmatprep.mubr.bf16.mxu0 0
      %2204 = vmatmul.mubr.bf16.gmra.mrb[0].mxu0 %v2054
      %v2205 = vpop.f32.mrb[0].mxu0
      %v2206 = vadd.f32 0.0, %v2205
      %v2207 = vpop.f32.mrb[0].mxu0
      %v2208 = vpop.f32.mrb[0].mxu0
      %v2209 = vadd.f32 0.0, %v2208
      %v2210 = vpop.f32.mrb[0].mxu0
      %2211 = vmatprep.mubr.bf16.mxu0 0
      %2212 = vmatmul.mubr.bf16.gmra.mrb[0].mxu0 %v2057
      %v2213 = vpop.f32.mrb[0].mxu0
      %v2214 = vadd.f32 0.0, %v2213
      %v2215 = vpop.f32.mrb[0].mxu0
      %v2216 = vpop.f32.mrb[0].mxu0
      %v2217 = vadd.f32 0.0, %v2216
      %v2218 = vpop.f32.mrb[0].mxu0
      %2219 = vdwg.mxu0
      %v2220 = vadd.f32 %v1882, %v2094
      %v2221 = vadd.f32 %v1883, %v2097
      %v2222 = vadd.f32 %v1884, %v2102
      %v2223 = vadd.f32 %v1885, %v2105
      %v2224 = vadd.f32 %v1886, %v2110
      %v2225 = vadd.f32 %v1887, %v2113
      %v2226 = vadd.f32 %v1888, %v2118
      %v2227 = vadd.f32 %v1889, %v2121
      %v2228 = vadd.f32 %v1890, %v2126
      %v2229 = vadd.f32 %v1891, %v2129
      %v2230 = vadd.f32 %v1892, %v2134
      %v2231 = vadd.f32 %v1893, %v2137
      %v2232 = vadd.f32 %v1894, %v2142
      %v2233 = vadd.f32 %v1895, %v2145
      %v2234 = vadd.f32 %v1896, %v2150
      %v2235 = vadd.f32 %v1897, %v2153
      %v2236 = vadd.f32 %v1898, %v2158
      %v2237 = vadd.f32 %v1899, %v2161
      %v2238 = vadd.f32 %v1900, %v2166
      %v2239 = vadd.f32 %v1901, %v2169
      %v2240 = vadd.f32 %v1902, %v2174
      %v2241 = vadd.f32 %v1903, %v2177
      %v2242 = vadd.f32 %v1904, %v2182
      %v2243 = vadd.f32 %v1905, %v2185
      %v2244 = vadd.f32 %v1906, %v2190
      %v2245 = vadd.f32 %v1907, %v2193
      %v2246 = vadd.f32 %v1908, %v2198
      %v2247 = vadd.f32 %v1909, %v2201
      %v2248 = vadd.f32 %v1910, %v2206
      %v2249 = vadd.f32 %v1911, %v2209
      %v2250 = vadd.f32 %v1912, %v2214
      %v2251 = vadd.f32 %v1913, %v2217
      %v2252 = vld [vmem:[#allocation2 + $0x18] sm:$0xff]
      %v2253 = vld [vmem:[#allocation2 + $0x20] sm:$0xff]
      %v2254 = vld [vmem:[#allocation2 + $0x28] sm:$0xff]
      %v2255 = vld [vmem:[#allocation2 + $0x30] sm:$0xff]
      %v2256 = vld [vmem:[#allocation2 + $0x38] sm:$0xff]
      %v2257 = vld [vmem:[#allocation2 + $0x40] sm:$0xff]
      %v2258 = vld [vmem:[#allocation2 + $0x48] sm:$0xff]
      %v2259 = vld [vmem:[#allocation2 + $0x50] sm:$0xff]
      %v2260 = vld [vmem:[#allocation2 + $0x58] sm:$0xff]
      %v2261 = vld [vmem:[#allocation2 + $0x60] sm:$0xff]
      %v2262 = vld [vmem:[#allocation2 + $0x68] sm:$0xff]
      %v2263 = vld [vmem:[#allocation2 + $0x70] sm:$0xff]
      %v2264 = vld [vmem:[#allocation2 + $0x78] sm:$0xff]
      %v2265 = vld [vmem:[#allocation2 + $0x80] sm:$0xff]
      %v2266 = vld [vmem:[#allocation2 + $0x88] sm:$0xff]
      %v2267 = vld [vmem:[#allocation2 + $0x90] sm:$0xff]
      %v2268 = vld [vmem:[#allocation2 + $0x98] sm:$0xff]
      %v2269 = vld [vmem:[#allocation2 + $0xa0] sm:$0xff]
      %v2270 = vld [vmem:[#allocation2 + $0xa8] sm:$0xff]
      %v2271 = vld [vmem:[#allocation2 + $0xb0] sm:$0xff]
      %v2272 = vld [vmem:[#allocation2 + $0xb8] sm:$0xff]
      %v2273 = vld [vmem:[#allocation2 + $0xc0] sm:$0xff]
      %v2274 = vld [vmem:[#allocation2 + $0xc8] sm:$0xff]
      %v2275 = vld [vmem:[#allocation2 + $0xd0] sm:$0xff]
      %v2276 = vld [vmem:[#allocation2 + $0xd8] sm:$0xff]
      %v2277 = vld [vmem:[#allocation2 + $0xe0] sm:$0xff]
      %v2278 = vld [vmem:[#allocation2 + $0xe8] sm:$0xff]
      %v2279 = vld [vmem:[#allocation2 + $0xf0] sm:$0xff]
      %v2280 = vld [vmem:[#allocation2 + $0xf8] sm:$0xff]
      %v2281 = vld [vmem:[#allocation2 + $0x100] sm:$0xff]
      %v2282 = vld [vmem:[#allocation2 + $0x108] sm:$0xff]
      %v2283 = vld [vmem:[#allocation2 + $0x110] sm:$0xff]
      %v2284 = vpack.c.bf16 %v2253, %v2252
      %v2285 = vpack.c.bf16 %v2255, %v2254
      %v2286 = vpack.c.bf16 %v2257, %v2256
      %v2287 = vpack.c.bf16 %v2259, %v2258
      %v2288 = vpack.c.bf16 %v2261, %v2260
      %v2289 = vpack.c.bf16 %v2263, %v2262
      %v2290 = vpack.c.bf16 %v2265, %v2264
      %v2291 = vpack.c.bf16 %v2267, %v2266
      %v2292 = vpack.c.bf16 %v2269, %v2268
      %v2293 = vpack.c.bf16 %v2271, %v2270
      %v2294 = vpack.c.bf16 %v2273, %v2272
      %v2295 = vpack.c.bf16 %v2275, %v2274
      %v2296 = vpack.c.bf16 %v2277, %v2276
      %v2297 = vpack.c.bf16 %v2279, %v2278
      %v2298 = vpack.c.bf16 %v2281, %v2280
      %v2299 = vpack.c.bf16 %v2283, %v2282
      %s2300 = scalar_lea.vmem %s1, 64
      %v2301 = vld [vmem:[%s2300] sm:$0xf]
      %v2302 = vld [vmem:[%s2300 + $0x4] sm:$0xf]
      %v2303 = vld [vmem:[%s2300 + $0x8] sm:$0xf]
      %v2304 = vld [vmem:[%s2300 + $0xc] sm:$0xf]
      %v2309 = vunpack.c.l.b16 %v2301
      %v2310 = vunpack.c.l.b16 %v2302
      %v2311 = vunpack.c.l.b16 %v2303
      %v2312 = vunpack.c.l.b16 %v2304
      %v2313 = vpack.c.b16 %v2310, %v2309
      %v2314 = vpack.c.b16 %v2312, %v2311
      %v2318 = vsel %vm310, %v2284, 0
      %v2321 = vsel %vm310, %v2285, 0
      %v2324 = vsel %vm310, %v2286, 0
      %v2327 = vsel %vm310, %v2287, 0
      %v2330 = vsel %vm310, %v2288, 0
      %v2333 = vsel %vm310, %v2289, 0
      %v2336 = vsel %vm310, %v2290, 0
      %v2339 = vsel %vm310, %v2291, 0
      %v2342 = vsel %vm310, %v2292, 0
      %v2345 = vsel %vm310, %v2293, 0
      %v2348 = vsel %vm310, %v2294, 0
      %v2351 = vsel %vm310, %v2295, 0
      %v2354 = vsel %vm310, %v2296, 0
      %v2357 = vsel %vm310, %v2297, 0
      %v2360 = vsel %vm310, %v2298, 0
      %v2363 = vsel %vm310, %v2299, 0
      %2365 = vmatprep.subr.bf16.mxu0 0
      %2366 = vmatpush1.bf16.msra.mxu0 %v2313
      %2367 = vmatprep.subr.bf16.mxu0 0
      %2368 = vmatpush1.bf16.msra.mxu0 %v2314
      %2369 = vmatprep.subr.bf16.mxu0 0
      %2370 = vmatpush1.bf16.msra.mxu0 0
      %2371 = vmatprep.subr.bf16.mxu0 0
      %2372 = vmatpush1.bf16.msra.mxu0 0
      %2373 = vmatprep.subr.bf16.mxu0 0
      %2374 = vmatpush1.bf16.msra.mxu0 0
      %2375 = vmatprep.subr.bf16.mxu0 0
      %2376 = vmatpush1.bf16.msra.mxu0 0
      %2377 = vmatprep.subr.bf16.mxu0 0
      %2378 = vmatpush1.bf16.msra.mxu0 0
      %2379 = vmatprep.subr.bf16.mxu0 0
      %2380 = vmatpush1.bf16.msra.mxu0 0
      %2381 = vmatprep.subr.bf16.mxu0 0
      %2382 = vmatpush1.bf16.msra.mxu0 0
      %2383 = vmatprep.subr.bf16.mxu0 0
      %2384 = vmatpush1.bf16.msra.mxu0 0
      %2385 = vmatprep.subr.bf16.mxu0 0
      %2386 = vmatpush1.bf16.msra.mxu0 0
      %2387 = vmatprep.subr.bf16.mxu0 0
      %2388 = vmatpush1.bf16.msra.mxu0 0
      %2389 = vmatprep.subr.bf16.mxu0 0
      %2390 = vmatpush1.bf16.msra.mxu0 0
      %2391 = vmatprep.subr.bf16.mxu0 0
      %2392 = vmatpush1.bf16.msra.mxu0 0
      %2393 = vmatprep.subr.bf16.mxu0 0
      %2394 = vmatpush1.bf16.msra.mxu0 0
      %2395 = vmatprep.subr.bf16.mxu0 0
      %2396 = vmatpush1.bf16.msra.mxu0 0
      %2397 = vmatprep.mubr.bf16.mxu0 0
      %2398 = vmatmul.mubr.bf16.gmra.mrb[0].mxu0 %v2318
      %v2399 = vpop.f32.mrb[0].mxu0
      %v2400 = vadd.f32 0.0, %v2399
      %v2401 = vpop.f32.mrb[0].mxu0
      %v2402 = vpop.f32.mrb[0].mxu0
      %v2403 = vadd.f32 0.0, %v2402
      %v2404 = vpop.f32.mrb[0].mxu0
      %2405 = vmatprep.mubr.bf16.mxu0 0
      %2406 = vmatmul.mubr.bf16.gmra.mrb[0].mxu0 %v2321
      %v2407 = vpop.f32.mrb[0].mxu0
      %v2408 = vadd.f32 0.0, %v2407
      %v2409 = vpop.f32.mrb[0].mxu0
      %v2410 = vpop.f32.mrb[0].mxu0
      %v2411 = vadd.f32 0.0, %v2410
      %v2412 = vpop.f32.mrb[0].mxu0
      %2413 = vmatprep.mubr.bf16.mxu0 0
      %2414 = vmatmul.mubr.bf16.gmra.mrb[0].mxu0 %v2324
      %v2415 = vpop.f32.mrb[0].mxu0
      %v2416 = vadd.f32 0.0, %v2415
      %v2417 = vpop.f32.mrb[0].mxu0
      %v2418 = vpop.f32.mrb[0].mxu0
      %v2419 = vadd.f32 0.0, %v2418
      %v2420 = vpop.f32.mrb[0].mxu0
      %2421 = vmatprep.mubr.bf16.mxu0 0
      %2422 = vmatmul.mubr.bf16.gmra.mrb[0].mxu0 %v2327
      %v2423 = vpop.f32.mrb[0].mxu0
      %v2424 = vadd.f32 0.0, %v2423
      %v2425 = vpop.f32.mrb[0].mxu0
      %v2426 = vpop.f32.mrb[0].mxu0
      %v2427 = vadd.f32 0.0, %v2426
      %v2428 = vpop.f32.mrb[0].mxu0
      %2429 = vmatprep.mubr.bf16.mxu0 0
      %2430 = vmatmul.mubr.bf16.gmra.mrb[0].mxu0 %v2330
      %v2431 = vpop.f32.mrb[0].mxu0
      %v2432 = vadd.f32 0.0, %v2431
      %v2433 = vpop.f32.mrb[0].mxu0
      %v2434 = vpop.f32.mrb[0].mxu0
      %v2435 = vadd.f32 0.0, %v2434
      %v2436 = vpop.f32.mrb[0].mxu0
      %2437 = vmatprep.mubr.bf16.mxu0 0
      %2438 = vmatmul.mubr.bf16.gmra.mrb[0].mxu0 %v2333
      %v2439 = vpop.f32.mrb[0].mxu0
      %v2440 = vadd.f32 0.0, %v2439
      %v2441 = vpop.f32.mrb[0].mxu0
      %v2442 = vpop.f32.mrb[0].mxu0
      %v2443 = vadd.f32 0.0, %v2442
      %v2444 = vpop.f32.mrb[0].mxu0
      %2445 = vmatprep.mubr.bf16.mxu0 0
      %2446 = vmatmul.mubr.bf16.gmra.mrb[0].mxu0 %v2336
      %v2447 = vpop.f32.mrb[0].mxu0
      %v2448 = vadd.f32 0.0, %v2447
      %v2449 = vpop.f32.mrb[0].mxu0
      %v2450 = vpop.f32.mrb[0].mxu0
      %v2451 = vadd.f32 0.0, %v2450
      %v2452 = vpop.f32.mrb[0].mxu0
      %2453 = vmatprep.mubr.bf16.mxu0 0
      %2454 = vmatmul.mubr.bf16.gmra.mrb[0].mxu0 %v2339
      %v2455 = vpop.f32.mrb[0].mxu0
      %v2456 = vadd.f32 0.0, %v2455
      %v2457 = vpop.f32.mrb[0].mxu0
      %v2458 = vpop.f32.mrb[0].mxu0
      %v2459 = vadd.f32 0.0, %v2458
      %v2460 = vpop.f32.mrb[0].mxu0
      %2461 = vmatprep.mubr.bf16.mxu0 0
      %2462 = vmatmul.mubr.bf16.gmra.mrb[0].mxu0 %v2342
      %v2463 = vpop.f32.mrb[0].mxu0
      %v2464 = vadd.f32 0.0, %v2463
      %v2465 = vpop.f32.mrb[0].mxu0
      %v2466 = vpop.f32.mrb[0].mxu0
      %v2467 = vadd.f32 0.0, %v2466
      %v2468 = vpop.f32.mrb[0].mxu0
      %2469 = vmatprep.mubr.bf16.mxu0 0
      %2470 = vmatmul.mubr.bf16.gmra.mrb[0].mxu0 %v2345
      %v2471 = vpop.f32.mrb[0].mxu0
      %v2472 = vadd.f32 0.0, %v2471
      %v2473 = vpop.f32.mrb[0].mxu0
      %v2474 = vpop.f32.mrb[0].mxu0
      %v2475 = vadd.f32 0.0, %v2474
      %v2476 = vpop.f32.mrb[0].mxu0
      %2477 = vmatprep.mubr.bf16.mxu0 0
      %2478 = vmatmul.mubr.bf16.gmra.mrb[0].mxu0 %v2348
      %v2479 = vpop.f32.mrb[0].mxu0
      %v2480 = vadd.f32 0.0, %v2479
      %v2481 = vpop.f32.mrb[0].mxu0
      %v2482 = vpop.f32.mrb[0].mxu0
      %v2483 = vadd.f32 0.0, %v2482
      %v2484 = vpop.f32.mrb[0].mxu0
      %2485 = vmatprep.mubr.bf16.mxu0 0
      %2486 = vmatmul.mubr.bf16.gmra.mrb[0].mxu0 %v2351
      %v2487 = vpop.f32.mrb[0].mxu0
      %v2488 = vadd.f32 0.0, %v2487
      %v2489 = vpop.f32.mrb[0].mxu0
      %v2490 = vpop.f32.mrb[0].mxu0
      %v2491 = vadd.f32 0.0, %v2490
      %v2492 = vpop.f32.mrb[0].mxu0
      %2493 = vmatprep.mubr.bf16.mxu0 0
      %2494 = vmatmul.mubr.bf16.gmra.mrb[0].mxu0 %v2354
      %v2495 = vpop.f32.mrb[0].mxu0
      %v2496 = vadd.f32 0.0, %v2495
      %v2497 = vpop.f32.mrb[0].mxu0
      %v2498 = vpop.f32.mrb[0].mxu0
      %v2499 = vadd.f32 0.0, %v2498
      %v2500 = vpop.f32.mrb[0].mxu0
      %2501 = vmatprep.mubr.bf16.mxu0 0
      %2502 = vmatmul.mubr.bf16.gmra.mrb[0].mxu0 %v2357
      %v2503 = vpop.f32.mrb[0].mxu0
      %v2504 = vadd.f32 0.0, %v2503
      %v2505 = vpop.f32.mrb[0].mxu0
      %v2506 = vpop.f32.mrb[0].mxu0
      %v2507 = vadd.f32 0.0, %v2506
      %v2508 = vpop.f32.mrb[0].mxu0
      %2509 = vmatprep.mubr.bf16.mxu0 0
      %2510 = vmatmul.mubr.bf16.gmra.mrb[0].mxu0 %v2360
      %v2511 = vpop.f32.mrb[0].mxu0
      %v2512 = vadd.f32 0.0, %v2511
      %v2513 = vpop.f32.mrb[0].mxu0
      %v2514 = vpop.f32.mrb[0].mxu0
      %v2515 = vadd.f32 0.0, %v2514
      %v2516 = vpop.f32.mrb[0].mxu0
      %2517 = vmatprep.mubr.bf16.mxu0 0
      %2518 = vmatmul.mubr.bf16.gmra.mrb[0].mxu0 %v2363
      %v2519 = vpop.f32.mrb[0].mxu0
      %v2520 = vadd.f32 0.0, %v2519
      %v2521 = vpop.f32.mrb[0].mxu0
      %v2522 = vpop.f32.mrb[0].mxu0
      %v2523 = vadd.f32 0.0, %v2522
      %v2524 = vpop.f32.mrb[0].mxu0
      %2525 = vdwg.mxu0
      %v2526 = vadd.f32 %v2220, %v2400
      %v2527 = vadd.f32 %v2221, %v2403
      %v2528 = vadd.f32 %v2222, %v2408
      %v2529 = vadd.f32 %v2223, %v2411
      %v2530 = vadd.f32 %v2224, %v2416
      %v2531 = vadd.f32 %v2225, %v2419
      %v2532 = vadd.f32 %v2226, %v2424
      %v2533 = vadd.f32 %v2227, %v2427
      %v2534 = vadd.f32 %v2228, %v2432
      %v2535 = vadd.f32 %v2229, %v2435
      %v2536 = vadd.f32 %v2230, %v2440
      %v2537 = vadd.f32 %v2231, %v2443
      %v2538 = vadd.f32 %v2232, %v2448
      %v2539 = vadd.f32 %v2233, %v2451
      %v2540 = vadd.f32 %v2234, %v2456
      %v2541 = vadd.f32 %v2235, %v2459
      %v2542 = vadd.f32 %v2236, %v2464
      %v2543 = vadd.f32 %v2237, %v2467
      %v2544 = vadd.f32 %v2238, %v2472
      %v2545 = vadd.f32 %v2239, %v2475
      %v2546 = vadd.f32 %v2240, %v2480
      %v2547 = vadd.f32 %v2241, %v2483
      %v2548 = vadd.f32 %v2242, %v2488
      %v2549 = vadd.f32 %v2243, %v2491
      %v2550 = vadd.f32 %v2244, %v2496
      %v2551 = vadd.f32 %v2245, %v2499
      %v2552 = vadd.f32 %v2246, %v2504
      %v2553 = vadd.f32 %v2247, %v2507
      %v2554 = vadd.f32 %v2248, %v2512
      %v2555 = vadd.f32 %v2249, %v2515
      %v2556 = vadd.f32 %v2250, %v2520
      %v2557 = vadd.f32 %v2251, %v2523
      %v2558 = vld [vmem:[#allocation2 + $0x19] sm:$0xff]
      %v2559 = vld [vmem:[#allocation2 + $0x21] sm:$0xff]
      %v2560 = vld [vmem:[#allocation2 + $0x29] sm:$0xff]
      %v2561 = vld [vmem:[#allocation2 + $0x31] sm:$0xff]
      %v2562 = vld [vmem:[#allocation2 + $0x39] sm:$0xff]
      %v2563 = vld [vmem:[#allocation2 + $0x41] sm:$0xff]
      %v2564 = vld [vmem:[#allocation2 + $0x49] sm:$0xff]
      %v2565 = vld [vmem:[#allocation2 + $0x51] sm:$0xff]
      %v2566 = vld [vmem:[#allocation2 + $0x59] sm:$0xff]
      %v2567 = vld [vmem:[#allocation2 + $0x61] sm:$0xff]
      %v2568 = vld [vmem:[#allocation2 + $0x69] sm:$0xff]
      %v2569 = vld [vmem:[#allocation2 + $0x71] sm:$0xff]
      %v2570 = vld [vmem:[#allocation2 + $0x79] sm:$0xff]
      %v2571 = vld [vmem:[#allocation2 + $0x81] sm:$0xff]
      %v2572 = vld [vmem:[#allocation2 + $0x89] sm:$0xff]
      %v2573 = vld [vmem:[#allocation2 + $0x91] sm:$0xff]
      %v2574 = vld [vmem:[#allocation2 + $0x99] sm:$0xff]
      %v2575 = vld [vmem:[#allocation2 + $0xa1] sm:$0xff]
      %v2576 = vld [vmem:[#allocation2 + $0xa9] sm:$0xff]
      %v2577 = vld [vmem:[#allocation2 + $0xb1] sm:$0xff]
      %v2578 = vld [vmem:[#allocation2 + $0xb9] sm:$0xff]
      %v2579 = vld [vmem:[#allocation2 + $0xc1] sm:$0xff]
      %v2580 = vld [vmem:[#allocation2 + $0xc9] sm:$0xff]
      %v2581 = vld [vmem:[#allocation2 + $0xd1] sm:$0xff]
      %v2582 = vld [vmem:[#allocation2 + $0xd9] sm:$0xff]
      %v2583 = vld [vmem:[#allocation2 + $0xe1] sm:$0xff]
      %v2584 = vld [vmem:[#allocation2 + $0xe9] sm:$0xff]
      %v2585 = vld [vmem:[#allocation2 + $0xf1] sm:$0xff]
      %v2586 = vld [vmem:[#allocation2 + $0xf9] sm:$0xff]
      %v2587 = vld [vmem:[#allocation2 + $0x101] sm:$0xff]
      %v2588 = vld [vmem:[#allocation2 + $0x109] sm:$0xff]
      %v2589 = vld [vmem:[#allocation2 + $0x111] sm:$0xff]
      %v2590 = vmul.f32 %v2558, %v901
      %v2591 = vmul.f32 %v2559, %v902
      %v2592 = vmul.f32 %v2560, %v903
      %v2593 = vmul.f32 %v2561, %v904
      %v2594 = vmul.f32 %v2562, %v905
      %v2595 = vmul.f32 %v2563, %v906
      %v2596 = vmul.f32 %v2564, %v907
      %v2597 = vmul.f32 %v2565, %v908
      %v2598 = vmul.f32 %v2566, %v909
      %v2599 = vmul.f32 %v2567, %v910
      %v2600 = vmul.f32 %v2568, %v911
      %v2601 = vmul.f32 %v2569, %v912
      %v2602 = vmul.f32 %v2570, %v913
      %v2603 = vmul.f32 %v2571, %v914
      %v2604 = vmul.f32 %v2572, %v915
      %v2605 = vmul.f32 %v2573, %v916
      %v2606 = vmul.f32 %v2574, %v917
      %v2607 = vmul.f32 %v2575, %v918
      %v2608 = vmul.f32 %v2576, %v919
      %v2609 = vmul.f32 %v2577, %v920
      %v2610 = vmul.f32 %v2578, %v921
      %v2611 = vmul.f32 %v2579, %v922
      %v2612 = vmul.f32 %v2580, %v923
      %v2613 = vmul.f32 %v2581, %v924
      %v2614 = vmul.f32 %v2582, %v925
      %v2615 = vmul.f32 %v2583, %v926
      %v2616 = vmul.f32 %v2584, %v927
      %v2617 = vmul.f32 %v2585, %v928
      %v2618 = vmul.f32 %v2586, %v929
      %v2619 = vmul.f32 %v2587, %v930
      %v2620 = vmul.f32 %v2588, %v931
      %v2621 = vmul.f32 %v2589, %v932
      %v2622 = vpack.c.bf16 %v2591, %v2590
      %v2623 = vpack.c.bf16 %v2593, %v2592
      %v2624 = vpack.c.bf16 %v2595, %v2594
      %v2625 = vpack.c.bf16 %v2597, %v2596
      %v2626 = vpack.c.bf16 %v2599, %v2598
      %v2627 = vpack.c.bf16 %v2601, %v2600
      %v2628 = vpack.c.bf16 %v2603, %v2602
      %v2629 = vpack.c.bf16 %v2605, %v2604
      %v2630 = vpack.c.bf16 %v2607, %v2606
      %v2631 = vpack.c.bf16 %v2609, %v2608
      %v2632 = vpack.c.bf16 %v2611, %v2610
      %v2633 = vpack.c.bf16 %v2613, %v2612
      %v2634 = vpack.c.bf16 %v2615, %v2614
      %v2635 = vpack.c.bf16 %v2617, %v2616
      %v2636 = vpack.c.bf16 %v2619, %v2618
      %v2637 = vpack.c.bf16 %v2621, %v2620
      %s2638 = scalar_lea.vmem %s1, 80
      %v2639 = vld [vmem:[%s2638] sm:$0xf]
      %v2640 = vld [vmem:[%s2638 + $0x4] sm:$0xf]
      %v2641 = vld [vmem:[%s2638 + $0x8] sm:$0xf]
      %v2642 = vld [vmem:[%s2638 + $0xc] sm:$0xf]
      %v2647 = vunpack.c.l.b16 %v2639
      %v2648 = vunpack.c.l.b16 %v2640
      %v2649 = vunpack.c.l.b16 %v2641
      %v2650 = vunpack.c.l.b16 %v2642
      %v2651 = vpack.c.b16 %v2648, %v2647
      %v2652 = vpack.c.b16 %v2650, %v2649
      %v2656 = vsel %vm310, %v2622, 0
      %v2659 = vsel %vm310, %v2623, 0
      %v2662 = vsel %vm310, %v2624, 0
      %v2665 = vsel %vm310, %v2625, 0
      %v2668 = vsel %vm310, %v2626, 0
      %v2671 = vsel %vm310, %v2627, 0
      %v2674 = vsel %vm310, %v2628, 0
      %v2677 = vsel %vm310, %v2629, 0
      %v2680 = vsel %vm310, %v2630, 0
      %v2683 = vsel %vm310, %v2631, 0
      %v2686 = vsel %vm310, %v2632, 0
      %v2689 = vsel %vm310, %v2633, 0
      %v2692 = vsel %vm310, %v2634, 0
      %v2695 = vsel %vm310, %v2635, 0
      %v2698 = vsel %vm310, %v2636, 0
      %v2701 = vsel %vm310, %v2637, 0
      %2703 = vmatprep.subr.bf16.mxu0 0
      %2704 = vmatpush1.bf16.msra.mxu0 %v2651
      %2705 = vmatprep.subr.bf16.mxu0 0
      %2706 = vmatpush1.bf16.msra.mxu0 %v2652
      %2707 = vmatprep.subr.bf16.mxu0 0
      %2708 = vmatpush1.bf16.msra.mxu0 0
      %2709 = vmatprep.subr.bf16.mxu0 0
      %2710 = vmatpush1.bf16.msra.mxu0 0
      %2711 = vmatprep.subr.bf16.mxu0 0
      %2712 = vmatpush1.bf16.msra.mxu0 0
      %2713 = vmatprep.subr.bf16.mxu0 0
      %2714 = vmatpush1.bf16.msra.mxu0 0
      %2715 = vmatprep.subr.bf16.mxu0 0
      %2716 = vmatpush1.bf16.msra.mxu0 0
      %2717 = vmatprep.subr.bf16.mxu0 0
      %2718 = vmatpush1.bf16.msra.mxu0 0
      %2719 = vmatprep.subr.bf16.mxu0 0
      %2720 = vmatpush1.bf16.msra.mxu0 0
      %2721 = vmatprep.subr.bf16.mxu0 0
      %2722 = vmatpush1.bf16.msra.mxu0 0
      %2723 = vmatprep.subr.bf16.mxu0 0
      %2724 = vmatpush1.bf16.msra.mxu0 0
      %2725 = vmatprep.subr.bf16.mxu0 0
      %2726 = vmatpush1.bf16.msra.mxu0 0
      %2727 = vmatprep.subr.bf16.mxu0 0
      %2728 = vmatpush1.bf16.msra.mxu0 0
      %2729 = vmatprep.subr.bf16.mxu0 0
      %2730 = vmatpush1.bf16.msra.mxu0 0
      %2731 = vmatprep.subr.bf16.mxu0 0
      %2732 = vmatpush1.bf16.msra.mxu0 0
      %2733 = vmatprep.subr.bf16.mxu0 0
      %2734 = vmatpush1.bf16.msra.mxu0 0
      %2735 = vmatprep.mubr.bf16.mxu0 0
      %2736 = vmatmul.mubr.bf16.gmra.mrb[0].mxu0 %v2656
      %v2737 = vpop.f32.mrb[0].mxu0
      %v2738 = vadd.f32 0.0, %v2737
      %v2739 = vpop.f32.mrb[0].mxu0
      %v2740 = vpop.f32.mrb[0].mxu0
      %v2741 = vadd.f32 0.0, %v2740
      %v2742 = vpop.f32.mrb[0].mxu0
      %2743 = vmatprep.mubr.bf16.mxu0 0
      %2744 = vmatmul.mubr.bf16.gmra.mrb[0].mxu0 %v2659
      %v2745 = vpop.f32.mrb[0].mxu0
      %v2746 = vadd.f32 0.0, %v2745
      %v2747 = vpop.f32.mrb[0].mxu0
      %v2748 = vpop.f32.mrb[0].mxu0
      %v2749 = vadd.f32 0.0, %v2748
      %v2750 = vpop.f32.mrb[0].mxu0
      %2751 = vmatprep.mubr.bf16.mxu0 0
      %2752 = vmatmul.mubr.bf16.gmra.mrb[0].mxu0 %v2662
      %v2753 = vpop.f32.mrb[0].mxu0
      %v2754 = vadd.f32 0.0, %v2753
      %v2755 = vpop.f32.mrb[0].mxu0
      %v2756 = vpop.f32.mrb[0].mxu0
      %v2757 = vadd.f32 0.0, %v2756
      %v2758 = vpop.f32.mrb[0].mxu0
      %2759 = vmatprep.mubr.bf16.mxu0 0
      %2760 = vmatmul.mubr.bf16.gmra.mrb[0].mxu0 %v2665
      %v2761 = vpop.f32.mrb[0].mxu0
      %v2762 = vadd.f32 0.0, %v2761
      %v2763 = vpop.f32.mrb[0].mxu0
      %v2764 = vpop.f32.mrb[0].mxu0
      %v2765 = vadd.f32 0.0, %v2764
      %v2766 = vpop.f32.mrb[0].mxu0
      %2767 = vmatprep.mubr.bf16.mxu0 0
      %2768 = vmatmul.mubr.bf16.gmra.mrb[0].mxu0 %v2668
      %v2769 = vpop.f32.mrb[0].mxu0
      %v2770 = vadd.f32 0.0, %v2769
      %v2771 = vpop.f32.mrb[0].mxu0
      %v2772 = vpop.f32.mrb[0].mxu0
      %v2773 = vadd.f32 0.0, %v2772
      %v2774 = vpop.f32.mrb[0].mxu0
      %2775 = vmatprep.mubr.bf16.mxu0 0
      %2776 = vmatmul.mubr.bf16.gmra.mrb[0].mxu0 %v2671
      %v2777 = vpop.f32.mrb[0].mxu0
      %v2778 = vadd.f32 0.0, %v2777
      %v2779 = vpop.f32.mrb[0].mxu0
      %v2780 = vpop.f32.mrb[0].mxu0
      %v2781 = vadd.f32 0.0, %v2780
      %v2782 = vpop.f32.mrb[0].mxu0
      %2783 = vmatprep.mubr.bf16.mxu0 0
      %2784 = vmatmul.mubr.bf16.gmra.mrb[0].mxu0 %v2674
      %v2785 = vpop.f32.mrb[0].mxu0
      %v2786 = vadd.f32 0.0, %v2785
      %v2787 = vpop.f32.mrb[0].mxu0
      %v2788 = vpop.f32.mrb[0].mxu0
      %v2789 = vadd.f32 0.0, %v2788
      %v2790 = vpop.f32.mrb[0].mxu0
      %2791 = vmatprep.mubr.bf16.mxu0 0
      %2792 = vmatmul.mubr.bf16.gmra.mrb[0].mxu0 %v2677
      %v2793 = vpop.f32.mrb[0].mxu0
      %v2794 = vadd.f32 0.0, %v2793
      %v2795 = vpop.f32.mrb[0].mxu0
      %v2796 = vpop.f32.mrb[0].mxu0
      %v2797 = vadd.f32 0.0, %v2796
      %v2798 = vpop.f32.mrb[0].mxu0
      %2799 = vmatprep.mubr.bf16.mxu0 0
      %2800 = vmatmul.mubr.bf16.gmra.mrb[0].mxu0 %v2680
      %v2801 = vpop.f32.mrb[0].mxu0
      %v2802 = vadd.f32 0.0, %v2801
      %v2803 = vpop.f32.mrb[0].mxu0
      %v2804 = vpop.f32.mrb[0].mxu0
      %v2805 = vadd.f32 0.0, %v2804
      %v2806 = vpop.f32.mrb[0].mxu0
      %2807 = vmatprep.mubr.bf16.mxu0 0
      %2808 = vmatmul.mubr.bf16.gmra.mrb[0].mxu0 %v2683
      %v2809 = vpop.f32.mrb[0].mxu0
      %v2810 = vadd.f32 0.0, %v2809
      %v2811 = vpop.f32.mrb[0].mxu0
      %v2812 = vpop.f32.mrb[0].mxu0
      %v2813 = vadd.f32 0.0, %v2812
      %v2814 = vpop.f32.mrb[0].mxu0
      %2815 = vmatprep.mubr.bf16.mxu0 0
      %2816 = vmatmul.mubr.bf16.gmra.mrb[0].mxu0 %v2686
      %v2817 = vpop.f32.mrb[0].mxu0
      %v2818 = vadd.f32 0.0, %v2817
      %v2819 = vpop.f32.mrb[0].mxu0
      %v2820 = vpop.f32.mrb[0].mxu0
      %v2821 = vadd.f32 0.0, %v2820
      %v2822 = vpop.f32.mrb[0].mxu0
      %2823 = vmatprep.mubr.bf16.mxu0 0
      %2824 = vmatmul.mubr.bf16.gmra.mrb[0].mxu0 %v2689
      %v2825 = vpop.f32.mrb[0].mxu0
      %v2826 = vadd.f32 0.0, %v2825
      %v2827 = vpop.f32.mrb[0].mxu0
      %v2828 = vpop.f32.mrb[0].mxu0
      %v2829 = vadd.f32 0.0, %v2828
      %v2830 = vpop.f32.mrb[0].mxu0
      %2831 = vmatprep.mubr.bf16.mxu0 0
      %2832 = vmatmul.mubr.bf16.gmra.mrb[0].mxu0 %v2692
      %v2833 = vpop.f32.mrb[0].mxu0
      %v2834 = vadd.f32 0.0, %v2833
      %v2835 = vpop.f32.mrb[0].mxu0
      %v2836 = vpop.f32.mrb[0].mxu0
      %v2837 = vadd.f32 0.0, %v2836
      %v2838 = vpop.f32.mrb[0].mxu0
      %2839 = vmatprep.mubr.bf16.mxu0 0
      %2840 = vmatmul.mubr.bf16.gmra.mrb[0].mxu0 %v2695
      %v2841 = vpop.f32.mrb[0].mxu0
      %v2842 = vadd.f32 0.0, %v2841
      %v2843 = vpop.f32.mrb[0].mxu0
      %v2844 = vpop.f32.mrb[0].mxu0
      %v2845 = vadd.f32 0.0, %v2844
      %v2846 = vpop.f32.mrb[0].mxu0
      %2847 = vmatprep.mubr.bf16.mxu0 0
      %2848 = vmatmul.mubr.bf16.gmra.mrb[0].mxu0 %v2698
      %v2849 = vpop.f32.mrb[0].mxu0
      %v2850 = vadd.f32 0.0, %v2849
      %v2851 = vpop.f32.mrb[0].mxu0
      %v2852 = vpop.f32.mrb[0].mxu0
      %v2853 = vadd.f32 0.0, %v2852
      %v2854 = vpop.f32.mrb[0].mxu0
      %2855 = vmatprep.mubr.bf16.mxu0 0
      %2856 = vmatmul.mubr.bf16.gmra.mrb[0].mxu0 %v2701
      %v2857 = vpop.f32.mrb[0].mxu0
      %v2858 = vadd.f32 0.0, %v2857
      %v2859 = vpop.f32.mrb[0].mxu0
      %v2860 = vpop.f32.mrb[0].mxu0
      %v2861 = vadd.f32 0.0, %v2860
      %v2862 = vpop.f32.mrb[0].mxu0
      %2863 = vdwg.mxu0
      %v2864 = vadd.f32 %v2526, %v2738
      %v2865 = vadd.f32 %v2527, %v2741
      %v2866 = vadd.f32 %v2528, %v2746
      %v2867 = vadd.f32 %v2529, %v2749
      %v2868 = vadd.f32 %v2530, %v2754
      %v2869 = vadd.f32 %v2531, %v2757
      %v2870 = vadd.f32 %v2532, %v2762
      %v2871 = vadd.f32 %v2533, %v2765
      %v2872 = vadd.f32 %v2534, %v2770
      %v2873 = vadd.f32 %v2535, %v2773
      %v2874 = vadd.f32 %v2536, %v2778
      %v2875 = vadd.f32 %v2537, %v2781
      %v2876 = vadd.f32 %v2538, %v2786
      %v2877 = vadd.f32 %v2539, %v2789
      %v2878 = vadd.f32 %v2540, %v2794
      %v2879 = vadd.f32 %v2541, %v2797
      %v2880 = vadd.f32 %v2542, %v2802
      %v2881 = vadd.f32 %v2543, %v2805
      %v2882 = vadd.f32 %v2544, %v2810
      %v2883 = vadd.f32 %v2545, %v2813
      %v2884 = vadd.f32 %v2546, %v2818
      %v2885 = vadd.f32 %v2547, %v2821
      %v2886 = vadd.f32 %v2548, %v2826
      %v2887 = vadd.f32 %v2549, %v2829
      %v2888 = vadd.f32 %v2550, %v2834
      %v2889 = vadd.f32 %v2551, %v2837
      %v2890 = vadd.f32 %v2552, %v2842
      %v2891 = vadd.f32 %v2553, %v2845
      %v2892 = vadd.f32 %v2554, %v2850
      %v2893 = vadd.f32 %v2555, %v2853
      %v2894 = vadd.f32 %v2556, %v2858
      %v2895 = vadd.f32 %v2557, %v2861
      %v2896 = vld [vmem:[#allocation2 + $0x27] sm:$0xff]
      %v2897 = vld [vmem:[#allocation2 + $0x2f] sm:$0xff]
      %v2898 = vld [vmem:[#allocation2 + $0x37] sm:$0xff]
      %v2899 = vld [vmem:[#allocation2 + $0x3f] sm:$0xff]
      %v2900 = vld [vmem:[#allocation2 + $0x47] sm:$0xff]
      %v2901 = vld [vmem:[#allocation2 + $0x4f] sm:$0xff]
      %v2902 = vld [vmem:[#allocation2 + $0x57] sm:$0xff]
      %v2903 = vld [vmem:[#allocation2 + $0x5f] sm:$0xff]
      %v2904 = vld [vmem:[#allocation2 + $0x67] sm:$0xff]
      %v2905 = vld [vmem:[#allocation2 + $0x6f] sm:$0xff]
      %v2906 = vld [vmem:[#allocation2 + $0x77] sm:$0xff]
      %v2907 = vld [vmem:[#allocation2 + $0x7f] sm:$0xff]
      %v2908 = vld [vmem:[#allocation2 + $0x87] sm:$0xff]
      %v2909 = vld [vmem:[#allocation2 + $0x8f] sm:$0xff]
      %v2910 = vld [vmem:[#allocation2 + $0x97] sm:$0xff]
      %v2911 = vld [vmem:[#allocation2 + $0x9f] sm:$0xff]
      %v2912 = vld [vmem:[#allocation2 + $0xa7] sm:$0xff]
      %v2913 = vld [vmem:[#allocation2 + $0xaf] sm:$0xff]
      %v2914 = vld [vmem:[#allocation2 + $0xb7] sm:$0xff]
      %v2915 = vld [vmem:[#allocation2 + $0xbf] sm:$0xff]
      %v2916 = vld [vmem:[#allocation2 + $0xc7] sm:$0xff]
      %v2917 = vld [vmem:[#allocation2 + $0xcf] sm:$0xff]
      %v2918 = vld [vmem:[#allocation2 + $0xd7] sm:$0xff]
      %v2919 = vld [vmem:[#allocation2 + $0xdf] sm:$0xff]
      %v2920 = vld [vmem:[#allocation2 + $0xe7] sm:$0xff]
      %v2921 = vld [vmem:[#allocation2 + $0xef] sm:$0xff]
      %v2922 = vld [vmem:[#allocation2 + $0xf7] sm:$0xff]
      %v2923 = vld [vmem:[#allocation2 + $0xff] sm:$0xff]
      %v2924 = vld [vmem:[#allocation2 + $0x107] sm:$0xff]
      %v2925 = vld [vmem:[#allocation2 + $0x10f] sm:$0xff]
      %v2926 = vld [vmem:[#allocation2 + $0x117] sm:$0xff]
      %v2927 = vld [vmem:[#allocation2 + $0x11f] sm:$0xff]
      %v2928 = vmul.f32 %v2896, %v805
      %v2929 = vmul.f32 %v2897, %v806
      %v2930 = vmul.f32 %v2898, %v807
      %v2931 = vmul.f32 %v2899, %v808
      %v2932 = vmul.f32 %v2900, %v809
      %v2933 = vmul.f32 %v2901, %v810
      %v2934 = vmul.f32 %v2902, %v811
      %v2935 = vmul.f32 %v2903, %v812
      %v2936 = vmul.f32 %v2904, %v813
      %v2937 = vmul.f32 %v2905, %v814
      %v2938 = vmul.f32 %v2906, %v815
      %v2939 = vmul.f32 %v2907, %v816
      %v2940 = vmul.f32 %v2908, %v817
      %v2941 = vmul.f32 %v2909, %v818
      %v2942 = vmul.f32 %v2910, %v819
      %v2943 = vmul.f32 %v2911, %v820
      %v2944 = vmul.f32 %v2912, %v821
      %v2945 = vmul.f32 %v2913, %v822
      %v2946 = vmul.f32 %v2914, %v823
      %v2947 = vmul.f32 %v2915, %v824
      %v2948 = vmul.f32 %v2916, %v825
      %v2949 = vmul.f32 %v2917, %v826
      %v2950 = vmul.f32 %v2918, %v827
      %v2951 = vmul.f32 %v2919, %v828
      %v2952 = vmul.f32 %v2920, %v829
      %v2953 = vmul.f32 %v2921, %v830
      %v2954 = vmul.f32 %v2922, %v831
      %v2955 = vmul.f32 %v2923, %v832
      %v2956 = vmul.f32 %v2924, %v833
      %v2957 = vmul.f32 %v2925, %v834
      %v2958 = vmul.f32 %v2926, %v835
      %v2959 = vmul.f32 %v2927, %v836
      %v2960 = vpack.c.bf16 %v2929, %v2928
      %v2961 = vpack.c.bf16 %v2931, %v2930
      %v2962 = vpack.c.bf16 %v2933, %v2932
      %v2963 = vpack.c.bf16 %v2935, %v2934
      %v2964 = vpack.c.bf16 %v2937, %v2936
      %v2965 = vpack.c.bf16 %v2939, %v2938
      %v2966 = vpack.c.bf16 %v2941, %v2940
      %v2967 = vpack.c.bf16 %v2943, %v2942
      %v2968 = vpack.c.bf16 %v2945, %v2944
      %v2969 = vpack.c.bf16 %v2947, %v2946
      %v2970 = vpack.c.bf16 %v2949, %v2948
      %v2971 = vpack.c.bf16 %v2951, %v2950
      %v2972 = vpack.c.bf16 %v2953, %v2952
      %v2973 = vpack.c.bf16 %v2955, %v2954
      %v2974 = vpack.c.bf16 %v2957, %v2956
      %v2975 = vpack.c.bf16 %v2959, %v2958
      %s2976 = scalar_lea.vmem %s1, 96
      %v2977 = vld [vmem:[%s2976] sm:$0xf]
      %v2978 = vld [vmem:[%s2976 + $0x4] sm:$0xf]
      %v2979 = vld [vmem:[%s2976 + $0x8] sm:$0xf]
      %v2980 = vld [vmem:[%s2976 + $0xc] sm:$0xf]
      %v2985 = vunpack.c.l.b16 %v2977
      %v2986 = vunpack.c.l.b16 %v2978
      %v2987 = vunpack.c.l.b16 %v2979
      %v2988 = vunpack.c.l.b16 %v2980
      %v2989 = vpack.c.b16 %v2986, %v2985
      %v2990 = vpack.c.b16 %v2988, %v2987
      %v2994 = vsel %vm310, %v2960, 0
      %v2997 = vsel %vm310, %v2961, 0
      %v3000 = vsel %vm310, %v2962, 0
      %v3003 = vsel %vm310, %v2963, 0
      %v3006 = vsel %vm310, %v2964, 0
      %v3009 = vsel %vm310, %v2965, 0
      %v3012 = vsel %vm310, %v2966, 0
      %v3015 = vsel %vm310, %v2967, 0
      %v3018 = vsel %vm310, %v2968, 0
      %v3021 = vsel %vm310, %v2969, 0
      %v3024 = vsel %vm310, %v2970, 0
      %v3027 = vsel %vm310, %v2971, 0
      %v3030 = vsel %vm310, %v2972, 0
      %v3033 = vsel %vm310, %v2973, 0
      %v3036 = vsel %vm310, %v2974, 0
      %v3039 = vsel %vm310, %v2975, 0
      %3041 = vmatprep.subr.bf16.mxu0 0
      %3042 = vmatpush1.bf16.msra.mxu0 %v2989
      %3043 = vmatprep.subr.bf16.mxu0 0
      %3044 = vmatpush1.bf16.msra.mxu0 %v2990
      %3045 = vmatprep.subr.bf16.mxu0 0
      %3046 = vmatpush1.bf16.msra.mxu0 0
      %3047 = vmatprep.subr.bf16.mxu0 0
      %3048 = vmatpush1.bf16.msra.mxu0 0
      %3049 = vmatprep.subr.bf16.mxu0 0
      %3050 = vmatpush1.bf16.msra.mxu0 0
      %3051 = vmatprep.subr.bf16.mxu0 0
      %3052 = vmatpush1.bf16.msra.mxu0 0
      %3053 = vmatprep.subr.bf16.mxu0 0
      %3054 = vmatpush1.bf16.msra.mxu0 0
      %3055 = vmatprep.subr.bf16.mxu0 0
      %3056 = vmatpush1.bf16.msra.mxu0 0
      %3057 = vmatprep.subr.bf16.mxu0 0
      %3058 = vmatpush1.bf16.msra.mxu0 0
      %3059 = vmatprep.subr.bf16.mxu0 0
      %3060 = vmatpush1.bf16.msra.mxu0 0
      %3061 = vmatprep.subr.bf16.mxu0 0
      %3062 = vmatpush1.bf16.msra.mxu0 0
      %3063 = vmatprep.subr.bf16.mxu0 0
      %3064 = vmatpush1.bf16.msra.mxu0 0
      %3065 = vmatprep.subr.bf16.mxu0 0
      %3066 = vmatpush1.bf16.msra.mxu0 0
      %3067 = vmatprep.subr.bf16.mxu0 0
      %3068 = vmatpush1.bf16.msra.mxu0 0
      %3069 = vmatprep.subr.bf16.mxu0 0
      %3070 = vmatpush1.bf16.msra.mxu0 0
      %3071 = vmatprep.subr.bf16.mxu0 0
      %3072 = vmatpush1.bf16.msra.mxu0 0
      %3073 = vmatprep.mubr.bf16.mxu0 0
      %3074 = vmatmul.mubr.bf16.gmra.mrb[0].mxu0 %v2994
      %v3075 = vpop.f32.mrb[0].mxu0
      %v3076 = vadd.f32 0.0, %v3075
      %v3077 = vpop.f32.mrb[0].mxu0
      %v3078 = vpop.f32.mrb[0].mxu0
      %v3079 = vadd.f32 0.0, %v3078
      %v3080 = vpop.f32.mrb[0].mxu0
      %3081 = vmatprep.mubr.bf16.mxu0 0
      %3082 = vmatmul.mubr.bf16.gmra.mrb[0].mxu0 %v2997
      %v3083 = vpop.f32.mrb[0].mxu0
      %v3084 = vadd.f32 0.0, %v3083
      %v3085 = vpop.f32.mrb[0].mxu0
      %v3086 = vpop.f32.mrb[0].mxu0
      %v3087 = vadd.f32 0.0, %v3086
      %v3088 = vpop.f32.mrb[0].mxu0
      %3089 = vmatprep.mubr.bf16.mxu0 0
      %3090 = vmatmul.mubr.bf16.gmra.mrb[0].mxu0 %v3000
      %v3091 = vpop.f32.mrb[0].mxu0
      %v3092 = vadd.f32 0.0, %v3091
      %v3093 = vpop.f32.mrb[0].mxu0
      %v3094 = vpop.f32.mrb[0].mxu0
      %v3095 = vadd.f32 0.0, %v3094
      %v3096 = vpop.f32.mrb[0].mxu0
      %3097 = vmatprep.mubr.bf16.mxu0 0
      %3098 = vmatmul.mubr.bf16.gmra.mrb[0].mxu0 %v3003
      %v3099 = vpop.f32.mrb[0].mxu0
      %v3100 = vadd.f32 0.0, %v3099
      %v3101 = vpop.f32.mrb[0].mxu0
      %v3102 = vpop.f32.mrb[0].mxu0
      %v3103 = vadd.f32 0.0, %v3102
      %v3104 = vpop.f32.mrb[0].mxu0
      %3105 = vmatprep.mubr.bf16.mxu0 0
      %3106 = vmatmul.mubr.bf16.gmra.mrb[0].mxu0 %v3006
      %v3107 = vpop.f32.mrb[0].mxu0
      %v3108 = vadd.f32 0.0, %v3107
      %v3109 = vpop.f32.mrb[0].mxu0
      %v3110 = vpop.f32.mrb[0].mxu0
      %v3111 = vadd.f32 0.0, %v3110
      %v3112 = vpop.f32.mrb[0].mxu0
      %3113 = vmatprep.mubr.bf16.mxu0 0
      %3114 = vmatmul.mubr.bf16.gmra.mrb[0].mxu0 %v3009
      %v3115 = vpop.f32.mrb[0].mxu0
      %v3116 = vadd.f32 0.0, %v3115
      %v3117 = vpop.f32.mrb[0].mxu0
      %v3118 = vpop.f32.mrb[0].mxu0
      %v3119 = vadd.f32 0.0, %v3118
      %v3120 = vpop.f32.mrb[0].mxu0
      %3121 = vmatprep.mubr.bf16.mxu0 0
      %3122 = vmatmul.mubr.bf16.gmra.mrb[0].mxu0 %v3012
      %v3123 = vpop.f32.mrb[0].mxu0
      %v3124 = vadd.f32 0.0, %v3123
      %v3125 = vpop.f32.mrb[0].mxu0
      %v3126 = vpop.f32.mrb[0].mxu0
      %v3127 = vadd.f32 0.0, %v3126
      %v3128 = vpop.f32.mrb[0].mxu0
      %3129 = vmatprep.mubr.bf16.mxu0 0
      %3130 = vmatmul.mubr.bf16.gmra.mrb[0].mxu0 %v3015
      %v3131 = vpop.f32.mrb[0].mxu0
      %v3132 = vadd.f32 0.0, %v3131
      %v3133 = vpop.f32.mrb[0].mxu0
      %v3134 = vpop.f32.mrb[0].mxu0
      %v3135 = vadd.f32 0.0, %v3134
      %v3136 = vpop.f32.mrb[0].mxu0
      %3137 = vmatprep.mubr.bf16.mxu0 0
      %3138 = vmatmul.mubr.bf16.gmra.mrb[0].mxu0 %v3018
      %v3139 = vpop.f32.mrb[0].mxu0
      %v3140 = vadd.f32 0.0, %v3139
      %v3141 = vpop.f32.mrb[0].mxu0
      %v3142 = vpop.f32.mrb[0].mxu0
      %v3143 = vadd.f32 0.0, %v3142
      %v3144 = vpop.f32.mrb[0].mxu0
      %3145 = vmatprep.mubr.bf16.mxu0 0
      %3146 = vmatmul.mubr.bf16.gmra.mrb[0].mxu0 %v3021
      %v3147 = vpop.f32.mrb[0].mxu0
      %v3148 = vadd.f32 0.0, %v3147
      %v3149 = vpop.f32.mrb[0].mxu0
      %v3150 = vpop.f32.mrb[0].mxu0
      %v3151 = vadd.f32 0.0, %v3150
      %v3152 = vpop.f32.mrb[0].mxu0
      %3153 = vmatprep.mubr.bf16.mxu0 0
      %3154 = vmatmul.mubr.bf16.gmra.mrb[0].mxu0 %v3024
      %v3155 = vpop.f32.mrb[0].mxu0
      %v3156 = vadd.f32 0.0, %v3155
      %v3157 = vpop.f32.mrb[0].mxu0
      %v3158 = vpop.f32.mrb[0].mxu0
      %v3159 = vadd.f32 0.0, %v3158
      %v3160 = vpop.f32.mrb[0].mxu0
      %3161 = vmatprep.mubr.bf16.mxu0 0
      %3162 = vmatmul.mubr.bf16.gmra.mrb[0].mxu0 %v3027
      %v3163 = vpop.f32.mrb[0].mxu0
      %v3164 = vadd.f32 0.0, %v3163
      %v3165 = vpop.f32.mrb[0].mxu0
      %v3166 = vpop.f32.mrb[0].mxu0
      %v3167 = vadd.f32 0.0, %v3166
      %v3168 = vpop.f32.mrb[0].mxu0
      %3169 = vmatprep.mubr.bf16.mxu0 0
      %3170 = vmatmul.mubr.bf16.gmra.mrb[0].mxu0 %v3030
      %v3171 = vpop.f32.mrb[0].mxu0
      %v3172 = vadd.f32 0.0, %v3171
      %v3173 = vpop.f32.mrb[0].mxu0
      %v3174 = vpop.f32.mrb[0].mxu0
      %v3175 = vadd.f32 0.0, %v3174
      %v3176 = vpop.f32.mrb[0].mxu0
      %3177 = vmatprep.mubr.bf16.mxu0 0
      %3178 = vmatmul.mubr.bf16.gmra.mrb[0].mxu0 %v3033
      %v3179 = vpop.f32.mrb[0].mxu0
      %v3180 = vadd.f32 0.0, %v3179
      %v3181 = vpop.f32.mrb[0].mxu0
      %v3182 = vpop.f32.mrb[0].mxu0
      %v3183 = vadd.f32 0.0, %v3182
      %v3184 = vpop.f32.mrb[0].mxu0
      %3185 = vmatprep.mubr.bf16.mxu0 0
      %3186 = vmatmul.mubr.bf16.gmra.mrb[0].mxu0 %v3036
      %v3187 = vpop.f32.mrb[0].mxu0
      %v3188 = vadd.f32 0.0, %v3187
      %v3189 = vpop.f32.mrb[0].mxu0
      %v3190 = vpop.f32.mrb[0].mxu0
      %v3191 = vadd.f32 0.0, %v3190
      %v3192 = vpop.f32.mrb[0].mxu0
      %3193 = vmatprep.mubr.bf16.mxu0 0
      %3194 = vmatmul.mubr.bf16.gmra.mrb[0].mxu0 %v3039
      %v3195 = vpop.f32.mrb[0].mxu0
      %v3196 = vadd.f32 0.0, %v3195
      %v3197 = vpop.f32.mrb[0].mxu0
      %v3198 = vpop.f32.mrb[0].mxu0
      %v3199 = vadd.f32 0.0, %v3198
      %v3200 = vpop.f32.mrb[0].mxu0
      %3201 = vdwg.mxu0
      %v3202 = vadd.f32 %v2864, %v3076
      %v3203 = vadd.f32 %v2865, %v3079
      %v3204 = vadd.f32 %v2866, %v3084
      %v3205 = vadd.f32 %v2867, %v3087
      %v3206 = vadd.f32 %v2868, %v3092
      %v3207 = vadd.f32 %v2869, %v3095
      %v3208 = vadd.f32 %v2870, %v3100
      %v3209 = vadd.f32 %v2871, %v3103
      %v3210 = vadd.f32 %v2872, %v3108
      %v3211 = vadd.f32 %v2873, %v3111
      %v3212 = vadd.f32 %v2874, %v3116
      %v3213 = vadd.f32 %v2875, %v3119
      %v3214 = vadd.f32 %v2876, %v3124
      %v3215 = vadd.f32 %v2877, %v3127
      %v3216 = vadd.f32 %v2878, %v3132
      %v3217 = vadd.f32 %v2879, %v3135
      %v3218 = vadd.f32 %v2880, %v3140
      %v3219 = vadd.f32 %v2881, %v3143
      %v3220 = vadd.f32 %v2882, %v3148
      %v3221 = vadd.f32 %v2883, %v3151
      %v3222 = vadd.f32 %v2884, %v3156
      %v3223 = vadd.f32 %v2885, %v3159
      %v3224 = vadd.f32 %v2886, %v3164
      %v3225 = vadd.f32 %v2887, %v3167
      %v3226 = vadd.f32 %v2888, %v3172
      %v3227 = vadd.f32 %v2889, %v3175
      %v3228 = vadd.f32 %v2890, %v3180
      %v3229 = vadd.f32 %v2891, %v3183
      %v3230 = vadd.f32 %v2892, %v3188
      %v3231 = vadd.f32 %v2893, %v3191
      %v3232 = vadd.f32 %v2894, %v3196
      %v3233 = vadd.f32 %v2895, %v3199
      %v3234 = vld [vmem:[#allocation2 + $0x28] sm:$0xff]
      %v3235 = vld [vmem:[#allocation2 + $0x30] sm:$0xff]
      %v3236 = vld [vmem:[#allocation2 + $0x38] sm:$0xff]
      %v3237 = vld [vmem:[#allocation2 + $0x40] sm:$0xff]
      %v3238 = vld [vmem:[#allocation2 + $0x48] sm:$0xff]
      %v3239 = vld [vmem:[#allocation2 + $0x50] sm:$0xff]
      %v3240 = vld [vmem:[#allocation2 + $0x58] sm:$0xff]
      %v3241 = vld [vmem:[#allocation2 + $0x60] sm:$0xff]
      %v3242 = vld [vmem:[#allocation2 + $0x68] sm:$0xff]
      %v3243 = vld [vmem:[#allocation2 + $0x70] sm:$0xff]
      %v3244 = vld [vmem:[#allocation2 + $0x78] sm:$0xff]
      %v3245 = vld [vmem:[#allocation2 + $0x80] sm:$0xff]
      %v3246 = vld [vmem:[#allocation2 + $0x88] sm:$0xff]
      %v3247 = vld [vmem:[#allocation2 + $0x90] sm:$0xff]
      %v3248 = vld [vmem:[#allocation2 + $0x98] sm:$0xff]
      %v3249 = vld [vmem:[#allocation2 + $0xa0] sm:$0xff]
      %v3250 = vld [vmem:[#allocation2 + $0xa8] sm:$0xff]
      %v3251 = vld [vmem:[#allocation2 + $0xb0] sm:$0xff]
      %v3252 = vld [vmem:[#allocation2 + $0xb8] sm:$0xff]
      %v3253 = vld [vmem:[#allocation2 + $0xc0] sm:$0xff]
      %v3254 = vld [vmem:[#allocation2 + $0xc8] sm:$0xff]
      %v3255 = vld [vmem:[#allocation2 + $0xd0] sm:$0xff]
      %v3256 = vld [vmem:[#allocation2 + $0xd8] sm:$0xff]
      %v3257 = vld [vmem:[#allocation2 + $0xe0] sm:$0xff]
      %v3258 = vld [vmem:[#allocation2 + $0xe8] sm:$0xff]
      %v3259 = vld [vmem:[#allocation2 + $0xf0] sm:$0xff]
      %v3260 = vld [vmem:[#allocation2 + $0xf8] sm:$0xff]
      %v3261 = vld [vmem:[#allocation2 + $0x100] sm:$0xff]
      %v3262 = vld [vmem:[#allocation2 + $0x108] sm:$0xff]
      %v3263 = vld [vmem:[#allocation2 + $0x110] sm:$0xff]
      %v3264 = vld [vmem:[#allocation2 + $0x118] sm:$0xff]
      %v3265 = vld [vmem:[#allocation2 + $0x120] sm:$0xff]
      %v3266 = vpack.c.bf16 %v3235, %v3234
      %v3267 = vpack.c.bf16 %v3237, %v3236
      %v3268 = vpack.c.bf16 %v3239, %v3238
      %v3269 = vpack.c.bf16 %v3241, %v3240
      %v3270 = vpack.c.bf16 %v3243, %v3242
      %v3271 = vpack.c.bf16 %v3245, %v3244
      %v3272 = vpack.c.bf16 %v3247, %v3246
      %v3273 = vpack.c.bf16 %v3249, %v3248
      %v3274 = vpack.c.bf16 %v3251, %v3250
      %v3275 = vpack.c.bf16 %v3253, %v3252
      %v3276 = vpack.c.bf16 %v3255, %v3254
      %v3277 = vpack.c.bf16 %v3257, %v3256
      %v3278 = vpack.c.bf16 %v3259, %v3258
      %v3279 = vpack.c.bf16 %v3261, %v3260
      %v3280 = vpack.c.bf16 %v3263, %v3262
      %v3281 = vpack.c.bf16 %v3265, %v3264
      %s3282 = scalar_lea.vmem %s1, 112
      %v3283 = vld [vmem:[%s3282] sm:$0xf]
      %v3284 = vld [vmem:[%s3282 + $0x4] sm:$0xf]
      %v3285 = vld [vmem:[%s3282 + $0x8] sm:$0xf]
      %v3286 = vld [vmem:[%s3282 + $0xc] sm:$0xf]
      %v3291 = vunpack.c.l.b16 %v3283
      %v3292 = vunpack.c.l.b16 %v3284
      %v3293 = vunpack.c.l.b16 %v3285
      %v3294 = vunpack.c.l.b16 %v3286
      %v3295 = vpack.c.b16 %v3292, %v3291
      %v3296 = vpack.c.b16 %v3294, %v3293
      %v3300 = vsel %vm310, %v3266, 0
      %v3303 = vsel %vm310, %v3267, 0
      %v3306 = vsel %vm310, %v3268, 0
      %v3309 = vsel %vm310, %v3269, 0
      %v3312 = vsel %vm310, %v3270, 0
      %v3315 = vsel %vm310, %v3271, 0
      %v3318 = vsel %vm310, %v3272, 0
      %v3321 = vsel %vm310, %v3273, 0
      %v3324 = vsel %vm310, %v3274, 0
      %v3327 = vsel %vm310, %v3275, 0
      %v3330 = vsel %vm310, %v3276, 0
      %v3333 = vsel %vm310, %v3277, 0
      %v3336 = vsel %vm310, %v3278, 0
      %v3339 = vsel %vm310, %v3279, 0
      %v3342 = vsel %vm310, %v3280, 0
      %v3345 = vsel %vm310, %v3281, 0
      %3347 = vmatprep.subr.bf16.mxu0 0
      %3348 = vmatpush1.bf16.msra.mxu0 %v3295
      %3349 = vmatprep.subr.bf16.mxu0 0
      %3350 = vmatpush1.bf16.msra.mxu0 %v3296
      %3351 = vmatprep.subr.bf16.mxu0 0
      %3352 = vmatpush1.bf16.msra.mxu0 0
      %3353 = vmatprep.subr.bf16.mxu0 0
      %3354 = vmatpush1.bf16.msra.mxu0 0
      %3355 = vmatprep.subr.bf16.mxu0 0
      %3356 = vmatpush1.bf16.msra.mxu0 0
      %3357 = vmatprep.subr.bf16.mxu0 0
      %3358 = vmatpush1.bf16.msra.mxu0 0
      %3359 = vmatprep.subr.bf16.mxu0 0
      %3360 = vmatpush1.bf16.msra.mxu0 0
      %3361 = vmatprep.subr.bf16.mxu0 0
      %3362 = vmatpush1.bf16.msra.mxu0 0
      %3363 = vmatprep.subr.bf16.mxu0 0
      %3364 = vmatpush1.bf16.msra.mxu0 0
      %3365 = vmatprep.subr.bf16.mxu0 0
      %3366 = vmatpush1.bf16.msra.mxu0 0
      %3367 = vmatprep.subr.bf16.mxu0 0
      %3368 = vmatpush1.bf16.msra.mxu0 0
      %3369 = vmatprep.subr.bf16.mxu0 0
      %3370 = vmatpush1.bf16.msra.mxu0 0
      %3371 = vmatprep.subr.bf16.mxu0 0
      %3372 = vmatpush1.bf16.msra.mxu0 0
      %3373 = vmatprep.subr.bf16.mxu0 0
      %3374 = vmatpush1.bf16.msra.mxu0 0
      %3375 = vmatprep.subr.bf16.mxu0 0
      %3376 = vmatpush1.bf16.msra.mxu0 0
      %3377 = vmatprep.subr.bf16.mxu0 0
      %3378 = vmatpush1.bf16.msra.mxu0 0
      %3379 = vmatprep.mubr.bf16.mxu0 0
      %3380 = vmatmul.mubr.bf16.gmra.mrb[0].mxu0 %v3300
      %v3381 = vpop.f32.mrb[0].mxu0
      %v3382 = vadd.f32 0.0, %v3381
      %v3383 = vpop.f32.mrb[0].mxu0
      %v3384 = vpop.f32.mrb[0].mxu0
      %v3385 = vadd.f32 0.0, %v3384
      %v3386 = vpop.f32.mrb[0].mxu0
      %3387 = vmatprep.mubr.bf16.mxu0 0
      %3388 = vmatmul.mubr.bf16.gmra.mrb[0].mxu0 %v3303
      %v3389 = vpop.f32.mrb[0].mxu0
      %v3390 = vadd.f32 0.0, %v3389
      %v3391 = vpop.f32.mrb[0].mxu0
      %v3392 = vpop.f32.mrb[0].mxu0
      %v3393 = vadd.f32 0.0, %v3392
      %v3394 = vpop.f32.mrb[0].mxu0
      %3395 = vmatprep.mubr.bf16.mxu0 0
      %3396 = vmatmul.mubr.bf16.gmra.mrb[0].mxu0 %v3306
      %v3397 = vpop.f32.mrb[0].mxu0
      %v3398 = vadd.f32 0.0, %v3397
      %v3399 = vpop.f32.mrb[0].mxu0
      %v3400 = vpop.f32.mrb[0].mxu0
      %v3401 = vadd.f32 0.0, %v3400
      %v3402 = vpop.f32.mrb[0].mxu0
      %3403 = vmatprep.mubr.bf16.mxu0 0
      %3404 = vmatmul.mubr.bf16.gmra.mrb[0].mxu0 %v3309
      %v3405 = vpop.f32.mrb[0].mxu0
      %v3406 = vadd.f32 0.0, %v3405
      %v3407 = vpop.f32.mrb[0].mxu0
      %v3408 = vpop.f32.mrb[0].mxu0
      %v3409 = vadd.f32 0.0, %v3408
      %v3410 = vpop.f32.mrb[0].mxu0
      %3411 = vmatprep.mubr.bf16.mxu0 0
      %3412 = vmatmul.mubr.bf16.gmra.mrb[0].mxu0 %v3312
      %v3413 = vpop.f32.mrb[0].mxu0
      %v3414 = vadd.f32 0.0, %v3413
      %v3415 = vpop.f32.mrb[0].mxu0
      %v3416 = vpop.f32.mrb[0].mxu0
      %v3417 = vadd.f32 0.0, %v3416
      %v3418 = vpop.f32.mrb[0].mxu0
      %3419 = vmatprep.mubr.bf16.mxu0 0
      %3420 = vmatmul.mubr.bf16.gmra.mrb[0].mxu0 %v3315
      %v3421 = vpop.f32.mrb[0].mxu0
      %v3422 = vadd.f32 0.0, %v3421
      %v3423 = vpop.f32.mrb[0].mxu0
      %v3424 = vpop.f32.mrb[0].mxu0
      %v3425 = vadd.f32 0.0, %v3424
      %v3426 = vpop.f32.mrb[0].mxu0
      %3427 = vmatprep.mubr.bf16.mxu0 0
      %3428 = vmatmul.mubr.bf16.gmra.mrb[0].mxu0 %v3318
      %v3429 = vpop.f32.mrb[0].mxu0
      %v3430 = vadd.f32 0.0, %v3429
      %v3431 = vpop.f32.mrb[0].mxu0
      %v3432 = vpop.f32.mrb[0].mxu0
      %v3433 = vadd.f32 0.0, %v3432
      %v3434 = vpop.f32.mrb[0].mxu0
      %3435 = vmatprep.mubr.bf16.mxu0 0
      %3436 = vmatmul.mubr.bf16.gmra.mrb[0].mxu0 %v3321
      %v3437 = vpop.f32.mrb[0].mxu0
      %v3438 = vadd.f32 0.0, %v3437
      %v3439 = vpop.f32.mrb[0].mxu0
      %v3440 = vpop.f32.mrb[0].mxu0
      %v3441 = vadd.f32 0.0, %v3440
      %v3442 = vpop.f32.mrb[0].mxu0
      %3443 = vmatprep.mubr.bf16.mxu0 0
      %3444 = vmatmul.mubr.bf16.gmra.mrb[0].mxu0 %v3324
      %v3445 = vpop.f32.mrb[0].mxu0
      %v3446 = vadd.f32 0.0, %v3445
      %v3447 = vpop.f32.mrb[0].mxu0
      %v3448 = vpop.f32.mrb[0].mxu0
      %v3449 = vadd.f32 0.0, %v3448
      %v3450 = vpop.f32.mrb[0].mxu0
      %3451 = vmatprep.mubr.bf16.mxu0 0
      %3452 = vmatmul.mubr.bf16.gmra.mrb[0].mxu0 %v3327
      %v3453 = vpop.f32.mrb[0].mxu0
      %v3454 = vadd.f32 0.0, %v3453
      %v3455 = vpop.f32.mrb[0].mxu0
      %v3456 = vpop.f32.mrb[0].mxu0
      %v3457 = vadd.f32 0.0, %v3456
      %v3458 = vpop.f32.mrb[0].mxu0
      %3459 = vmatprep.mubr.bf16.mxu0 0
      %3460 = vmatmul.mubr.bf16.gmra.mrb[0].mxu0 %v3330
      %v3461 = vpop.f32.mrb[0].mxu0
      %v3462 = vadd.f32 0.0, %v3461
      %v3463 = vpop.f32.mrb[0].mxu0
      %v3464 = vpop.f32.mrb[0].mxu0
      %v3465 = vadd.f32 0.0, %v3464
      %v3466 = vpop.f32.mrb[0].mxu0
      %3467 = vmatprep.mubr.bf16.mxu0 0
      %3468 = vmatmul.mubr.bf16.gmra.mrb[0].mxu0 %v3333
      %v3469 = vpop.f32.mrb[0].mxu0
      %v3470 = vadd.f32 0.0, %v3469
      %v3471 = vpop.f32.mrb[0].mxu0
      %v3472 = vpop.f32.mrb[0].mxu0
      %v3473 = vadd.f32 0.0, %v3472
      %v3474 = vpop.f32.mrb[0].mxu0
      %3475 = vmatprep.mubr.bf16.mxu0 0
      %3476 = vmatmul.mubr.bf16.gmra.mrb[0].mxu0 %v3336
      %v3477 = vpop.f32.mrb[0].mxu0
      %v3478 = vadd.f32 0.0, %v3477
      %v3479 = vpop.f32.mrb[0].mxu0
      %v3480 = vpop.f32.mrb[0].mxu0
      %v3481 = vadd.f32 0.0, %v3480
      %v3482 = vpop.f32.mrb[0].mxu0
      %3483 = vmatprep.mubr.bf16.mxu0 0
      %3484 = vmatmul.mubr.bf16.gmra.mrb[0].mxu0 %v3339
      %v3485 = vpop.f32.mrb[0].mxu0
      %v3486 = vadd.f32 0.0, %v3485
      %v3487 = vpop.f32.mrb[0].mxu0
      %v3488 = vpop.f32.mrb[0].mxu0
      %v3489 = vadd.f32 0.0, %v3488
      %v3490 = vpop.f32.mrb[0].mxu0
      %3491 = vmatprep.mubr.bf16.mxu0 0
      %3492 = vmatmul.mubr.bf16.gmra.mrb[0].mxu0 %v3342
      %v3493 = vpop.f32.mrb[0].mxu0
      %v3494 = vadd.f32 0.0, %v3493
      %v3495 = vpop.f32.mrb[0].mxu0
      %v3496 = vpop.f32.mrb[0].mxu0
      %v3497 = vadd.f32 0.0, %v3496
      %v3498 = vpop.f32.mrb[0].mxu0
      %3499 = vmatprep.mubr.bf16.mxu0 0
      %3500 = vmatmul.mubr.bf16.gmra.mrb[0].mxu0 %v3345
      %v3501 = vpop.f32.mrb[0].mxu0
      %v3502 = vadd.f32 0.0, %v3501
      %v3503 = vpop.f32.mrb[0].mxu0
      %v3504 = vpop.f32.mrb[0].mxu0
      %v3505 = vadd.f32 0.0, %v3504
      %v3506 = vpop.f32.mrb[0].mxu0
      %3507 = vdwg.mxu0
      %v3508 = vadd.f32 %v3202, %v3382
      %v3509 = vadd.f32 %v3203, %v3385
      %v3510 = vadd.f32 %v3204, %v3390
      %v3511 = vadd.f32 %v3205, %v3393
      %v3512 = vadd.f32 %v3206, %v3398
      %v3513 = vadd.f32 %v3207, %v3401
      %v3514 = vadd.f32 %v3208, %v3406
      %v3515 = vadd.f32 %v3209, %v3409
      %v3516 = vadd.f32 %v3210, %v3414
      %v3517 = vadd.f32 %v3211, %v3417
      %v3518 = vadd.f32 %v3212, %v3422
      %v3519 = vadd.f32 %v3213, %v3425
      %v3520 = vadd.f32 %v3214, %v3430
      %v3521 = vadd.f32 %v3215, %v3433
      %v3522 = vadd.f32 %v3216, %v3438
      %v3523 = vadd.f32 %v3217, %v3441
      %v3524 = vadd.f32 %v3218, %v3446
      %v3525 = vadd.f32 %v3219, %v3449
      %v3526 = vadd.f32 %v3220, %v3454
      %v3527 = vadd.f32 %v3221, %v3457
      %v3528 = vadd.f32 %v3222, %v3462
      %v3529 = vadd.f32 %v3223, %v3465
      %v3530 = vadd.f32 %v3224, %v3470
      %v3531 = vadd.f32 %v3225, %v3473
      %v3532 = vadd.f32 %v3226, %v3478
      %v3533 = vadd.f32 %v3227, %v3481
      %v3534 = vadd.f32 %v3228, %v3486
      %v3535 = vadd.f32 %v3229, %v3489
      %v3536 = vadd.f32 %v3230, %v3494
      %v3537 = vadd.f32 %v3231, %v3497
      %v3538 = vadd.f32 %v3232, %v3502
      %v3539 = vadd.f32 %v3233, %v3505
      %v3540 = vld [vmem:[#allocation2 + $0x29] sm:$0xff]
      %v3541 = vld [vmem:[#allocation2 + $0x31] sm:$0xff]
      %v3542 = vld [vmem:[#allocation2 + $0x39] sm:$0xff]
      %v3543 = vld [vmem:[#allocation2 + $0x41] sm:$0xff]
      %v3544 = vld [vmem:[#allocation2 + $0x49] sm:$0xff]
      %v3545 = vld [vmem:[#allocation2 + $0x51] sm:$0xff]
      %v3546 = vld [vmem:[#allocation2 + $0x59] sm:$0xff]
      %v3547 = vld [vmem:[#allocation2 + $0x61] sm:$0xff]
      %v3548 = vld [vmem:[#allocation2 + $0x69] sm:$0xff]
      %v3549 = vld [vmem:[#allocation2 + $0x71] sm:$0xff]
      %v3550 = vld [vmem:[#allocation2 + $0x79] sm:$0xff]
      %v3551 = vld [vmem:[#allocation2 + $0x81] sm:$0xff]
      %v3552 = vld [vmem:[#allocation2 + $0x89] sm:$0xff]
      %v3553 = vld [vmem:[#allocation2 + $0x91] sm:$0xff]
      %v3554 = vld [vmem:[#allocation2 + $0x99] sm:$0xff]
      %v3555 = vld [vmem:[#allocation2 + $0xa1] sm:$0xff]
      %v3556 = vld [vmem:[#allocation2 + $0xa9] sm:$0xff]
      %v3557 = vld [vmem:[#allocation2 + $0xb1] sm:$0xff]
      %v3558 = vld [vmem:[#allocation2 + $0xb9] sm:$0xff]
      %v3559 = vld [vmem:[#allocation2 + $0xc1] sm:$0xff]
      %v3560 = vld [vmem:[#allocation2 + $0xc9] sm:$0xff]
      %v3561 = vld [vmem:[#allocation2 + $0xd1] sm:$0xff]
      %v3562 = vld [vmem:[#allocation2 + $0xd9] sm:$0xff]
      %v3563 = vld [vmem:[#allocation2 + $0xe1] sm:$0xff]
      %v3564 = vld [vmem:[#allocation2 + $0xe9] sm:$0xff]
      %v3565 = vld [vmem:[#allocation2 + $0xf1] sm:$0xff]
      %v3566 = vld [vmem:[#allocation2 + $0xf9] sm:$0xff]
      %v3567 = vld [vmem:[#allocation2 + $0x101] sm:$0xff]
      %v3568 = vld [vmem:[#allocation2 + $0x109] sm:$0xff]
      %v3569 = vld [vmem:[#allocation2 + $0x111] sm:$0xff]
      %v3570 = vld [vmem:[#allocation2 + $0x119] sm:$0xff]
      %v3571 = vld [vmem:[#allocation2 + $0x121] sm:$0xff]
      %v3572 = vmul.f32 %v3540, %v901
      %v3573 = vmul.f32 %v3541, %v902
      %v3574 = vmul.f32 %v3542, %v903
      %v3575 = vmul.f32 %v3543, %v904
      %v3576 = vmul.f32 %v3544, %v905
      %v3577 = vmul.f32 %v3545, %v906
      %v3578 = vmul.f32 %v3546, %v907
      %v3579 = vmul.f32 %v3547, %v908
      %v3580 = vmul.f32 %v3548, %v909
      %v3581 = vmul.f32 %v3549, %v910
      %v3582 = vmul.f32 %v3550, %v911
      %v3583 = vmul.f32 %v3551, %v912
      %v3584 = vmul.f32 %v3552, %v913
      %v3585 = vmul.f32 %v3553, %v914
      %v3586 = vmul.f32 %v3554, %v915
      %v3587 = vmul.f32 %v3555, %v916
      %v3588 = vmul.f32 %v3556, %v917
      %v3589 = vmul.f32 %v3557, %v918
      %v3590 = vmul.f32 %v3558, %v919
      %v3591 = vmul.f32 %v3559, %v920
      %v3592 = vmul.f32 %v3560, %v921
      %v3593 = vmul.f32 %v3561, %v922
      %v3594 = vmul.f32 %v3562, %v923
      %v3595 = vmul.f32 %v3563, %v924
      %v3596 = vmul.f32 %v3564, %v925
      %v3597 = vmul.f32 %v3565, %v926
      %v3598 = vmul.f32 %v3566, %v927
      %v3599 = vmul.f32 %v3567, %v928
      %v3600 = vmul.f32 %v3568, %v929
      %v3601 = vmul.f32 %v3569, %v930
      %v3602 = vmul.f32 %v3570, %v931
      %v3603 = vmul.f32 %v3571, %v932
      %v3604 = vpack.c.bf16 %v3573, %v3572
      %v3605 = vpack.c.bf16 %v3575, %v3574
      %v3606 = vpack.c.bf16 %v3577, %v3576
      %v3607 = vpack.c.bf16 %v3579, %v3578
      %v3608 = vpack.c.bf16 %v3581, %v3580
      %v3609 = vpack.c.bf16 %v3583, %v3582
      %v3610 = vpack.c.bf16 %v3585, %v3584
      %v3611 = vpack.c.bf16 %v3587, %v3586
      %v3612 = vpack.c.bf16 %v3589, %v3588
      %v3613 = vpack.c.bf16 %v3591, %v3590
      %v3614 = vpack.c.bf16 %v3593, %v3592
      %v3615 = vpack.c.bf16 %v3595, %v3594
      %v3616 = vpack.c.bf16 %v3597, %v3596
      %v3617 = vpack.c.bf16 %v3599, %v3598
      %v3618 = vpack.c.bf16 %v3601, %v3600
      %v3619 = vpack.c.bf16 %v3603, %v3602
      %s3620 = scalar_lea.vmem %s1, 128
      %v3621 = vld [vmem:[%s3620] sm:$0xf]
      %v3622 = vld [vmem:[%s3620 + $0x4] sm:$0xf]
      %v3623 = vld [vmem:[%s3620 + $0x8] sm:$0xf]
      %v3624 = vld [vmem:[%s3620 + $0xc] sm:$0xf]
      %v3629 = vunpack.c.l.b16 %v3621
      %v3630 = vunpack.c.l.b16 %v3622
      %v3631 = vunpack.c.l.b16 %v3623
      %v3632 = vunpack.c.l.b16 %v3624
      %v3633 = vpack.c.b16 %v3630, %v3629
      %v3634 = vpack.c.b16 %v3632, %v3631
      %v3638 = vsel %vm310, %v3604, 0
      %v3641 = vsel %vm310, %v3605, 0
      %v3644 = vsel %vm310, %v3606, 0
      %v3647 = vsel %vm310, %v3607, 0
      %v3650 = vsel %vm310, %v3608, 0
      %v3653 = vsel %vm310, %v3609, 0
      %v3656 = vsel %vm310, %v3610, 0
      %v3659 = vsel %vm310, %v3611, 0
      %v3662 = vsel %vm310, %v3612, 0
      %v3665 = vsel %vm310, %v3613, 0
      %v3668 = vsel %vm310, %v3614, 0
      %v3671 = vsel %vm310, %v3615, 0
      %v3674 = vsel %vm310, %v3616, 0
      %v3677 = vsel %vm310, %v3617, 0
      %v3680 = vsel %vm310, %v3618, 0
      %v3683 = vsel %vm310, %v3619, 0
      %3685 = vmatprep.subr.bf16.mxu0 0
      %3686 = vmatpush1.bf16.msra.mxu0 %v3633
      %3687 = vmatprep.subr.bf16.mxu0 0
      %3688 = vmatpush1.bf16.msra.mxu0 %v3634
      %3689 = vmatprep.subr.bf16.mxu0 0
      %3690 = vmatpush1.bf16.msra.mxu0 0
      %3691 = vmatprep.subr.bf16.mxu0 0
      %3692 = vmatpush1.bf16.msra.mxu0 0
      %3693 = vmatprep.subr.bf16.mxu0 0
      %3694 = vmatpush1.bf16.msra.mxu0 0
      %3695 = vmatprep.subr.bf16.mxu0 0
      %3696 = vmatpush1.bf16.msra.mxu0 0
      %3697 = vmatprep.subr.bf16.mxu0 0
      %3698 = vmatpush1.bf16.msra.mxu0 0
      %3699 = vmatprep.subr.bf16.mxu0 0
      %3700 = vmatpush1.bf16.msra.mxu0 0
      %3701 = vmatprep.subr.bf16.mxu0 0
      %3702 = vmatpush1.bf16.msra.mxu0 0
      %3703 = vmatprep.subr.bf16.mxu0 0
      %3704 = vmatpush1.bf16.msra.mxu0 0
      %3705 = vmatprep.subr.bf16.mxu0 0
      %3706 = vmatpush1.bf16.msra.mxu0 0
      %3707 = vmatprep.subr.bf16.mxu0 0
      %3708 = vmatpush1.bf16.msra.mxu0 0
      %3709 = vmatprep.subr.bf16.mxu0 0
      %3710 = vmatpush1.bf16.msra.mxu0 0
      %3711 = vmatprep.subr.bf16.mxu0 0
      %3712 = vmatpush1.bf16.msra.mxu0 0
      %3713 = vmatprep.subr.bf16.mxu0 0
      %3714 = vmatpush1.bf16.msra.mxu0 0
      %3715 = vmatprep.subr.bf16.mxu0 0
      %3716 = vmatpush1.bf16.msra.mxu0 0
      %3717 = vmatprep.mubr.bf16.mxu0 0
      %3718 = vmatmul.mubr.bf16.gmra.mrb[0].mxu0 %v3638
      %v3719 = vpop.f32.mrb[0].mxu0
      %v3720 = vadd.f32 0.0, %v3719
      %v3721 = vpop.f32.mrb[0].mxu0
      %v3722 = vpop.f32.mrb[0].mxu0
      %v3723 = vadd.f32 0.0, %v3722
      %v3724 = vpop.f32.mrb[0].mxu0
      %3725 = vmatprep.mubr.bf16.mxu0 0
      %3726 = vmatmul.mubr.bf16.gmra.mrb[0].mxu0 %v3641
      %v3727 = vpop.f32.mrb[0].mxu0
      %v3728 = vadd.f32 0.0, %v3727
      %v3729 = vpop.f32.mrb[0].mxu0
      %v3730 = vpop.f32.mrb[0].mxu0
      %v3731 = vadd.f32 0.0, %v3730
      %v3732 = vpop.f32.mrb[0].mxu0
      %3733 = vmatprep.mubr.bf16.mxu0 0
      %3734 = vmatmul.mubr.bf16.gmra.mrb[0].mxu0 %v3644
      %v3735 = vpop.f32.mrb[0].mxu0
      %v3736 = vadd.f32 0.0, %v3735
      %v3737 = vpop.f32.mrb[0].mxu0
      %v3738 = vpop.f32.mrb[0].mxu0
      %v3739 = vadd.f32 0.0, %v3738
      %v3740 = vpop.f32.mrb[0].mxu0
      %3741 = vmatprep.mubr.bf16.mxu0 0
      %3742 = vmatmul.mubr.bf16.gmra.mrb[0].mxu0 %v3647
      %v3743 = vpop.f32.mrb[0].mxu0
      %v3744 = vadd.f32 0.0, %v3743
      %v3745 = vpop.f32.mrb[0].mxu0
      %v3746 = vpop.f32.mrb[0].mxu0
      %v3747 = vadd.f32 0.0, %v3746
      %v3748 = vpop.f32.mrb[0].mxu0
      %3749 = vmatprep.mubr.bf16.mxu0 0
      %3750 = vmatmul.mubr.bf16.gmra.mrb[0].mxu0 %v3650
      %v3751 = vpop.f32.mrb[0].mxu0
      %v3752 = vadd.f32 0.0, %v3751
      %v3753 = vpop.f32.mrb[0].mxu0
      %v3754 = vpop.f32.mrb[0].mxu0
      %v3755 = vadd.f32 0.0, %v3754
      %v3756 = vpop.f32.mrb[0].mxu0
      %3757 = vmatprep.mubr.bf16.mxu0 0
      %3758 = vmatmul.mubr.bf16.gmra.mrb[0].mxu0 %v3653
      %v3759 = vpop.f32.mrb[0].mxu0
      %v3760 = vadd.f32 0.0, %v3759
      %v3761 = vpop.f32.mrb[0].mxu0
      %v3762 = vpop.f32.mrb[0].mxu0
      %v3763 = vadd.f32 0.0, %v3762
      %v3764 = vpop.f32.mrb[0].mxu0
      %3765 = vmatprep.mubr.bf16.mxu0 0
      %3766 = vmatmul.mubr.bf16.gmra.mrb[0].mxu0 %v3656
      %v3767 = vpop.f32.mrb[0].mxu0
      %v3768 = vadd.f32 0.0, %v3767
      %v3769 = vpop.f32.mrb[0].mxu0
      %v3770 = vpop.f32.mrb[0].mxu0
      %v3771 = vadd.f32 0.0, %v3770
      %v3772 = vpop.f32.mrb[0].mxu0
      %3773 = vmatprep.mubr.bf16.mxu0 0
      %3774 = vmatmul.mubr.bf16.gmra.mrb[0].mxu0 %v3659
      %v3775 = vpop.f32.mrb[0].mxu0
      %v3776 = vadd.f32 0.0, %v3775
      %v3777 = vpop.f32.mrb[0].mxu0
      %v3778 = vpop.f32.mrb[0].mxu0
      %v3779 = vadd.f32 0.0, %v3778
      %v3780 = vpop.f32.mrb[0].mxu0
      %3781 = vmatprep.mubr.bf16.mxu0 0
      %3782 = vmatmul.mubr.bf16.gmra.mrb[0].mxu0 %v3662
      %v3783 = vpop.f32.mrb[0].mxu0
      %v3784 = vadd.f32 0.0, %v3783
      %v3785 = vpop.f32.mrb[0].mxu0
      %v3786 = vpop.f32.mrb[0].mxu0
      %v3787 = vadd.f32 0.0, %v3786
      %v3788 = vpop.f32.mrb[0].mxu0
      %3789 = vmatprep.mubr.bf16.mxu0 0
      %3790 = vmatmul.mubr.bf16.gmra.mrb[0].mxu0 %v3665
      %v3791 = vpop.f32.mrb[0].mxu0
      %v3792 = vadd.f32 0.0, %v3791
      %v3793 = vpop.f32.mrb[0].mxu0
      %v3794 = vpop.f32.mrb[0].mxu0
      %v3795 = vadd.f32 0.0, %v3794
      %v3796 = vpop.f32.mrb[0].mxu0
      %3797 = vmatprep.mubr.bf16.mxu0 0
      %3798 = vmatmul.mubr.bf16.gmra.mrb[0].mxu0 %v3668
      %v3799 = vpop.f32.mrb[0].mxu0
      %v3800 = vadd.f32 0.0, %v3799
      %v3801 = vpop.f32.mrb[0].mxu0
      %v3802 = vpop.f32.mrb[0].mxu0
      %v3803 = vadd.f32 0.0, %v3802
      %v3804 = vpop.f32.mrb[0].mxu0
      %3805 = vmatprep.mubr.bf16.mxu0 0
      %3806 = vmatmul.mubr.bf16.gmra.mrb[0].mxu0 %v3671
      %v3807 = vpop.f32.mrb[0].mxu0
      %v3808 = vadd.f32 0.0, %v3807
      %v3809 = vpop.f32.mrb[0].mxu0
      %v3810 = vpop.f32.mrb[0].mxu0
      %v3811 = vadd.f32 0.0, %v3810
      %v3812 = vpop.f32.mrb[0].mxu0
      %3813 = vmatprep.mubr.bf16.mxu0 0
      %3814 = vmatmul.mubr.bf16.gmra.mrb[0].mxu0 %v3674
      %v3815 = vpop.f32.mrb[0].mxu0
      %v3816 = vadd.f32 0.0, %v3815
      %v3817 = vpop.f32.mrb[0].mxu0
      %v3818 = vpop.f32.mrb[0].mxu0
      %v3819 = vadd.f32 0.0, %v3818
      %v3820 = vpop.f32.mrb[0].mxu0
      %3821 = vmatprep.mubr.bf16.mxu0 0
      %3822 = vmatmul.mubr.bf16.gmra.mrb[0].mxu0 %v3677
      %v3823 = vpop.f32.mrb[0].mxu0
      %v3824 = vadd.f32 0.0, %v3823
      %v3825 = vpop.f32.mrb[0].mxu0
      %v3826 = vpop.f32.mrb[0].mxu0
      %v3827 = vadd.f32 0.0, %v3826
      %v3828 = vpop.f32.mrb[0].mxu0
      %3829 = vmatprep.mubr.bf16.mxu0 0
      %3830 = vmatmul.mubr.bf16.gmra.mrb[0].mxu0 %v3680
      %v3831 = vpop.f32.mrb[0].mxu0
      %v3832 = vadd.f32 0.0, %v3831
      %v3833 = vpop.f32.mrb[0].mxu0
      %v3834 = vpop.f32.mrb[0].mxu0
      %v3835 = vadd.f32 0.0, %v3834
      %v3836 = vpop.f32.mrb[0].mxu0
      %3837 = vmatprep.mubr.bf16.mxu0 0
      %3838 = vmatmul.mubr.bf16.gmra.mrb[0].mxu0 %v3683
      %v3839 = vpop.f32.mrb[0].mxu0
      %v3840 = vadd.f32 0.0, %v3839
      %v3841 = vpop.f32.mrb[0].mxu0
      %v3842 = vpop.f32.mrb[0].mxu0
      %v3843 = vadd.f32 0.0, %v3842
      %v3844 = vpop.f32.mrb[0].mxu0
      %3845 = vdwg.mxu0
      %v3846 = vadd.f32 %v3508, %v3720
      %v3847 = vadd.f32 %v3509, %v3723
      %v3848 = vadd.f32 %v3510, %v3728
      %v3849 = vadd.f32 %v3511, %v3731
      %v3850 = vadd.f32 %v3512, %v3736
      %v3851 = vadd.f32 %v3513, %v3739
      %v3852 = vadd.f32 %v3514, %v3744
      %v3853 = vadd.f32 %v3515, %v3747
      %v3854 = vadd.f32 %v3516, %v3752
      %v3855 = vadd.f32 %v3517, %v3755
      %v3856 = vadd.f32 %v3518, %v3760
      %v3857 = vadd.f32 %v3519, %v3763
      %v3858 = vadd.f32 %v3520, %v3768
      %v3859 = vadd.f32 %v3521, %v3771
      %v3860 = vadd.f32 %v3522, %v3776
      %v3861 = vadd.f32 %v3523, %v3779
      %v3862 = vadd.f32 %v3524, %v3784
      %v3863 = vadd.f32 %v3525, %v3787
      %v3864 = vadd.f32 %v3526, %v3792
      %v3865 = vadd.f32 %v3527, %v3795
      %v3866 = vadd.f32 %v3528, %v3800
      %v3867 = vadd.f32 %v3529, %v3803
      %v3868 = vadd.f32 %v3530, %v3808
      %v3869 = vadd.f32 %v3531, %v3811
      %v3870 = vadd.f32 %v3532, %v3816
      %v3871 = vadd.f32 %v3533, %v3819
      %v3872 = vadd.f32 %v3534, %v3824
      %v3873 = vadd.f32 %v3535, %v3827
      %v3874 = vadd.f32 %v3536, %v3832
      %v3875 = vadd.f32 %v3537, %v3835
      %v3876 = vadd.f32 %v3538, %v3840
      %v3877 = vadd.f32 %v3539, %v3843
      %v3878 = vld [vmem:[%s2] sm:$0x1]
      %v3880 = vlaneseq
      %v3881 = vshrl.u32 %v3880, 7
      %v3882 = vsub.s32 0, %v3881
      %v3883 = vrot.slane %v3878, %v3882
      %v3885 = vadd.f32 %v3846, %v3883
      %v3886 = vadd.f32 %v3847, %v3883
      %v3887 = vadd.f32 %v3848, %v3883
      %v3888 = vadd.f32 %v3849, %v3883
      %v3889 = vadd.f32 %v3850, %v3883
      %v3890 = vadd.f32 %v3851, %v3883
      %v3891 = vadd.f32 %v3852, %v3883
      %v3892 = vadd.f32 %v3853, %v3883
      %v3893 = vadd.f32 %v3854, %v3883
      %v3894 = vadd.f32 %v3855, %v3883
      %v3895 = vadd.f32 %v3856, %v3883
      %v3896 = vadd.f32 %v3857, %v3883
      %v3897 = vadd.f32 %v3858, %v3883
      %v3898 = vadd.f32 %v3859, %v3883
      %v3899 = vadd.f32 %v3860, %v3883
      %v3900 = vadd.f32 %v3861, %v3883
      %v3901 = vadd.f32 %v3862, %v3883
      %v3902 = vadd.f32 %v3863, %v3883
      %v3903 = vadd.f32 %v3864, %v3883
      %v3904 = vadd.f32 %v3865, %v3883
      %v3905 = vadd.f32 %v3866, %v3883
      %v3906 = vadd.f32 %v3867, %v3883
      %v3907 = vadd.f32 %v3868, %v3883
      %v3908 = vadd.f32 %v3869, %v3883
      %v3909 = vadd.f32 %v3870, %v3883
      %v3910 = vadd.f32 %v3871, %v3883
      %v3911 = vadd.f32 %v3872, %v3883
      %v3912 = vadd.f32 %v3873, %v3883
      %v3913 = vadd.f32 %v3874, %v3883
      %v3914 = vadd.f32 %v3875, %v3883
      %v3915 = vadd.f32 %v3876, %v3883
      %v3916 = vadd.f32 %v3877, %v3883
      %v3917 = vmax.f32 %v3885, 0.0
      %v3918 = vmax.f32 %v3886, 0.0
      %v3919 = vmax.f32 %v3887, 0.0
      %v3920 = vmax.f32 %v3888, 0.0
      %v3921 = vmax.f32 %v3889, 0.0
      %v3922 = vmax.f32 %v3890, 0.0
      %v3923 = vmax.f32 %v3891, 0.0
      %v3924 = vmax.f32 %v3892, 0.0
      %v3925 = vmax.f32 %v3893, 0.0
      %v3926 = vmax.f32 %v3894, 0.0
      %v3927 = vmax.f32 %v3895, 0.0
      %v3928 = vmax.f32 %v3896, 0.0
      %v3929 = vmax.f32 %v3897, 0.0
      %v3930 = vmax.f32 %v3898, 0.0
      %v3931 = vmax.f32 %v3899, 0.0
      %v3932 = vmax.f32 %v3900, 0.0
      %v3933 = vmax.f32 %v3901, 0.0
      %v3934 = vmax.f32 %v3902, 0.0
      %v3935 = vmax.f32 %v3903, 0.0
      %v3936 = vmax.f32 %v3904, 0.0
      %v3937 = vmax.f32 %v3905, 0.0
      %v3938 = vmax.f32 %v3906, 0.0
      %v3939 = vmax.f32 %v3907, 0.0
      %v3940 = vmax.f32 %v3908, 0.0
      %v3941 = vmax.f32 %v3909, 0.0
      %v3942 = vmax.f32 %v3910, 0.0
      %v3943 = vmax.f32 %v3911, 0.0
      %v3944 = vmax.f32 %v3912, 0.0
      %v3945 = vmax.f32 %v3913, 0.0
      %v3946 = vmax.f32 %v3914, 0.0
      %v3947 = vmax.f32 %v3915, 0.0
      %v3948 = vmax.f32 %v3916, 0.0
      %3949 = vst.msk [vmem:[#allocation2 + $0x18] sm:$0xff] %vm310, %v3917
      %3950 = vst.msk [vmem:[#allocation2 + $0x20] sm:$0xff] %vm310, %v3918
      %3951 = vst.msk [vmem:[#allocation2 + $0x28] sm:$0xff] %vm310, %v3919
      %3952 = vst.msk [vmem:[#allocation2 + $0x30] sm:$0xff] %vm310, %v3920
      %3953 = vst.msk [vmem:[#allocation2 + $0x38] sm:$0xff] %vm310, %v3921
      %3954 = vst.msk [vmem:[#allocation2 + $0x40] sm:$0xff] %vm310, %v3922
      %3955 = vst.msk [vmem:[#allocation2 + $0x48] sm:$0xff] %vm310, %v3923
      %3956 = vst.msk [vmem:[#allocation2 + $0x50] sm:$0xff] %vm310, %v3924
      %3957 = vst.msk [vmem:[#allocation2 + $0x58] sm:$0xff] %vm310, %v3925
      %3958 = vst.msk [vmem:[#allocation2 + $0x60] sm:$0xff] %vm310, %v3926
      %3959 = vst.msk [vmem:[#allocation2 + $0x68] sm:$0xff] %vm310, %v3927
      %3960 = vst.msk [vmem:[#allocation2 + $0x70] sm:$0xff] %vm310, %v3928
      %3961 = vst.msk [vmem:[#allocation2 + $0x78] sm:$0xff] %vm310, %v3929
      %3962 = vst.msk [vmem:[#allocation2 + $0x80] sm:$0xff] %vm310, %v3930
      %3963 = vst.msk [vmem:[#allocation2 + $0x88] sm:$0xff] %vm310, %v3931
      %3964 = vst.msk [vmem:[#allocation2 + $0x90] sm:$0xff] %vm310, %v3932
      %3965 = vst.msk [vmem:[#allocation2 + $0x98] sm:$0xff] %vm310, %v3933
      %3966 = vst.msk [vmem:[#allocation2 + $0xa0] sm:$0xff] %vm310, %v3934
      %3967 = vst.msk [vmem:[#allocation2 + $0xa8] sm:$0xff] %vm310, %v3935
      %3968 = vst.msk [vmem:[#allocation2 + $0xb0] sm:$0xff] %vm310, %v3936
      %3969 = vst.msk [vmem:[#allocation2 + $0xb8] sm:$0xff] %vm310, %v3937
      %3970 = vst.msk [vmem:[#allocation2 + $0xc0] sm:$0xff] %vm310, %v3938
      %3971 = vst.msk [vmem:[#allocation2 + $0xc8] sm:$0xff] %vm310, %v3939
      %3972 = vst.msk [vmem:[#allocation2 + $0xd0] sm:$0xff] %vm310, %v3940
      %3973 = vst.msk [vmem:[#allocation2 + $0xd8] sm:$0xff] %vm310, %v3941
      %3974 = vst.msk [vmem:[#allocation2 + $0xe0] sm:$0xff] %vm310, %v3942
      %3975 = vst.msk [vmem:[#allocation2 + $0xe8] sm:$0xff] %vm310, %v3943
      %3976 = vst.msk [vmem:[#allocation2 + $0xf0] sm:$0xff] %vm310, %v3944
      %3977 = vst.msk [vmem:[#allocation2 + $0xf8] sm:$0xff] %vm310, %v3945
      %3978 = vst.msk [vmem:[#allocation2 + $0x100] sm:$0xff] %vm310, %v3946
      %3979 = vst.msk [vmem:[#allocation2 + $0x108] sm:$0xff] %vm310, %v3947
      %3980 = vst.msk [vmem:[#allocation2 + $0x110] sm:$0xff] %vm310, %v3948
      %v3981 = vld [vmem:[#allocation2 + $0x7] sm:$0xff]
      %v3982 = vld [vmem:[#allocation2 + $0xf] sm:$0xff]
      %v3983 = vld [vmem:[#allocation2 + $0x17] sm:$0xff]
      %v3984 = vld [vmem:[#allocation2 + $0x1f] sm:$0xff]
      %v3985 = vld [vmem:[#allocation2 + $0x27] sm:$0xff]
      %v3986 = vld [vmem:[#allocation2 + $0x2f] sm:$0xff]
      %v3987 = vld [vmem:[#allocation2 + $0x37] sm:$0xff]
      %v3988 = vld [vmem:[#allocation2 + $0x3f] sm:$0xff]
      %v3989 = vld [vmem:[#allocation2 + $0x47] sm:$0xff]
      %v3990 = vld [vmem:[#allocation2 + $0x4f] sm:$0xff]
      %v3991 = vld [vmem:[#allocation2 + $0x57] sm:$0xff]
      %v3992 = vld [vmem:[#allocation2 + $0x5f] sm:$0xff]
      %v3993 = vld [vmem:[#allocation2 + $0x67] sm:$0xff]
      %v3994 = vld [vmem:[#allocation2 + $0x6f] sm:$0xff]
      %v3995 = vld [vmem:[#allocation2 + $0x77] sm:$0xff]
      %v3996 = vld [vmem:[#allocation2 + $0x7f] sm:$0xff]
      %v3997 = vld [vmem:[#allocation2 + $0x87] sm:$0xff]
      %v3998 = vld [vmem:[#allocation2 + $0x8f] sm:$0xff]
      %v3999 = vld [vmem:[#allocation2 + $0x97] sm:$0xff]
      %v4000 = vld [vmem:[#allocation2 + $0x9f] sm:$0xff]
      %v4001 = vld [vmem:[#allocation2 + $0xa7] sm:$0xff]
      %v4002 = vld [vmem:[#allocation2 + $0xaf] sm:$0xff]
      %v4003 = vld [vmem:[#allocation2 + $0xb7] sm:$0xff]
      %v4004 = vld [vmem:[#allocation2 + $0xbf] sm:$0xff]
      %v4005 = vld [vmem:[#allocation2 + $0xc7] sm:$0xff]
      %v4006 = vld [vmem:[#allocation2 + $0xcf] sm:$0xff]
      %v4007 = vld [vmem:[#allocation2 + $0xd7] sm:$0xff]
      %v4008 = vld [vmem:[#allocation2 + $0xdf] sm:$0xff]
      %v4009 = vld [vmem:[#allocation2 + $0xe7] sm:$0xff]
      %v4010 = vld [vmem:[#allocation2 + $0xef] sm:$0xff]
      %v4011 = vld [vmem:[#allocation2 + $0xf7] sm:$0xff]
      %v4012 = vld [vmem:[#allocation2 + $0xff] sm:$0xff]
      %v4013 = vmul.f32 %v3981, %v805
      %v4014 = vmul.f32 %v3982, %v806
      %v4015 = vmul.f32 %v3983, %v807
      %v4016 = vmul.f32 %v3984, %v808
      %v4017 = vmul.f32 %v3985, %v809
      %v4018 = vmul.f32 %v3986, %v810
      %v4019 = vmul.f32 %v3987, %v811
      %v4020 = vmul.f32 %v3988, %v812
      %v4021 = vmul.f32 %v3989, %v813
      %v4022 = vmul.f32 %v3990, %v814
      %v4023 = vmul.f32 %v3991, %v815
      %v4024 = vmul.f32 %v3992, %v816
      %v4025 = vmul.f32 %v3993, %v817
      %v4026 = vmul.f32 %v3994, %v818
      %v4027 = vmul.f32 %v3995, %v819
      %v4028 = vmul.f32 %v3996, %v820
      %v4029 = vmul.f32 %v3997, %v821
      %v4030 = vmul.f32 %v3998, %v822
      %v4031 = vmul.f32 %v3999, %v823
      %v4032 = vmul.f32 %v4000, %v824
      %v4033 = vmul.f32 %v4001, %v825
      %v4034 = vmul.f32 %v4002, %v826
      %v4035 = vmul.f32 %v4003, %v827
      %v4036 = vmul.f32 %v4004, %v828
      %v4037 = vmul.f32 %v4005, %v829
      %v4038 = vmul.f32 %v4006, %v830
      %v4039 = vmul.f32 %v4007, %v831
      %v4040 = vmul.f32 %v4008, %v832
      %v4041 = vmul.f32 %v4009, %v833
      %v4042 = vmul.f32 %v4010, %v834
      %v4043 = vmul.f32 %v4011, %v835
      %v4044 = vmul.f32 %v4012, %v836
      %v4045 = vpack.c.bf16 %v4014, %v4013
      %v4046 = vpack.c.bf16 %v4016, %v4015
      %v4047 = vpack.c.bf16 %v4018, %v4017
      %v4048 = vpack.c.bf16 %v4020, %v4019
      %v4049 = vpack.c.bf16 %v4022, %v4021
      %v4050 = vpack.c.bf16 %v4024, %v4023
      %v4051 = vpack.c.bf16 %v4026, %v4025
      %v4052 = vpack.c.bf16 %v4028, %v4027
      %v4053 = vpack.c.bf16 %v4030, %v4029
      %v4054 = vpack.c.bf16 %v4032, %v4031
      %v4055 = vpack.c.bf16 %v4034, %v4033
      %v4056 = vpack.c.bf16 %v4036, %v4035
      %v4057 = vpack.c.bf16 %v4038, %v4037
      %v4058 = vpack.c.bf16 %v4040, %v4039
      %v4059 = vpack.c.bf16 %v4042, %v4041
      %v4060 = vpack.c.bf16 %v4044, %v4043
      %v4061 = vld [vmem:[%s3] sm:$0xf]
      %v4062 = vld [vmem:[%s3 + $0x4] sm:$0xf]
      %v4063 = vld [vmem:[%s3 + $0x8] sm:$0xf]
      %v4064 = vld [vmem:[%s3 + $0xc] sm:$0xf]
      %v4065 = vld [vmem:[#allocation2 + $0x8] sm:$0xff]
      %v4066 = vld [vmem:[#allocation2 + $0x10] sm:$0xff]
      %v4067 = vld [vmem:[#allocation2 + $0x18] sm:$0xff]
      %v4068 = vld [vmem:[#allocation2 + $0x20] sm:$0xff]
      %v4069 = vld [vmem:[#allocation2 + $0x28] sm:$0xff]
      %v4070 = vld [vmem:[#allocation2 + $0x30] sm:$0xff]
      %v4071 = vld [vmem:[#allocation2 + $0x38] sm:$0xff]
      %v4072 = vld [vmem:[#allocation2 + $0x40] sm:$0xff]
      %v4073 = vld [vmem:[#allocation2 + $0x48] sm:$0xff]
      %v4074 = vld [vmem:[#allocation2 + $0x50] sm:$0xff]
      %v4075 = vld [vmem:[#allocation2 + $0x58] sm:$0xff]
      %v4076 = vld [vmem:[#allocation2 + $0x60] sm:$0xff]
      %v4077 = vld [vmem:[#allocation2 + $0x68] sm:$0xff]
      %v4078 = vld [vmem:[#allocation2 + $0x70] sm:$0xff]
      %v4079 = vld [vmem:[#allocation2 + $0x78] sm:$0xff]
      %v4080 = vld [vmem:[#allocation2 + $0x80] sm:$0xff]
      %v4081 = vld [vmem:[#allocation2 + $0x88] sm:$0xff]
      %v4082 = vld [vmem:[#allocation2 + $0x90] sm:$0xff]
      %v4083 = vld [vmem:[#allocation2 + $0x98] sm:$0xff]
      %v4084 = vld [vmem:[#allocation2 + $0xa0] sm:$0xff]
      %v4085 = vld [vmem:[#allocation2 + $0xa8] sm:$0xff]
      %v4086 = vld [vmem:[#allocation2 + $0xb0] sm:$0xff]
      %v4087 = vld [vmem:[#allocation2 + $0xb8] sm:$0xff]
      %v4088 = vld [vmem:[#allocation2 + $0xc0] sm:$0xff]
      %v4089 = vld [vmem:[#allocation2 + $0xc8] sm:$0xff]
      %v4090 = vld [vmem:[#allocation2 + $0xd0] sm:$0xff]
      %v4091 = vld [vmem:[#allocation2 + $0xd8] sm:$0xff]
      %v4092 = vld [vmem:[#allocation2 + $0xe0] sm:$0xff]
      %v4093 = vld [vmem:[#allocation2 + $0xe8] sm:$0xff]
      %v4094 = vld [vmem:[#allocation2 + $0xf0] sm:$0xff]
      %v4095 = vld [vmem:[#allocation2 + $0xf8] sm:$0xff]
      %v4096 = vld [vmem:[#allocation2 + $0x100] sm:$0xff]
      %v4097 = vpack.c.bf16 %v4066, %v4065
      %v4098 = vpack.c.bf16 %v4068, %v4067
      %v4099 = vpack.c.bf16 %v4070, %v4069
      %v4100 = vpack.c.bf16 %v4072, %v4071
      %v4101 = vpack.c.bf16 %v4074, %v4073
      %v4102 = vpack.c.bf16 %v4076, %v4075
      %v4103 = vpack.c.bf16 %v4078, %v4077
      %v4104 = vpack.c.bf16 %v4080, %v4079
      %v4105 = vpack.c.bf16 %v4082, %v4081
      %v4106 = vpack.c.bf16 %v4084, %v4083
      %v4107 = vpack.c.bf16 %v4086, %v4085
      %v4108 = vpack.c.bf16 %v4088, %v4087
      %v4109 = vpack.c.bf16 %v4090, %v4089
      %v4110 = vpack.c.bf16 %v4092, %v4091
      %v4111 = vpack.c.bf16 %v4094, %v4093
      %v4112 = vpack.c.bf16 %v4096, %v4095
      %s4113 = scalar_lea.vmem %s3, 16
      %v4114 = vld [vmem:[%s4113] sm:$0xf]
      %v4115 = vld [vmem:[%s4113 + $0x4] sm:$0xf]
      %v4116 = vld [vmem:[%s4113 + $0x8] sm:$0xf]
      %v4117 = vld [vmem:[%s4113 + $0xc] sm:$0xf]
      %v4122 = vunpack.c.l.b16 %v4114
      %v4123 = vunpack.c.l.b16 %v4115
      %v4124 = vunpack.c.l.b16 %v4116
      %v4125 = vunpack.c.l.b16 %v4117
      %v4126 = vpack.c.b16 %v4123, %v4122
      %v4127 = vpack.c.b16 %v4125, %v4124
      %v4131 = vsel %vm310, %v4097, 0
      %v4134 = vsel %vm310, %v4098, 0
      %v4137 = vsel %vm310, %v4099, 0
      %v4140 = vsel %vm310, %v4100, 0
      %v4143 = vsel %vm310, %v4101, 0
      %v4146 = vsel %vm310, %v4102, 0
      %v4149 = vsel %vm310, %v4103, 0
      %v4152 = vsel %vm310, %v4104, 0
      %v4155 = vsel %vm310, %v4105, 0
      %v4158 = vsel %vm310, %v4106, 0
      %v4161 = vsel %vm310, %v4107, 0
      %v4164 = vsel %vm310, %v4108, 0
      %v4167 = vsel %vm310, %v4109, 0
      %v4170 = vsel %vm310, %v4110, 0
      %v4173 = vsel %vm310, %v4111, 0
      %v4176 = vsel %vm310, %v4112, 0
      %4178 = vmatprep.subr.bf16.mxu0 0
      %4179 = vmatpush1.bf16.msra.mxu0 %v4126
      %4180 = vmatprep.subr.bf16.mxu0 0
      %4181 = vmatpush1.bf16.msra.mxu0 %v4127
      %4182 = vmatprep.subr.bf16.mxu0 0
      %4183 = vmatpush1.bf16.msra.mxu0 0
      %4184 = vmatprep.subr.bf16.mxu0 0
      %4185 = vmatpush1.bf16.msra.mxu0 0
      %4186 = vmatprep.subr.bf16.mxu0 0
      %4187 = vmatpush1.bf16.msra.mxu0 0
      %4188 = vmatprep.subr.bf16.mxu0 0
      %4189 = vmatpush1.bf16.msra.mxu0 0
      %4190 = vmatprep.subr.bf16.mxu0 0
      %4191 = vmatpush1.bf16.msra.mxu0 0
      %4192 = vmatprep.subr.bf16.mxu0 0
      %4193 = vmatpush1.bf16.msra.mxu0 0
      %4194 = vmatprep.subr.bf16.mxu0 0
      %4195 = vmatpush1.bf16.msra.mxu0 0
      %4196 = vmatprep.subr.bf16.mxu0 0
      %4197 = vmatpush1.bf16.msra.mxu0 0
      %4198 = vmatprep.subr.bf16.mxu0 0
      %4199 = vmatpush1.bf16.msra.mxu0 0
      %4200 = vmatprep.subr.bf16.mxu0 0
      %4201 = vmatpush1.bf16.msra.mxu0 0
      %4202 = vmatprep.subr.bf16.mxu0 0
      %4203 = vmatpush1.bf16.msra.mxu0 0
      %4204 = vmatprep.subr.bf16.mxu0 0
      %4205 = vmatpush1.bf16.msra.mxu0 0
      %4206 = vmatprep.subr.bf16.mxu0 0
      %4207 = vmatpush1.bf16.msra.mxu0 0
      %4208 = vmatprep.subr.bf16.mxu0 0
      %4209 = vmatpush1.bf16.msra.mxu0 0
      %4210 = vmatprep.mubr.bf16.mxu0 0
      %4211 = vmatmul.mubr.bf16.gmra.mrb[0].mxu0 %v4131
      %v4212 = vpop.f32.mrb[0].mxu0
      %v4213 = vadd.f32 0.0, %v4212
      %v4214 = vpop.f32.mrb[0].mxu0
      %v4215 = vpop.f32.mrb[0].mxu0
      %v4216 = vadd.f32 0.0, %v4215
      %v4217 = vpop.f32.mrb[0].mxu0
      %4218 = vmatprep.mubr.bf16.mxu0 0
      %4219 = vmatmul.mubr.bf16.gmra.mrb[0].mxu0 %v4134
      %v4220 = vpop.f32.mrb[0].mxu0
      %v4221 = vadd.f32 0.0, %v4220
      %v4222 = vpop.f32.mrb[0].mxu0
      %v4223 = vpop.f32.mrb[0].mxu0
      %v4224 = vadd.f32 0.0, %v4223
      %v4225 = vpop.f32.mrb[0].mxu0
      %4226 = vmatprep.mubr.bf16.mxu0 0
      %4227 = vmatmul.mubr.bf16.gmra.mrb[0].mxu0 %v4137
      %v4228 = vpop.f32.mrb[0].mxu0
      %v4229 = vadd.f32 0.0, %v4228
      %v4230 = vpop.f32.mrb[0].mxu0
      %v4231 = vpop.f32.mrb[0].mxu0
      %v4232 = vadd.f32 0.0, %v4231
      %v4233 = vpop.f32.mrb[0].mxu0
      %4234 = vmatprep.mubr.bf16.mxu0 0
      %4235 = vmatmul.mubr.bf16.gmra.mrb[0].mxu0 %v4140
      %v4236 = vpop.f32.mrb[0].mxu0
      %v4237 = vadd.f32 0.0, %v4236
      %v4238 = vpop.f32.mrb[0].mxu0
      %v4239 = vpop.f32.mrb[0].mxu0
      %v4240 = vadd.f32 0.0, %v4239
      %v4241 = vpop.f32.mrb[0].mxu0
      %4242 = vmatprep.mubr.bf16.mxu0 0
      %4243 = vmatmul.mubr.bf16.gmra.mrb[0].mxu0 %v4143
      %v4244 = vpop.f32.mrb[0].mxu0
      %v4245 = vadd.f32 0.0, %v4244
      %v4246 = vpop.f32.mrb[0].mxu0
      %v4247 = vpop.f32.mrb[0].mxu0
      %v4248 = vadd.f32 0.0, %v4247
      %v4249 = vpop.f32.mrb[0].mxu0
      %4250 = vmatprep.mubr.bf16.mxu0 0
      %4251 = vmatmul.mubr.bf16.gmra.mrb[0].mxu0 %v4146
      %v4252 = vpop.f32.mrb[0].mxu0
      %v4253 = vadd.f32 0.0, %v4252
      %v4254 = vpop.f32.mrb[0].mxu0
      %v4255 = vpop.f32.mrb[0].mxu0
      %v4256 = vadd.f32 0.0, %v4255
      %v4257 = vpop.f32.mrb[0].mxu0
      %4258 = vmatprep.mubr.bf16.mxu0 0
      %4259 = vmatmul.mubr.bf16.gmra.mrb[0].mxu0 %v4149
      %v4260 = vpop.f32.mrb[0].mxu0
      %v4261 = vadd.f32 0.0, %v4260
      %v4262 = vpop.f32.mrb[0].mxu0
      %v4263 = vpop.f32.mrb[0].mxu0
      %v4264 = vadd.f32 0.0, %v4263
      %v4265 = vpop.f32.mrb[0].mxu0
      %4266 = vmatprep.mubr.bf16.mxu0 0
      %4267 = vmatmul.mubr.bf16.gmra.mrb[0].mxu0 %v4152
      %v4268 = vpop.f32.mrb[0].mxu0
      %v4269 = vadd.f32 0.0, %v4268
      %v4270 = vpop.f32.mrb[0].mxu0
      %v4271 = vpop.f32.mrb[0].mxu0
      %v4272 = vadd.f32 0.0, %v4271
      %v4273 = vpop.f32.mrb[0].mxu0
      %4274 = vmatprep.mubr.bf16.mxu0 0
      %4275 = vmatmul.mubr.bf16.gmra.mrb[0].mxu0 %v4155
      %v4276 = vpop.f32.mrb[0].mxu0
      %v4277 = vadd.f32 0.0, %v4276
      %v4278 = vpop.f32.mrb[0].mxu0
      %v4279 = vpop.f32.mrb[0].mxu0
      %v4280 = vadd.f32 0.0, %v4279
      %v4281 = vpop.f32.mrb[0].mxu0
      %4282 = vmatprep.mubr.bf16.mxu0 0
      %4283 = vmatmul.mubr.bf16.gmra.mrb[0].mxu0 %v4158
      %v4284 = vpop.f32.mrb[0].mxu0
      %v4285 = vadd.f32 0.0, %v4284
      %v4286 = vpop.f32.mrb[0].mxu0
      %v4287 = vpop.f32.mrb[0].mxu0
      %v4288 = vadd.f32 0.0, %v4287
      %v4289 = vpop.f32.mrb[0].mxu0
      %4290 = vmatprep.mubr.bf16.mxu0 0
      %4291 = vmatmul.mubr.bf16.gmra.mrb[0].mxu0 %v4161
      %v4292 = vpop.f32.mrb[0].mxu0
      %v4293 = vadd.f32 0.0, %v4292
      %v4294 = vpop.f32.mrb[0].mxu0
      %v4295 = vpop.f32.mrb[0].mxu0
      %v4296 = vadd.f32 0.0, %v4295
      %v4297 = vpop.f32.mrb[0].mxu0
      %4298 = vmatprep.mubr.bf16.mxu0 0
      %4299 = vmatmul.mubr.bf16.gmra.mrb[0].mxu0 %v4164
      %v4300 = vpop.f32.mrb[0].mxu0
      %v4301 = vadd.f32 0.0, %v4300
      %v4302 = vpop.f32.mrb[0].mxu0
      %v4303 = vpop.f32.mrb[0].mxu0
      %v4304 = vadd.f32 0.0, %v4303
      %v4305 = vpop.f32.mrb[0].mxu0
      %4306 = vmatprep.mubr.bf16.mxu0 0
      %4307 = vmatmul.mubr.bf16.gmra.mrb[0].mxu0 %v4167
      %v4308 = vpop.f32.mrb[0].mxu0
      %v4309 = vadd.f32 0.0, %v4308
      %v4310 = vpop.f32.mrb[0].mxu0
      %v4311 = vpop.f32.mrb[0].mxu0
      %v4312 = vadd.f32 0.0, %v4311
      %v4313 = vpop.f32.mrb[0].mxu0
      %4314 = vmatprep.mubr.bf16.mxu0 0
      %4315 = vmatmul.mubr.bf16.gmra.mrb[0].mxu0 %v4170
      %v4316 = vpop.f32.mrb[0].mxu0
      %v4317 = vadd.f32 0.0, %v4316
      %v4318 = vpop.f32.mrb[0].mxu0
      %v4319 = vpop.f32.mrb[0].mxu0
      %v4320 = vadd.f32 0.0, %v4319
      %v4321 = vpop.f32.mrb[0].mxu0
      %4322 = vmatprep.mubr.bf16.mxu0 0
      %4323 = vmatmul.mubr.bf16.gmra.mrb[0].mxu0 %v4173
      %v4324 = vpop.f32.mrb[0].mxu0
      %v4325 = vadd.f32 0.0, %v4324
      %v4326 = vpop.f32.mrb[0].mxu0
      %v4327 = vpop.f32.mrb[0].mxu0
      %v4328 = vadd.f32 0.0, %v4327
      %v4329 = vpop.f32.mrb[0].mxu0
      %4330 = vmatprep.mubr.bf16.mxu0 0
      %4331 = vmatmul.mubr.bf16.gmra.mrb[0].mxu0 %v4176
      %v4332 = vpop.f32.mrb[0].mxu0
      %v4333 = vadd.f32 0.0, %v4332
      %v4334 = vpop.f32.mrb[0].mxu0
      %v4335 = vpop.f32.mrb[0].mxu0
      %v4336 = vadd.f32 0.0, %v4335
      %v4337 = vpop.f32.mrb[0].mxu0
      %4338 = vdwg.mxu0
      %v4343 = vunpack.c.l.b16 %v4061
      %v4344 = vunpack.c.l.b16 %v4062
      %v4345 = vunpack.c.l.b16 %v4063
      %v4346 = vunpack.c.l.b16 %v4064
      %v4347 = vpack.c.b16 %v4344, %v4343
      %v4348 = vpack.c.b16 %v4346, %v4345
      %v4352 = vsel %vm310, %v4045, 0
      %v4355 = vsel %vm310, %v4046, 0
      %v4358 = vsel %vm310, %v4047, 0
      %v4361 = vsel %vm310, %v4048, 0
      %v4364 = vsel %vm310, %v4049, 0
      %v4367 = vsel %vm310, %v4050, 0
      %v4370 = vsel %vm310, %v4051, 0
      %v4373 = vsel %vm310, %v4052, 0
      %v4376 = vsel %vm310, %v4053, 0
      %v4379 = vsel %vm310, %v4054, 0
      %v4382 = vsel %vm310, %v4055, 0
      %v4385 = vsel %vm310, %v4056, 0
      %v4388 = vsel %vm310, %v4057, 0
      %v4391 = vsel %vm310, %v4058, 0
      %v4394 = vsel %vm310, %v4059, 0
      %v4397 = vsel %vm310, %v4060, 0
      %4399 = vmatprep.subr.bf16.mxu0 0
      %4400 = vmatpush1.bf16.msra.mxu0 %v4347
      %4401 = vmatprep.subr.bf16.mxu0 0
      %4402 = vmatpush1.bf16.msra.mxu0 %v4348
      %4403 = vmatprep.subr.bf16.mxu0 0
      %4404 = vmatpush1.bf16.msra.mxu0 0
      %4405 = vmatprep.subr.bf16.mxu0 0
      %4406 = vmatpush1.bf16.msra.mxu0 0
      %4407 = vmatprep.subr.bf16.mxu0 0
      %4408 = vmatpush1.bf16.msra.mxu0 0
      %4409 = vmatprep.subr.bf16.mxu0 0
      %4410 = vmatpush1.bf16.msra.mxu0 0
      %4411 = vmatprep.subr.bf16.mxu0 0
      %4412 = vmatpush1.bf16.msra.mxu0 0
      %4413 = vmatprep.subr.bf16.mxu0 0
      %4414 = vmatpush1.bf16.msra.mxu0 0
      %4415 = vmatprep.subr.bf16.mxu0 0
      %4416 = vmatpush1.bf16.msra.mxu0 0
      %4417 = vmatprep.subr.bf16.mxu0 0
      %4418 = vmatpush1.bf16.msra.mxu0 0
      %4419 = vmatprep.subr.bf16.mxu0 0
      %4420 = vmatpush1.bf16.msra.mxu0 0
      %4421 = vmatprep.subr.bf16.mxu0 0
      %4422 = vmatpush1.bf16.msra.mxu0 0
      %4423 = vmatprep.subr.bf16.mxu0 0
      %4424 = vmatpush1.bf16.msra.mxu0 0
      %4425 = vmatprep.subr.bf16.mxu0 0
      %4426 = vmatpush1.bf16.msra.mxu0 0
      %4427 = vmatprep.subr.bf16.mxu0 0
      %4428 = vmatpush1.bf16.msra.mxu0 0
      %4429 = vmatprep.subr.bf16.mxu0 0
      %4430 = vmatpush1.bf16.msra.mxu0 0
      %4431 = vmatprep.mubr.bf16.mxu0 0
      %4432 = vmatmul.mubr.bf16.gmra.mrb[0].mxu0 %v4352
      %v4433 = vpop.f32.mrb[0].mxu0
      %v4434 = vadd.f32 %v4213, %v4433
      %v4435 = vpop.f32.mrb[0].mxu0
      %v4436 = vpop.f32.mrb[0].mxu0
      %v4437 = vadd.f32 %v4216, %v4436
      %v4438 = vpop.f32.mrb[0].mxu0
      %4439 = vmatprep.mubr.bf16.mxu0 0
      %4440 = vmatmul.mubr.bf16.gmra.mrb[0].mxu0 %v4355
      %v4441 = vpop.f32.mrb[0].mxu0
      %v4442 = vadd.f32 %v4221, %v4441
      %v4443 = vpop.f32.mrb[0].mxu0
      %v4444 = vpop.f32.mrb[0].mxu0
      %v4445 = vadd.f32 %v4224, %v4444
      %v4446 = vpop.f32.mrb[0].mxu0
      %4447 = vmatprep.mubr.bf16.mxu0 0
      %4448 = vmatmul.mubr.bf16.gmra.mrb[0].mxu0 %v4358
      %v4449 = vpop.f32.mrb[0].mxu0
      %v4450 = vadd.f32 %v4229, %v4449
      %v4451 = vpop.f32.mrb[0].mxu0
      %v4452 = vpop.f32.mrb[0].mxu0
      %v4453 = vadd.f32 %v4232, %v4452
      %v4454 = vpop.f32.mrb[0].mxu0
      %4455 = vmatprep.mubr.bf16.mxu0 0
      %4456 = vmatmul.mubr.bf16.gmra.mrb[0].mxu0 %v4361
      %v4457 = vpop.f32.mrb[0].mxu0
      %v4458 = vadd.f32 %v4237, %v4457
      %v4459 = vpop.f32.mrb[0].mxu0
      %v4460 = vpop.f32.mrb[0].mxu0
      %v4461 = vadd.f32 %v4240, %v4460
      %v4462 = vpop.f32.mrb[0].mxu0
      %4463 = vmatprep.mubr.bf16.mxu0 0
      %4464 = vmatmul.mubr.bf16.gmra.mrb[0].mxu0 %v4364
      %v4465 = vpop.f32.mrb[0].mxu0
      %v4466 = vadd.f32 %v4245, %v4465
      %v4467 = vpop.f32.mrb[0].mxu0
      %v4468 = vpop.f32.mrb[0].mxu0
      %v4469 = vadd.f32 %v4248, %v4468
      %v4470 = vpop.f32.mrb[0].mxu0
      %4471 = vmatprep.mubr.bf16.mxu0 0
      %4472 = vmatmul.mubr.bf16.gmra.mrb[0].mxu0 %v4367
      %v4473 = vpop.f32.mrb[0].mxu0
      %v4474 = vadd.f32 %v4253, %v4473
      %v4475 = vpop.f32.mrb[0].mxu0
      %v4476 = vpop.f32.mrb[0].mxu0
      %v4477 = vadd.f32 %v4256, %v4476
      %v4478 = vpop.f32.mrb[0].mxu0
      %4479 = vmatprep.mubr.bf16.mxu0 0
      %4480 = vmatmul.mubr.bf16.gmra.mrb[0].mxu0 %v4370
      %v4481 = vpop.f32.mrb[0].mxu0
      %v4482 = vadd.f32 %v4261, %v4481
      %v4483 = vpop.f32.mrb[0].mxu0
      %v4484 = vpop.f32.mrb[0].mxu0
      %v4485 = vadd.f32 %v4264, %v4484
      %v4486 = vpop.f32.mrb[0].mxu0
      %4487 = vmatprep.mubr.bf16.mxu0 0
      %4488 = vmatmul.mubr.bf16.gmra.mrb[0].mxu0 %v4373
      %v4489 = vpop.f32.mrb[0].mxu0
      %v4490 = vadd.f32 %v4269, %v4489
      %v4491 = vpop.f32.mrb[0].mxu0
      %v4492 = vpop.f32.mrb[0].mxu0
      %v4493 = vadd.f32 %v4272, %v4492
      %v4494 = vpop.f32.mrb[0].mxu0
      %4495 = vmatprep.mubr.bf16.mxu0 0
      %4496 = vmatmul.mubr.bf16.gmra.mrb[0].mxu0 %v4376
      %v4497 = vpop.f32.mrb[0].mxu0
      %v4498 = vadd.f32 %v4277, %v4497
      %v4499 = vpop.f32.mrb[0].mxu0
      %v4500 = vpop.f32.mrb[0].mxu0
      %v4501 = vadd.f32 %v4280, %v4500
      %v4502 = vpop.f32.mrb[0].mxu0
      %4503 = vmatprep.mubr.bf16.mxu0 0
      %4504 = vmatmul.mubr.bf16.gmra.mrb[0].mxu0 %v4379
      %v4505 = vpop.f32.mrb[0].mxu0
      %v4506 = vadd.f32 %v4285, %v4505
      %v4507 = vpop.f32.mrb[0].mxu0
      %v4508 = vpop.f32.mrb[0].mxu0
      %v4509 = vadd.f32 %v4288, %v4508
      %v4510 = vpop.f32.mrb[0].mxu0
      %4511 = vmatprep.mubr.bf16.mxu0 0
      %4512 = vmatmul.mubr.bf16.gmra.mrb[0].mxu0 %v4382
      %v4513 = vpop.f32.mrb[0].mxu0
      %v4514 = vadd.f32 %v4293, %v4513
      %v4515 = vpop.f32.mrb[0].mxu0
      %v4516 = vpop.f32.mrb[0].mxu0
      %v4517 = vadd.f32 %v4296, %v4516
      %v4518 = vpop.f32.mrb[0].mxu0
      %4519 = vmatprep.mubr.bf16.mxu0 0
      %4520 = vmatmul.mubr.bf16.gmra.mrb[0].mxu0 %v4385
      %v4521 = vpop.f32.mrb[0].mxu0
      %v4522 = vadd.f32 %v4301, %v4521
      %v4523 = vpop.f32.mrb[0].mxu0
      %v4524 = vpop.f32.mrb[0].mxu0
      %v4525 = vadd.f32 %v4304, %v4524
      %v4526 = vpop.f32.mrb[0].mxu0
      %4527 = vmatprep.mubr.bf16.mxu0 0
      %4528 = vmatmul.mubr.bf16.gmra.mrb[0].mxu0 %v4388
      %v4529 = vpop.f32.mrb[0].mxu0
      %v4530 = vadd.f32 %v4309, %v4529
      %v4531 = vpop.f32.mrb[0].mxu0
      %v4532 = vpop.f32.mrb[0].mxu0
      %v4533 = vadd.f32 %v4312, %v4532
      %v4534 = vpop.f32.mrb[0].mxu0
      %4535 = vmatprep.mubr.bf16.mxu0 0
      %4536 = vmatmul.mubr.bf16.gmra.mrb[0].mxu0 %v4391
      %v4537 = vpop.f32.mrb[0].mxu0
      %v4538 = vadd.f32 %v4317, %v4537
      %v4539 = vpop.f32.mrb[0].mxu0
      %v4540 = vpop.f32.mrb[0].mxu0
      %v4541 = vadd.f32 %v4320, %v4540
      %v4542 = vpop.f32.mrb[0].mxu0
      %4543 = vmatprep.mubr.bf16.mxu0 0
      %4544 = vmatmul.mubr.bf16.gmra.mrb[0].mxu0 %v4394
      %v4545 = vpop.f32.mrb[0].mxu0
      %v4546 = vadd.f32 %v4325, %v4545
      %v4547 = vpop.f32.mrb[0].mxu0
      %v4548 = vpop.f32.mrb[0].mxu0
      %v4549 = vadd.f32 %v4328, %v4548
      %v4550 = vpop.f32.mrb[0].mxu0
      %4551 = vmatprep.mubr.bf16.mxu0 0
      %4552 = vmatmul.mubr.bf16.gmra.mrb[0].mxu0 %v4397
      %v4553 = vpop.f32.mrb[0].mxu0
      %v4554 = vadd.f32 %v4333, %v4553
      %v4555 = vpop.f32.mrb[0].mxu0
      %v4556 = vpop.f32.mrb[0].mxu0
      %v4557 = vadd.f32 %v4336, %v4556
      %v4558 = vpop.f32.mrb[0].mxu0
      %4559 = vdwg.mxu0
      %v4560 = vld [vmem:[#allocation2 + $0x9] sm:$0xff]
      %v4561 = vld [vmem:[#allocation2 + $0x11] sm:$0xff]
      %v4562 = vld [vmem:[#allocation2 + $0x19] sm:$0xff]
      %v4563 = vld [vmem:[#allocation2 + $0x21] sm:$0xff]
      %v4564 = vld [vmem:[#allocation2 + $0x29] sm:$0xff]
      %v4565 = vld [vmem:[#allocation2 + $0x31] sm:$0xff]
      %v4566 = vld [vmem:[#allocation2 + $0x39] sm:$0xff]
      %v4567 = vld [vmem:[#allocation2 + $0x41] sm:$0xff]
      %v4568 = vld [vmem:[#allocation2 + $0x49] sm:$0xff]
      %v4569 = vld [vmem:[#allocation2 + $0x51] sm:$0xff]
      %v4570 = vld [vmem:[#allocation2 + $0x59] sm:$0xff]
      %v4571 = vld [vmem:[#allocation2 + $0x61] sm:$0xff]
      %v4572 = vld [vmem:[#allocation2 + $0x69] sm:$0xff]
      %v4573 = vld [vmem:[#allocation2 + $0x71] sm:$0xff]
      %v4574 = vld [vmem:[#allocation2 + $0x79] sm:$0xff]
      %v4575 = vld [vmem:[#allocation2 + $0x81] sm:$0xff]
      %v4576 = vld [vmem:[#allocation2 + $0x89] sm:$0xff]
      %v4577 = vld [vmem:[#allocation2 + $0x91] sm:$0xff]
      %v4578 = vld [vmem:[#allocation2 + $0x99] sm:$0xff]
      %v4579 = vld [vmem:[#allocation2 + $0xa1] sm:$0xff]
      %v4580 = vld [vmem:[#allocation2 + $0xa9] sm:$0xff]
      %v4581 = vld [vmem:[#allocation2 + $0xb1] sm:$0xff]
      %v4582 = vld [vmem:[#allocation2 + $0xb9] sm:$0xff]
      %v4583 = vld [vmem:[#allocation2 + $0xc1] sm:$0xff]
      %v4584 = vld [vmem:[#allocation2 + $0xc9] sm:$0xff]
      %v4585 = vld [vmem:[#allocation2 + $0xd1] sm:$0xff]
      %v4586 = vld [vmem:[#allocation2 + $0xd9] sm:$0xff]
      %v4587 = vld [vmem:[#allocation2 + $0xe1] sm:$0xff]
      %v4588 = vld [vmem:[#allocation2 + $0xe9] sm:$0xff]
      %v4589 = vld [vmem:[#allocation2 + $0xf1] sm:$0xff]
      %v4590 = vld [vmem:[#allocation2 + $0xf9] sm:$0xff]
      %v4591 = vld [vmem:[#allocation2 + $0x101] sm:$0xff]
      %v4592 = vmul.f32 %v4560, %v901
      %v4593 = vmul.f32 %v4561, %v902
      %v4594 = vmul.f32 %v4562, %v903
      %v4595 = vmul.f32 %v4563, %v904
      %v4596 = vmul.f32 %v4564, %v905
      %v4597 = vmul.f32 %v4565, %v906
      %v4598 = vmul.f32 %v4566, %v907
      %v4599 = vmul.f32 %v4567, %v908
      %v4600 = vmul.f32 %v4568, %v909
      %v4601 = vmul.f32 %v4569, %v910
      %v4602 = vmul.f32 %v4570, %v911
      %v4603 = vmul.f32 %v4571, %v912
      %v4604 = vmul.f32 %v4572, %v913
      %v4605 = vmul.f32 %v4573, %v914
      %v4606 = vmul.f32 %v4574, %v915
      %v4607 = vmul.f32 %v4575, %v916
      %v4608 = vmul.f32 %v4576, %v917
      %v4609 = vmul.f32 %v4577, %v918
      %v4610 = vmul.f32 %v4578, %v919
      %v4611 = vmul.f32 %v4579, %v920
      %v4612 = vmul.f32 %v4580, %v921
      %v4613 = vmul.f32 %v4581, %v922
      %v4614 = vmul.f32 %v4582, %v923
      %v4615 = vmul.f32 %v4583, %v924
      %v4616 = vmul.f32 %v4584, %v925
      %v4617 = vmul.f32 %v4585, %v926
      %v4618 = vmul.f32 %v4586, %v927
      %v4619 = vmul.f32 %v4587, %v928
      %v4620 = vmul.f32 %v4588, %v929
      %v4621 = vmul.f32 %v4589, %v930
      %v4622 = vmul.f32 %v4590, %v931
      %v4623 = vmul.f32 %v4591, %v932
      %v4624 = vpack.c.bf16 %v4593, %v4592
      %v4625 = vpack.c.bf16 %v4595, %v4594
      %v4626 = vpack.c.bf16 %v4597, %v4596
      %v4627 = vpack.c.bf16 %v4599, %v4598
      %v4628 = vpack.c.bf16 %v4601, %v4600
      %v4629 = vpack.c.bf16 %v4603, %v4602
      %v4630 = vpack.c.bf16 %v4605, %v4604
      %v4631 = vpack.c.bf16 %v4607, %v4606
      %v4632 = vpack.c.bf16 %v4609, %v4608
      %v4633 = vpack.c.bf16 %v4611, %v4610
      %v4634 = vpack.c.bf16 %v4613, %v4612
      %v4635 = vpack.c.bf16 %v4615, %v4614
      %v4636 = vpack.c.bf16 %v4617, %v4616
      %v4637 = vpack.c.bf16 %v4619, %v4618
      %v4638 = vpack.c.bf16 %v4621, %v4620
      %v4639 = vpack.c.bf16 %v4623, %v4622
      %s4640 = scalar_lea.vmem %s3, 32
      %v4641 = vld [vmem:[%s4640] sm:$0xf]
      %v4642 = vld [vmem:[%s4640 + $0x4] sm:$0xf]
      %v4643 = vld [vmem:[%s4640 + $0x8] sm:$0xf]
      %v4644 = vld [vmem:[%s4640 + $0xc] sm:$0xf]
      %v4649 = vunpack.c.l.b16 %v4641
      %v4650 = vunpack.c.l.b16 %v4642
      %v4651 = vunpack.c.l.b16 %v4643
      %v4652 = vunpack.c.l.b16 %v4644
      %v4653 = vpack.c.b16 %v4650, %v4649
      %v4654 = vpack.c.b16 %v4652, %v4651
      %v4658 = vsel %vm310, %v4624, 0
      %v4661 = vsel %vm310, %v4625, 0
      %v4664 = vsel %vm310, %v4626, 0
      %v4667 = vsel %vm310, %v4627, 0
      %v4670 = vsel %vm310, %v4628, 0
      %v4673 = vsel %vm310, %v4629, 0
      %v4676 = vsel %vm310, %v4630, 0
      %v4679 = vsel %vm310, %v4631, 0
      %v4682 = vsel %vm310, %v4632, 0
      %v4685 = vsel %vm310, %v4633, 0
      %v4688 = vsel %vm310, %v4634, 0
      %v4691 = vsel %vm310, %v4635, 0
      %v4694 = vsel %vm310, %v4636, 0
      %v4697 = vsel %vm310, %v4637, 0
      %v4700 = vsel %vm310, %v4638, 0
      %v4703 = vsel %vm310, %v4639, 0
      %4705 = vmatprep.subr.bf16.mxu0 0
      %4706 = vmatpush1.bf16.msra.mxu0 %v4653
      %4707 = vmatprep.subr.bf16.mxu0 0
      %4708 = vmatpush1.bf16.msra.mxu0 %v4654
      %4709 = vmatprep.subr.bf16.mxu0 0
      %4710 = vmatpush1.bf16.msra.mxu0 0
      %4711 = vmatprep.subr.bf16.mxu0 0
      %4712 = vmatpush1.bf16.msra.mxu0 0
      %4713 = vmatprep.subr.bf16.mxu0 0
      %4714 = vmatpush1.bf16.msra.mxu0 0
      %4715 = vmatprep.subr.bf16.mxu0 0
      %4716 = vmatpush1.bf16.msra.mxu0 0
      %4717 = vmatprep.subr.bf16.mxu0 0
      %4718 = vmatpush1.bf16.msra.mxu0 0
      %4719 = vmatprep.subr.bf16.mxu0 0
      %4720 = vmatpush1.bf16.msra.mxu0 0
      %4721 = vmatprep.subr.bf16.mxu0 0
      %4722 = vmatpush1.bf16.msra.mxu0 0
      %4723 = vmatprep.subr.bf16.mxu0 0
      %4724 = vmatpush1.bf16.msra.mxu0 0
      %4725 = vmatprep.subr.bf16.mxu0 0
      %4726 = vmatpush1.bf16.msra.mxu0 0
      %4727 = vmatprep.subr.bf16.mxu0 0
      %4728 = vmatpush1.bf16.msra.mxu0 0
      %4729 = vmatprep.subr.bf16.mxu0 0
      %4730 = vmatpush1.bf16.msra.mxu0 0
      %4731 = vmatprep.subr.bf16.mxu0 0
      %4732 = vmatpush1.bf16.msra.mxu0 0
      %4733 = vmatprep.subr.bf16.mxu0 0
      %4734 = vmatpush1.bf16.msra.mxu0 0
      %4735 = vmatprep.subr.bf16.mxu0 0
      %4736 = vmatpush1.bf16.msra.mxu0 0
      %4737 = vmatprep.mubr.bf16.mxu0 0
      %4738 = vmatmul.mubr.bf16.gmra.mrb[0].mxu0 %v4658
      %v4739 = vpop.f32.mrb[0].mxu0
      %v4740 = vadd.f32 0.0, %v4739
      %v4741 = vpop.f32.mrb[0].mxu0
      %v4742 = vpop.f32.mrb[0].mxu0
      %v4743 = vadd.f32 0.0, %v4742
      %v4744 = vpop.f32.mrb[0].mxu0
      %4745 = vmatprep.mubr.bf16.mxu0 0
      %4746 = vmatmul.mubr.bf16.gmra.mrb[0].mxu0 %v4661
      %v4747 = vpop.f32.mrb[0].mxu0
      %v4748 = vadd.f32 0.0, %v4747
      %v4749 = vpop.f32.mrb[0].mxu0
      %v4750 = vpop.f32.mrb[0].mxu0
      %v4751 = vadd.f32 0.0, %v4750
      %v4752 = vpop.f32.mrb[0].mxu0
      %4753 = vmatprep.mubr.bf16.mxu0 0
      %4754 = vmatmul.mubr.bf16.gmra.mrb[0].mxu0 %v4664
      %v4755 = vpop.f32.mrb[0].mxu0
      %v4756 = vadd.f32 0.0, %v4755
      %v4757 = vpop.f32.mrb[0].mxu0
      %v4758 = vpop.f32.mrb[0].mxu0
      %v4759 = vadd.f32 0.0, %v4758
      %v4760 = vpop.f32.mrb[0].mxu0
      %4761 = vmatprep.mubr.bf16.mxu0 0
      %4762 = vmatmul.mubr.bf16.gmra.mrb[0].mxu0 %v4667
      %v4763 = vpop.f32.mrb[0].mxu0
      %v4764 = vadd.f32 0.0, %v4763
      %v4765 = vpop.f32.mrb[0].mxu0
      %v4766 = vpop.f32.mrb[0].mxu0
      %v4767 = vadd.f32 0.0, %v4766
      %v4768 = vpop.f32.mrb[0].mxu0
      %4769 = vmatprep.mubr.bf16.mxu0 0
      %4770 = vmatmul.mubr.bf16.gmra.mrb[0].mxu0 %v4670
      %v4771 = vpop.f32.mrb[0].mxu0
      %v4772 = vadd.f32 0.0, %v4771
      %v4773 = vpop.f32.mrb[0].mxu0
      %v4774 = vpop.f32.mrb[0].mxu0
      %v4775 = vadd.f32 0.0, %v4774
      %v4776 = vpop.f32.mrb[0].mxu0
      %4777 = vmatprep.mubr.bf16.mxu0 0
      %4778 = vmatmul.mubr.bf16.gmra.mrb[0].mxu0 %v4673
      %v4779 = vpop.f32.mrb[0].mxu0
      %v4780 = vadd.f32 0.0, %v4779
      %v4781 = vpop.f32.mrb[0].mxu0
      %v4782 = vpop.f32.mrb[0].mxu0
      %v4783 = vadd.f32 0.0, %v4782
      %v4784 = vpop.f32.mrb[0].mxu0
      %4785 = vmatprep.mubr.bf16.mxu0 0
      %4786 = vmatmul.mubr.bf16.gmra.mrb[0].mxu0 %v4676
      %v4787 = vpop.f32.mrb[0].mxu0
      %v4788 = vadd.f32 0.0, %v4787
      %v4789 = vpop.f32.mrb[0].mxu0
      %v4790 = vpop.f32.mrb[0].mxu0
      %v4791 = vadd.f32 0.0, %v4790
      %v4792 = vpop.f32.mrb[0].mxu0
      %4793 = vmatprep.mubr.bf16.mxu0 0
      %4794 = vmatmul.mubr.bf16.gmra.mrb[0].mxu0 %v4679
      %v4795 = vpop.f32.mrb[0].mxu0
      %v4796 = vadd.f32 0.0, %v4795
      %v4797 = vpop.f32.mrb[0].mxu0
      %v4798 = vpop.f32.mrb[0].mxu0
      %v4799 = vadd.f32 0.0, %v4798
      %v4800 = vpop.f32.mrb[0].mxu0
      %4801 = vmatprep.mubr.bf16.mxu0 0
      %4802 = vmatmul.mubr.bf16.gmra.mrb[0].mxu0 %v4682
      %v4803 = vpop.f32.mrb[0].mxu0
      %v4804 = vadd.f32 0.0, %v4803
      %v4805 = vpop.f32.mrb[0].mxu0
      %v4806 = vpop.f32.mrb[0].mxu0
      %v4807 = vadd.f32 0.0, %v4806
      %v4808 = vpop.f32.mrb[0].mxu0
      %4809 = vmatprep.mubr.bf16.mxu0 0
      %4810 = vmatmul.mubr.bf16.gmra.mrb[0].mxu0 %v4685
      %v4811 = vpop.f32.mrb[0].mxu0
      %v4812 = vadd.f32 0.0, %v4811
      %v4813 = vpop.f32.mrb[0].mxu0
      %v4814 = vpop.f32.mrb[0].mxu0
      %v4815 = vadd.f32 0.0, %v4814
      %v4816 = vpop.f32.mrb[0].mxu0
      %4817 = vmatprep.mubr.bf16.mxu0 0
      %4818 = vmatmul.mubr.bf16.gmra.mrb[0].mxu0 %v4688
      %v4819 = vpop.f32.mrb[0].mxu0
      %v4820 = vadd.f32 0.0, %v4819
      %v4821 = vpop.f32.mrb[0].mxu0
      %v4822 = vpop.f32.mrb[0].mxu0
      %v4823 = vadd.f32 0.0, %v4822
      %v4824 = vpop.f32.mrb[0].mxu0
      %4825 = vmatprep.mubr.bf16.mxu0 0
      %4826 = vmatmul.mubr.bf16.gmra.mrb[0].mxu0 %v4691
      %v4827 = vpop.f32.mrb[0].mxu0
      %v4828 = vadd.f32 0.0, %v4827
      %v4829 = vpop.f32.mrb[0].mxu0
      %v4830 = vpop.f32.mrb[0].mxu0
      %v4831 = vadd.f32 0.0, %v4830
      %v4832 = vpop.f32.mrb[0].mxu0
      %4833 = vmatprep.mubr.bf16.mxu0 0
      %4834 = vmatmul.mubr.bf16.gmra.mrb[0].mxu0 %v4694
      %v4835 = vpop.f32.mrb[0].mxu0
      %v4836 = vadd.f32 0.0, %v4835
      %v4837 = vpop.f32.mrb[0].mxu0
      %v4838 = vpop.f32.mrb[0].mxu0
      %v4839 = vadd.f32 0.0, %v4838
      %v4840 = vpop.f32.mrb[0].mxu0
      %4841 = vmatprep.mubr.bf16.mxu0 0
      %4842 = vmatmul.mubr.bf16.gmra.mrb[0].mxu0 %v4697
      %v4843 = vpop.f32.mrb[0].mxu0
      %v4844 = vadd.f32 0.0, %v4843
      %v4845 = vpop.f32.mrb[0].mxu0
      %v4846 = vpop.f32.mrb[0].mxu0
      %v4847 = vadd.f32 0.0, %v4846
      %v4848 = vpop.f32.mrb[0].mxu0
      %4849 = vmatprep.mubr.bf16.mxu0 0
      %4850 = vmatmul.mubr.bf16.gmra.mrb[0].mxu0 %v4700
      %v4851 = vpop.f32.mrb[0].mxu0
      %v4852 = vadd.f32 0.0, %v4851
      %v4853 = vpop.f32.mrb[0].mxu0
      %v4854 = vpop.f32.mrb[0].mxu0
      %v4855 = vadd.f32 0.0, %v4854
      %v4856 = vpop.f32.mrb[0].mxu0
      %4857 = vmatprep.mubr.bf16.mxu0 0
      %4858 = vmatmul.mubr.bf16.gmra.mrb[0].mxu0 %v4703
      %v4859 = vpop.f32.mrb[0].mxu0
      %v4860 = vadd.f32 0.0, %v4859
      %v4861 = vpop.f32.mrb[0].mxu0
      %v4862 = vpop.f32.mrb[0].mxu0
      %v4863 = vadd.f32 0.0, %v4862
      %v4864 = vpop.f32.mrb[0].mxu0
      %4865 = vdwg.mxu0
      %v4866 = vadd.f32 %v4434, %v4740
      %v4867 = vadd.f32 %v4437, %v4743
      %v4868 = vadd.f32 %v4442, %v4748
      %v4869 = vadd.f32 %v4445, %v4751
      %v4870 = vadd.f32 %v4450, %v4756
      %v4871 = vadd.f32 %v4453, %v4759
      %v4872 = vadd.f32 %v4458, %v4764
      %v4873 = vadd.f32 %v4461, %v4767
      %v4874 = vadd.f32 %v4466, %v4772
      %v4875 = vadd.f32 %v4469, %v4775
      %v4876 = vadd.f32 %v4474, %v4780
      %v4877 = vadd.f32 %v4477, %v4783
      %v4878 = vadd.f32 %v4482, %v4788
      %v4879 = vadd.f32 %v4485, %v4791
      %v4880 = vadd.f32 %v4490, %v4796
      %v4881 = vadd.f32 %v4493, %v4799
      %v4882 = vadd.f32 %v4498, %v4804
      %v4883 = vadd.f32 %v4501, %v4807
      %v4884 = vadd.f32 %v4506, %v4812
      %v4885 = vadd.f32 %v4509, %v4815
      %v4886 = vadd.f32 %v4514, %v4820
      %v4887 = vadd.f32 %v4517, %v4823
      %v4888 = vadd.f32 %v4522, %v4828
      %v4889 = vadd.f32 %v4525, %v4831
      %v4890 = vadd.f32 %v4530, %v4836
      %v4891 = vadd.f32 %v4533, %v4839
      %v4892 = vadd.f32 %v4538, %v4844
      %v4893 = vadd.f32 %v4541, %v4847
      %v4894 = vadd.f32 %v4546, %v4852
      %v4895 = vadd.f32 %v4549, %v4855
      %v4896 = vadd.f32 %v4554, %v4860
      %v4897 = vadd.f32 %v4557, %v4863
      %v4898 = vld [vmem:[#allocation2 + $0x17] sm:$0xff]
      %v4899 = vld [vmem:[#allocation2 + $0x1f] sm:$0xff]
      %v4900 = vld [vmem:[#allocation2 + $0x27] sm:$0xff]
      %v4901 = vld [vmem:[#allocation2 + $0x2f] sm:$0xff]
      %v4902 = vld [vmem:[#allocation2 + $0x37] sm:$0xff]
      %v4903 = vld [vmem:[#allocation2 + $0x3f] sm:$0xff]
      %v4904 = vld [vmem:[#allocation2 + $0x47] sm:$0xff]
      %v4905 = vld [vmem:[#allocation2 + $0x4f] sm:$0xff]
      %v4906 = vld [vmem:[#allocation2 + $0x57] sm:$0xff]
      %v4907 = vld [vmem:[#allocation2 + $0x5f] sm:$0xff]
      %v4908 = vld [vmem:[#allocation2 + $0x67] sm:$0xff]
      %v4909 = vld [vmem:[#allocation2 + $0x6f] sm:$0xff]
      %v4910 = vld [vmem:[#allocation2 + $0x77] sm:$0xff]
      %v4911 = vld [vmem:[#allocation2 + $0x7f] sm:$0xff]
      %v4912 = vld [vmem:[#allocation2 + $0x87] sm:$0xff]
      %v4913 = vld [vmem:[#allocation2 + $0x8f] sm:$0xff]
      %v4914 = vld [vmem:[#allocation2 + $0x97] sm:$0xff]
      %v4915 = vld [vmem:[#allocation2 + $0x9f] sm:$0xff]
      %v4916 = vld [vmem:[#allocation2 + $0xa7] sm:$0xff]
      %v4917 = vld [vmem:[#allocation2 + $0xaf] sm:$0xff]
      %v4918 = vld [vmem:[#allocation2 + $0xb7] sm:$0xff]
      %v4919 = vld [vmem:[#allocation2 + $0xbf] sm:$0xff]
      %v4920 = vld [vmem:[#allocation2 + $0xc7] sm:$0xff]
      %v4921 = vld [vmem:[#allocation2 + $0xcf] sm:$0xff]
      %v4922 = vld [vmem:[#allocation2 + $0xd7] sm:$0xff]
      %v4923 = vld [vmem:[#allocation2 + $0xdf] sm:$0xff]
      %v4924 = vld [vmem:[#allocation2 + $0xe7] sm:$0xff]
      %v4925 = vld [vmem:[#allocation2 + $0xef] sm:$0xff]
      %v4926 = vld [vmem:[#allocation2 + $0xf7] sm:$0xff]
      %v4927 = vld [vmem:[#allocation2 + $0xff] sm:$0xff]
      %v4928 = vld [vmem:[#allocation2 + $0x107] sm:$0xff]
      %v4929 = vld [vmem:[#allocation2 + $0x10f] sm:$0xff]
      %v4930 = vmul.f32 %v4898, %v805
      %v4931 = vmul.f32 %v4899, %v806
      %v4932 = vmul.f32 %v4900, %v807
      %v4933 = vmul.f32 %v4901, %v808
      %v4934 = vmul.f32 %v4902, %v809
      %v4935 = vmul.f32 %v4903, %v810
      %v4936 = vmul.f32 %v4904, %v811
      %v4937 = vmul.f32 %v4905, %v812
      %v4938 = vmul.f32 %v4906, %v813
      %v4939 = vmul.f32 %v4907, %v814
      %v4940 = vmul.f32 %v4908, %v815
      %v4941 = vmul.f32 %v4909, %v816
      %v4942 = vmul.f32 %v4910, %v817
      %v4943 = vmul.f32 %v4911, %v818
      %v4944 = vmul.f32 %v4912, %v819
      %v4945 = vmul.f32 %v4913, %v820
      %v4946 = vmul.f32 %v4914, %v821
      %v4947 = vmul.f32 %v4915, %v822
      %v4948 = vmul.f32 %v4916, %v823
      %v4949 = vmul.f32 %v4917, %v824
      %v4950 = vmul.f32 %v4918, %v825
      %v4951 = vmul.f32 %v4919, %v826
      %v4952 = vmul.f32 %v4920, %v827
      %v4953 = vmul.f32 %v4921, %v828
      %v4954 = vmul.f32 %v4922, %v829
      %v4955 = vmul.f32 %v4923, %v830
      %v4956 = vmul.f32 %v4924, %v831
      %v4957 = vmul.f32 %v4925, %v832
      %v4958 = vmul.f32 %v4926, %v833
      %v4959 = vmul.f32 %v4927, %v834
      %v4960 = vmul.f32 %v4928, %v835
      %v4961 = vmul.f32 %v4929, %v836
      %v4962 = vpack.c.bf16 %v4931, %v4930
      %v4963 = vpack.c.bf16 %v4933, %v4932
      %v4964 = vpack.c.bf16 %v4935, %v4934
      %v4965 = vpack.c.bf16 %v4937, %v4936
      %v4966 = vpack.c.bf16 %v4939, %v4938
      %v4967 = vpack.c.bf16 %v4941, %v4940
      %v4968 = vpack.c.bf16 %v4943, %v4942
      %v4969 = vpack.c.bf16 %v4945, %v4944
      %v4970 = vpack.c.bf16 %v4947, %v4946
      %v4971 = vpack.c.bf16 %v4949, %v4948
      %v4972 = vpack.c.bf16 %v4951, %v4950
      %v4973 = vpack.c.bf16 %v4953, %v4952
      %v4974 = vpack.c.bf16 %v4955, %v4954
      %v4975 = vpack.c.bf16 %v4957, %v4956
      %v4976 = vpack.c.bf16 %v4959, %v4958
      %v4977 = vpack.c.bf16 %v4961, %v4960
      %s4978 = scalar_lea.vmem %s3, 48
      %v4979 = vld [vmem:[%s4978] sm:$0xf]
      %v4980 = vld [vmem:[%s4978 + $0x4] sm:$0xf]
      %v4981 = vld [vmem:[%s4978 + $0x8] sm:$0xf]
      %v4982 = vld [vmem:[%s4978 + $0xc] sm:$0xf]
      %v4987 = vunpack.c.l.b16 %v4979
      %v4988 = vunpack.c.l.b16 %v4980
      %v4989 = vunpack.c.l.b16 %v4981
      %v4990 = vunpack.c.l.b16 %v4982
      %v4991 = vpack.c.b16 %v4988, %v4987
      %v4992 = vpack.c.b16 %v4990, %v4989
      %v4996 = vsel %vm310, %v4962, 0
      %v4999 = vsel %vm310, %v4963, 0
      %v5002 = vsel %vm310, %v4964, 0
      %v5005 = vsel %vm310, %v4965, 0
      %v5008 = vsel %vm310, %v4966, 0
      %v5011 = vsel %vm310, %v4967, 0
      %v5014 = vsel %vm310, %v4968, 0
      %v5017 = vsel %vm310, %v4969, 0
      %v5020 = vsel %vm310, %v4970, 0
      %v5023 = vsel %vm310, %v4971, 0
      %v5026 = vsel %vm310, %v4972, 0
      %v5029 = vsel %vm310, %v4973, 0
      %v5032 = vsel %vm310, %v4974, 0
      %v5035 = vsel %vm310, %v4975, 0
      %v5038 = vsel %vm310, %v4976, 0
      %v5041 = vsel %vm310, %v4977, 0
      %5043 = vmatprep.subr.bf16.mxu0 0
      %5044 = vmatpush1.bf16.msra.mxu0 %v4991
      %5045 = vmatprep.subr.bf16.mxu0 0
      %5046 = vmatpush1.bf16.msra.mxu0 %v4992
      %5047 = vmatprep.subr.bf16.mxu0 0
      %5048 = vmatpush1.bf16.msra.mxu0 0
      %5049 = vmatprep.subr.bf16.mxu0 0
      %5050 = vmatpush1.bf16.msra.mxu0 0
      %5051 = vmatprep.subr.bf16.mxu0 0
      %5052 = vmatpush1.bf16.msra.mxu0 0
      %5053 = vmatprep.subr.bf16.mxu0 0
      %5054 = vmatpush1.bf16.msra.mxu0 0
      %5055 = vmatprep.subr.bf16.mxu0 0
      %5056 = vmatpush1.bf16.msra.mxu0 0
      %5057 = vmatprep.subr.bf16.mxu0 0
      %5058 = vmatpush1.bf16.msra.mxu0 0
      %5059 = vmatprep.subr.bf16.mxu0 0
      %5060 = vmatpush1.bf16.msra.mxu0 0
      %5061 = vmatprep.subr.bf16.mxu0 0
      %5062 = vmatpush1.bf16.msra.mxu0 0
      %5063 = vmatprep.subr.bf16.mxu0 0
      %5064 = vmatpush1.bf16.msra.mxu0 0
      %5065 = vmatprep.subr.bf16.mxu0 0
      %5066 = vmatpush1.bf16.msra.mxu0 0
      %5067 = vmatprep.subr.bf16.mxu0 0
      %5068 = vmatpush1.bf16.msra.mxu0 0
      %5069 = vmatprep.subr.bf16.mxu0 0
      %5070 = vmatpush1.bf16.msra.mxu0 0
      %5071 = vmatprep.subr.bf16.mxu0 0
      %5072 = vmatpush1.bf16.msra.mxu0 0
      %5073 = vmatprep.subr.bf16.mxu0 0
      %5074 = vmatpush1.bf16.msra.mxu0 0
      %5075 = vmatprep.mubr.bf16.mxu0 0
      %5076 = vmatmul.mubr.bf16.gmra.mrb[0].mxu0 %v4996
      %v5077 = vpop.f32.mrb[0].mxu0
      %v5078 = vadd.f32 0.0, %v5077
      %v5079 = vpop.f32.mrb[0].mxu0
      %v5080 = vpop.f32.mrb[0].mxu0
      %v5081 = vadd.f32 0.0, %v5080
      %v5082 = vpop.f32.mrb[0].mxu0
      %5083 = vmatprep.mubr.bf16.mxu0 0
      %5084 = vmatmul.mubr.bf16.gmra.mrb[0].mxu0 %v4999
      %v5085 = vpop.f32.mrb[0].mxu0
      %v5086 = vadd.f32 0.0, %v5085
      %v5087 = vpop.f32.mrb[0].mxu0
      %v5088 = vpop.f32.mrb[0].mxu0
      %v5089 = vadd.f32 0.0, %v5088
      %v5090 = vpop.f32.mrb[0].mxu0
      %5091 = vmatprep.mubr.bf16.mxu0 0
      %5092 = vmatmul.mubr.bf16.gmra.mrb[0].mxu0 %v5002
      %v5093 = vpop.f32.mrb[0].mxu0
      %v5094 = vadd.f32 0.0, %v5093
      %v5095 = vpop.f32.mrb[0].mxu0
      %v5096 = vpop.f32.mrb[0].mxu0
      %v5097 = vadd.f32 0.0, %v5096
      %v5098 = vpop.f32.mrb[0].mxu0
      %5099 = vmatprep.mubr.bf16.mxu0 0
      %5100 = vmatmul.mubr.bf16.gmra.mrb[0].mxu0 %v5005
      %v5101 = vpop.f32.mrb[0].mxu0
      %v5102 = vadd.f32 0.0, %v5101
      %v5103 = vpop.f32.mrb[0].mxu0
      %v5104 = vpop.f32.mrb[0].mxu0
      %v5105 = vadd.f32 0.0, %v5104
      %v5106 = vpop.f32.mrb[0].mxu0
      %5107 = vmatprep.mubr.bf16.mxu0 0
      %5108 = vmatmul.mubr.bf16.gmra.mrb[0].mxu0 %v5008
      %v5109 = vpop.f32.mrb[0].mxu0
      %v5110 = vadd.f32 0.0, %v5109
      %v5111 = vpop.f32.mrb[0].mxu0
      %v5112 = vpop.f32.mrb[0].mxu0
      %v5113 = vadd.f32 0.0, %v5112
      %v5114 = vpop.f32.mrb[0].mxu0
      %5115 = vmatprep.mubr.bf16.mxu0 0
      %5116 = vmatmul.mubr.bf16.gmra.mrb[0].mxu0 %v5011
      %v5117 = vpop.f32.mrb[0].mxu0
      %v5118 = vadd.f32 0.0, %v5117
      %v5119 = vpop.f32.mrb[0].mxu0
      %v5120 = vpop.f32.mrb[0].mxu0
      %v5121 = vadd.f32 0.0, %v5120
      %v5122 = vpop.f32.mrb[0].mxu0
      %5123 = vmatprep.mubr.bf16.mxu0 0
      %5124 = vmatmul.mubr.bf16.gmra.mrb[0].mxu0 %v5014
      %v5125 = vpop.f32.mrb[0].mxu0
      %v5126 = vadd.f32 0.0, %v5125
      %v5127 = vpop.f32.mrb[0].mxu0
      %v5128 = vpop.f32.mrb[0].mxu0
      %v5129 = vadd.f32 0.0, %v5128
      %v5130 = vpop.f32.mrb[0].mxu0
      %5131 = vmatprep.mubr.bf16.mxu0 0
      %5132 = vmatmul.mubr.bf16.gmra.mrb[0].mxu0 %v5017
      %v5133 = vpop.f32.mrb[0].mxu0
      %v5134 = vadd.f32 0.0, %v5133
      %v5135 = vpop.f32.mrb[0].mxu0
      %v5136 = vpop.f32.mrb[0].mxu0
      %v5137 = vadd.f32 0.0, %v5136
      %v5138 = vpop.f32.mrb[0].mxu0
      %5139 = vmatprep.mubr.bf16.mxu0 0
      %5140 = vmatmul.mubr.bf16.gmra.mrb[0].mxu0 %v5020
      %v5141 = vpop.f32.mrb[0].mxu0
      %v5142 = vadd.f32 0.0, %v5141
      %v5143 = vpop.f32.mrb[0].mxu0
      %v5144 = vpop.f32.mrb[0].mxu0
      %v5145 = vadd.f32 0.0, %v5144
      %v5146 = vpop.f32.mrb[0].mxu0
      %5147 = vmatprep.mubr.bf16.mxu0 0
      %5148 = vmatmul.mubr.bf16.gmra.mrb[0].mxu0 %v5023
      %v5149 = vpop.f32.mrb[0].mxu0
      %v5150 = vadd.f32 0.0, %v5149
      %v5151 = vpop.f32.mrb[0].mxu0
      %v5152 = vpop.f32.mrb[0].mxu0
      %v5153 = vadd.f32 0.0, %v5152
      %v5154 = vpop.f32.mrb[0].mxu0
      %5155 = vmatprep.mubr.bf16.mxu0 0
      %5156 = vmatmul.mubr.bf16.gmra.mrb[0].mxu0 %v5026
      %v5157 = vpop.f32.mrb[0].mxu0
      %v5158 = vadd.f32 0.0, %v5157
      %v5159 = vpop.f32.mrb[0].mxu0
      %v5160 = vpop.f32.mrb[0].mxu0
      %v5161 = vadd.f32 0.0, %v5160
      %v5162 = vpop.f32.mrb[0].mxu0
      %5163 = vmatprep.mubr.bf16.mxu0 0
      %5164 = vmatmul.mubr.bf16.gmra.mrb[0].mxu0 %v5029
      %v5165 = vpop.f32.mrb[0].mxu0
      %v5166 = vadd.f32 0.0, %v5165
      %v5167 = vpop.f32.mrb[0].mxu0
      %v5168 = vpop.f32.mrb[0].mxu0
      %v5169 = vadd.f32 0.0, %v5168
      %v5170 = vpop.f32.mrb[0].mxu0
      %5171 = vmatprep.mubr.bf16.mxu0 0
      %5172 = vmatmul.mubr.bf16.gmra.mrb[0].mxu0 %v5032
      %v5173 = vpop.f32.mrb[0].mxu0
      %v5174 = vadd.f32 0.0, %v5173
      %v5175 = vpop.f32.mrb[0].mxu0
      %v5176 = vpop.f32.mrb[0].mxu0
      %v5177 = vadd.f32 0.0, %v5176
      %v5178 = vpop.f32.mrb[0].mxu0
      %5179 = vmatprep.mubr.bf16.mxu0 0
      %5180 = vmatmul.mubr.bf16.gmra.mrb[0].mxu0 %v5035
      %v5181 = vpop.f32.mrb[0].mxu0
      %v5182 = vadd.f32 0.0, %v5181
      %v5183 = vpop.f32.mrb[0].mxu0
      %v5184 = vpop.f32.mrb[0].mxu0
      %v5185 = vadd.f32 0.0, %v5184
      %v5186 = vpop.f32.mrb[0].mxu0
      %5187 = vmatprep.mubr.bf16.mxu0 0
      %5188 = vmatmul.mubr.bf16.gmra.mrb[0].mxu0 %v5038
      %v5189 = vpop.f32.mrb[0].mxu0
      %v5190 = vadd.f32 0.0, %v5189
      %v5191 = vpop.f32.mrb[0].mxu0
      %v5192 = vpop.f32.mrb[0].mxu0
      %v5193 = vadd.f32 0.0, %v5192
      %v5194 = vpop.f32.mrb[0].mxu0
      %5195 = vmatprep.mubr.bf16.mxu0 0
      %5196 = vmatmul.mubr.bf16.gmra.mrb[0].mxu0 %v5041
      %v5197 = vpop.f32.mrb[0].mxu0
      %v5198 = vadd.f32 0.0, %v5197
      %v5199 = vpop.f32.mrb[0].mxu0
      %v5200 = vpop.f32.mrb[0].mxu0
      %v5201 = vadd.f32 0.0, %v5200
      %v5202 = vpop.f32.mrb[0].mxu0
      %5203 = vdwg.mxu0
      %v5204 = vadd.f32 %v4866, %v5078
      %v5205 = vadd.f32 %v4867, %v5081
      %v5206 = vadd.f32 %v4868, %v5086
      %v5207 = vadd.f32 %v4869, %v5089
      %v5208 = vadd.f32 %v4870, %v5094
      %v5209 = vadd.f32 %v4871, %v5097
      %v5210 = vadd.f32 %v4872, %v5102
      %v5211 = vadd.f32 %v4873, %v5105
      %v5212 = vadd.f32 %v4874, %v5110
      %v5213 = vadd.f32 %v4875, %v5113
      %v5214 = vadd.f32 %v4876, %v5118
      %v5215 = vadd.f32 %v4877, %v5121
      %v5216 = vadd.f32 %v4878, %v5126
      %v5217 = vadd.f32 %v4879, %v5129
      %v5218 = vadd.f32 %v4880, %v5134
      %v5219 = vadd.f32 %v4881, %v5137
      %v5220 = vadd.f32 %v4882, %v5142
      %v5221 = vadd.f32 %v4883, %v5145
      %v5222 = vadd.f32 %v4884, %v5150
      %v5223 = vadd.f32 %v4885, %v5153
      %v5224 = vadd.f32 %v4886, %v5158
      %v5225 = vadd.f32 %v4887, %v5161
      %v5226 = vadd.f32 %v4888, %v5166
      %v5227 = vadd.f32 %v4889, %v5169
      %v5228 = vadd.f32 %v4890, %v5174
      %v5229 = vadd.f32 %v4891, %v5177
      %v5230 = vadd.f32 %v4892, %v5182
      %v5231 = vadd.f32 %v4893, %v5185
      %v5232 = vadd.f32 %v4894, %v5190
      %v5233 = vadd.f32 %v4895, %v5193
      %v5234 = vadd.f32 %v4896, %v5198
      %v5235 = vadd.f32 %v4897, %v5201
      %v5236 = vld [vmem:[#allocation2 + $0x18] sm:$0xff]
      %v5237 = vld [vmem:[#allocation2 + $0x20] sm:$0xff]
      %v5238 = vld [vmem:[#allocation2 + $0x28] sm:$0xff]
      %v5239 = vld [vmem:[#allocation2 + $0x30] sm:$0xff]
      %v5240 = vld [vmem:[#allocation2 + $0x38] sm:$0xff]
      %v5241 = vld [vmem:[#allocation2 + $0x40] sm:$0xff]
      %v5242 = vld [vmem:[#allocation2 + $0x48] sm:$0xff]
      %v5243 = vld [vmem:[#allocation2 + $0x50] sm:$0xff]
      %v5244 = vld [vmem:[#allocation2 + $0x58] sm:$0xff]
      %v5245 = vld [vmem:[#allocation2 + $0x60] sm:$0xff]
      %v5246 = vld [vmem:[#allocation2 + $0x68] sm:$0xff]
      %v5247 = vld [vmem:[#allocation2 + $0x70] sm:$0xff]
      %v5248 = vld [vmem:[#allocation2 + $0x78] sm:$0xff]
      %v5249 = vld [vmem:[#allocation2 + $0x80] sm:$0xff]
      %v5250 = vld [vmem:[#allocation2 + $0x88] sm:$0xff]
      %v5251 = vld [vmem:[#allocation2 + $0x90] sm:$0xff]
      %v5252 = vld [vmem:[#allocation2 + $0x98] sm:$0xff]
      %v5253 = vld [vmem:[#allocation2 + $0xa0] sm:$0xff]
      %v5254 = vld [vmem:[#allocation2 + $0xa8] sm:$0xff]
      %v5255 = vld [vmem:[#allocation2 + $0xb0] sm:$0xff]
      %v5256 = vld [vmem:[#allocation2 + $0xb8] sm:$0xff]
      %v5257 = vld [vmem:[#allocation2 + $0xc0] sm:$0xff]
      %v5258 = vld [vmem:[#allocation2 + $0xc8] sm:$0xff]
      %v5259 = vld [vmem:[#allocation2 + $0xd0] sm:$0xff]
      %v5260 = vld [vmem:[#allocation2 + $0xd8] sm:$0xff]
      %v5261 = vld [vmem:[#allocation2 + $0xe0] sm:$0xff]
      %v5262 = vld [vmem:[#allocation2 + $0xe8] sm:$0xff]
      %v5263 = vld [vmem:[#allocation2 + $0xf0] sm:$0xff]
      %v5264 = vld [vmem:[#allocation2 + $0xf8] sm:$0xff]
      %v5265 = vld [vmem:[#allocation2 + $0x100] sm:$0xff]
      %v5266 = vld [vmem:[#allocation2 + $0x108] sm:$0xff]
      %v5267 = vld [vmem:[#allocation2 + $0x110] sm:$0xff]
      %v5268 = vpack.c.bf16 %v5237, %v5236
      %v5269 = vpack.c.bf16 %v5239, %v5238
      %v5270 = vpack.c.bf16 %v5241, %v5240
      %v5271 = vpack.c.bf16 %v5243, %v5242
      %v5272 = vpack.c.bf16 %v5245, %v5244
      %v5273 = vpack.c.bf16 %v5247, %v5246
      %v5274 = vpack.c.bf16 %v5249, %v5248
      %v5275 = vpack.c.bf16 %v5251, %v5250
      %v5276 = vpack.c.bf16 %v5253, %v5252
      %v5277 = vpack.c.bf16 %v5255, %v5254
      %v5278 = vpack.c.bf16 %v5257, %v5256
      %v5279 = vpack.c.bf16 %v5259, %v5258
      %v5280 = vpack.c.bf16 %v5261, %v5260
      %v5281 = vpack.c.bf16 %v5263, %v5262
      %v5282 = vpack.c.bf16 %v5265, %v5264
      %v5283 = vpack.c.bf16 %v5267, %v5266
      %s5284 = scalar_lea.vmem %s3, 64
      %v5285 = vld [vmem:[%s5284] sm:$0xf]
      %v5286 = vld [vmem:[%s5284 + $0x4] sm:$0xf]
      %v5287 = vld [vmem:[%s5284 + $0x8] sm:$0xf]
      %v5288 = vld [vmem:[%s5284 + $0xc] sm:$0xf]
      %v5293 = vunpack.c.l.b16 %v5285
      %v5294 = vunpack.c.l.b16 %v5286
      %v5295 = vunpack.c.l.b16 %v5287
      %v5296 = vunpack.c.l.b16 %v5288
      %v5297 = vpack.c.b16 %v5294, %v5293
      %v5298 = vpack.c.b16 %v5296, %v5295
      %v5302 = vsel %vm310, %v5268, 0
      %v5305 = vsel %vm310, %v5269, 0
      %v5308 = vsel %vm310, %v5270, 0
      %v5311 = vsel %vm310, %v5271, 0
      %v5314 = vsel %vm310, %v5272, 0
      %v5317 = vsel %vm310, %v5273, 0
      %v5320 = vsel %vm310, %v5274, 0
      %v5323 = vsel %vm310, %v5275, 0
      %v5326 = vsel %vm310, %v5276, 0
      %v5329 = vsel %vm310, %v5277, 0
      %v5332 = vsel %vm310, %v5278, 0
      %v5335 = vsel %vm310, %v5279, 0
      %v5338 = vsel %vm310, %v5280, 0
      %v5341 = vsel %vm310, %v5281, 0
      %v5344 = vsel %vm310, %v5282, 0
      %v5347 = vsel %vm310, %v5283, 0
      %5349 = vmatprep.subr.bf16.mxu0 0
      %5350 = vmatpush1.bf16.msra.mxu0 %v5297
      %5351 = vmatprep.subr.bf16.mxu0 0
      %5352 = vmatpush1.bf16.msra.mxu0 %v5298
      %5353 = vmatprep.subr.bf16.mxu0 0
      %5354 = vmatpush1.bf16.msra.mxu0 0
      %5355 = vmatprep.subr.bf16.mxu0 0
      %5356 = vmatpush1.bf16.msra.mxu0 0
      %5357 = vmatprep.subr.bf16.mxu0 0
      %5358 = vmatpush1.bf16.msra.mxu0 0
      %5359 = vmatprep.subr.bf16.mxu0 0
      %5360 = vmatpush1.bf16.msra.mxu0 0
      %5361 = vmatprep.subr.bf16.mxu0 0
      %5362 = vmatpush1.bf16.msra.mxu0 0
      %5363 = vmatprep.subr.bf16.mxu0 0
      %5364 = vmatpush1.bf16.msra.mxu0 0
      %5365 = vmatprep.subr.bf16.mxu0 0
      %5366 = vmatpush1.bf16.msra.mxu0 0
      %5367 = vmatprep.subr.bf16.mxu0 0
      %5368 = vmatpush1.bf16.msra.mxu0 0
      %5369 = vmatprep.subr.bf16.mxu0 0
      %5370 = vmatpush1.bf16.msra.mxu0 0
      %5371 = vmatprep.subr.bf16.mxu0 0
      %5372 = vmatpush1.bf16.msra.mxu0 0
      %5373 = vmatprep.subr.bf16.mxu0 0
      %5374 = vmatpush1.bf16.msra.mxu0 0
      %5375 = vmatprep.subr.bf16.mxu0 0
      %5376 = vmatpush1.bf16.msra.mxu0 0
      %5377 = vmatprep.subr.bf16.mxu0 0
      %5378 = vmatpush1.bf16.msra.mxu0 0
      %5379 = vmatprep.subr.bf16.mxu0 0
      %5380 = vmatpush1.bf16.msra.mxu0 0
      %5381 = vmatprep.mubr.bf16.mxu0 0
      %5382 = vmatmul.mubr.bf16.gmra.mrb[0].mxu0 %v5302
      %v5383 = vpop.f32.mrb[0].mxu0
      %v5384 = vadd.f32 0.0, %v5383
      %v5385 = vpop.f32.mrb[0].mxu0
      %v5386 = vpop.f32.mrb[0].mxu0
      %v5387 = vadd.f32 0.0, %v5386
      %v5388 = vpop.f32.mrb[0].mxu0
      %5389 = vmatprep.mubr.bf16.mxu0 0
      %5390 = vmatmul.mubr.bf16.gmra.mrb[0].mxu0 %v5305
      %v5391 = vpop.f32.mrb[0].mxu0
      %v5392 = vadd.f32 0.0, %v5391
      %v5393 = vpop.f32.mrb[0].mxu0
      %v5394 = vpop.f32.mrb[0].mxu0
      %v5395 = vadd.f32 0.0, %v5394
      %v5396 = vpop.f32.mrb[0].mxu0
      %5397 = vmatprep.mubr.bf16.mxu0 0
      %5398 = vmatmul.mubr.bf16.gmra.mrb[0].mxu0 %v5308
      %v5399 = vpop.f32.mrb[0].mxu0
      %v5400 = vadd.f32 0.0, %v5399
      %v5401 = vpop.f32.mrb[0].mxu0
      %v5402 = vpop.f32.mrb[0].mxu0
      %v5403 = vadd.f32 0.0, %v5402
      %v5404 = vpop.f32.mrb[0].mxu0
      %5405 = vmatprep.mubr.bf16.mxu0 0
      %5406 = vmatmul.mubr.bf16.gmra.mrb[0].mxu0 %v5311
      %v5407 = vpop.f32.mrb[0].mxu0
      %v5408 = vadd.f32 0.0, %v5407
      %v5409 = vpop.f32.mrb[0].mxu0
      %v5410 = vpop.f32.mrb[0].mxu0
      %v5411 = vadd.f32 0.0, %v5410
      %v5412 = vpop.f32.mrb[0].mxu0
      %5413 = vmatprep.mubr.bf16.mxu0 0
      %5414 = vmatmul.mubr.bf16.gmra.mrb[0].mxu0 %v5314
      %v5415 = vpop.f32.mrb[0].mxu0
      %v5416 = vadd.f32 0.0, %v5415
      %v5417 = vpop.f32.mrb[0].mxu0
      %v5418 = vpop.f32.mrb[0].mxu0
      %v5419 = vadd.f32 0.0, %v5418
      %v5420 = vpop.f32.mrb[0].mxu0
      %5421 = vmatprep.mubr.bf16.mxu0 0
      %5422 = vmatmul.mubr.bf16.gmra.mrb[0].mxu0 %v5317
      %v5423 = vpop.f32.mrb[0].mxu0
      %v5424 = vadd.f32 0.0, %v5423
      %v5425 = vpop.f32.mrb[0].mxu0
      %v5426 = vpop.f32.mrb[0].mxu0
      %v5427 = vadd.f32 0.0, %v5426
      %v5428 = vpop.f32.mrb[0].mxu0
      %5429 = vmatprep.mubr.bf16.mxu0 0
      %5430 = vmatmul.mubr.bf16.gmra.mrb[0].mxu0 %v5320
      %v5431 = vpop.f32.mrb[0].mxu0
      %v5432 = vadd.f32 0.0, %v5431
      %v5433 = vpop.f32.mrb[0].mxu0
      %v5434 = vpop.f32.mrb[0].mxu0
      %v5435 = vadd.f32 0.0, %v5434
      %v5436 = vpop.f32.mrb[0].mxu0
      %5437 = vmatprep.mubr.bf16.mxu0 0
      %5438 = vmatmul.mubr.bf16.gmra.mrb[0].mxu0 %v5323
      %v5439 = vpop.f32.mrb[0].mxu0
      %v5440 = vadd.f32 0.0, %v5439
      %v5441 = vpop.f32.mrb[0].mxu0
      %v5442 = vpop.f32.mrb[0].mxu0
      %v5443 = vadd.f32 0.0, %v5442
      %v5444 = vpop.f32.mrb[0].mxu0
      %5445 = vmatprep.mubr.bf16.mxu0 0
      %5446 = vmatmul.mubr.bf16.gmra.mrb[0].mxu0 %v5326
      %v5447 = vpop.f32.mrb[0].mxu0
      %v5448 = vadd.f32 0.0, %v5447
      %v5449 = vpop.f32.mrb[0].mxu0
      %v5450 = vpop.f32.mrb[0].mxu0
      %v5451 = vadd.f32 0.0, %v5450
      %v5452 = vpop.f32.mrb[0].mxu0
      %5453 = vmatprep.mubr.bf16.mxu0 0
      %5454 = vmatmul.mubr.bf16.gmra.mrb[0].mxu0 %v5329
      %v5455 = vpop.f32.mrb[0].mxu0
      %v5456 = vadd.f32 0.0, %v5455
      %v5457 = vpop.f32.mrb[0].mxu0
      %v5458 = vpop.f32.mrb[0].mxu0
      %v5459 = vadd.f32 0.0, %v5458
      %v5460 = vpop.f32.mrb[0].mxu0
      %5461 = vmatprep.mubr.bf16.mxu0 0
      %5462 = vmatmul.mubr.bf16.gmra.mrb[0].mxu0 %v5332
      %v5463 = vpop.f32.mrb[0].mxu0
      %v5464 = vadd.f32 0.0, %v5463
      %v5465 = vpop.f32.mrb[0].mxu0
      %v5466 = vpop.f32.mrb[0].mxu0
      %v5467 = vadd.f32 0.0, %v5466
      %v5468 = vpop.f32.mrb[0].mxu0
      %5469 = vmatprep.mubr.bf16.mxu0 0
      %5470 = vmatmul.mubr.bf16.gmra.mrb[0].mxu0 %v5335
      %v5471 = vpop.f32.mrb[0].mxu0
      %v5472 = vadd.f32 0.0, %v5471
      %v5473 = vpop.f32.mrb[0].mxu0
      %v5474 = vpop.f32.mrb[0].mxu0
      %v5475 = vadd.f32 0.0, %v5474
      %v5476 = vpop.f32.mrb[0].mxu0
      %5477 = vmatprep.mubr.bf16.mxu0 0
      %5478 = vmatmul.mubr.bf16.gmra.mrb[0].mxu0 %v5338
      %v5479 = vpop.f32.mrb[0].mxu0
      %v5480 = vadd.f32 0.0, %v5479
      %v5481 = vpop.f32.mrb[0].mxu0
      %v5482 = vpop.f32.mrb[0].mxu0
      %v5483 = vadd.f32 0.0, %v5482
      %v5484 = vpop.f32.mrb[0].mxu0
      %5485 = vmatprep.mubr.bf16.mxu0 0
      %5486 = vmatmul.mubr.bf16.gmra.mrb[0].mxu0 %v5341
      %v5487 = vpop.f32.mrb[0].mxu0
      %v5488 = vadd.f32 0.0, %v5487
      %v5489 = vpop.f32.mrb[0].mxu0
      %v5490 = vpop.f32.mrb[0].mxu0
      %v5491 = vadd.f32 0.0, %v5490
      %v5492 = vpop.f32.mrb[0].mxu0
      %5493 = vmatprep.mubr.bf16.mxu0 0
      %5494 = vmatmul.mubr.bf16.gmra.mrb[0].mxu0 %v5344
      %v5495 = vpop.f32.mrb[0].mxu0
      %v5496 = vadd.f32 0.0, %v5495
      %v5497 = vpop.f32.mrb[0].mxu0
      %v5498 = vpop.f32.mrb[0].mxu0
      %v5499 = vadd.f32 0.0, %v5498
      %v5500 = vpop.f32.mrb[0].mxu0
      %5501 = vmatprep.mubr.bf16.mxu0 0
      %5502 = vmatmul.mubr.bf16.gmra.mrb[0].mxu0 %v5347
      %v5503 = vpop.f32.mrb[0].mxu0
      %v5504 = vadd.f32 0.0, %v5503
      %v5505 = vpop.f32.mrb[0].mxu0
      %v5506 = vpop.f32.mrb[0].mxu0
      %v5507 = vadd.f32 0.0, %v5506
      %v5508 = vpop.f32.mrb[0].mxu0
      %5509 = vdwg.mxu0
      %v5510 = vadd.f32 %v5204, %v5384
      %v5511 = vadd.f32 %v5205, %v5387
      %v5512 = vadd.f32 %v5206, %v5392
      %v5513 = vadd.f32 %v5207, %v5395
      %v5514 = vadd.f32 %v5208, %v5400
      %v5515 = vadd.f32 %v5209, %v5403
      %v5516 = vadd.f32 %v5210, %v5408
      %v5517 = vadd.f32 %v5211, %v5411
      %v5518 = vadd.f32 %v5212, %v5416
      %v5519 = vadd.f32 %v5213, %v5419
      %v5520 = vadd.f32 %v5214, %v5424
      %v5521 = vadd.f32 %v5215, %v5427
      %v5522 = vadd.f32 %v5216, %v5432
      %v5523 = vadd.f32 %v5217, %v5435
      %v5524 = vadd.f32 %v5218, %v5440
      %v5525 = vadd.f32 %v5219, %v5443
      %v5526 = vadd.f32 %v5220, %v5448
      %v5527 = vadd.f32 %v5221, %v5451
      %v5528 = vadd.f32 %v5222, %v5456
      %v5529 = vadd.f32 %v5223, %v5459
      %v5530 = vadd.f32 %v5224, %v5464
      %v5531 = vadd.f32 %v5225, %v5467
      %v5532 = vadd.f32 %v5226, %v5472
      %v5533 = vadd.f32 %v5227, %v5475
      %v5534 = vadd.f32 %v5228, %v5480
      %v5535 = vadd.f32 %v5229, %v5483
      %v5536 = vadd.f32 %v5230, %v5488
      %v5537 = vadd.f32 %v5231, %v5491
      %v5538 = vadd.f32 %v5232, %v5496
      %v5539 = vadd.f32 %v5233, %v5499
      %v5540 = vadd.f32 %v5234, %v5504
      %v5541 = vadd.f32 %v5235, %v5507
      %v5542 = vld [vmem:[#allocation2 + $0x19] sm:$0xff]
      %v5543 = vld [vmem:[#allocation2 + $0x21] sm:$0xff]
      %v5544 = vld [vmem:[#allocation2 + $0x29] sm:$0xff]
      %v5545 = vld [vmem:[#allocation2 + $0x31] sm:$0xff]
      %v5546 = vld [vmem:[#allocation2 + $0x39] sm:$0xff]
      %v5547 = vld [vmem:[#allocation2 + $0x41] sm:$0xff]
      %v5548 = vld [vmem:[#allocation2 + $0x49] sm:$0xff]
      %v5549 = vld [vmem:[#allocation2 + $0x51] sm:$0xff]
      %v5550 = vld [vmem:[#allocation2 + $0x59] sm:$0xff]
      %v5551 = vld [vmem:[#allocation2 + $0x61] sm:$0xff]
      %v5552 = vld [vmem:[#allocation2 + $0x69] sm:$0xff]
      %v5553 = vld [vmem:[#allocation2 + $0x71] sm:$0xff]
      %v5554 = vld [vmem:[#allocation2 + $0x79] sm:$0xff]
      %v5555 = vld [vmem:[#allocation2 + $0x81] sm:$0xff]
      %v5556 = vld [vmem:[#allocation2 + $0x89] sm:$0xff]
      %v5557 = vld [vmem:[#allocation2 + $0x91] sm:$0xff]
      %v5558 = vld [vmem:[#allocation2 + $0x99] sm:$0xff]
      %v5559 = vld [vmem:[#allocation2 + $0xa1] sm:$0xff]
      %v5560 = vld [vmem:[#allocation2 + $0xa9] sm:$0xff]
      %v5561 = vld [vmem:[#allocation2 + $0xb1] sm:$0xff]
      %v5562 = vld [vmem:[#allocation2 + $0xb9] sm:$0xff]
      %v5563 = vld [vmem:[#allocation2 + $0xc1] sm:$0xff]
      %v5564 = vld [vmem:[#allocation2 + $0xc9] sm:$0xff]
      %v5565 = vld [vmem:[#allocation2 + $0xd1] sm:$0xff]
      %v5566 = vld [vmem:[#allocation2 + $0xd9] sm:$0xff]
      %v5567 = vld [vmem:[#allocation2 + $0xe1] sm:$0xff]
      %v5568 = vld [vmem:[#allocation2 + $0xe9] sm:$0xff]
      %v5569 = vld [vmem:[#allocation2 + $0xf1] sm:$0xff]
      %v5570 = vld [vmem:[#allocation2 + $0xf9] sm:$0xff]
      %v5571 = vld [vmem:[#allocation2 + $0x101] sm:$0xff]
      %v5572 = vld [vmem:[#allocation2 + $0x109] sm:$0xff]
      %v5573 = vld [vmem:[#allocation2 + $0x111] sm:$0xff]
      %v5574 = vmul.f32 %v5542, %v901
      %v5575 = vmul.f32 %v5543, %v902
      %v5576 = vmul.f32 %v5544, %v903
      %v5577 = vmul.f32 %v5545, %v904
      %v5578 = vmul.f32 %v5546, %v905
      %v5579 = vmul.f32 %v5547, %v906
      %v5580 = vmul.f32 %v5548, %v907
      %v5581 = vmul.f32 %v5549, %v908
      %v5582 = vmul.f32 %v5550, %v909
      %v5583 = vmul.f32 %v5551, %v910
      %v5584 = vmul.f32 %v5552, %v911
      %v5585 = vmul.f32 %v5553, %v912
      %v5586 = vmul.f32 %v5554, %v913
      %v5587 = vmul.f32 %v5555, %v914
      %v5588 = vmul.f32 %v5556, %v915
      %v5589 = vmul.f32 %v5557, %v916
      %v5590 = vmul.f32 %v5558, %v917
      %v5591 = vmul.f32 %v5559, %v918
      %v5592 = vmul.f32 %v5560, %v919
      %v5593 = vmul.f32 %v5561, %v920
      %v5594 = vmul.f32 %v5562, %v921
      %v5595 = vmul.f32 %v5563, %v922
      %v5596 = vmul.f32 %v5564, %v923
      %v5597 = vmul.f32 %v5565, %v924
      %v5598 = vmul.f32 %v5566, %v925
      %v5599 = vmul.f32 %v5567, %v926
      %v5600 = vmul.f32 %v5568, %v927
      %v5601 = vmul.f32 %v5569, %v928
      %v5602 = vmul.f32 %v5570, %v929
      %v5603 = vmul.f32 %v5571, %v930
      %v5604 = vmul.f32 %v5572, %v931
      %v5605 = vmul.f32 %v5573, %v932
      %v5606 = vpack.c.bf16 %v5575, %v5574
      %v5607 = vpack.c.bf16 %v5577, %v5576
      %v5608 = vpack.c.bf16 %v5579, %v5578
      %v5609 = vpack.c.bf16 %v5581, %v5580
      %v5610 = vpack.c.bf16 %v5583, %v5582
      %v5611 = vpack.c.bf16 %v5585, %v5584
      %v5612 = vpack.c.bf16 %v5587, %v5586
      %v5613 = vpack.c.bf16 %v5589, %v5588
      %v5614 = vpack.c.bf16 %v5591, %v5590
      %v5615 = vpack.c.bf16 %v5593, %v5592
      %v5616 = vpack.c.bf16 %v5595, %v5594
      %v5617 = vpack.c.bf16 %v5597, %v5596
      %v5618 = vpack.c.bf16 %v5599, %v5598
      %v5619 = vpack.c.bf16 %v5601, %v5600
      %v5620 = vpack.c.bf16 %v5603, %v5602
      %v5621 = vpack.c.bf16 %v5605, %v5604
      %s5622 = scalar_lea.vmem %s3, 80
      %v5623 = vld [vmem:[%s5622] sm:$0xf]
      %v5624 = vld [vmem:[%s5622 + $0x4] sm:$0xf]
      %v5625 = vld [vmem:[%s5622 + $0x8] sm:$0xf]
      %v5626 = vld [vmem:[%s5622 + $0xc] sm:$0xf]
      %v5631 = vunpack.c.l.b16 %v5623
      %v5632 = vunpack.c.l.b16 %v5624
      %v5633 = vunpack.c.l.b16 %v5625
      %v5634 = vunpack.c.l.b16 %v5626
      %v5635 = vpack.c.b16 %v5632, %v5631
      %v5636 = vpack.c.b16 %v5634, %v5633
      %v5640 = vsel %vm310, %v5606, 0
      %v5643 = vsel %vm310, %v5607, 0
      %v5646 = vsel %vm310, %v5608, 0
      %v5649 = vsel %vm310, %v5609, 0
      %v5652 = vsel %vm310, %v5610, 0
      %v5655 = vsel %vm310, %v5611, 0
      %v5658 = vsel %vm310, %v5612, 0
      %v5661 = vsel %vm310, %v5613, 0
      %v5664 = vsel %vm310, %v5614, 0
      %v5667 = vsel %vm310, %v5615, 0
      %v5670 = vsel %vm310, %v5616, 0
      %v5673 = vsel %vm310, %v5617, 0
      %v5676 = vsel %vm310, %v5618, 0
      %v5679 = vsel %vm310, %v5619, 0
      %v5682 = vsel %vm310, %v5620, 0
      %v5685 = vsel %vm310, %v5621, 0
      %5687 = vmatprep.subr.bf16.mxu0 0
      %5688 = vmatpush1.bf16.msra.mxu0 %v5635
      %5689 = vmatprep.subr.bf16.mxu0 0
      %5690 = vmatpush1.bf16.msra.mxu0 %v5636
      %5691 = vmatprep.subr.bf16.mxu0 0
      %5692 = vmatpush1.bf16.msra.mxu0 0
      %5693 = vmatprep.subr.bf16.mxu0 0
      %5694 = vmatpush1.bf16.msra.mxu0 0
      %5695 = vmatprep.subr.bf16.mxu0 0
      %5696 = vmatpush1.bf16.msra.mxu0 0
      %5697 = vmatprep.subr.bf16.mxu0 0
      %5698 = vmatpush1.bf16.msra.mxu0 0
      %5699 = vmatprep.subr.bf16.mxu0 0
      %5700 = vmatpush1.bf16.msra.mxu0 0
      %5701 = vmatprep.subr.bf16.mxu0 0
      %5702 = vmatpush1.bf16.msra.mxu0 0
      %5703 = vmatprep.subr.bf16.mxu0 0
      %5704 = vmatpush1.bf16.msra.mxu0 0
      %5705 = vmatprep.subr.bf16.mxu0 0
      %5706 = vmatpush1.bf16.msra.mxu0 0
      %5707 = vmatprep.subr.bf16.mxu0 0
      %5708 = vmatpush1.bf16.msra.mxu0 0
      %5709 = vmatprep.subr.bf16.mxu0 0
      %5710 = vmatpush1.bf16.msra.mxu0 0
      %5711 = vmatprep.subr.bf16.mxu0 0
      %5712 = vmatpush1.bf16.msra.mxu0 0
      %5713 = vmatprep.subr.bf16.mxu0 0
      %5714 = vmatpush1.bf16.msra.mxu0 0
      %5715 = vmatprep.subr.bf16.mxu0 0
      %5716 = vmatpush1.bf16.msra.mxu0 0
      %5717 = vmatprep.subr.bf16.mxu0 0
      %5718 = vmatpush1.bf16.msra.mxu0 0
      %5719 = vmatprep.mubr.bf16.mxu0 0
      %5720 = vmatmul.mubr.bf16.gmra.mrb[0].mxu0 %v5640
      %v5721 = vpop.f32.mrb[0].mxu0
      %v5722 = vadd.f32 0.0, %v5721
      %v5723 = vpop.f32.mrb[0].mxu0
      %v5724 = vpop.f32.mrb[0].mxu0
      %v5725 = vadd.f32 0.0, %v5724
      %v5726 = vpop.f32.mrb[0].mxu0
      %5727 = vmatprep.mubr.bf16.mxu0 0
      %5728 = vmatmul.mubr.bf16.gmra.mrb[0].mxu0 %v5643
      %v5729 = vpop.f32.mrb[0].mxu0
      %v5730 = vadd.f32 0.0, %v5729
      %v5731 = vpop.f32.mrb[0].mxu0
      %v5732 = vpop.f32.mrb[0].mxu0
      %v5733 = vadd.f32 0.0, %v5732
      %v5734 = vpop.f32.mrb[0].mxu0
      %5735 = vmatprep.mubr.bf16.mxu0 0
      %5736 = vmatmul.mubr.bf16.gmra.mrb[0].mxu0 %v5646
      %v5737 = vpop.f32.mrb[0].mxu0
      %v5738 = vadd.f32 0.0, %v5737
      %v5739 = vpop.f32.mrb[0].mxu0
      %v5740 = vpop.f32.mrb[0].mxu0
      %v5741 = vadd.f32 0.0, %v5740
      %v5742 = vpop.f32.mrb[0].mxu0
      %5743 = vmatprep.mubr.bf16.mxu0 0
      %5744 = vmatmul.mubr.bf16.gmra.mrb[0].mxu0 %v5649
      %v5745 = vpop.f32.mrb[0].mxu0
      %v5746 = vadd.f32 0.0, %v5745
      %v5747 = vpop.f32.mrb[0].mxu0
      %v5748 = vpop.f32.mrb[0].mxu0
      %v5749 = vadd.f32 0.0, %v5748
      %v5750 = vpop.f32.mrb[0].mxu0
      %5751 = vmatprep.mubr.bf16.mxu0 0
      %5752 = vmatmul.mubr.bf16.gmra.mrb[0].mxu0 %v5652
      %v5753 = vpop.f32.mrb[0].mxu0
      %v5754 = vadd.f32 0.0, %v5753
      %v5755 = vpop.f32.mrb[0].mxu0
      %v5756 = vpop.f32.mrb[0].mxu0
      %v5757 = vadd.f32 0.0, %v5756
      %v5758 = vpop.f32.mrb[0].mxu0
      %5759 = vmatprep.mubr.bf16.mxu0 0
      %5760 = vmatmul.mubr.bf16.gmra.mrb[0].mxu0 %v5655
      %v5761 = vpop.f32.mrb[0].mxu0
      %v5762 = vadd.f32 0.0, %v5761
      %v5763 = vpop.f32.mrb[0].mxu0
      %v5764 = vpop.f32.mrb[0].mxu0
      %v5765 = vadd.f32 0.0, %v5764
      %v5766 = vpop.f32.mrb[0].mxu0
      %5767 = vmatprep.mubr.bf16.mxu0 0
      %5768 = vmatmul.mubr.bf16.gmra.mrb[0].mxu0 %v5658
      %v5769 = vpop.f32.mrb[0].mxu0
      %v5770 = vadd.f32 0.0, %v5769
      %v5771 = vpop.f32.mrb[0].mxu0
      %v5772 = vpop.f32.mrb[0].mxu0
      %v5773 = vadd.f32 0.0, %v5772
      %v5774 = vpop.f32.mrb[0].mxu0
      %5775 = vmatprep.mubr.bf16.mxu0 0
      %5776 = vmatmul.mubr.bf16.gmra.mrb[0].mxu0 %v5661
      %v5777 = vpop.f32.mrb[0].mxu0
      %v5778 = vadd.f32 0.0, %v5777
      %v5779 = vpop.f32.mrb[0].mxu0
      %v5780 = vpop.f32.mrb[0].mxu0
      %v5781 = vadd.f32 0.0, %v5780
      %v5782 = vpop.f32.mrb[0].mxu0
      %5783 = vmatprep.mubr.bf16.mxu0 0
      %5784 = vmatmul.mubr.bf16.gmra.mrb[0].mxu0 %v5664
      %v5785 = vpop.f32.mrb[0].mxu0
      %v5786 = vadd.f32 0.0, %v5785
      %v5787 = vpop.f32.mrb[0].mxu0
      %v5788 = vpop.f32.mrb[0].mxu0
      %v5789 = vadd.f32 0.0, %v5788
      %v5790 = vpop.f32.mrb[0].mxu0
      %5791 = vmatprep.mubr.bf16.mxu0 0
      %5792 = vmatmul.mubr.bf16.gmra.mrb[0].mxu0 %v5667
      %v5793 = vpop.f32.mrb[0].mxu0
      %v5794 = vadd.f32 0.0, %v5793
      %v5795 = vpop.f32.mrb[0].mxu0
      %v5796 = vpop.f32.mrb[0].mxu0
      %v5797 = vadd.f32 0.0, %v5796
      %v5798 = vpop.f32.mrb[0].mxu0
      %5799 = vmatprep.mubr.bf16.mxu0 0
      %5800 = vmatmul.mubr.bf16.gmra.mrb[0].mxu0 %v5670
      %v5801 = vpop.f32.mrb[0].mxu0
      %v5802 = vadd.f32 0.0, %v5801
      %v5803 = vpop.f32.mrb[0].mxu0
      %v5804 = vpop.f32.mrb[0].mxu0
      %v5805 = vadd.f32 0.0, %v5804
      %v5806 = vpop.f32.mrb[0].mxu0
      %5807 = vmatprep.mubr.bf16.mxu0 0
      %5808 = vmatmul.mubr.bf16.gmra.mrb[0].mxu0 %v5673
      %v5809 = vpop.f32.mrb[0].mxu0
      %v5810 = vadd.f32 0.0, %v5809
      %v5811 = vpop.f32.mrb[0].mxu0
      %v5812 = vpop.f32.mrb[0].mxu0
      %v5813 = vadd.f32 0.0, %v5812
      %v5814 = vpop.f32.mrb[0].mxu0
      %5815 = vmatprep.mubr.bf16.mxu0 0
      %5816 = vmatmul.mubr.bf16.gmra.mrb[0].mxu0 %v5676
      %v5817 = vpop.f32.mrb[0].mxu0
      %v5818 = vadd.f32 0.0, %v5817
      %v5819 = vpop.f32.mrb[0].mxu0
      %v5820 = vpop.f32.mrb[0].mxu0
      %v5821 = vadd.f32 0.0, %v5820
      %v5822 = vpop.f32.mrb[0].mxu0
      %5823 = vmatprep.mubr.bf16.mxu0 0
      %5824 = vmatmul.mubr.bf16.gmra.mrb[0].mxu0 %v5679
      %v5825 = vpop.f32.mrb[0].mxu0
      %v5826 = vadd.f32 0.0, %v5825
      %v5827 = vpop.f32.mrb[0].mxu0
      %v5828 = vpop.f32.mrb[0].mxu0
      %v5829 = vadd.f32 0.0, %v5828
      %v5830 = vpop.f32.mrb[0].mxu0
      %5831 = vmatprep.mubr.bf16.mxu0 0
      %5832 = vmatmul.mubr.bf16.gmra.mrb[0].mxu0 %v5682
      %v5833 = vpop.f32.mrb[0].mxu0
      %v5834 = vadd.f32 0.0, %v5833
      %v5835 = vpop.f32.mrb[0].mxu0
      %v5836 = vpop.f32.mrb[0].mxu0
      %v5837 = vadd.f32 0.0, %v5836
      %v5838 = vpop.f32.mrb[0].mxu0
      %5839 = vmatprep.mubr.bf16.mxu0 0
      %5840 = vmatmul.mubr.bf16.gmra.mrb[0].mxu0 %v5685
      %v5841 = vpop.f32.mrb[0].mxu0
      %v5842 = vadd.f32 0.0, %v5841
      %v5843 = vpop.f32.mrb[0].mxu0
      %v5844 = vpop.f32.mrb[0].mxu0
      %v5845 = vadd.f32 0.0, %v5844
      %v5846 = vpop.f32.mrb[0].mxu0
      %5847 = vdwg.mxu0
      %v5848 = vadd.f32 %v5510, %v5722
      %v5849 = vadd.f32 %v5511, %v5725
      %v5850 = vadd.f32 %v5512, %v5730
      %v5851 = vadd.f32 %v5513, %v5733
      %v5852 = vadd.f32 %v5514, %v5738
      %v5853 = vadd.f32 %v5515, %v5741
      %v5854 = vadd.f32 %v5516, %v5746
      %v5855 = vadd.f32 %v5517, %v5749
      %v5856 = vadd.f32 %v5518, %v5754
      %v5857 = vadd.f32 %v5519, %v5757
      %v5858 = vadd.f32 %v5520, %v5762
      %v5859 = vadd.f32 %v5521, %v5765
      %v5860 = vadd.f32 %v5522, %v5770
      %v5861 = vadd.f32 %v5523, %v5773
      %v5862 = vadd.f32 %v5524, %v5778
      %v5863 = vadd.f32 %v5525, %v5781
      %v5864 = vadd.f32 %v5526, %v5786
      %v5865 = vadd.f32 %v5527, %v5789
      %v5866 = vadd.f32 %v5528, %v5794
      %v5867 = vadd.f32 %v5529, %v5797
      %v5868 = vadd.f32 %v5530, %v5802
      %v5869 = vadd.f32 %v5531, %v5805
      %v5870 = vadd.f32 %v5532, %v5810
      %v5871 = vadd.f32 %v5533, %v5813
      %v5872 = vadd.f32 %v5534, %v5818
      %v5873 = vadd.f32 %v5535, %v5821
      %v5874 = vadd.f32 %v5536, %v5826
      %v5875 = vadd.f32 %v5537, %v5829
      %v5876 = vadd.f32 %v5538, %v5834
      %v5877 = vadd.f32 %v5539, %v5837
      %v5878 = vadd.f32 %v5540, %v5842
      %v5879 = vadd.f32 %v5541, %v5845
      %v5880 = vld [vmem:[#allocation2 + $0x27] sm:$0xff]
      %v5881 = vld [vmem:[#allocation2 + $0x2f] sm:$0xff]
      %v5882 = vld [vmem:[#allocation2 + $0x37] sm:$0xff]
      %v5883 = vld [vmem:[#allocation2 + $0x3f] sm:$0xff]
      %v5884 = vld [vmem:[#allocation2 + $0x47] sm:$0xff]
      %v5885 = vld [vmem:[#allocation2 + $0x4f] sm:$0xff]
      %v5886 = vld [vmem:[#allocation2 + $0x57] sm:$0xff]
      %v5887 = vld [vmem:[#allocation2 + $0x5f] sm:$0xff]
      %v5888 = vld [vmem:[#allocation2 + $0x67] sm:$0xff]
      %v5889 = vld [vmem:[#allocation2 + $0x6f] sm:$0xff]
      %v5890 = vld [vmem:[#allocation2 + $0x77] sm:$0xff]
      %v5891 = vld [vmem:[#allocation2 + $0x7f] sm:$0xff]
      %v5892 = vld [vmem:[#allocation2 + $0x87] sm:$0xff]
      %v5893 = vld [vmem:[#allocation2 + $0x8f] sm:$0xff]
      %v5894 = vld [vmem:[#allocation2 + $0x97] sm:$0xff]
      %v5895 = vld [vmem:[#allocation2 + $0x9f] sm:$0xff]
      %v5896 = vld [vmem:[#allocation2 + $0xa7] sm:$0xff]
      %v5897 = vld [vmem:[#allocation2 + $0xaf] sm:$0xff]
      %v5898 = vld [vmem:[#allocation2 + $0xb7] sm:$0xff]
      %v5899 = vld [vmem:[#allocation2 + $0xbf] sm:$0xff]
      %v5900 = vld [vmem:[#allocation2 + $0xc7] sm:$0xff]
      %v5901 = vld [vmem:[#allocation2 + $0xcf] sm:$0xff]
      %v5902 = vld [vmem:[#allocation2 + $0xd7] sm:$0xff]
      %v5903 = vld [vmem:[#allocation2 + $0xdf] sm:$0xff]
      %v5904 = vld [vmem:[#allocation2 + $0xe7] sm:$0xff]
      %v5905 = vld [vmem:[#allocation2 + $0xef] sm:$0xff]
      %v5906 = vld [vmem:[#allocation2 + $0xf7] sm:$0xff]
      %v5907 = vld [vmem:[#allocation2 + $0xff] sm:$0xff]
      %v5908 = vld [vmem:[#allocation2 + $0x107] sm:$0xff]
      %v5909 = vld [vmem:[#allocation2 + $0x10f] sm:$0xff]
      %v5910 = vld [vmem:[#allocation2 + $0x117] sm:$0xff]
      %v5911 = vld [vmem:[#allocation2 + $0x11f] sm:$0xff]
      %v5912 = vmul.f32 %v5880, %v805
      %v5913 = vmul.f32 %v5881, %v806
      %v5914 = vmul.f32 %v5882, %v807
      %v5915 = vmul.f32 %v5883, %v808
      %v5916 = vmul.f32 %v5884, %v809
      %v5917 = vmul.f32 %v5885, %v810
      %v5918 = vmul.f32 %v5886, %v811
      %v5919 = vmul.f32 %v5887, %v812
      %v5920 = vmul.f32 %v5888, %v813
      %v5921 = vmul.f32 %v5889, %v814
      %v5922 = vmul.f32 %v5890, %v815
      %v5923 = vmul.f32 %v5891, %v816
      %v5924 = vmul.f32 %v5892, %v817
      %v5925 = vmul.f32 %v5893, %v818
      %v5926 = vmul.f32 %v5894, %v819
      %v5927 = vmul.f32 %v5895, %v820
      %v5928 = vmul.f32 %v5896, %v821
      %v5929 = vmul.f32 %v5897, %v822
      %v5930 = vmul.f32 %v5898, %v823
      %v5931 = vmul.f32 %v5899, %v824
      %v5932 = vmul.f32 %v5900, %v825
      %v5933 = vmul.f32 %v5901, %v826
      %v5934 = vmul.f32 %v5902, %v827
      %v5935 = vmul.f32 %v5903, %v828
      %v5936 = vmul.f32 %v5904, %v829
      %v5937 = vmul.f32 %v5905, %v830
      %v5938 = vmul.f32 %v5906, %v831
      %v5939 = vmul.f32 %v5907, %v832
      %v5940 = vmul.f32 %v5908, %v833
      %v5941 = vmul.f32 %v5909, %v834
      %v5942 = vmul.f32 %v5910, %v835
      %v5943 = vmul.f32 %v5911, %v836
      %v5944 = vpack.c.bf16 %v5913, %v5912
      %v5945 = vpack.c.bf16 %v5915, %v5914
      %v5946 = vpack.c.bf16 %v5917, %v5916
      %v5947 = vpack.c.bf16 %v5919, %v5918
      %v5948 = vpack.c.bf16 %v5921, %v5920
      %v5949 = vpack.c.bf16 %v5923, %v5922
      %v5950 = vpack.c.bf16 %v5925, %v5924
      %v5951 = vpack.c.bf16 %v5927, %v5926
      %v5952 = vpack.c.bf16 %v5929, %v5928
      %v5953 = vpack.c.bf16 %v5931, %v5930
      %v5954 = vpack.c.bf16 %v5933, %v5932
      %v5955 = vpack.c.bf16 %v5935, %v5934
      %v5956 = vpack.c.bf16 %v5937, %v5936
      %v5957 = vpack.c.bf16 %v5939, %v5938
      %v5958 = vpack.c.bf16 %v5941, %v5940
      %v5959 = vpack.c.bf16 %v5943, %v5942
      %s5960 = scalar_lea.vmem %s3, 96
      %v5961 = vld [vmem:[%s5960] sm:$0xf]
      %v5962 = vld [vmem:[%s5960 + $0x4] sm:$0xf]
      %v5963 = vld [vmem:[%s5960 + $0x8] sm:$0xf]
      %v5964 = vld [vmem:[%s5960 + $0xc] sm:$0xf]
      %v5969 = vunpack.c.l.b16 %v5961
      %v5970 = vunpack.c.l.b16 %v5962
      %v5971 = vunpack.c.l.b16 %v5963
      %v5972 = vunpack.c.l.b16 %v5964
      %v5973 = vpack.c.b16 %v5970, %v5969
      %v5974 = vpack.c.b16 %v5972, %v5971
      %v5978 = vsel %vm310, %v5944, 0
      %v5981 = vsel %vm310, %v5945, 0
      %v5984 = vsel %vm310, %v5946, 0
      %v5987 = vsel %vm310, %v5947, 0
      %v5990 = vsel %vm310, %v5948, 0
      %v5993 = vsel %vm310, %v5949, 0
      %v5996 = vsel %vm310, %v5950, 0
      %v5999 = vsel %vm310, %v5951, 0
      %v6002 = vsel %vm310, %v5952, 0
      %v6005 = vsel %vm310, %v5953, 0
      %v6008 = vsel %vm310, %v5954, 0
      %v6011 = vsel %vm310, %v5955, 0
      %v6014 = vsel %vm310, %v5956, 0
      %v6017 = vsel %vm310, %v5957, 0
      %v6020 = vsel %vm310, %v5958, 0
      %v6023 = vsel %vm310, %v5959, 0
      %6025 = vmatprep.subr.bf16.mxu0 0
      %6026 = vmatpush1.bf16.msra.mxu0 %v5973
      %6027 = vmatprep.subr.bf16.mxu0 0
      %6028 = vmatpush1.bf16.msra.mxu0 %v5974
      %6029 = vmatprep.subr.bf16.mxu0 0
      %6030 = vmatpush1.bf16.msra.mxu0 0
      %6031 = vmatprep.subr.bf16.mxu0 0
      %6032 = vmatpush1.bf16.msra.mxu0 0
      %6033 = vmatprep.subr.bf16.mxu0 0
      %6034 = vmatpush1.bf16.msra.mxu0 0
      %6035 = vmatprep.subr.bf16.mxu0 0
      %6036 = vmatpush1.bf16.msra.mxu0 0
      %6037 = vmatprep.subr.bf16.mxu0 0
      %6038 = vmatpush1.bf16.msra.mxu0 0
      %6039 = vmatprep.subr.bf16.mxu0 0
      %6040 = vmatpush1.bf16.msra.mxu0 0
      %6041 = vmatprep.subr.bf16.mxu0 0
      %6042 = vmatpush1.bf16.msra.mxu0 0
      %6043 = vmatprep.subr.bf16.mxu0 0
      %6044 = vmatpush1.bf16.msra.mxu0 0
      %6045 = vmatprep.subr.bf16.mxu0 0
      %6046 = vmatpush1.bf16.msra.mxu0 0
      %6047 = vmatprep.subr.bf16.mxu0 0
      %6048 = vmatpush1.bf16.msra.mxu0 0
      %6049 = vmatprep.subr.bf16.mxu0 0
      %6050 = vmatpush1.bf16.msra.mxu0 0
      %6051 = vmatprep.subr.bf16.mxu0 0
      %6052 = vmatpush1.bf16.msra.mxu0 0
      %6053 = vmatprep.subr.bf16.mxu0 0
      %6054 = vmatpush1.bf16.msra.mxu0 0
      %6055 = vmatprep.subr.bf16.mxu0 0
      %6056 = vmatpush1.bf16.msra.mxu0 0
      %6057 = vmatprep.mubr.bf16.mxu0 0
      %6058 = vmatmul.mubr.bf16.gmra.mrb[0].mxu0 %v5978
      %v6059 = vpop.f32.mrb[0].mxu0
      %v6060 = vadd.f32 0.0, %v6059
      %v6061 = vpop.f32.mrb[0].mxu0
      %v6062 = vpop.f32.mrb[0].mxu0
      %v6063 = vadd.f32 0.0, %v6062
      %v6064 = vpop.f32.mrb[0].mxu0
      %6065 = vmatprep.mubr.bf16.mxu0 0
      %6066 = vmatmul.mubr.bf16.gmra.mrb[0].mxu0 %v5981
      %v6067 = vpop.f32.mrb[0].mxu0
      %v6068 = vadd.f32 0.0, %v6067
      %v6069 = vpop.f32.mrb[0].mxu0
      %v6070 = vpop.f32.mrb[0].mxu0
      %v6071 = vadd.f32 0.0, %v6070
      %v6072 = vpop.f32.mrb[0].mxu0
      %6073 = vmatprep.mubr.bf16.mxu0 0
      %6074 = vmatmul.mubr.bf16.gmra.mrb[0].mxu0 %v5984
      %v6075 = vpop.f32.mrb[0].mxu0
      %v6076 = vadd.f32 0.0, %v6075
      %v6077 = vpop.f32.mrb[0].mxu0
      %v6078 = vpop.f32.mrb[0].mxu0
      %v6079 = vadd.f32 0.0, %v6078
      %v6080 = vpop.f32.mrb[0].mxu0
      %6081 = vmatprep.mubr.bf16.mxu0 0
      %6082 = vmatmul.mubr.bf16.gmra.mrb[0].mxu0 %v5987
      %v6083 = vpop.f32.mrb[0].mxu0
      %v6084 = vadd.f32 0.0, %v6083
      %v6085 = vpop.f32.mrb[0].mxu0
      %v6086 = vpop.f32.mrb[0].mxu0
      %v6087 = vadd.f32 0.0, %v6086
      %v6088 = vpop.f32.mrb[0].mxu0
      %6089 = vmatprep.mubr.bf16.mxu0 0
      %6090 = vmatmul.mubr.bf16.gmra.mrb[0].mxu0 %v5990
      %v6091 = vpop.f32.mrb[0].mxu0
      %v6092 = vadd.f32 0.0, %v6091
      %v6093 = vpop.f32.mrb[0].mxu0
      %v6094 = vpop.f32.mrb[0].mxu0
      %v6095 = vadd.f32 0.0, %v6094
      %v6096 = vpop.f32.mrb[0].mxu0
      %6097 = vmatprep.mubr.bf16.mxu0 0
      %6098 = vmatmul.mubr.bf16.gmra.mrb[0].mxu0 %v5993
      %v6099 = vpop.f32.mrb[0].mxu0
      %v6100 = vadd.f32 0.0, %v6099
      %v6101 = vpop.f32.mrb[0].mxu0
      %v6102 = vpop.f32.mrb[0].mxu0
      %v6103 = vadd.f32 0.0, %v6102
      %v6104 = vpop.f32.mrb[0].mxu0
      %6105 = vmatprep.mubr.bf16.mxu0 0
      %6106 = vmatmul.mubr.bf16.gmra.mrb[0].mxu0 %v5996
      %v6107 = vpop.f32.mrb[0].mxu0
      %v6108 = vadd.f32 0.0, %v6107
      %v6109 = vpop.f32.mrb[0].mxu0
      %v6110 = vpop.f32.mrb[0].mxu0
      %v6111 = vadd.f32 0.0, %v6110
      %v6112 = vpop.f32.mrb[0].mxu0
      %6113 = vmatprep.mubr.bf16.mxu0 0
      %6114 = vmatmul.mubr.bf16.gmra.mrb[0].mxu0 %v5999
      %v6115 = vpop.f32.mrb[0].mxu0
      %v6116 = vadd.f32 0.0, %v6115
      %v6117 = vpop.f32.mrb[0].mxu0
      %v6118 = vpop.f32.mrb[0].mxu0
      %v6119 = vadd.f32 0.0, %v6118
      %v6120 = vpop.f32.mrb[0].mxu0
      %6121 = vmatprep.mubr.bf16.mxu0 0
      %6122 = vmatmul.mubr.bf16.gmra.mrb[0].mxu0 %v6002
      %v6123 = vpop.f32.mrb[0].mxu0
      %v6124 = vadd.f32 0.0, %v6123
      %v6125 = vpop.f32.mrb[0].mxu0
      %v6126 = vpop.f32.mrb[0].mxu0
      %v6127 = vadd.f32 0.0, %v6126
      %v6128 = vpop.f32.mrb[0].mxu0
      %6129 = vmatprep.mubr.bf16.mxu0 0
      %6130 = vmatmul.mubr.bf16.gmra.mrb[0].mxu0 %v6005
      %v6131 = vpop.f32.mrb[0].mxu0
      %v6132 = vadd.f32 0.0, %v6131
      %v6133 = vpop.f32.mrb[0].mxu0
      %v6134 = vpop.f32.mrb[0].mxu0
      %v6135 = vadd.f32 0.0, %v6134
      %v6136 = vpop.f32.mrb[0].mxu0
      %6137 = vmatprep.mubr.bf16.mxu0 0
      %6138 = vmatmul.mubr.bf16.gmra.mrb[0].mxu0 %v6008
      %v6139 = vpop.f32.mrb[0].mxu0
      %v6140 = vadd.f32 0.0, %v6139
      %v6141 = vpop.f32.mrb[0].mxu0
      %v6142 = vpop.f32.mrb[0].mxu0
      %v6143 = vadd.f32 0.0, %v6142
      %v6144 = vpop.f32.mrb[0].mxu0
      %6145 = vmatprep.mubr.bf16.mxu0 0
      %6146 = vmatmul.mubr.bf16.gmra.mrb[0].mxu0 %v6011
      %v6147 = vpop.f32.mrb[0].mxu0
      %v6148 = vadd.f32 0.0, %v6147
      %v6149 = vpop.f32.mrb[0].mxu0
      %v6150 = vpop.f32.mrb[0].mxu0
      %v6151 = vadd.f32 0.0, %v6150
      %v6152 = vpop.f32.mrb[0].mxu0
      %6153 = vmatprep.mubr.bf16.mxu0 0
      %6154 = vmatmul.mubr.bf16.gmra.mrb[0].mxu0 %v6014
      %v6155 = vpop.f32.mrb[0].mxu0
      %v6156 = vadd.f32 0.0, %v6155
      %v6157 = vpop.f32.mrb[0].mxu0
      %v6158 = vpop.f32.mrb[0].mxu0
      %v6159 = vadd.f32 0.0, %v6158
      %v6160 = vpop.f32.mrb[0].mxu0
      %6161 = vmatprep.mubr.bf16.mxu0 0
      %6162 = vmatmul.mubr.bf16.gmra.mrb[0].mxu0 %v6017
      %v6163 = vpop.f32.mrb[0].mxu0
      %v6164 = vadd.f32 0.0, %v6163
      %v6165 = vpop.f32.mrb[0].mxu0
      %v6166 = vpop.f32.mrb[0].mxu0
      %v6167 = vadd.f32 0.0, %v6166
      %v6168 = vpop.f32.mrb[0].mxu0
      %6169 = vmatprep.mubr.bf16.mxu0 0
      %6170 = vmatmul.mubr.bf16.gmra.mrb[0].mxu0 %v6020
      %v6171 = vpop.f32.mrb[0].mxu0
      %v6172 = vadd.f32 0.0, %v6171
      %v6173 = vpop.f32.mrb[0].mxu0
      %v6174 = vpop.f32.mrb[0].mxu0
      %v6175 = vadd.f32 0.0, %v6174
      %v6176 = vpop.f32.mrb[0].mxu0
      %6177 = vmatprep.mubr.bf16.mxu0 0
      %6178 = vmatmul.mubr.bf16.gmra.mrb[0].mxu0 %v6023
      %v6179 = vpop.f32.mrb[0].mxu0
      %v6180 = vadd.f32 0.0, %v6179
      %v6181 = vpop.f32.mrb[0].mxu0
      %v6182 = vpop.f32.mrb[0].mxu0
      %v6183 = vadd.f32 0.0, %v6182
      %v6184 = vpop.f32.mrb[0].mxu0
      %6185 = vdwg.mxu0
      %v6186 = vadd.f32 %v5848, %v6060
      %v6187 = vadd.f32 %v5849, %v6063
      %v6188 = vadd.f32 %v5850, %v6068
      %v6189 = vadd.f32 %v5851, %v6071
      %v6190 = vadd.f32 %v5852, %v6076
      %v6191 = vadd.f32 %v5853, %v6079
      %v6192 = vadd.f32 %v5854, %v6084
      %v6193 = vadd.f32 %v5855, %v6087
      %v6194 = vadd.f32 %v5856, %v6092
      %v6195 = vadd.f32 %v5857, %v6095
      %v6196 = vadd.f32 %v5858, %v6100
      %v6197 = vadd.f32 %v5859, %v6103
      %v6198 = vadd.f32 %v5860, %v6108
      %v6199 = vadd.f32 %v5861, %v6111
      %v6200 = vadd.f32 %v5862, %v6116
      %v6201 = vadd.f32 %v5863, %v6119
      %v6202 = vadd.f32 %v5864, %v6124
      %v6203 = vadd.f32 %v5865, %v6127
      %v6204 = vadd.f32 %v5866, %v6132
      %v6205 = vadd.f32 %v5867, %v6135
      %v6206 = vadd.f32 %v5868, %v6140
      %v6207 = vadd.f32 %v5869, %v6143
      %v6208 = vadd.f32 %v5870, %v6148
      %v6209 = vadd.f32 %v5871, %v6151
      %v6210 = vadd.f32 %v5872, %v6156
      %v6211 = vadd.f32 %v5873, %v6159
      %v6212 = vadd.f32 %v5874, %v6164
      %v6213 = vadd.f32 %v5875, %v6167
      %v6214 = vadd.f32 %v5876, %v6172
      %v6215 = vadd.f32 %v5877, %v6175
      %v6216 = vadd.f32 %v5878, %v6180
      %v6217 = vadd.f32 %v5879, %v6183
      %v6218 = vld [vmem:[#allocation2 + $0x28] sm:$0xff]
      %v6219 = vld [vmem:[#allocation2 + $0x30] sm:$0xff]
      %v6220 = vld [vmem:[#allocation2 + $0x38] sm:$0xff]
      %v6221 = vld [vmem:[#allocation2 + $0x40] sm:$0xff]
      %v6222 = vld [vmem:[#allocation2 + $0x48] sm:$0xff]
      %v6223 = vld [vmem:[#allocation2 + $0x50] sm:$0xff]
      %v6224 = vld [vmem:[#allocation2 + $0x58] sm:$0xff]
      %v6225 = vld [vmem:[#allocation2 + $0x60] sm:$0xff]
      %v6226 = vld [vmem:[#allocation2 + $0x68] sm:$0xff]
      %v6227 = vld [vmem:[#allocation2 + $0x70] sm:$0xff]
      %v6228 = vld [vmem:[#allocation2 + $0x78] sm:$0xff]
      %v6229 = vld [vmem:[#allocation2 + $0x80] sm:$0xff]
      %v6230 = vld [vmem:[#allocation2 + $0x88] sm:$0xff]
      %v6231 = vld [vmem:[#allocation2 + $0x90] sm:$0xff]
      %v6232 = vld [vmem:[#allocation2 + $0x98] sm:$0xff]
      %v6233 = vld [vmem:[#allocation2 + $0xa0] sm:$0xff]
      %v6234 = vld [vmem:[#allocation2 + $0xa8] sm:$0xff]
      %v6235 = vld [vmem:[#allocation2 + $0xb0] sm:$0xff]
      %v6236 = vld [vmem:[#allocation2 + $0xb8] sm:$0xff]
      %v6237 = vld [vmem:[#allocation2 + $0xc0] sm:$0xff]
      %v6238 = vld [vmem:[#allocation2 + $0xc8] sm:$0xff]
      %v6239 = vld [vmem:[#allocation2 + $0xd0] sm:$0xff]
      %v6240 = vld [vmem:[#allocation2 + $0xd8] sm:$0xff]
      %v6241 = vld [vmem:[#allocation2 + $0xe0] sm:$0xff]
      %v6242 = vld [vmem:[#allocation2 + $0xe8] sm:$0xff]
      %v6243 = vld [vmem:[#allocation2 + $0xf0] sm:$0xff]
      %v6244 = vld [vmem:[#allocation2 + $0xf8] sm:$0xff]
      %v6245 = vld [vmem:[#allocation2 + $0x100] sm:$0xff]
      %v6246 = vld [vmem:[#allocation2 + $0x108] sm:$0xff]
      %v6247 = vld [vmem:[#allocation2 + $0x110] sm:$0xff]
      %v6248 = vld [vmem:[#allocation2 + $0x118] sm:$0xff]
      %v6249 = vld [vmem:[#allocation2 + $0x120] sm:$0xff]
      %v6250 = vpack.c.bf16 %v6219, %v6218
      %v6251 = vpack.c.bf16 %v6221, %v6220
      %v6252 = vpack.c.bf16 %v6223, %v6222
      %v6253 = vpack.c.bf16 %v6225, %v6224
      %v6254 = vpack.c.bf16 %v6227, %v6226
      %v6255 = vpack.c.bf16 %v6229, %v6228
      %v6256 = vpack.c.bf16 %v6231, %v6230
      %v6257 = vpack.c.bf16 %v6233, %v6232
      %v6258 = vpack.c.bf16 %v6235, %v6234
      %v6259 = vpack.c.bf16 %v6237, %v6236
      %v6260 = vpack.c.bf16 %v6239, %v6238
      %v6261 = vpack.c.bf16 %v6241, %v6240
      %v6262 = vpack.c.bf16 %v6243, %v6242
      %v6263 = vpack.c.bf16 %v6245, %v6244
      %v6264 = vpack.c.bf16 %v6247, %v6246
      %v6265 = vpack.c.bf16 %v6249, %v6248
      %s6266 = scalar_lea.vmem %s3, 112
      %v6267 = vld [vmem:[%s6266] sm:$0xf]
      %v6268 = vld [vmem:[%s6266 + $0x4] sm:$0xf]
      %v6269 = vld [vmem:[%s6266 + $0x8] sm:$0xf]
      %v6270 = vld [vmem:[%s6266 + $0xc] sm:$0xf]
      %v6275 = vunpack.c.l.b16 %v6267
      %v6276 = vunpack.c.l.b16 %v6268
      %v6277 = vunpack.c.l.b16 %v6269
      %v6278 = vunpack.c.l.b16 %v6270
      %v6279 = vpack.c.b16 %v6276, %v6275
      %v6280 = vpack.c.b16 %v6278, %v6277
      %v6284 = vsel %vm310, %v6250, 0
      %v6287 = vsel %vm310, %v6251, 0
      %v6290 = vsel %vm310, %v6252, 0
      %v6293 = vsel %vm310, %v6253, 0
      %v6296 = vsel %vm310, %v6254, 0
      %v6299 = vsel %vm310, %v6255, 0
      %v6302 = vsel %vm310, %v6256, 0
      %v6305 = vsel %vm310, %v6257, 0
      %v6308 = vsel %vm310, %v6258, 0
      %v6311 = vsel %vm310, %v6259, 0
      %v6314 = vsel %vm310, %v6260, 0
      %v6317 = vsel %vm310, %v6261, 0
      %v6320 = vsel %vm310, %v6262, 0
      %v6323 = vsel %vm310, %v6263, 0
      %v6326 = vsel %vm310, %v6264, 0
      %v6329 = vsel %vm310, %v6265, 0
      %6331 = vmatprep.subr.bf16.mxu0 0
      %6332 = vmatpush1.bf16.msra.mxu0 %v6279
      %6333 = vmatprep.subr.bf16.mxu0 0
      %6334 = vmatpush1.bf16.msra.mxu0 %v6280
      %6335 = vmatprep.subr.bf16.mxu0 0
      %6336 = vmatpush1.bf16.msra.mxu0 0
      %6337 = vmatprep.subr.bf16.mxu0 0
      %6338 = vmatpush1.bf16.msra.mxu0 0
      %6339 = vmatprep.subr.bf16.mxu0 0
      %6340 = vmatpush1.bf16.msra.mxu0 0
      %6341 = vmatprep.subr.bf16.mxu0 0
      %6342 = vmatpush1.bf16.msra.mxu0 0
      %6343 = vmatprep.subr.bf16.mxu0 0
      %6344 = vmatpush1.bf16.msra.mxu0 0
      %6345 = vmatprep.subr.bf16.mxu0 0
      %6346 = vmatpush1.bf16.msra.mxu0 0
      %6347 = vmatprep.subr.bf16.mxu0 0
      %6348 = vmatpush1.bf16.msra.mxu0 0
      %6349 = vmatprep.subr.bf16.mxu0 0
      %6350 = vmatpush1.bf16.msra.mxu0 0
      %6351 = vmatprep.subr.bf16.mxu0 0
      %6352 = vmatpush1.bf16.msra.mxu0 0
      %6353 = vmatprep.subr.bf16.mxu0 0
      %6354 = vmatpush1.bf16.msra.mxu0 0
      %6355 = vmatprep.subr.bf16.mxu0 0
      %6356 = vmatpush1.bf16.msra.mxu0 0
      %6357 = vmatprep.subr.bf16.mxu0 0
      %6358 = vmatpush1.bf16.msra.mxu0 0
      %6359 = vmatprep.subr.bf16.mxu0 0
      %6360 = vmatpush1.bf16.msra.mxu0 0
      %6361 = vmatprep.subr.bf16.mxu0 0
      %6362 = vmatpush1.bf16.msra.mxu0 0
      %6363 = vmatprep.mubr.bf16.mxu0 0
      %6364 = vmatmul.mubr.bf16.gmra.mrb[0].mxu0 %v6284
      %v6365 = vpop.f32.mrb[0].mxu0
      %v6366 = vadd.f32 0.0, %v6365
      %v6367 = vpop.f32.mrb[0].mxu0
      %v6368 = vpop.f32.mrb[0].mxu0
      %v6369 = vadd.f32 0.0, %v6368
      %v6370 = vpop.f32.mrb[0].mxu0
      %6371 = vmatprep.mubr.bf16.mxu0 0
      %6372 = vmatmul.mubr.bf16.gmra.mrb[0].mxu0 %v6287
      %v6373 = vpop.f32.mrb[0].mxu0
      %v6374 = vadd.f32 0.0, %v6373
      %v6375 = vpop.f32.mrb[0].mxu0
      %v6376 = vpop.f32.mrb[0].mxu0
      %v6377 = vadd.f32 0.0, %v6376
      %v6378 = vpop.f32.mrb[0].mxu0
      %6379 = vmatprep.mubr.bf16.mxu0 0
      %6380 = vmatmul.mubr.bf16.gmra.mrb[0].mxu0 %v6290
      %v6381 = vpop.f32.mrb[0].mxu0
      %v6382 = vadd.f32 0.0, %v6381
      %v6383 = vpop.f32.mrb[0].mxu0
      %v6384 = vpop.f32.mrb[0].mxu0
      %v6385 = vadd.f32 0.0, %v6384
      %v6386 = vpop.f32.mrb[0].mxu0
      %6387 = vmatprep.mubr.bf16.mxu0 0
      %6388 = vmatmul.mubr.bf16.gmra.mrb[0].mxu0 %v6293
      %v6389 = vpop.f32.mrb[0].mxu0
      %v6390 = vadd.f32 0.0, %v6389
      %v6391 = vpop.f32.mrb[0].mxu0
      %v6392 = vpop.f32.mrb[0].mxu0
      %v6393 = vadd.f32 0.0, %v6392
      %v6394 = vpop.f32.mrb[0].mxu0
      %6395 = vmatprep.mubr.bf16.mxu0 0
      %6396 = vmatmul.mubr.bf16.gmra.mrb[0].mxu0 %v6296
      %v6397 = vpop.f32.mrb[0].mxu0
      %v6398 = vadd.f32 0.0, %v6397
      %v6399 = vpop.f32.mrb[0].mxu0
      %v6400 = vpop.f32.mrb[0].mxu0
      %v6401 = vadd.f32 0.0, %v6400
      %v6402 = vpop.f32.mrb[0].mxu0
      %6403 = vmatprep.mubr.bf16.mxu0 0
      %6404 = vmatmul.mubr.bf16.gmra.mrb[0].mxu0 %v6299
      %v6405 = vpop.f32.mrb[0].mxu0
      %v6406 = vadd.f32 0.0, %v6405
      %v6407 = vpop.f32.mrb[0].mxu0
      %v6408 = vpop.f32.mrb[0].mxu0
      %v6409 = vadd.f32 0.0, %v6408
      %v6410 = vpop.f32.mrb[0].mxu0
      %6411 = vmatprep.mubr.bf16.mxu0 0
      %6412 = vmatmul.mubr.bf16.gmra.mrb[0].mxu0 %v6302
      %v6413 = vpop.f32.mrb[0].mxu0
      %v6414 = vadd.f32 0.0, %v6413
      %v6415 = vpop.f32.mrb[0].mxu0
      %v6416 = vpop.f32.mrb[0].mxu0
      %v6417 = vadd.f32 0.0, %v6416
      %v6418 = vpop.f32.mrb[0].mxu0
      %6419 = vmatprep.mubr.bf16.mxu0 0
      %6420 = vmatmul.mubr.bf16.gmra.mrb[0].mxu0 %v6305
      %v6421 = vpop.f32.mrb[0].mxu0
      %v6422 = vadd.f32 0.0, %v6421
      %v6423 = vpop.f32.mrb[0].mxu0
      %v6424 = vpop.f32.mrb[0].mxu0
      %v6425 = vadd.f32 0.0, %v6424
      %v6426 = vpop.f32.mrb[0].mxu0
      %6427 = vmatprep.mubr.bf16.mxu0 0
      %6428 = vmatmul.mubr.bf16.gmra.mrb[0].mxu0 %v6308
      %v6429 = vpop.f32.mrb[0].mxu0
      %v6430 = vadd.f32 0.0, %v6429
      %v6431 = vpop.f32.mrb[0].mxu0
      %v6432 = vpop.f32.mrb[0].mxu0
      %v6433 = vadd.f32 0.0, %v6432
      %v6434 = vpop.f32.mrb[0].mxu0
      %6435 = vmatprep.mubr.bf16.mxu0 0
      %6436 = vmatmul.mubr.bf16.gmra.mrb[0].mxu0 %v6311
      %v6437 = vpop.f32.mrb[0].mxu0
      %v6438 = vadd.f32 0.0, %v6437
      %v6439 = vpop.f32.mrb[0].mxu0
      %v6440 = vpop.f32.mrb[0].mxu0
      %v6441 = vadd.f32 0.0, %v6440
      %v6442 = vpop.f32.mrb[0].mxu0
      %6443 = vmatprep.mubr.bf16.mxu0 0
      %6444 = vmatmul.mubr.bf16.gmra.mrb[0].mxu0 %v6314
      %v6445 = vpop.f32.mrb[0].mxu0
      %v6446 = vadd.f32 0.0, %v6445
      %v6447 = vpop.f32.mrb[0].mxu0
      %v6448 = vpop.f32.mrb[0].mxu0
      %v6449 = vadd.f32 0.0, %v6448
      %v6450 = vpop.f32.mrb[0].mxu0
      %6451 = vmatprep.mubr.bf16.mxu0 0
      %6452 = vmatmul.mubr.bf16.gmra.mrb[0].mxu0 %v6317
      %v6453 = vpop.f32.mrb[0].mxu0
      %v6454 = vadd.f32 0.0, %v6453
      %v6455 = vpop.f32.mrb[0].mxu0
      %v6456 = vpop.f32.mrb[0].mxu0
      %v6457 = vadd.f32 0.0, %v6456
      %v6458 = vpop.f32.mrb[0].mxu0
      %6459 = vmatprep.mubr.bf16.mxu0 0
      %6460 = vmatmul.mubr.bf16.gmra.mrb[0].mxu0 %v6320
      %v6461 = vpop.f32.mrb[0].mxu0
      %v6462 = vadd.f32 0.0, %v6461
      %v6463 = vpop.f32.mrb[0].mxu0
      %v6464 = vpop.f32.mrb[0].mxu0
      %v6465 = vadd.f32 0.0, %v6464
      %v6466 = vpop.f32.mrb[0].mxu0
      %6467 = vmatprep.mubr.bf16.mxu0 0
      %6468 = vmatmul.mubr.bf16.gmra.mrb[0].mxu0 %v6323
      %v6469 = vpop.f32.mrb[0].mxu0
      %v6470 = vadd.f32 0.0, %v6469
      %v6471 = vpop.f32.mrb[0].mxu0
      %v6472 = vpop.f32.mrb[0].mxu0
      %v6473 = vadd.f32 0.0, %v6472
      %v6474 = vpop.f32.mrb[0].mxu0
      %6475 = vmatprep.mubr.bf16.mxu0 0
      %6476 = vmatmul.mubr.bf16.gmra.mrb[0].mxu0 %v6326
      %v6477 = vpop.f32.mrb[0].mxu0
      %v6478 = vadd.f32 0.0, %v6477
      %v6479 = vpop.f32.mrb[0].mxu0
      %v6480 = vpop.f32.mrb[0].mxu0
      %v6481 = vadd.f32 0.0, %v6480
      %v6482 = vpop.f32.mrb[0].mxu0
      %6483 = vmatprep.mubr.bf16.mxu0 0
      %6484 = vmatmul.mubr.bf16.gmra.mrb[0].mxu0 %v6329
      %v6485 = vpop.f32.mrb[0].mxu0
      %v6486 = vadd.f32 0.0, %v6485
      %v6487 = vpop.f32.mrb[0].mxu0
      %v6488 = vpop.f32.mrb[0].mxu0
      %v6489 = vadd.f32 0.0, %v6488
      %v6490 = vpop.f32.mrb[0].mxu0
      %6491 = vdwg.mxu0
      %v6492 = vadd.f32 %v6186, %v6366
      %v6493 = vadd.f32 %v6187, %v6369
      %v6494 = vadd.f32 %v6188, %v6374
      %v6495 = vadd.f32 %v6189, %v6377
      %v6496 = vadd.f32 %v6190, %v6382
      %v6497 = vadd.f32 %v6191, %v6385
      %v6498 = vadd.f32 %v6192, %v6390
      %v6499 = vadd.f32 %v6193, %v6393
      %v6500 = vadd.f32 %v6194, %v6398
      %v6501 = vadd.f32 %v6195, %v6401
      %v6502 = vadd.f32 %v6196, %v6406
      %v6503 = vadd.f32 %v6197, %v6409
      %v6504 = vadd.f32 %v6198, %v6414
      %v6505 = vadd.f32 %v6199, %v6417
      %v6506 = vadd.f32 %v6200, %v6422
      %v6507 = vadd.f32 %v6201, %v6425
      %v6508 = vadd.f32 %v6202, %v6430
      %v6509 = vadd.f32 %v6203, %v6433
      %v6510 = vadd.f32 %v6204, %v6438
      %v6511 = vadd.f32 %v6205, %v6441
      %v6512 = vadd.f32 %v6206, %v6446
      %v6513 = vadd.f32 %v6207, %v6449
      %v6514 = vadd.f32 %v6208, %v6454
      %v6515 = vadd.f32 %v6209, %v6457
      %v6516 = vadd.f32 %v6210, %v6462
      %v6517 = vadd.f32 %v6211, %v6465
      %v6518 = vadd.f32 %v6212, %v6470
      %v6519 = vadd.f32 %v6213, %v6473
      %v6520 = vadd.f32 %v6214, %v6478
      %v6521 = vadd.f32 %v6215, %v6481
      %v6522 = vadd.f32 %v6216, %v6486
      %v6523 = vadd.f32 %v6217, %v6489
      %v6524 = vld [vmem:[#allocation2 + $0x29] sm:$0xff]
      %v6525 = vld [vmem:[#allocation2 + $0x31] sm:$0xff]
      %v6526 = vld [vmem:[#allocation2 + $0x39] sm:$0xff]
      %v6527 = vld [vmem:[#allocation2 + $0x41] sm:$0xff]
      %v6528 = vld [vmem:[#allocation2 + $0x49] sm:$0xff]
      %v6529 = vld [vmem:[#allocation2 + $0x51] sm:$0xff]
      %v6530 = vld [vmem:[#allocation2 + $0x59] sm:$0xff]
      %v6531 = vld [vmem:[#allocation2 + $0x61] sm:$0xff]
      %v6532 = vld [vmem:[#allocation2 + $0x69] sm:$0xff]
      %v6533 = vld [vmem:[#allocation2 + $0x71] sm:$0xff]
      %v6534 = vld [vmem:[#allocation2 + $0x79] sm:$0xff]
      %v6535 = vld [vmem:[#allocation2 + $0x81] sm:$0xff]
      %v6536 = vld [vmem:[#allocation2 + $0x89] sm:$0xff]
      %v6537 = vld [vmem:[#allocation2 + $0x91] sm:$0xff]
      %v6538 = vld [vmem:[#allocation2 + $0x99] sm:$0xff]
      %v6539 = vld [vmem:[#allocation2 + $0xa1] sm:$0xff]
      %v6540 = vld [vmem:[#allocation2 + $0xa9] sm:$0xff]
      %v6541 = vld [vmem:[#allocation2 + $0xb1] sm:$0xff]
      %v6542 = vld [vmem:[#allocation2 + $0xb9] sm:$0xff]
      %v6543 = vld [vmem:[#allocation2 + $0xc1] sm:$0xff]
      %v6544 = vld [vmem:[#allocation2 + $0xc9] sm:$0xff]
      %v6545 = vld [vmem:[#allocation2 + $0xd1] sm:$0xff]
      %v6546 = vld [vmem:[#allocation2 + $0xd9] sm:$0xff]
      %v6547 = vld [vmem:[#allocation2 + $0xe1] sm:$0xff]
      %v6548 = vld [vmem:[#allocation2 + $0xe9] sm:$0xff]
      %v6549 = vld [vmem:[#allocation2 + $0xf1] sm:$0xff]
      %v6550 = vld [vmem:[#allocation2 + $0xf9] sm:$0xff]
      %v6551 = vld [vmem:[#allocation2 + $0x101] sm:$0xff]
      %v6552 = vld [vmem:[#allocation2 + $0x109] sm:$0xff]
      %v6553 = vld [vmem:[#allocation2 + $0x111] sm:$0xff]
      %v6554 = vld [vmem:[#allocation2 + $0x119] sm:$0xff]
      %v6555 = vld [vmem:[#allocation2 + $0x121] sm:$0xff]
      %v6556 = vmul.f32 %v6524, %v901
      %v6557 = vmul.f32 %v6525, %v902
      %v6558 = vmul.f32 %v6526, %v903
      %v6559 = vmul.f32 %v6527, %v904
      %v6560 = vmul.f32 %v6528, %v905
      %v6561 = vmul.f32 %v6529, %v906
      %v6562 = vmul.f32 %v6530, %v907
      %v6563 = vmul.f32 %v6531, %v908
      %v6564 = vmul.f32 %v6532, %v909
      %v6565 = vmul.f32 %v6533, %v910
      %v6566 = vmul.f32 %v6534, %v911
      %v6567 = vmul.f32 %v6535, %v912
      %v6568 = vmul.f32 %v6536, %v913
      %v6569 = vmul.f32 %v6537, %v914
      %v6570 = vmul.f32 %v6538, %v915
      %v6571 = vmul.f32 %v6539, %v916
      %v6572 = vmul.f32 %v6540, %v917
      %v6573 = vmul.f32 %v6541, %v918
      %v6574 = vmul.f32 %v6542, %v919
      %v6575 = vmul.f32 %v6543, %v920
      %v6576 = vmul.f32 %v6544, %v921
      %v6577 = vmul.f32 %v6545, %v922
      %v6578 = vmul.f32 %v6546, %v923
      %v6579 = vmul.f32 %v6547, %v924
      %v6580 = vmul.f32 %v6548, %v925
      %v6581 = vmul.f32 %v6549, %v926
      %v6582 = vmul.f32 %v6550, %v927
      %v6583 = vmul.f32 %v6551, %v928
      %v6584 = vmul.f32 %v6552, %v929
      %v6585 = vmul.f32 %v6553, %v930
      %v6586 = vmul.f32 %v6554, %v931
      %v6587 = vmul.f32 %v6555, %v932
      %v6588 = vpack.c.bf16 %v6557, %v6556
      %v6589 = vpack.c.bf16 %v6559, %v6558
      %v6590 = vpack.c.bf16 %v6561, %v6560
      %v6591 = vpack.c.bf16 %v6563, %v6562
      %v6592 = vpack.c.bf16 %v6565, %v6564
      %v6593 = vpack.c.bf16 %v6567, %v6566
      %v6594 = vpack.c.bf16 %v6569, %v6568
      %v6595 = vpack.c.bf16 %v6571, %v6570
      %v6596 = vpack.c.bf16 %v6573, %v6572
      %v6597 = vpack.c.bf16 %v6575, %v6574
      %v6598 = vpack.c.bf16 %v6577, %v6576
      %v6599 = vpack.c.bf16 %v6579, %v6578
      %v6600 = vpack.c.bf16 %v6581, %v6580
      %v6601 = vpack.c.bf16 %v6583, %v6582
      %v6602 = vpack.c.bf16 %v6585, %v6584
      %v6603 = vpack.c.bf16 %v6587, %v6586
      %s6604 = scalar_lea.vmem %s3, 128
      %v6605 = vld [vmem:[%s6604] sm:$0xf]
      %v6606 = vld [vmem:[%s6604 + $0x4] sm:$0xf]
      %v6607 = vld [vmem:[%s6604 + $0x8] sm:$0xf]
      %v6608 = vld [vmem:[%s6604 + $0xc] sm:$0xf]
      %v6613 = vunpack.c.l.b16 %v6605
      %v6614 = vunpack.c.l.b16 %v6606
      %v6615 = vunpack.c.l.b16 %v6607
      %v6616 = vunpack.c.l.b16 %v6608
      %v6617 = vpack.c.b16 %v6614, %v6613
      %v6618 = vpack.c.b16 %v6616, %v6615
      %v6622 = vsel %vm310, %v6588, 0
      %v6625 = vsel %vm310, %v6589, 0
      %v6628 = vsel %vm310, %v6590, 0
      %v6631 = vsel %vm310, %v6591, 0
      %v6634 = vsel %vm310, %v6592, 0
      %v6637 = vsel %vm310, %v6593, 0
      %v6640 = vsel %vm310, %v6594, 0
      %v6643 = vsel %vm310, %v6595, 0
      %v6646 = vsel %vm310, %v6596, 0
      %v6649 = vsel %vm310, %v6597, 0
      %v6652 = vsel %vm310, %v6598, 0
      %v6655 = vsel %vm310, %v6599, 0
      %v6658 = vsel %vm310, %v6600, 0
      %v6661 = vsel %vm310, %v6601, 0
      %v6664 = vsel %vm310, %v6602, 0
      %v6667 = vsel %vm310, %v6603, 0
      %6669 = vmatprep.subr.bf16.mxu0 0
      %6670 = vmatpush1.bf16.msra.mxu0 %v6617
      %6671 = vmatprep.subr.bf16.mxu0 0
      %6672 = vmatpush1.bf16.msra.mxu0 %v6618
      %6673 = vmatprep.subr.bf16.mxu0 0
      %6674 = vmatpush1.bf16.msra.mxu0 0
      %6675 = vmatprep.subr.bf16.mxu0 0
      %6676 = vmatpush1.bf16.msra.mxu0 0
      %6677 = vmatprep.subr.bf16.mxu0 0
      %6678 = vmatpush1.bf16.msra.mxu0 0
      %6679 = vmatprep.subr.bf16.mxu0 0
      %6680 = vmatpush1.bf16.msra.mxu0 0
      %6681 = vmatprep.subr.bf16.mxu0 0
      %6682 = vmatpush1.bf16.msra.mxu0 0
      %6683 = vmatprep.subr.bf16.mxu0 0
      %6684 = vmatpush1.bf16.msra.mxu0 0
      %6685 = vmatprep.subr.bf16.mxu0 0
      %6686 = vmatpush1.bf16.msra.mxu0 0
      %6687 = vmatprep.subr.bf16.mxu0 0
      %6688 = vmatpush1.bf16.msra.mxu0 0
      %6689 = vmatprep.subr.bf16.mxu0 0
      %6690 = vmatpush1.bf16.msra.mxu0 0
      %6691 = vmatprep.subr.bf16.mxu0 0
      %6692 = vmatpush1.bf16.msra.mxu0 0
      %6693 = vmatprep.subr.bf16.mxu0 0
      %6694 = vmatpush1.bf16.msra.mxu0 0
      %6695 = vmatprep.subr.bf16.mxu0 0
      %6696 = vmatpush1.bf16.msra.mxu0 0
      %6697 = vmatprep.subr.bf16.mxu0 0
      %6698 = vmatpush1.bf16.msra.mxu0 0
      %6699 = vmatprep.subr.bf16.mxu0 0
      %6700 = vmatpush1.bf16.msra.mxu0 0
      %6701 = vmatprep.mubr.bf16.mxu0 0
      %6702 = vmatmul.mubr.bf16.gmra.mrb[0].mxu0 %v6622
      %v6703 = vpop.f32.mrb[0].mxu0
      %v6704 = vadd.f32 0.0, %v6703
      %v6705 = vpop.f32.mrb[0].mxu0
      %v6706 = vpop.f32.mrb[0].mxu0
      %v6707 = vadd.f32 0.0, %v6706
      %v6708 = vpop.f32.mrb[0].mxu0
      %6709 = vmatprep.mubr.bf16.mxu0 0
      %6710 = vmatmul.mubr.bf16.gmra.mrb[0].mxu0 %v6625
      %v6711 = vpop.f32.mrb[0].mxu0
      %v6712 = vadd.f32 0.0, %v6711
      %v6713 = vpop.f32.mrb[0].mxu0
      %v6714 = vpop.f32.mrb[0].mxu0
      %v6715 = vadd.f32 0.0, %v6714
      %v6716 = vpop.f32.mrb[0].mxu0
      %6717 = vmatprep.mubr.bf16.mxu0 0
      %6718 = vmatmul.mubr.bf16.gmra.mrb[0].mxu0 %v6628
      %v6719 = vpop.f32.mrb[0].mxu0
      %v6720 = vadd.f32 0.0, %v6719
      %v6721 = vpop.f32.mrb[0].mxu0
      %v6722 = vpop.f32.mrb[0].mxu0
      %v6723 = vadd.f32 0.0, %v6722
      %v6724 = vpop.f32.mrb[0].mxu0
      %6725 = vmatprep.mubr.bf16.mxu0 0
      %6726 = vmatmul.mubr.bf16.gmra.mrb[0].mxu0 %v6631
      %v6727 = vpop.f32.mrb[0].mxu0
      %v6728 = vadd.f32 0.0, %v6727
      %v6729 = vpop.f32.mrb[0].mxu0
      %v6730 = vpop.f32.mrb[0].mxu0
      %v6731 = vadd.f32 0.0, %v6730
      %v6732 = vpop.f32.mrb[0].mxu0
      %6733 = vmatprep.mubr.bf16.mxu0 0
      %6734 = vmatmul.mubr.bf16.gmra.mrb[0].mxu0 %v6634
      %v6735 = vpop.f32.mrb[0].mxu0
      %v6736 = vadd.f32 0.0, %v6735
      %v6737 = vpop.f32.mrb[0].mxu0
      %v6738 = vpop.f32.mrb[0].mxu0
      %v6739 = vadd.f32 0.0, %v6738
      %v6740 = vpop.f32.mrb[0].mxu0
      %6741 = vmatprep.mubr.bf16.mxu0 0
      %6742 = vmatmul.mubr.bf16.gmra.mrb[0].mxu0 %v6637
      %v6743 = vpop.f32.mrb[0].mxu0
      %v6744 = vadd.f32 0.0, %v6743
      %v6745 = vpop.f32.mrb[0].mxu0
      %v6746 = vpop.f32.mrb[0].mxu0
      %v6747 = vadd.f32 0.0, %v6746
      %v6748 = vpop.f32.mrb[0].mxu0
      %6749 = vmatprep.mubr.bf16.mxu0 0
      %6750 = vmatmul.mubr.bf16.gmra.mrb[0].mxu0 %v6640
      %v6751 = vpop.f32.mrb[0].mxu0
      %v6752 = vadd.f32 0.0, %v6751
      %v6753 = vpop.f32.mrb[0].mxu0
      %v6754 = vpop.f32.mrb[0].mxu0
      %v6755 = vadd.f32 0.0, %v6754
      %v6756 = vpop.f32.mrb[0].mxu0
      %6757 = vmatprep.mubr.bf16.mxu0 0
      %6758 = vmatmul.mubr.bf16.gmra.mrb[0].mxu0 %v6643
      %v6759 = vpop.f32.mrb[0].mxu0
      %v6760 = vadd.f32 0.0, %v6759
      %v6761 = vpop.f32.mrb[0].mxu0
      %v6762 = vpop.f32.mrb[0].mxu0
      %v6763 = vadd.f32 0.0, %v6762
      %v6764 = vpop.f32.mrb[0].mxu0
      %6765 = vmatprep.mubr.bf16.mxu0 0
      %6766 = vmatmul.mubr.bf16.gmra.mrb[0].mxu0 %v6646
      %v6767 = vpop.f32.mrb[0].mxu0
      %v6768 = vadd.f32 0.0, %v6767
      %v6769 = vpop.f32.mrb[0].mxu0
      %v6770 = vpop.f32.mrb[0].mxu0
      %v6771 = vadd.f32 0.0, %v6770
      %v6772 = vpop.f32.mrb[0].mxu0
      %6773 = vmatprep.mubr.bf16.mxu0 0
      %6774 = vmatmul.mubr.bf16.gmra.mrb[0].mxu0 %v6649
      %v6775 = vpop.f32.mrb[0].mxu0
      %v6776 = vadd.f32 0.0, %v6775
      %v6777 = vpop.f32.mrb[0].mxu0
      %v6778 = vpop.f32.mrb[0].mxu0
      %v6779 = vadd.f32 0.0, %v6778
      %v6780 = vpop.f32.mrb[0].mxu0
      %6781 = vmatprep.mubr.bf16.mxu0 0
      %6782 = vmatmul.mubr.bf16.gmra.mrb[0].mxu0 %v6652
      %v6783 = vpop.f32.mrb[0].mxu0
      %v6784 = vadd.f32 0.0, %v6783
      %v6785 = vpop.f32.mrb[0].mxu0
      %v6786 = vpop.f32.mrb[0].mxu0
      %v6787 = vadd.f32 0.0, %v6786
      %v6788 = vpop.f32.mrb[0].mxu0
      %6789 = vmatprep.mubr.bf16.mxu0 0
      %6790 = vmatmul.mubr.bf16.gmra.mrb[0].mxu0 %v6655
      %v6791 = vpop.f32.mrb[0].mxu0
      %v6792 = vadd.f32 0.0, %v6791
      %v6793 = vpop.f32.mrb[0].mxu0
      %v6794 = vpop.f32.mrb[0].mxu0
      %v6795 = vadd.f32 0.0, %v6794
      %v6796 = vpop.f32.mrb[0].mxu0
      %6797 = vmatprep.mubr.bf16.mxu0 0
      %6798 = vmatmul.mubr.bf16.gmra.mrb[0].mxu0 %v6658
      %v6799 = vpop.f32.mrb[0].mxu0
      %v6800 = vadd.f32 0.0, %v6799
      %v6801 = vpop.f32.mrb[0].mxu0
      %v6802 = vpop.f32.mrb[0].mxu0
      %v6803 = vadd.f32 0.0, %v6802
      %v6804 = vpop.f32.mrb[0].mxu0
      %6805 = vmatprep.mubr.bf16.mxu0 0
      %6806 = vmatmul.mubr.bf16.gmra.mrb[0].mxu0 %v6661
      %v6807 = vpop.f32.mrb[0].mxu0
      %v6808 = vadd.f32 0.0, %v6807
      %v6809 = vpop.f32.mrb[0].mxu0
      %v6810 = vpop.f32.mrb[0].mxu0
      %v6811 = vadd.f32 0.0, %v6810
      %v6812 = vpop.f32.mrb[0].mxu0
      %6813 = vmatprep.mubr.bf16.mxu0 0
      %6814 = vmatmul.mubr.bf16.gmra.mrb[0].mxu0 %v6664
      %v6815 = vpop.f32.mrb[0].mxu0
      %v6816 = vadd.f32 0.0, %v6815
      %v6817 = vpop.f32.mrb[0].mxu0
      %v6818 = vpop.f32.mrb[0].mxu0
      %v6819 = vadd.f32 0.0, %v6818
      %v6820 = vpop.f32.mrb[0].mxu0
      %6821 = vmatprep.mubr.bf16.mxu0 0
      %6822 = vmatmul.mubr.bf16.gmra.mrb[0].mxu0 %v6667
      %v6823 = vpop.f32.mrb[0].mxu0
      %v6824 = vadd.f32 0.0, %v6823
      %v6825 = vpop.f32.mrb[0].mxu0
      %v6826 = vpop.f32.mrb[0].mxu0
      %v6827 = vadd.f32 0.0, %v6826
      %v6828 = vpop.f32.mrb[0].mxu0
      %6829 = vdwg.mxu0
      %v6830 = vadd.f32 %v6492, %v6704
      %v6831 = vadd.f32 %v6493, %v6707
      %v6832 = vadd.f32 %v6494, %v6712
      %v6833 = vadd.f32 %v6495, %v6715
      %v6834 = vadd.f32 %v6496, %v6720
      %v6835 = vadd.f32 %v6497, %v6723
      %v6836 = vadd.f32 %v6498, %v6728
      %v6837 = vadd.f32 %v6499, %v6731
      %v6838 = vadd.f32 %v6500, %v6736
      %v6839 = vadd.f32 %v6501, %v6739
      %v6840 = vadd.f32 %v6502, %v6744
      %v6841 = vadd.f32 %v6503, %v6747
      %v6842 = vadd.f32 %v6504, %v6752
      %v6843 = vadd.f32 %v6505, %v6755
      %v6844 = vadd.f32 %v6506, %v6760
      %v6845 = vadd.f32 %v6507, %v6763
      %v6846 = vadd.f32 %v6508, %v6768
      %v6847 = vadd.f32 %v6509, %v6771
      %v6848 = vadd.f32 %v6510, %v6776
      %v6849 = vadd.f32 %v6511, %v6779
      %v6850 = vadd.f32 %v6512, %v6784
      %v6851 = vadd.f32 %v6513, %v6787
      %v6852 = vadd.f32 %v6514, %v6792
      %v6853 = vadd.f32 %v6515, %v6795
      %v6854 = vadd.f32 %v6516, %v6800
      %v6855 = vadd.f32 %v6517, %v6803
      %v6856 = vadd.f32 %v6518, %v6808
      %v6857 = vadd.f32 %v6519, %v6811
      %v6858 = vadd.f32 %v6520, %v6816
      %v6859 = vadd.f32 %v6521, %v6819
      %v6860 = vadd.f32 %v6522, %v6824
      %v6861 = vadd.f32 %v6523, %v6827
      %v6862 = vld [vmem:[%s4] sm:$0x1]
      %v6864 = vlaneseq
      %v6865 = vshrl.u32 %v6864, 7
      %v6866 = vsub.s32 0, %v6865
      %v6867 = vrot.slane %v6862, %v6866
      %v6869 = vadd.f32 %v6830, %v6867
      %v6870 = vadd.f32 %v6831, %v6867
      %v6871 = vadd.f32 %v6832, %v6867
      %v6872 = vadd.f32 %v6833, %v6867
      %v6873 = vadd.f32 %v6834, %v6867
      %v6874 = vadd.f32 %v6835, %v6867
      %v6875 = vadd.f32 %v6836, %v6867
      %v6876 = vadd.f32 %v6837, %v6867
      %v6877 = vadd.f32 %v6838, %v6867
      %v6878 = vadd.f32 %v6839, %v6867
      %v6879 = vadd.f32 %v6840, %v6867
      %v6880 = vadd.f32 %v6841, %v6867
      %v6881 = vadd.f32 %v6842, %v6867
      %v6882 = vadd.f32 %v6843, %v6867
      %v6883 = vadd.f32 %v6844, %v6867
      %v6884 = vadd.f32 %v6845, %v6867
      %v6885 = vadd.f32 %v6846, %v6867
      %v6886 = vadd.f32 %v6847, %v6867
      %v6887 = vadd.f32 %v6848, %v6867
      %v6888 = vadd.f32 %v6849, %v6867
      %v6889 = vadd.f32 %v6850, %v6867
      %v6890 = vadd.f32 %v6851, %v6867
      %v6891 = vadd.f32 %v6852, %v6867
      %v6892 = vadd.f32 %v6853, %v6867
      %v6893 = vadd.f32 %v6854, %v6867
      %v6894 = vadd.f32 %v6855, %v6867
      %v6895 = vadd.f32 %v6856, %v6867
      %v6896 = vadd.f32 %v6857, %v6867
      %v6897 = vadd.f32 %v6858, %v6867
      %v6898 = vadd.f32 %v6859, %v6867
      %v6899 = vadd.f32 %v6860, %v6867
      %v6900 = vadd.f32 %v6861, %v6867
      %v6901 = vsel %vm310, %v6869, 0.0
      %v6902 = vsel %vm310, %v6870, 0.0
      %v6903 = vadd.f32 %v6901, %v6902
      %v6904 = vsel %vm310, %v6871, 0.0
      %v6905 = vadd.f32 %v6903, %v6904
      %v6906 = vsel %vm310, %v6872, 0.0
      %v6907 = vadd.f32 %v6905, %v6906
      %v6908 = vsel %vm310, %v6873, 0.0
      %v6909 = vadd.f32 %v6907, %v6908
      %v6910 = vsel %vm310, %v6874, 0.0
      %v6911 = vadd.f32 %v6909, %v6910
      %v6912 = vsel %vm310, %v6875, 0.0
      %v6913 = vadd.f32 %v6911, %v6912
      %v6914 = vsel %vm310, %v6876, 0.0
      %v6915 = vadd.f32 %v6913, %v6914
      %v6916 = vsel %vm310, %v6877, 0.0
      %v6917 = vadd.f32 %v6915, %v6916
      %v6918 = vsel %vm310, %v6878, 0.0
      %v6919 = vadd.f32 %v6917, %v6918
      %v6920 = vsel %vm310, %v6879, 0.0
      %v6921 = vadd.f32 %v6919, %v6920
      %v6922 = vsel %vm310, %v6880, 0.0
      %v6923 = vadd.f32 %v6921, %v6922
      %v6924 = vsel %vm310, %v6881, 0.0
      %v6925 = vadd.f32 %v6923, %v6924
      %v6926 = vsel %vm310, %v6882, 0.0
      %v6927 = vadd.f32 %v6925, %v6926
      %v6928 = vsel %vm310, %v6883, 0.0
      %v6929 = vadd.f32 %v6927, %v6928
      %v6930 = vsel %vm310, %v6884, 0.0
      %v6931 = vadd.f32 %v6929, %v6930
      %v6932 = vsel %vm310, %v6885, 0.0
      %v6933 = vadd.f32 %v6931, %v6932
      %v6934 = vsel %vm310, %v6886, 0.0
      %v6935 = vadd.f32 %v6933, %v6934
      %v6936 = vsel %vm310, %v6887, 0.0
      %v6937 = vadd.f32 %v6935, %v6936
      %v6938 = vsel %vm310, %v6888, 0.0
      %v6939 = vadd.f32 %v6937, %v6938
      %v6940 = vsel %vm310, %v6889, 0.0
      %v6941 = vadd.f32 %v6939, %v6940
      %v6942 = vsel %vm310, %v6890, 0.0
      %v6943 = vadd.f32 %v6941, %v6942
      %v6944 = vsel %vm310, %v6891, 0.0
      %v6945 = vadd.f32 %v6943, %v6944
      %v6946 = vsel %vm310, %v6892, 0.0
      %v6947 = vadd.f32 %v6945, %v6946
      %v6948 = vsel %vm310, %v6893, 0.0
      %v6949 = vadd.f32 %v6947, %v6948
      %v6950 = vsel %vm310, %v6894, 0.0
      %v6951 = vadd.f32 %v6949, %v6950
      %v6952 = vsel %vm310, %v6895, 0.0
      %v6953 = vadd.f32 %v6951, %v6952
      %v6954 = vsel %vm310, %v6896, 0.0
      %v6955 = vadd.f32 %v6953, %v6954
      %v6956 = vsel %vm310, %v6897, 0.0
      %v6957 = vadd.f32 %v6955, %v6956
      %v6958 = vsel %vm310, %v6898, 0.0
      %v6959 = vadd.f32 %v6957, %v6958
      %v6960 = vsel %vm310, %v6899, 0.0
      %v6961 = vadd.f32 %v6959, %v6960
      %v6962 = vsel %vm310, %v6900, 0.0
      %v6963 = vadd.f32 %v6961, %v6962
      %v6964 = vrot.slane %v6963, 4
      %v6965 = vadd.f32 %v6963, %v6964
      %v6966 = vrot.slane %v6965, 2
      %v6967 = vadd.f32 %v6965, %v6966
      %v6968 = vrot.slane %v6967, 1
      %v6969 = vadd.f32 %v6967, %v6968
      %v6970 = vrcp.pop 256.0
      %v6971 = vmul.f32 %v6969, %v6970
      %v6972 = vsel %vm310, %v6869, -inf
      %v6973 = vsel %vm310, %v6870, -inf
      %v6974 = vsel %vm310, %v6871, -inf
      %v6975 = vsel %vm310, %v6872, -inf
      %v6976 = vsel %vm310, %v6873, -inf
      %v6977 = vmax.f32 %v6972, %v6976
      %v6978 = vsel %vm310, %v6874, -inf
      %v6979 = vmax.f32 %v6973, %v6978
      %v6980 = vsel %vm310, %v6875, -inf
      %v6981 = vmax.f32 %v6974, %v6980
      %v6982 = vsel %vm310, %v6876, -inf
      %v6983 = vmax.f32 %v6975, %v6982
      %v6984 = vsel %vm310, %v6877, -inf
      %v6985 = vmax.f32 %v6977, %v6984
      %v6986 = vsel %vm310, %v6878, -inf
      %v6987 = vmax.f32 %v6979, %v6986
      %v6988 = vsel %vm310, %v6879, -inf
      %v6989 = vmax.f32 %v6981, %v6988
      %v6990 = vsel %vm310, %v6880, -inf
      %v6991 = vmax.f32 %v6983, %v6990
      %v6992 = vsel %vm310, %v6881, -inf
      %v6993 = vmax.f32 %v6985, %v6992
      %v6994 = vsel %vm310, %v6882, -inf
      %v6995 = vmax.f32 %v6987, %v6994
      %v6996 = vsel %vm310, %v6883, -inf
      %v6997 = vmax.f32 %v6989, %v6996
      %v6998 = vsel %vm310, %v6884, -inf
      %v6999 = vmax.f32 %v6991, %v6998
      %v7000 = vsel %vm310, %v6885, -inf
      %v7001 = vmax.f32 %v6993, %v7000
      %v7002 = vsel %vm310, %v6886, -inf
      %v7003 = vmax.f32 %v6995, %v7002
      %v7004 = vsel %vm310, %v6887, -inf
      %v7005 = vmax.f32 %v6997, %v7004
      %v7006 = vsel %vm310, %v6888, -inf
      %v7007 = vmax.f32 %v6999, %v7006
      %v7008 = vsel %vm310, %v6889, -inf
      %v7009 = vmax.f32 %v7001, %v7008
      %v7010 = vsel %vm310, %v6890, -inf
      %v7011 = vmax.f32 %v7003, %v7010
      %v7012 = vsel %vm310, %v6891, -inf
      %v7013 = vmax.f32 %v7005, %v7012
      %v7014 = vsel %vm310, %v6892, -inf
      %v7015 = vmax.f32 %v7007, %v7014
      %v7016 = vsel %vm310, %v6893, -inf
      %v7017 = vmax.f32 %v7009, %v7016
      %v7018 = vsel %vm310, %v6894, -inf
      %v7019 = vmax.f32 %v7011, %v7018
      %v7020 = vsel %vm310, %v6895, -inf
      %v7021 = vmax.f32 %v7013, %v7020
      %v7022 = vsel %vm310, %v6896, -inf
      %v7023 = vmax.f32 %v7015, %v7022
      %v7024 = vsel %vm310, %v6897, -inf
      %v7025 = vmax.f32 %v7017, %v7024
      %v7026 = vsel %vm310, %v6898, -inf
      %v7027 = vmax.f32 %v7019, %v7026
      %v7028 = vsel %vm310, %v6899, -inf
      %v7029 = vmax.f32 %v7021, %v7028
      %v7030 = vsel %vm310, %v6900, -inf
      %v7031 = vmax.f32 %v7023, %v7030
      %v7032 = vmax.f32 %v7025, %v7027
      %v7033 = vmax.f32 %v7029, %v7031
      %v7034 = vmax.f32 %v7032, %v7033
      %v7035 = vrot.slane %v7034, 4
      %v7036 = vmax.f32 %v7034, %v7035
      %v7037 = vrot.slane %v7036, 2
      %v7038 = vmax.f32 %v7036, %v7037
      %v7039 = vrot.slane %v7038, 1
      %v7040 = vmax.f32 %v7038, %v7039
      %vm7041 = vcmask 1040384
      %v7042 = vsel %vm7041, %v6971, %v7040
      %v7043 = vld [vmem:[%s5] sm:$0xff]
      %v7044 = vld [vmem:[%s5 + $0x8] sm:$0xff]
      %v7045 = vld [vmem:[%s5 + $0x10] sm:$0xff]
      %v7046 = vld [vmem:[%s5 + $0x18] sm:$0xff]
      %v7048 = vsel %vm310, %v7042, 0
      %7050 = vmatprep.subr.mxu0 0.0
      %7051 = vmatpush1.msra.mxu0 %v7043
      %7052 = vmatprep.subr.mxu0 0.0
      %7053 = vmatpush1.msra.mxu0 %v7044
      %7054 = vmatprep.subr.mxu0 0.0
      %7055 = vmatpush1.msra.mxu0 %v7045
      %7056 = vmatprep.subr.mxu0 0.0
      %7057 = vmatpush1.msra.mxu0 %v7046
      %7058 = vmatprep.subr.mxu0 0.0
      %7059 = vmatpush1.msra.mxu0 0.0
      %7060 = vmatprep.subr.mxu0 0.0
      %7061 = vmatpush1.msra.mxu0 0.0
      %7062 = vmatprep.subr.mxu0 0.0
      %7063 = vmatpush1.msra.mxu0 0.0
      %7064 = vmatprep.subr.mxu0 0.0
      %7065 = vmatpush1.msra.mxu0 0.0
      %7066 = vmatprep.subr.mxu0 0.0
      %7067 = vmatpush1.msra.mxu0 0.0
      %7068 = vmatprep.subr.mxu0 0.0
      %7069 = vmatpush1.msra.mxu0 0.0
      %7070 = vmatprep.subr.mxu0 0.0
      %7071 = vmatpush1.msra.mxu0 0.0
      %7072 = vmatprep.subr.mxu0 0.0
      %7073 = vmatpush1.msra.mxu0 0.0
      %7074 = vmatprep.subr.mxu0 0.0
      %7075 = vmatpush1.msra.mxu0 0.0
      %7076 = vmatprep.subr.mxu0 0.0
      %7077 = vmatpush1.msra.mxu0 0.0
      %7078 = vmatprep.subr.mxu0 0.0
      %7079 = vmatpush1.msra.mxu0 0.0
      %7080 = vmatprep.subr.mxu0 0.0
      %7081 = vmatpush1.msra.mxu0 0.0
      %7082 = vmatprep.subr.mxu0 0.0
      %7083 = vmatpush1.msra.mxu0 0.0
      %7084 = vmatprep.subr.mxu0 0.0
      %7085 = vmatpush1.msra.mxu0 0.0
      %7086 = vmatprep.subr.mxu0 0.0
      %7087 = vmatpush1.msra.mxu0 0.0
      %7088 = vmatprep.subr.mxu0 0.0
      %7089 = vmatpush1.msra.mxu0 0.0
      %7090 = vmatprep.subr.mxu0 0.0
      %7091 = vmatpush1.msra.mxu0 0.0
      %7092 = vmatprep.subr.mxu0 0.0
      %7093 = vmatpush1.msra.mxu0 0.0
      %7094 = vmatprep.subr.mxu0 0.0
      %7095 = vmatpush1.msra.mxu0 0.0
      %7096 = vmatprep.subr.mxu0 0.0
      %7097 = vmatpush1.msra.mxu0 0.0
      %7098 = vmatprep.subr.mxu0 0.0
      %7099 = vmatpush1.msra.mxu0 0.0
      %7100 = vmatprep.subr.mxu0 0.0
      %7101 = vmatpush1.msra.mxu0 0.0
      %7102 = vmatprep.subr.mxu0 0.0
      %7103 = vmatpush1.msra.mxu0 0.0
      %7104 = vmatprep.subr.mxu0 0.0
      %7105 = vmatpush1.msra.mxu0 0.0
      %7106 = vmatprep.subr.mxu0 0.0
      %7107 = vmatpush1.msra.mxu0 0.0
      %7108 = vmatprep.subr.mxu0 0.0
      %7109 = vmatpush1.msra.mxu0 0.0
      %7110 = vmatprep.subr.mxu0 0.0
      %7111 = vmatpush1.msra.mxu0 0.0
      %7112 = vmatprep.subr.mxu0 0.0
      %7113 = vmatpush1.msra.mxu0 0.0
      %7114 = vmatprep.mubr.f32.mxu0 0.0
      %7115 = vmatmul.mubr.f32.gmra.mrb[0].mxu0 %v7048
      %v7116 = vpop.f32.mrb[0].mxu0
      %v7117 = vadd.f32 0.0, %v7116
      %v7118 = vpop.f32.mrb[0].mxu0
      %7119 = vdwg.mxu0
      %v7120 = vmax.f32 %v7117, 0.0
      %v7121 = vld [vmem:[%s6] sm:$0x3]
      %v7123 = vsel %vm317, %v7120, 0
      %vm7125 = vcmask 1041408
      %v7127 = vsel %vm7125, %v7121, 0
      %7129 = vmatprep.subr.mxu0 0.0
      %7130 = vmatpush1.msra.mxu0 %v7127
      %7131 = vmatprep.subr.mxu0 0.0
      %7132 = vmatpush1.msra.mxu0 0.0
      %7133 = vmatprep.subr.mxu0 0.0
      %7134 = vmatpush1.msra.mxu0 0.0
      %7135 = vmatprep.subr.mxu0 0.0
      %7136 = vmatpush1.msra.mxu0 0.0
      %7137 = vmatprep.subr.mxu0 0.0
      %7138 = vmatpush1.msra.mxu0 0.0
      %7139 = vmatprep.subr.mxu0 0.0
      %7140 = vmatpush1.msra.mxu0 0.0
      %7141 = vmatprep.subr.mxu0 0.0
      %7142 = vmatpush1.msra.mxu0 0.0
      %7143 = vmatprep.subr.mxu0 0.0
      %7144 = vmatpush1.msra.mxu0 0.0
      %7145 = vmatprep.subr.mxu0 0.0
      %7146 = vmatpush1.msra.mxu0 0.0
      %7147 = vmatprep.subr.mxu0 0.0
      %7148 = vmatpush1.msra.mxu0 0.0
      %7149 = vmatprep.subr.mxu0 0.0
      %7150 = vmatpush1.msra.mxu0 0.0
      %7151 = vmatprep.subr.mxu0 0.0
      %7152 = vmatpush1.msra.mxu0 0.0
      %7153 = vmatprep.subr.mxu0 0.0
      %7154 = vmatpush1.msra.mxu0 0.0
      %7155 = vmatprep.subr.mxu0 0.0
      %7156 = vmatpush1.msra.mxu0 0.0
      %7157 = vmatprep.subr.mxu0 0.0
      %7158 = vmatpush1.msra.mxu0 0.0
      %7159 = vmatprep.subr.mxu0 0.0
      %7160 = vmatpush1.msra.mxu0 0.0
      %7161 = vmatprep.subr.mxu0 0.0
      %7162 = vmatpush1.msra.mxu0 0.0
      %7163 = vmatprep.subr.mxu0 0.0
      %7164 = vmatpush1.msra.mxu0 0.0
      %7165 = vmatprep.subr.mxu0 0.0
      %7166 = vmatpush1.msra.mxu0 0.0
      %7167 = vmatprep.subr.mxu0 0.0
      %7168 = vmatpush1.msra.mxu0 0.0
      %7169 = vmatprep.subr.mxu0 0.0
      %7170 = vmatpush1.msra.mxu0 0.0
      %7171 = vmatprep.subr.mxu0 0.0
      %7172 = vmatpush1.msra.mxu0 0.0
      %7173 = vmatprep.subr.mxu0 0.0
      %7174 = vmatpush1.msra.mxu0 0.0
      %7175 = vmatprep.subr.mxu0 0.0
      %7176 = vmatpush1.msra.mxu0 0.0
      %7177 = vmatprep.subr.mxu0 0.0
      %7178 = vmatpush1.msra.mxu0 0.0
      %7179 = vmatprep.subr.mxu0 0.0
      %7180 = vmatpush1.msra.mxu0 0.0
      %7181 = vmatprep.subr.mxu0 0.0
      %7182 = vmatpush1.msra.mxu0 0.0
      %7183 = vmatprep.subr.mxu0 0.0
      %7184 = vmatpush1.msra.mxu0 0.0
      %7185 = vmatprep.subr.mxu0 0.0
      %7186 = vmatpush1.msra.mxu0 0.0
      %7187 = vmatprep.subr.mxu0 0.0
      %7188 = vmatpush1.msra.mxu0 0.0
      %7189 = vmatprep.subr.mxu0 0.0
      %7190 = vmatpush1.msra.mxu0 0.0
      %7191 = vmatprep.subr.mxu0 0.0
      %7192 = vmatpush1.msra.mxu0 0.0
      %7193 = vmatprep.mubr.f32.mxu0 0.0
      %7194 = vmatmul.mubr.f32.gmra.mrb[0].mxu0 %v7123
      %v7195 = vpop.f32.mrb[0].mxu0
      %v7196 = vadd.f32 0.0, %v7195
      %v7197 = vpop.f32.mrb[0].mxu0
      %7198 = vdwg.mxu0
      %v7200 = vrot.slane %v7196, 1
      %v7202 = vadd.f32 %v7196, %v7200
      %v7203 = vxor.u32 %v7202, 2147483648
      %v7204 = vmul.f32 %v7203, 1.442695
      %v7205 = vpow.pop %v7204
      %v7206 = vadd.f32 %v7205, 1.0
      %v7207 = vrcp.pop %v7206
      %v7208 = vmul.f32 1.0, %v7207
      %v7209 = vlaneseq
      %v7210 = vshrl.u32 %v7209, 7
      %v7211 = vsub.s32 0, %v7210
      %v7212 = vrot.slane %v7208, %v7211
      %v7213 = vmul.f32 %v6869, %v7212
      %v7214 = vmul.f32 %v6870, %v7212
      %v7215 = vmul.f32 %v6871, %v7212
      %v7216 = vmul.f32 %v6872, %v7212
      %v7217 = vmul.f32 %v6873, %v7212
      %v7218 = vmul.f32 %v6874, %v7212
      %v7219 = vmul.f32 %v6875, %v7212
      %v7220 = vmul.f32 %v6876, %v7212
      %v7221 = vmul.f32 %v6877, %v7212
      %v7222 = vmul.f32 %v6878, %v7212
      %v7223 = vmul.f32 %v6879, %v7212
      %v7224 = vmul.f32 %v6880, %v7212
      %v7225 = vmul.f32 %v6881, %v7212
      %v7226 = vmul.f32 %v6882, %v7212
      %v7227 = vmul.f32 %v6883, %v7212
      %v7228 = vmul.f32 %v6884, %v7212
      %v7229 = vmul.f32 %v6885, %v7212
      %v7230 = vmul.f32 %v6886, %v7212
      %v7231 = vmul.f32 %v6887, %v7212
      %v7232 = vmul.f32 %v6888, %v7212
      %v7233 = vmul.f32 %v6889, %v7212
      %v7234 = vmul.f32 %v6890, %v7212
      %v7235 = vmul.f32 %v6891, %v7212
      %v7236 = vmul.f32 %v6892, %v7212
      %v7237 = vmul.f32 %v6893, %v7212
      %v7238 = vmul.f32 %v6894, %v7212
      %v7239 = vmul.f32 %v6895, %v7212
      %v7240 = vmul.f32 %v6896, %v7212
      %v7241 = vmul.f32 %v6897, %v7212
      %v7242 = vmul.f32 %v6898, %v7212
      %v7243 = vmul.f32 %v6899, %v7212
      %v7244 = vmul.f32 %v6900, %v7212
      %v7245 = vsel %vm310, %v7213, 0.0
      %7246 = vadd.xlane.f32.xlu0 %v7245
      %v7247 = vpop.xlane.xlu0 %7246
      %v7248 = vsel %vm310, %v7214, 0.0
      %7249 = vadd.xlane.f32.xlu0 %v7248
      %v7250 = vpop.xlane.xlu0 %7249
      %v7251 = vsel %vm310, %v7215, 0.0
      %7252 = vadd.xlane.f32.xlu0 %v7251
      %v7253 = vpop.xlane.xlu0 %7252
      %v7254 = vsel %vm310, %v7216, 0.0
      %7255 = vadd.xlane.f32.xlu0 %v7254
      %v7256 = vpop.xlane.xlu0 %7255
      %v7257 = vsel %vm310, %v7217, 0.0
      %7258 = vadd.xlane.f32.xlu0 %v7257
      %v7259 = vpop.xlane.xlu0 %7258
      %v7260 = vsel %vm310, %v7218, 0.0
      %7261 = vadd.xlane.f32.xlu0 %v7260
      %v7262 = vpop.xlane.xlu0 %7261
      %v7263 = vsel %vm310, %v7219, 0.0
      %7264 = vadd.xlane.f32.xlu0 %v7263
      %v7265 = vpop.xlane.xlu0 %7264
      %v7266 = vsel %vm310, %v7220, 0.0
      %7267 = vadd.xlane.f32.xlu0 %v7266
      %v7268 = vpop.xlane.xlu0 %7267
      %v7269 = vsel %vm310, %v7221, 0.0
      %7270 = vadd.xlane.f32.xlu0 %v7269
      %v7271 = vpop.xlane.xlu0 %7270
      %v7272 = vsel %vm310, %v7222, 0.0
      %7273 = vadd.xlane.f32.xlu0 %v7272
      %v7274 = vpop.xlane.xlu0 %7273
      %v7275 = vsel %vm310, %v7223, 0.0
      %7276 = vadd.xlane.f32.xlu0 %v7275
      %v7277 = vpop.xlane.xlu0 %7276
      %v7278 = vsel %vm310, %v7224, 0.0
      %7279 = vadd.xlane.f32.xlu0 %v7278
      %v7280 = vpop.xlane.xlu0 %7279
      %v7281 = vsel %vm310, %v7225, 0.0
      %7282 = vadd.xlane.f32.xlu0 %v7281
      %v7283 = vpop.xlane.xlu0 %7282
      %v7284 = vsel %vm310, %v7226, 0.0
      %7285 = vadd.xlane.f32.xlu0 %v7284
      %v7286 = vpop.xlane.xlu0 %7285
      %v7287 = vsel %vm310, %v7227, 0.0
      %7288 = vadd.xlane.f32.xlu0 %v7287
      %v7289 = vpop.xlane.xlu0 %7288
      %v7290 = vsel %vm310, %v7228, 0.0
      %7291 = vadd.xlane.f32.xlu0 %v7290
      %v7292 = vpop.xlane.xlu0 %7291
      %v7293 = vsel %vm310, %v7229, 0.0
      %7294 = vadd.xlane.f32.xlu0 %v7293
      %v7295 = vpop.xlane.xlu0 %7294
      %v7296 = vsel %vm310, %v7230, 0.0
      %7297 = vadd.xlane.f32.xlu0 %v7296
      %v7298 = vpop.xlane.xlu0 %7297
      %v7299 = vsel %vm310, %v7231, 0.0
      %7300 = vadd.xlane.f32.xlu0 %v7299
      %v7301 = vpop.xlane.xlu0 %7300
      %v7302 = vsel %vm310, %v7232, 0.0
      %7303 = vadd.xlane.f32.xlu0 %v7302
      %v7304 = vpop.xlane.xlu0 %7303
      %v7305 = vsel %vm310, %v7233, 0.0
      %7306 = vadd.xlane.f32.xlu0 %v7305
      %v7307 = vpop.xlane.xlu0 %7306
      %v7308 = vsel %vm310, %v7234, 0.0
      %7309 = vadd.xlane.f32.xlu0 %v7308
      %v7310 = vpop.xlane.xlu0 %7309
      %v7311 = vsel %vm310, %v7235, 0.0
      %7312 = vadd.xlane.f32.xlu0 %v7311
      %v7313 = vpop.xlane.xlu0 %7312
      %v7314 = vsel %vm310, %v7236, 0.0
      %7315 = vadd.xlane.f32.xlu0 %v7314
      %v7316 = vpop.xlane.xlu0 %7315
      %v7317 = vsel %vm310, %v7237, 0.0
      %7318 = vadd.xlane.f32.xlu0 %v7317
      %v7319 = vpop.xlane.xlu0 %7318
      %v7320 = vsel %vm310, %v7238, 0.0
      %7321 = vadd.xlane.f32.xlu0 %v7320
      %v7322 = vpop.xlane.xlu0 %7321
      %v7323 = vsel %vm310, %v7239, 0.0
      %7324 = vadd.xlane.f32.xlu0 %v7323
      %v7325 = vpop.xlane.xlu0 %7324
      %v7326 = vsel %vm310, %v7240, 0.0
      %7327 = vadd.xlane.f32.xlu0 %v7326
      %v7328 = vpop.xlane.xlu0 %7327
      %v7329 = vsel %vm310, %v7241, 0.0
      %7330 = vadd.xlane.f32.xlu0 %v7329
      %v7331 = vpop.xlane.xlu0 %7330
      %v7332 = vsel %vm310, %v7242, 0.0
      %7333 = vadd.xlane.f32.xlu0 %v7332
      %v7334 = vpop.xlane.xlu0 %7333
      %v7335 = vsel %vm310, %v7243, 0.0
      %7336 = vadd.xlane.f32.xlu0 %v7335
      %v7337 = vpop.xlane.xlu0 %7336
      %v7338 = vsel %vm310, %v7244, 0.0
      %7339 = vadd.xlane.f32.xlu0 %v7338
      %v7340 = vpop.xlane.xlu0 %7339
      %v7341 = vrcp.pop 32.0
      %v7342 = vmul.f32 %v7247, %v7341
      %v7343 = vmul.f32 %v7250, %v7341
      %v7344 = vmul.f32 %v7253, %v7341
      %v7345 = vmul.f32 %v7256, %v7341
      %v7346 = vmul.f32 %v7259, %v7341
      %v7347 = vmul.f32 %v7262, %v7341
      %v7348 = vmul.f32 %v7265, %v7341
      %v7349 = vmul.f32 %v7268, %v7341
      %v7350 = vmul.f32 %v7271, %v7341
      %v7351 = vmul.f32 %v7274, %v7341
      %v7352 = vmul.f32 %v7277, %v7341
      %v7353 = vmul.f32 %v7280, %v7341
      %v7354 = vmul.f32 %v7283, %v7341
      %v7355 = vmul.f32 %v7286, %v7341
      %v7356 = vmul.f32 %v7289, %v7341
      %v7357 = vmul.f32 %v7292, %v7341
      %v7358 = vmul.f32 %v7295, %v7341
      %v7359 = vmul.f32 %v7298, %v7341
      %v7360 = vmul.f32 %v7301, %v7341
      %v7361 = vmul.f32 %v7304, %v7341
      %v7362 = vmul.f32 %v7307, %v7341
      %v7363 = vmul.f32 %v7310, %v7341
      %v7364 = vmul.f32 %v7313, %v7341
      %v7365 = vmul.f32 %v7316, %v7341
      %v7366 = vmul.f32 %v7319, %v7341
      %v7367 = vmul.f32 %v7322, %v7341
      %v7368 = vmul.f32 %v7325, %v7341
      %v7369 = vmul.f32 %v7328, %v7341
      %v7370 = vmul.f32 %v7331, %v7341
      %v7371 = vmul.f32 %v7334, %v7341
      %v7372 = vmul.f32 %v7337, %v7341
      %v7373 = vmul.f32 %v7340, %v7341
      %v7374 = vsel %vm310, %v7213, -inf
      %7375 = vmax.xlane.f32.xlu0 %v7374
      %v7376 = vpop.xlane.xlu0 %7375
      %v7377 = vsel %vm310, %v7214, -inf
      %7378 = vmax.xlane.f32.xlu0 %v7377
      %v7379 = vpop.xlane.xlu0 %7378
      %v7380 = vsel %vm310, %v7215, -inf
      %7381 = vmax.xlane.f32.xlu0 %v7380
      %v7382 = vpop.xlane.xlu0 %7381
      %v7383 = vsel %vm310, %v7216, -inf
      %7384 = vmax.xlane.f32.xlu0 %v7383
      %v7385 = vpop.xlane.xlu0 %7384
      %v7386 = vsel %vm310, %v7217, -inf
      %7387 = vmax.xlane.f32.xlu0 %v7386
      %v7388 = vpop.xlane.xlu0 %7387
      %v7389 = vsel %vm310, %v7218, -inf
      %7390 = vmax.xlane.f32.xlu0 %v7389
      %v7391 = vpop.xlane.xlu0 %7390
      %v7392 = vsel %vm310, %v7219, -inf
      %7393 = vmax.xlane.f32.xlu0 %v7392
      %v7394 = vpop.xlane.xlu0 %7393
      %v7395 = vsel %vm310, %v7220, -inf
      %7396 = vmax.xlane.f32.xlu0 %v7395
      %v7397 = vpop.xlane.xlu0 %7396
      %v7398 = vsel %vm310, %v7221, -inf
      %7399 = vmax.xlane.f32.xlu0 %v7398
      %v7400 = vpop.xlane.xlu0 %7399
      %v7401 = vsel %vm310, %v7222, -inf
      %7402 = vmax.xlane.f32.xlu0 %v7401
      %v7403 = vpop.xlane.xlu0 %7402
      %v7404 = vsel %vm310, %v7223, -inf
      %7405 = vmax.xlane.f32.xlu0 %v7404
      %v7406 = vpop.xlane.xlu0 %7405
      %v7407 = vsel %vm310, %v7224, -inf
      %7408 = vmax.xlane.f32.xlu0 %v7407
      %v7409 = vpop.xlane.xlu0 %7408
      %v7410 = vsel %vm310, %v7225, -inf
      %7411 = vmax.xlane.f32.xlu0 %v7410
      %v7412 = vpop.xlane.xlu0 %7411
      %v7413 = vsel %vm310, %v7226, -inf
      %7414 = vmax.xlane.f32.xlu0 %v7413
      %v7415 = vpop.xlane.xlu0 %7414
      %v7416 = vsel %vm310, %v7227, -inf
      %7417 = vmax.xlane.f32.xlu0 %v7416
      %v7418 = vpop.xlane.xlu0 %7417
      %v7419 = vsel %vm310, %v7228, -inf
      %7420 = vmax.xlane.f32.xlu0 %v7419
      %v7421 = vpop.xlane.xlu0 %7420
      %v7422 = vsel %vm310, %v7229, -inf
      %7423 = vmax.xlane.f32.xlu0 %v7422
      %v7424 = vpop.xlane.xlu0 %7423
      %v7425 = vsel %vm310, %v7230, -inf
      %7426 = vmax.xlane.f32.xlu0 %v7425
      %v7427 = vpop.xlane.xlu0 %7426
      %v7428 = vsel %vm310, %v7231, -inf
      %7429 = vmax.xlane.f32.xlu0 %v7428
      %v7430 = vpop.xlane.xlu0 %7429
      %v7431 = vsel %vm310, %v7232, -inf
      %7432 = vmax.xlane.f32.xlu0 %v7431
      %v7433 = vpop.xlane.xlu0 %7432
      %v7434 = vsel %vm310, %v7233, -inf
      %7435 = vmax.xlane.f32.xlu0 %v7434
      %v7436 = vpop.xlane.xlu0 %7435
      %v7437 = vsel %vm310, %v7234, -inf
      %7438 = vmax.xlane.f32.xlu0 %v7437
      %v7439 = vpop.xlane.xlu0 %7438
      %v7440 = vsel %vm310, %v7235, -inf
      %7441 = vmax.xlane.f32.xlu0 %v7440
      %v7442 = vpop.xlane.xlu0 %7441
      %v7443 = vsel %vm310, %v7236, -inf
      %7444 = vmax.xlane.f32.xlu0 %v7443
      %v7445 = vpop.xlane.xlu0 %7444
      %v7446 = vsel %vm310, %v7237, -inf
      %7447 = vmax.xlane.f32.xlu0 %v7446
      %v7448 = vpop.xlane.xlu0 %7447
      %v7449 = vsel %vm310, %v7238, -inf
      %7450 = vmax.xlane.f32.xlu0 %v7449
      %v7451 = vpop.xlane.xlu0 %7450
      %v7452 = vsel %vm310, %v7239, -inf
      %7453 = vmax.xlane.f32.xlu0 %v7452
      %v7454 = vpop.xlane.xlu0 %7453
      %v7455 = vsel %vm310, %v7240, -inf
      %7456 = vmax.xlane.f32.xlu0 %v7455
      %v7457 = vpop.xlane.xlu0 %7456
      %v7458 = vsel %vm310, %v7241, -inf
      %7459 = vmax.xlane.f32.xlu0 %v7458
      %v7460 = vpop.xlane.xlu0 %7459
      %v7461 = vsel %vm310, %v7242, -inf
      %7462 = vmax.xlane.f32.xlu0 %v7461
      %v7463 = vpop.xlane.xlu0 %7462
      %v7464 = vsel %vm310, %v7243, -inf
      %7465 = vmax.xlane.f32.xlu0 %v7464
      %v7466 = vpop.xlane.xlu0 %7465
      %v7467 = vsel %vm310, %v7244, -inf
      %7468 = vmax.xlane.f32.xlu0 %v7467
      %v7469 = vpop.xlane.xlu0 %7468
      %vm7470 = vcmask 7168
      %v7471 = vsel %vm7470, %v7342, %v7376
      %v7472 = vsel %vm7470, %v7343, %v7379
      %v7473 = vsel %vm7470, %v7344, %v7382
      %v7474 = vsel %vm7470, %v7345, %v7385
      %v7475 = vsel %vm7470, %v7346, %v7388
      %v7476 = vsel %vm7470, %v7347, %v7391
      %v7477 = vsel %vm7470, %v7348, %v7394
      %v7478 = vsel %vm7470, %v7349, %v7397
      %v7479 = vsel %vm7470, %v7350, %v7400
      %v7480 = vsel %vm7470, %v7351, %v7403
      %v7481 = vsel %vm7470, %v7352, %v7406
      %v7482 = vsel %vm7470, %v7353, %v7409
      %v7483 = vsel %vm7470, %v7354, %v7412
      %v7484 = vsel %vm7470, %v7355, %v7415
      %v7485 = vsel %vm7470, %v7356, %v7418
      %v7486 = vsel %vm7470, %v7357, %v7421
      %v7487 = vsel %vm7470, %v7358, %v7424
      %v7488 = vsel %vm7470, %v7359, %v7427
      %v7489 = vsel %vm7470, %v7360, %v7430
      %v7490 = vsel %vm7470, %v7361, %v7433
      %v7491 = vsel %vm7470, %v7362, %v7436
      %v7492 = vsel %vm7470, %v7363, %v7439
      %v7493 = vsel %vm7470, %v7364, %v7442
      %v7494 = vsel %vm7470, %v7365, %v7445
      %v7495 = vsel %vm7470, %v7366, %v7448
      %v7496 = vsel %vm7470, %v7367, %v7451
      %v7497 = vsel %vm7470, %v7368, %v7454
      %v7498 = vsel %vm7470, %v7369, %v7457
      %v7499 = vsel %vm7470, %v7370, %v7460
      %v7500 = vsel %vm7470, %v7371, %v7463
      %v7501 = vsel %vm7470, %v7372, %v7466
      %v7502 = vsel %vm7470, %v7373, %v7469
      %7503 = vst.msk [vmem:[#allocation3 + $0x18] sm:$0xff] %vm317, %v7471
      %7504 = vst.msk [vmem:[#allocation3 + $0x20] sm:$0xff] %vm317, %v7472
      %7505 = vst.msk [vmem:[#allocation3 + $0x28] sm:$0xff] %vm317, %v7473
      %7506 = vst.msk [vmem:[#allocation3 + $0x30] sm:$0xff] %vm317, %v7474
      %7507 = vst.msk [vmem:[#allocation3 + $0x38] sm:$0xff] %vm317, %v7475
      %7508 = vst.msk [vmem:[#allocation3 + $0x40] sm:$0xff] %vm317, %v7476
      %7509 = vst.msk [vmem:[#allocation3 + $0x48] sm:$0xff] %vm317, %v7477
      %7510 = vst.msk [vmem:[#allocation3 + $0x50] sm:$0xff] %vm317, %v7478
      %7511 = vst.msk [vmem:[#allocation3 + $0x58] sm:$0xff] %vm317, %v7479
      %7512 = vst.msk [vmem:[#allocation3 + $0x60] sm:$0xff] %vm317, %v7480
      %7513 = vst.msk [vmem:[#allocation3 + $0x68] sm:$0xff] %vm317, %v7481
      %7514 = vst.msk [vmem:[#allocation3 + $0x70] sm:$0xff] %vm317, %v7482
      %7515 = vst.msk [vmem:[#allocation3 + $0x78] sm:$0xff] %vm317, %v7483
      %7516 = vst.msk [vmem:[#allocation3 + $0x80] sm:$0xff] %vm317, %v7484
      %7517 = vst.msk [vmem:[#allocation3 + $0x88] sm:$0xff] %vm317, %v7485
      %7518 = vst.msk [vmem:[#allocation3 + $0x90] sm:$0xff] %vm317, %v7486
      %7519 = vst.msk [vmem:[#allocation3 + $0x98] sm:$0xff] %vm317, %v7487
      %7520 = vst.msk [vmem:[#allocation3 + $0xa0] sm:$0xff] %vm317, %v7488
      %7521 = vst.msk [vmem:[#allocation3 + $0xa8] sm:$0xff] %vm317, %v7489
      %7522 = vst.msk [vmem:[#allocation3 + $0xb0] sm:$0xff] %vm317, %v7490
      %7523 = vst.msk [vmem:[#allocation3 + $0xb8] sm:$0xff] %vm317, %v7491
      %7524 = vst.msk [vmem:[#allocation3 + $0xc0] sm:$0xff] %vm317, %v7492
      %7525 = vst.msk [vmem:[#allocation3 + $0xc8] sm:$0xff] %vm317, %v7493
      %7526 = vst.msk [vmem:[#allocation3 + $0xd0] sm:$0xff] %vm317, %v7494
      %7527 = vst.msk [vmem:[#allocation3 + $0xd8] sm:$0xff] %vm317, %v7495
      %7528 = vst.msk [vmem:[#allocation3 + $0xe0] sm:$0xff] %vm317, %v7496
      %7529 = vst.msk [vmem:[#allocation3 + $0xe8] sm:$0xff] %vm317, %v7497
      %7530 = vst.msk [vmem:[#allocation3 + $0xf0] sm:$0xff] %vm317, %v7498
      %7531 = vst.msk [vmem:[#allocation3 + $0xf8] sm:$0xff] %vm317, %v7499
      %7532 = vst.msk [vmem:[#allocation3 + $0x100] sm:$0xff] %vm317, %v7500
      %7533 = vst.msk [vmem:[#allocation3 + $0x108] sm:$0xff] %vm317, %v7501
      %7534 = vst.msk [vmem:[#allocation3 + $0x110] sm:$0xff] %vm317, %v7502
      %v7535 = vld [vmem:[#allocation3 + $0x7] sm:$0xff]
      %v7536 = vld [vmem:[#allocation3 + $0xf] sm:$0xff]
      %v7537 = vld [vmem:[#allocation3 + $0x17] sm:$0xff]
      %v7538 = vld [vmem:[#allocation3 + $0x1f] sm:$0xff]
      %v7539 = vld [vmem:[#allocation3 + $0x27] sm:$0xff]
      %v7540 = vld [vmem:[#allocation3 + $0x2f] sm:$0xff]
      %v7541 = vld [vmem:[#allocation3 + $0x37] sm:$0xff]
      %v7542 = vld [vmem:[#allocation3 + $0x3f] sm:$0xff]
      %v7543 = vld [vmem:[#allocation3 + $0x47] sm:$0xff]
      %v7544 = vld [vmem:[#allocation3 + $0x4f] sm:$0xff]
      %v7545 = vld [vmem:[#allocation3 + $0x57] sm:$0xff]
      %v7546 = vld [vmem:[#allocation3 + $0x5f] sm:$0xff]
      %v7547 = vld [vmem:[#allocation3 + $0x67] sm:$0xff]
      %v7548 = vld [vmem:[#allocation3 + $0x6f] sm:$0xff]
      %v7549 = vld [vmem:[#allocation3 + $0x77] sm:$0xff]
      %v7550 = vld [vmem:[#allocation3 + $0x7f] sm:$0xff]
      %v7551 = vld [vmem:[#allocation3 + $0x87] sm:$0xff]
      %v7552 = vld [vmem:[#allocation3 + $0x8f] sm:$0xff]
      %v7553 = vld [vmem:[#allocation3 + $0x97] sm:$0xff]
      %v7554 = vld [vmem:[#allocation3 + $0x9f] sm:$0xff]
      %v7555 = vld [vmem:[#allocation3 + $0xa7] sm:$0xff]
      %v7556 = vld [vmem:[#allocation3 + $0xaf] sm:$0xff]
      %v7557 = vld [vmem:[#allocation3 + $0xb7] sm:$0xff]
      %v7558 = vld [vmem:[#allocation3 + $0xbf] sm:$0xff]
      %v7559 = vld [vmem:[#allocation3 + $0xc7] sm:$0xff]
      %v7560 = vld [vmem:[#allocation3 + $0xcf] sm:$0xff]
      %v7561 = vld [vmem:[#allocation3 + $0xd7] sm:$0xff]
      %v7562 = vld [vmem:[#allocation3 + $0xdf] sm:$0xff]
      %v7563 = vld [vmem:[#allocation3 + $0xe7] sm:$0xff]
      %v7564 = vld [vmem:[#allocation3 + $0xef] sm:$0xff]
      %v7565 = vld [vmem:[#allocation3 + $0xf7] sm:$0xff]
      %v7566 = vld [vmem:[#allocation3 + $0xff] sm:$0xff]
      %v7567 = vmul.f32 %v7535, %v805
      %v7568 = vmul.f32 %v7536, %v806
      %v7569 = vmul.f32 %v7537, %v807
      %v7570 = vmul.f32 %v7538, %v808
      %v7571 = vmul.f32 %v7539, %v809
      %v7572 = vmul.f32 %v7540, %v810
      %v7573 = vmul.f32 %v7541, %v811
      %v7574 = vmul.f32 %v7542, %v812
      %v7575 = vmul.f32 %v7543, %v813
      %v7576 = vmul.f32 %v7544, %v814
      %v7577 = vmul.f32 %v7545, %v815
      %v7578 = vmul.f32 %v7546, %v816
      %v7579 = vmul.f32 %v7547, %v817
      %v7580 = vmul.f32 %v7548, %v818
      %v7581 = vmul.f32 %v7549, %v819
      %v7582 = vmul.f32 %v7550, %v820
      %v7583 = vmul.f32 %v7551, %v821
      %v7584 = vmul.f32 %v7552, %v822
      %v7585 = vmul.f32 %v7553, %v823
      %v7586 = vmul.f32 %v7554, %v824
      %v7587 = vmul.f32 %v7555, %v825
      %v7588 = vmul.f32 %v7556, %v826
      %v7589 = vmul.f32 %v7557, %v827
      %v7590 = vmul.f32 %v7558, %v828
      %v7591 = vmul.f32 %v7559, %v829
      %v7592 = vmul.f32 %v7560, %v830
      %v7593 = vmul.f32 %v7561, %v831
      %v7594 = vmul.f32 %v7562, %v832
      %v7595 = vmul.f32 %v7563, %v833
      %v7596 = vmul.f32 %v7564, %v834
      %v7597 = vmul.f32 %v7565, %v835
      %v7598 = vmul.f32 %v7566, %v836
      %v7599 = vld [vmem:[%s7] sm:$0x1]
      %v7601 = vlaneseq
      %v7602 = vshrl.u32 %v7601, 7
      %v7603 = vsub.s32 0, %v7602
      %v7604 = vrot.slane %v7599, %v7603
      %v7606 = vmul.f32 %v7567, %v7604
      %v7607 = vmul.f32 %v7568, %v7604
      %v7608 = vmul.f32 %v7569, %v7604
      %v7609 = vmul.f32 %v7570, %v7604
      %v7610 = vmul.f32 %v7571, %v7604
      %v7611 = vmul.f32 %v7572, %v7604
      %v7612 = vmul.f32 %v7573, %v7604
      %v7613 = vmul.f32 %v7574, %v7604
      %v7614 = vmul.f32 %v7575, %v7604
      %v7615 = vmul.f32 %v7576, %v7604
      %v7616 = vmul.f32 %v7577, %v7604
      %v7617 = vmul.f32 %v7578, %v7604
      %v7618 = vmul.f32 %v7579, %v7604
      %v7619 = vmul.f32 %v7580, %v7604
      %v7620 = vmul.f32 %v7581, %v7604
      %v7621 = vmul.f32 %v7582, %v7604
      %v7622 = vmul.f32 %v7583, %v7604
      %v7623 = vmul.f32 %v7584, %v7604
      %v7624 = vmul.f32 %v7585, %v7604
      %v7625 = vmul.f32 %v7586, %v7604
      %v7626 = vmul.f32 %v7587, %v7604
      %v7627 = vmul.f32 %v7588, %v7604
      %v7628 = vmul.f32 %v7589, %v7604
      %v7629 = vmul.f32 %v7590, %v7604
      %v7630 = vmul.f32 %v7591, %v7604
      %v7631 = vmul.f32 %v7592, %v7604
      %v7632 = vmul.f32 %v7593, %v7604
      %v7633 = vmul.f32 %v7594, %v7604
      %v7634 = vmul.f32 %v7595, %v7604
      %v7635 = vmul.f32 %v7596, %v7604
      %v7636 = vmul.f32 %v7597, %v7604
      %v7637 = vmul.f32 %v7598, %v7604
      %v7638 = vadd.f32 %v7606, 0.0
      %v7639 = vadd.f32 %v7607, 0.0
      %v7640 = vadd.f32 %v7608, 0.0
      %v7641 = vadd.f32 %v7609, 0.0
      %v7642 = vadd.f32 %v7610, 0.0
      %v7643 = vadd.f32 %v7611, 0.0
      %v7644 = vadd.f32 %v7612, 0.0
      %v7645 = vadd.f32 %v7613, 0.0
      %v7646 = vadd.f32 %v7614, 0.0
      %v7647 = vadd.f32 %v7615, 0.0
      %v7648 = vadd.f32 %v7616, 0.0
      %v7649 = vadd.f32 %v7617, 0.0
      %v7650 = vadd.f32 %v7618, 0.0
      %v7651 = vadd.f32 %v7619, 0.0
      %v7652 = vadd.f32 %v7620, 0.0
      %v7653 = vadd.f32 %v7621, 0.0
      %v7654 = vadd.f32 %v7622, 0.0
      %v7655 = vadd.f32 %v7623, 0.0
      %v7656 = vadd.f32 %v7624, 0.0
      %v7657 = vadd.f32 %v7625, 0.0
      %v7658 = vadd.f32 %v7626, 0.0
      %v7659 = vadd.f32 %v7627, 0.0
      %v7660 = vadd.f32 %v7628, 0.0
      %v7661 = vadd.f32 %v7629, 0.0
      %v7662 = vadd.f32 %v7630, 0.0
      %v7663 = vadd.f32 %v7631, 0.0
      %v7664 = vadd.f32 %v7632, 0.0
      %v7665 = vadd.f32 %v7633, 0.0
      %v7666 = vadd.f32 %v7634, 0.0
      %v7667 = vadd.f32 %v7635, 0.0
      %v7668 = vadd.f32 %v7636, 0.0
      %v7669 = vadd.f32 %v7637, 0.0
      %v7670 = vld [vmem:[#allocation3 + $0x8] sm:$0xff]
      %v7671 = vld [vmem:[#allocation3 + $0x10] sm:$0xff]
      %v7672 = vld [vmem:[#allocation3 + $0x18] sm:$0xff]
      %v7673 = vld [vmem:[#allocation3 + $0x20] sm:$0xff]
      %v7674 = vld [vmem:[#allocation3 + $0x28] sm:$0xff]
      %v7675 = vld [vmem:[#allocation3 + $0x30] sm:$0xff]
      %v7676 = vld [vmem:[#allocation3 + $0x38] sm:$0xff]
      %v7677 = vld [vmem:[#allocation3 + $0x40] sm:$0xff]
      %v7678 = vld [vmem:[#allocation3 + $0x48] sm:$0xff]
      %v7679 = vld [vmem:[#allocation3 + $0x50] sm:$0xff]
      %v7680 = vld [vmem:[#allocation3 + $0x58] sm:$0xff]
      %v7681 = vld [vmem:[#allocation3 + $0x60] sm:$0xff]
      %v7682 = vld [vmem:[#allocation3 + $0x68] sm:$0xff]
      %v7683 = vld [vmem:[#allocation3 + $0x70] sm:$0xff]
      %v7684 = vld [vmem:[#allocation3 + $0x78] sm:$0xff]
      %v7685 = vld [vmem:[#allocation3 + $0x80] sm:$0xff]
      %v7686 = vld [vmem:[#allocation3 + $0x88] sm:$0xff]
      %v7687 = vld [vmem:[#allocation3 + $0x90] sm:$0xff]
      %v7688 = vld [vmem:[#allocation3 + $0x98] sm:$0xff]
      %v7689 = vld [vmem:[#allocation3 + $0xa0] sm:$0xff]
      %v7690 = vld [vmem:[#allocation3 + $0xa8] sm:$0xff]
      %v7691 = vld [vmem:[#allocation3 + $0xb0] sm:$0xff]
      %v7692 = vld [vmem:[#allocation3 + $0xb8] sm:$0xff]
      %v7693 = vld [vmem:[#allocation3 + $0xc0] sm:$0xff]
      %v7694 = vld [vmem:[#allocation3 + $0xc8] sm:$0xff]
      %v7695 = vld [vmem:[#allocation3 + $0xd0] sm:$0xff]
      %v7696 = vld [vmem:[#allocation3 + $0xd8] sm:$0xff]
      %v7697 = vld [vmem:[#allocation3 + $0xe0] sm:$0xff]
      %v7698 = vld [vmem:[#allocation3 + $0xe8] sm:$0xff]
      %v7699 = vld [vmem:[#allocation3 + $0xf0] sm:$0xff]
      %v7700 = vld [vmem:[#allocation3 + $0xf8] sm:$0xff]
      %v7701 = vld [vmem:[#allocation3 + $0x100] sm:$0xff]
      %s7702 = scalar_lea.vmem %s7, 1
      %v7703 = vld [vmem:[%s7702] sm:$0x1]
      %v7705 = vlaneseq
      %v7706 = vshrl.u32 %v7705, 7
      %v7707 = vsub.s32 0, %v7706
      %v7708 = vrot.slane %v7703, %v7707
      %v7710 = vmul.f32 %v7670, %v7708
      %v7711 = vmul.f32 %v7671, %v7708
      %v7712 = vmul.f32 %v7672, %v7708
      %v7713 = vmul.f32 %v7673, %v7708
      %v7714 = vmul.f32 %v7674, %v7708
      %v7715 = vmul.f32 %v7675, %v7708
      %v7716 = vmul.f32 %v7676, %v7708
      %v7717 = vmul.f32 %v7677, %v7708
      %v7718 = vmul.f32 %v7678, %v7708
      %v7719 = vmul.f32 %v7679, %v7708
      %v7720 = vmul.f32 %v7680, %v7708
      %v7721 = vmul.f32 %v7681, %v7708
      %v7722 = vmul.f32 %v7682, %v7708
      %v7723 = vmul.f32 %v7683, %v7708
      %v7724 = vmul.f32 %v7684, %v7708
      %v7725 = vmul.f32 %v7685, %v7708
      %v7726 = vmul.f32 %v7686, %v7708
      %v7727 = vmul.f32 %v7687, %v7708
      %v7728 = vmul.f32 %v7688, %v7708
      %v7729 = vmul.f32 %v7689, %v7708
      %v7730 = vmul.f32 %v7690, %v7708
      %v7731 = vmul.f32 %v7691, %v7708
      %v7732 = vmul.f32 %v7692, %v7708
      %v7733 = vmul.f32 %v7693, %v7708
      %v7734 = vmul.f32 %v7694, %v7708
      %v7735 = vmul.f32 %v7695, %v7708
      %v7736 = vmul.f32 %v7696, %v7708
      %v7737 = vmul.f32 %v7697, %v7708
      %v7738 = vmul.f32 %v7698, %v7708
      %v7739 = vmul.f32 %v7699, %v7708
      %v7740 = vmul.f32 %v7700, %v7708
      %v7741 = vmul.f32 %v7701, %v7708
      %v7742 = vadd.f32 %v7638, %v7710
      %v7743 = vadd.f32 %v7639, %v7711
      %v7744 = vadd.f32 %v7640, %v7712
      %v7745 = vadd.f32 %v7641, %v7713
      %v7746 = vadd.f32 %v7642, %v7714
      %v7747 = vadd.f32 %v7643, %v7715
      %v7748 = vadd.f32 %v7644, %v7716
      %v7749 = vadd.f32 %v7645, %v7717
      %v7750 = vadd.f32 %v7646, %v7718
      %v7751 = vadd.f32 %v7647, %v7719
      %v7752 = vadd.f32 %v7648, %v7720
      %v7753 = vadd.f32 %v7649, %v7721
      %v7754 = vadd.f32 %v7650, %v7722
      %v7755 = vadd.f32 %v7651, %v7723
      %v7756 = vadd.f32 %v7652, %v7724
      %v7757 = vadd.f32 %v7653, %v7725
      %v7758 = vadd.f32 %v7654, %v7726
      %v7759 = vadd.f32 %v7655, %v7727
      %v7760 = vadd.f32 %v7656, %v7728
      %v7761 = vadd.f32 %v7657, %v7729
      %v7762 = vadd.f32 %v7658, %v7730
      %v7763 = vadd.f32 %v7659, %v7731
      %v7764 = vadd.f32 %v7660, %v7732
      %v7765 = vadd.f32 %v7661, %v7733
      %v7766 = vadd.f32 %v7662, %v7734
      %v7767 = vadd.f32 %v7663, %v7735
      %v7768 = vadd.f32 %v7664, %v7736
      %v7769 = vadd.f32 %v7665, %v7737
      %v7770 = vadd.f32 %v7666, %v7738
      %v7771 = vadd.f32 %v7667, %v7739
      %v7772 = vadd.f32 %v7668, %v7740
      %v7773 = vadd.f32 %v7669, %v7741
      %v7774 = vld [vmem:[#allocation3 + $0x9] sm:$0xff]
      %v7775 = vld [vmem:[#allocation3 + $0x11] sm:$0xff]
      %v7776 = vld [vmem:[#allocation3 + $0x19] sm:$0xff]
      %v7777 = vld [vmem:[#allocation3 + $0x21] sm:$0xff]
      %v7778 = vld [vmem:[#allocation3 + $0x29] sm:$0xff]
      %v7779 = vld [vmem:[#allocation3 + $0x31] sm:$0xff]
      %v7780 = vld [vmem:[#allocation3 + $0x39] sm:$0xff]
      %v7781 = vld [vmem:[#allocation3 + $0x41] sm:$0xff]
      %v7782 = vld [vmem:[#allocation3 + $0x49] sm:$0xff]
      %v7783 = vld [vmem:[#allocation3 + $0x51] sm:$0xff]
      %v7784 = vld [vmem:[#allocation3 + $0x59] sm:$0xff]
      %v7785 = vld [vmem:[#allocation3 + $0x61] sm:$0xff]
      %v7786 = vld [vmem:[#allocation3 + $0x69] sm:$0xff]
      %v7787 = vld [vmem:[#allocation3 + $0x71] sm:$0xff]
      %v7788 = vld [vmem:[#allocation3 + $0x79] sm:$0xff]
      %v7789 = vld [vmem:[#allocation3 + $0x81] sm:$0xff]
      %v7790 = vld [vmem:[#allocation3 + $0x89] sm:$0xff]
      %v7791 = vld [vmem:[#allocation3 + $0x91] sm:$0xff]
      %v7792 = vld [vmem:[#allocation3 + $0x99] sm:$0xff]
      %v7793 = vld [vmem:[#allocation3 + $0xa1] sm:$0xff]
      %v7794 = vld [vmem:[#allocation3 + $0xa9] sm:$0xff]
      %v7795 = vld [vmem:[#allocation3 + $0xb1] sm:$0xff]
      %v7796 = vld [vmem:[#allocation3 + $0xb9] sm:$0xff]
      %v7797 = vld [vmem:[#allocation3 + $0xc1] sm:$0xff]
      %v7798 = vld [vmem:[#allocation3 + $0xc9] sm:$0xff]
      %v7799 = vld [vmem:[#allocation3 + $0xd1] sm:$0xff]
      %v7800 = vld [vmem:[#allocation3 + $0xd9] sm:$0xff]
      %v7801 = vld [vmem:[#allocation3 + $0xe1] sm:$0xff]
      %v7802 = vld [vmem:[#allocation3 + $0xe9] sm:$0xff]
      %v7803 = vld [vmem:[#allocation3 + $0xf1] sm:$0xff]
      %v7804 = vld [vmem:[#allocation3 + $0xf9] sm:$0xff]
      %v7805 = vld [vmem:[#allocation3 + $0x101] sm:$0xff]
      %v7806 = vmul.f32 %v7774, %v901
      %v7807 = vmul.f32 %v7775, %v902
      %v7808 = vmul.f32 %v7776, %v903
      %v7809 = vmul.f32 %v7777, %v904
      %v7810 = vmul.f32 %v7778, %v905
      %v7811 = vmul.f32 %v7779, %v906
      %v7812 = vmul.f32 %v7780, %v907
      %v7813 = vmul.f32 %v7781, %v908
      %v7814 = vmul.f32 %v7782, %v909
      %v7815 = vmul.f32 %v7783, %v910
      %v7816 = vmul.f32 %v7784, %v911
      %v7817 = vmul.f32 %v7785, %v912
      %v7818 = vmul.f32 %v7786, %v913
      %v7819 = vmul.f32 %v7787, %v914
      %v7820 = vmul.f32 %v7788, %v915
      %v7821 = vmul.f32 %v7789, %v916
      %v7822 = vmul.f32 %v7790, %v917
      %v7823 = vmul.f32 %v7791, %v918
      %v7824 = vmul.f32 %v7792, %v919
      %v7825 = vmul.f32 %v7793, %v920
      %v7826 = vmul.f32 %v7794, %v921
      %v7827 = vmul.f32 %v7795, %v922
      %v7828 = vmul.f32 %v7796, %v923
      %v7829 = vmul.f32 %v7797, %v924
      %v7830 = vmul.f32 %v7798, %v925
      %v7831 = vmul.f32 %v7799, %v926
      %v7832 = vmul.f32 %v7800, %v927
      %v7833 = vmul.f32 %v7801, %v928
      %v7834 = vmul.f32 %v7802, %v929
      %v7835 = vmul.f32 %v7803, %v930
      %v7836 = vmul.f32 %v7804, %v931
      %v7837 = vmul.f32 %v7805, %v932
      %s7838 = scalar_lea.vmem %s7, 2
      %v7839 = vld [vmem:[%s7838] sm:$0x1]
      %v7841 = vlaneseq
      %v7842 = vshrl.u32 %v7841, 7
      %v7843 = vsub.s32 0, %v7842
      %v7844 = vrot.slane %v7839, %v7843
      %v7846 = vmul.f32 %v7806, %v7844
      %v7847 = vmul.f32 %v7807, %v7844
      %v7848 = vmul.f32 %v7808, %v7844
      %v7849 = vmul.f32 %v7809, %v7844
      %v7850 = vmul.f32 %v7810, %v7844
      %v7851 = vmul.f32 %v7811, %v7844
      %v7852 = vmul.f32 %v7812, %v7844
      %v7853 = vmul.f32 %v7813, %v7844
      %v7854 = vmul.f32 %v7814, %v7844
      %v7855 = vmul.f32 %v7815, %v7844
      %v7856 = vmul.f32 %v7816, %v7844
      %v7857 = vmul.f32 %v7817, %v7844
      %v7858 = vmul.f32 %v7818, %v7844
      %v7859 = vmul.f32 %v7819, %v7844
      %v7860 = vmul.f32 %v7820, %v7844
      %v7861 = vmul.f32 %v7821, %v7844
      %v7862 = vmul.f32 %v7822, %v7844
      %v7863 = vmul.f32 %v7823, %v7844
      %v7864 = vmul.f32 %v7824, %v7844
      %v7865 = vmul.f32 %v7825, %v7844
      %v7866 = vmul.f32 %v7826, %v7844
      %v7867 = vmul.f32 %v7827, %v7844
      %v7868 = vmul.f32 %v7828, %v7844
      %v7869 = vmul.f32 %v7829, %v7844
      %v7870 = vmul.f32 %v7830, %v7844
      %v7871 = vmul.f32 %v7831, %v7844
      %v7872 = vmul.f32 %v7832, %v7844
      %v7873 = vmul.f32 %v7833, %v7844
      %v7874 = vmul.f32 %v7834, %v7844
      %v7875 = vmul.f32 %v7835, %v7844
      %v7876 = vmul.f32 %v7836, %v7844
      %v7877 = vmul.f32 %v7837, %v7844
      %v7878 = vadd.f32 %v7742, %v7846
      %v7879 = vadd.f32 %v7743, %v7847
      %v7880 = vadd.f32 %v7744, %v7848
      %v7881 = vadd.f32 %v7745, %v7849
      %v7882 = vadd.f32 %v7746, %v7850
      %v7883 = vadd.f32 %v7747, %v7851
      %v7884 = vadd.f32 %v7748, %v7852
      %v7885 = vadd.f32 %v7749, %v7853
      %v7886 = vadd.f32 %v7750, %v7854
      %v7887 = vadd.f32 %v7751, %v7855
      %v7888 = vadd.f32 %v7752, %v7856
      %v7889 = vadd.f32 %v7753, %v7857
      %v7890 = vadd.f32 %v7754, %v7858
      %v7891 = vadd.f32 %v7755, %v7859
      %v7892 = vadd.f32 %v7756, %v7860
      %v7893 = vadd.f32 %v7757, %v7861
      %v7894 = vadd.f32 %v7758, %v7862
      %v7895 = vadd.f32 %v7759, %v7863
      %v7896 = vadd.f32 %v7760, %v7864
      %v7897 = vadd.f32 %v7761, %v7865
      %v7898 = vadd.f32 %v7762, %v7866
      %v7899 = vadd.f32 %v7763, %v7867
      %v7900 = vadd.f32 %v7764, %v7868
      %v7901 = vadd.f32 %v7765, %v7869
      %v7902 = vadd.f32 %v7766, %v7870
      %v7903 = vadd.f32 %v7767, %v7871
      %v7904 = vadd.f32 %v7768, %v7872
      %v7905 = vadd.f32 %v7769, %v7873
      %v7906 = vadd.f32 %v7770, %v7874
      %v7907 = vadd.f32 %v7771, %v7875
      %v7908 = vadd.f32 %v7772, %v7876
      %v7909 = vadd.f32 %v7773, %v7877
      %v7910 = vld [vmem:[#allocation3 + $0x107] sm:$0xff]
      %v7911 = vld [vmem:[#allocation3 + $0x10f] sm:$0xff]
      %v7912 = vmul.f32 %v7537, %v805
      %v7913 = vmul.f32 %v7538, %v806
      %v7914 = vmul.f32 %v7539, %v807
      %v7915 = vmul.f32 %v7540, %v808
      %v7916 = vmul.f32 %v7541, %v809
      %v7917 = vmul.f32 %v7542, %v810
      %v7918 = vmul.f32 %v7543, %v811
      %v7919 = vmul.f32 %v7544, %v812
      %v7920 = vmul.f32 %v7545, %v813
      %v7921 = vmul.f32 %v7546, %v814
      %v7922 = vmul.f32 %v7547, %v815
      %v7923 = vmul.f32 %v7548, %v816
      %v7924 = vmul.f32 %v7549, %v817
      %v7925 = vmul.f32 %v7550, %v818
      %v7926 = vmul.f32 %v7551, %v819
      %v7927 = vmul.f32 %v7552, %v820
      %v7928 = vmul.f32 %v7553, %v821
      %v7929 = vmul.f32 %v7554, %v822
      %v7930 = vmul.f32 %v7555, %v823
      %v7931 = vmul.f32 %v7556, %v824
      %v7932 = vmul.f32 %v7557, %v825
      %v7933 = vmul.f32 %v7558, %v826
      %v7934 = vmul.f32 %v7559, %v827
      %v7935 = vmul.f32 %v7560, %v828
      %v7936 = vmul.f32 %v7561, %v829
      %v7937 = vmul.f32 %v7562, %v830
      %v7938 = vmul.f32 %v7563, %v831
      %v7939 = vmul.f32 %v7564, %v832
      %v7940 = vmul.f32 %v7565, %v833
      %v7941 = vmul.f32 %v7566, %v834
      %v7942 = vmul.f32 %v7910, %v835
      %v7943 = vmul.f32 %v7911, %v836
      %s7944 = scalar_lea.vmem %s7, 3
      %v7945 = vld [vmem:[%s7944] sm:$0x1]
      %v7947 = vlaneseq
      %v7948 = vshrl.u32 %v7947, 7
      %v7949 = vsub.s32 0, %v7948
      %v7950 = vrot.slane %v7945, %v7949
      %v7952 = vmul.f32 %v7912, %v7950
      %v7953 = vmul.f32 %v7913, %v7950
      %v7954 = vmul.f32 %v7914, %v7950
      %v7955 = vmul.f32 %v7915, %v7950
      %v7956 = vmul.f32 %v7916, %v7950
      %v7957 = vmul.f32 %v7917, %v7950
      %v7958 = vmul.f32 %v7918, %v7950
      %v7959 = vmul.f32 %v7919, %v7950
      %v7960 = vmul.f32 %v7920, %v7950
      %v7961 = vmul.f32 %v7921, %v7950
      %v7962 = vmul.f32 %v7922, %v7950
      %v7963 = vmul.f32 %v7923, %v7950
      %v7964 = vmul.f32 %v7924, %v7950
      %v7965 = vmul.f32 %v7925, %v7950
      %v7966 = vmul.f32 %v7926, %v7950
      %v7967 = vmul.f32 %v7927, %v7950
      %v7968 = vmul.f32 %v7928, %v7950
      %v7969 = vmul.f32 %v7929, %v7950
      %v7970 = vmul.f32 %v7930, %v7950
      %v7971 = vmul.f32 %v7931, %v7950
      %v7972 = vmul.f32 %v7932, %v7950
      %v7973 = vmul.f32 %v7933, %v7950
      %v7974 = vmul.f32 %v7934, %v7950
      %v7975 = vmul.f32 %v7935, %v7950
      %v7976 = vmul.f32 %v7936, %v7950
      %v7977 = vmul.f32 %v7937, %v7950
      %v7978 = vmul.f32 %v7938, %v7950
      %v7979 = vmul.f32 %v7939, %v7950
      %v7980 = vmul.f32 %v7940, %v7950
      %v7981 = vmul.f32 %v7941, %v7950
      %v7982 = vmul.f32 %v7942, %v7950
      %v7983 = vmul.f32 %v7943, %v7950
      %v7984 = vadd.f32 %v7878, %v7952
      %v7985 = vadd.f32 %v7879, %v7953
      %v7986 = vadd.f32 %v7880, %v7954
      %v7987 = vadd.f32 %v7881, %v7955
      %v7988 = vadd.f32 %v7882, %v7956
      %v7989 = vadd.f32 %v7883, %v7957
      %v7990 = vadd.f32 %v7884, %v7958
      %v7991 = vadd.f32 %v7885, %v7959
      %v7992 = vadd.f32 %v7886, %v7960
      %v7993 = vadd.f32 %v7887, %v7961
      %v7994 = vadd.f32 %v7888, %v7962
      %v7995 = vadd.f32 %v7889, %v7963
      %v7996 = vadd.f32 %v7890, %v7964
      %v7997 = vadd.f32 %v7891, %v7965
      %v7998 = vadd.f32 %v7892, %v7966
      %v7999 = vadd.f32 %v7893, %v7967
      %v8000 = vadd.f32 %v7894, %v7968
      %v8001 = vadd.f32 %v7895, %v7969
      %v8002 = vadd.f32 %v7896, %v7970
      %v8003 = vadd.f32 %v7897, %v7971
      %v8004 = vadd.f32 %v7898, %v7972
      %v8005 = vadd.f32 %v7899, %v7973
      %v8006 = vadd.f32 %v7900, %v7974
      %v8007 = vadd.f32 %v7901, %v7975
      %v8008 = vadd.f32 %v7902, %v7976
      %v8009 = vadd.f32 %v7903, %v7977
      %v8010 = vadd.f32 %v7904, %v7978
      %v8011 = vadd.f32 %v7905, %v7979
      %v8012 = vadd.f32 %v7906, %v7980
      %v8013 = vadd.f32 %v7907, %v7981
      %v8014 = vadd.f32 %v7908, %v7982
      %v8015 = vadd.f32 %v7909, %v7983
      %v8016 = vld [vmem:[#allocation3 + $0x108] sm:$0xff]
      %v8017 = vld [vmem:[#allocation3 + $0x110] sm:$0xff]
      %s8018 = scalar_lea.vmem %s7, 4
      %v8019 = vld [vmem:[%s8018] sm:$0x1]
      %v8021 = vlaneseq
      %v8022 = vshrl.u32 %v8021, 7
      %v8023 = vsub.s32 0, %v8022
      %v8024 = vrot.slane %v8019, %v8023
      %v8026 = vmul.f32 %v7672, %v8024
      %v8027 = vmul.f32 %v7673, %v8024
      %v8028 = vmul.f32 %v7674, %v8024
      %v8029 = vmul.f32 %v7675, %v8024
      %v8030 = vmul.f32 %v7676, %v8024
      %v8031 = vmul.f32 %v7677, %v8024
      %v8032 = vmul.f32 %v7678, %v8024
      %v8033 = vmul.f32 %v7679, %v8024
      %v8034 = vmul.f32 %v7680, %v8024
      %v8035 = vmul.f32 %v7681, %v8024
      %v8036 = vmul.f32 %v7682, %v8024
      %v8037 = vmul.f32 %v7683, %v8024
      %v8038 = vmul.f32 %v7684, %v8024
      %v8039 = vmul.f32 %v7685, %v8024
      %v8040 = vmul.f32 %v7686, %v8024
      %v8041 = vmul.f32 %v7687, %v8024
      %v8042 = vmul.f32 %v7688, %v8024
      %v8043 = vmul.f32 %v7689, %v8024
      %v8044 = vmul.f32 %v7690, %v8024
      %v8045 = vmul.f32 %v7691, %v8024
      %v8046 = vmul.f32 %v7692, %v8024
      %v8047 = vmul.f32 %v7693, %v8024
      %v8048 = vmul.f32 %v7694, %v8024
      %v8049 = vmul.f32 %v7695, %v8024
      %v8050 = vmul.f32 %v7696, %v8024
      %v8051 = vmul.f32 %v7697, %v8024
      %v8052 = vmul.f32 %v7698, %v8024
      %v8053 = vmul.f32 %v7699, %v8024
      %v8054 = vmul.f32 %v7700, %v8024
      %v8055 = vmul.f32 %v7701, %v8024
      %v8056 = vmul.f32 %v8016, %v8024
      %v8057 = vmul.f32 %v8017, %v8024
      %v8058 = vadd.f32 %v7984, %v8026
      %v8059 = vadd.f32 %v7985, %v8027
      %v8060 = vadd.f32 %v7986, %v8028
      %v8061 = vadd.f32 %v7987, %v8029
      %v8062 = vadd.f32 %v7988, %v8030
      %v8063 = vadd.f32 %v7989, %v8031
      %v8064 = vadd.f32 %v7990, %v8032
      %v8065 = vadd.f32 %v7991, %v8033
      %v8066 = vadd.f32 %v7992, %v8034
      %v8067 = vadd.f32 %v7993, %v8035
      %v8068 = vadd.f32 %v7994, %v8036
      %v8069 = vadd.f32 %v7995, %v8037
      %v8070 = vadd.f32 %v7996, %v8038
      %v8071 = vadd.f32 %v7997, %v8039
      %v8072 = vadd.f32 %v7998, %v8040
      %v8073 = vadd.f32 %v7999, %v8041
      %v8074 = vadd.f32 %v8000, %v8042
      %v8075 = vadd.f32 %v8001, %v8043
      %v8076 = vadd.f32 %v8002, %v8044
      %v8077 = vadd.f32 %v8003, %v8045
      %v8078 = vadd.f32 %v8004, %v8046
      %v8079 = vadd.f32 %v8005, %v8047
      %v8080 = vadd.f32 %v8006, %v8048
      %v8081 = vadd.f32 %v8007, %v8049
      %v8082 = vadd.f32 %v8008, %v8050
      %v8083 = vadd.f32 %v8009, %v8051
      %v8084 = vadd.f32 %v8010, %v8052
      %v8085 = vadd.f32 %v8011, %v8053
      %v8086 = vadd.f32 %v8012, %v8054
      %v8087 = vadd.f32 %v8013, %v8055
      %v8088 = vadd.f32 %v8014, %v8056
      %v8089 = vadd.f32 %v8015, %v8057
      %v8090 = vld [vmem:[#allocation3 + $0x109] sm:$0xff]
      %v8091 = vld [vmem:[#allocation3 + $0x111] sm:$0xff]
      %v8092 = vmul.f32 %v7776, %v901
      %v8093 = vmul.f32 %v7777, %v902
      %v8094 = vmul.f32 %v7778, %v903
      %v8095 = vmul.f32 %v7779, %v904
      %v8096 = vmul.f32 %v7780, %v905
      %v8097 = vmul.f32 %v7781, %v906
      %v8098 = vmul.f32 %v7782, %v907
      %v8099 = vmul.f32 %v7783, %v908
      %v8100 = vmul.f32 %v7784, %v909
      %v8101 = vmul.f32 %v7785, %v910
      %v8102 = vmul.f32 %v7786, %v911
      %v8103 = vmul.f32 %v7787, %v912
      %v8104 = vmul.f32 %v7788, %v913
      %v8105 = vmul.f32 %v7789, %v914
      %v8106 = vmul.f32 %v7790, %v915
      %v8107 = vmul.f32 %v7791, %v916
      %v8108 = vmul.f32 %v7792, %v917
      %v8109 = vmul.f32 %v7793, %v918
      %v8110 = vmul.f32 %v7794, %v919
      %v8111 = vmul.f32 %v7795, %v920
      %v8112 = vmul.f32 %v7796, %v921
      %v8113 = vmul.f32 %v7797, %v922
      %v8114 = vmul.f32 %v7798, %v923
      %v8115 = vmul.f32 %v7799, %v924
      %v8116 = vmul.f32 %v7800, %v925
      %v8117 = vmul.f32 %v7801, %v926
      %v8118 = vmul.f32 %v7802, %v927
      %v8119 = vmul.f32 %v7803, %v928
      %v8120 = vmul.f32 %v7804, %v929
      %v8121 = vmul.f32 %v7805, %v930
      %v8122 = vmul.f32 %v8090, %v931
      %v8123 = vmul.f32 %v8091, %v932
      %s8124 = scalar_lea.vmem %s7, 5
      %v8125 = vld [vmem:[%s8124] sm:$0x1]
      %v8127 = vlaneseq
      %v8128 = vshrl.u32 %v8127, 7
      %v8129 = vsub.s32 0, %v8128
      %v8130 = vrot.slane %v8125, %v8129
      %v8132 = vmul.f32 %v8092, %v8130
      %v8133 = vmul.f32 %v8093, %v8130
      %v8134 = vmul.f32 %v8094, %v8130
      %v8135 = vmul.f32 %v8095, %v8130
      %v8136 = vmul.f32 %v8096, %v8130
      %v8137 = vmul.f32 %v8097, %v8130
      %v8138 = vmul.f32 %v8098, %v8130
      %v8139 = vmul.f32 %v8099, %v8130
      %v8140 = vmul.f32 %v8100, %v8130
      %v8141 = vmul.f32 %v8101, %v8130
      %v8142 = vmul.f32 %v8102, %v8130
      %v8143 = vmul.f32 %v8103, %v8130
      %v8144 = vmul.f32 %v8104, %v8130
      %v8145 = vmul.f32 %v8105, %v8130
      %v8146 = vmul.f32 %v8106, %v8130
      %v8147 = vmul.f32 %v8107, %v8130
      %v8148 = vmul.f32 %v8108, %v8130
      %v8149 = vmul.f32 %v8109, %v8130
      %v8150 = vmul.f32 %v8110, %v8130
      %v8151 = vmul.f32 %v8111, %v8130
      %v8152 = vmul.f32 %v8112, %v8130
      %v8153 = vmul.f32 %v8113, %v8130
      %v8154 = vmul.f32 %v8114, %v8130
      %v8155 = vmul.f32 %v8115, %v8130
      %v8156 = vmul.f32 %v8116, %v8130
      %v8157 = vmul.f32 %v8117, %v8130
      %v8158 = vmul.f32 %v8118, %v8130
      %v8159 = vmul.f32 %v8119, %v8130
      %v8160 = vmul.f32 %v8120, %v8130
      %v8161 = vmul.f32 %v8121, %v8130
      %v8162 = vmul.f32 %v8122, %v8130
      %v8163 = vmul.f32 %v8123, %v8130
      %v8164 = vadd.f32 %v8058, %v8132
      %v8165 = vadd.f32 %v8059, %v8133
      %v8166 = vadd.f32 %v8060, %v8134
      %v8167 = vadd.f32 %v8061, %v8135
      %v8168 = vadd.f32 %v8062, %v8136
      %v8169 = vadd.f32 %v8063, %v8137
      %v8170 = vadd.f32 %v8064, %v8138
      %v8171 = vadd.f32 %v8065, %v8139
      %v8172 = vadd.f32 %v8066, %v8140
      %v8173 = vadd.f32 %v8067, %v8141
      %v8174 = vadd.f32 %v8068, %v8142
      %v8175 = vadd.f32 %v8069, %v8143
      %v8176 = vadd.f32 %v8070, %v8144
      %v8177 = vadd.f32 %v8071, %v8145
      %v8178 = vadd.f32 %v8072, %v8146
      %v8179 = vadd.f32 %v8073, %v8147
      %v8180 = vadd.f32 %v8074, %v8148
      %v8181 = vadd.f32 %v8075, %v8149
      %v8182 = vadd.f32 %v8076, %v8150
      %v8183 = vadd.f32 %v8077, %v8151
      %v8184 = vadd.f32 %v8078, %v8152
      %v8185 = vadd.f32 %v8079, %v8153
      %v8186 = vadd.f32 %v8080, %v8154
      %v8187 = vadd.f32 %v8081, %v8155
      %v8188 = vadd.f32 %v8082, %v8156
      %v8189 = vadd.f32 %v8083, %v8157
      %v8190 = vadd.f32 %v8084, %v8158
      %v8191 = vadd.f32 %v8085, %v8159
      %v8192 = vadd.f32 %v8086, %v8160
      %v8193 = vadd.f32 %v8087, %v8161
      %v8194 = vadd.f32 %v8088, %v8162
      %v8195 = vadd.f32 %v8089, %v8163
      %v8196 = vld [vmem:[#allocation3 + $0x117] sm:$0xff]
      %v8197 = vld [vmem:[#allocation3 + $0x11f] sm:$0xff]
      %v8198 = vmul.f32 %v7539, %v805
      %v8199 = vmul.f32 %v7540, %v806
      %v8200 = vmul.f32 %v7541, %v807
      %v8201 = vmul.f32 %v7542, %v808
      %v8202 = vmul.f32 %v7543, %v809
      %v8203 = vmul.f32 %v7544, %v810
      %v8204 = vmul.f32 %v7545, %v811
      %v8205 = vmul.f32 %v7546, %v812
      %v8206 = vmul.f32 %v7547, %v813
      %v8207 = vmul.f32 %v7548, %v814
      %v8208 = vmul.f32 %v7549, %v815
      %v8209 = vmul.f32 %v7550, %v816
      %v8210 = vmul.f32 %v7551, %v817
      %v8211 = vmul.f32 %v7552, %v818
      %v8212 = vmul.f32 %v7553, %v819
      %v8213 = vmul.f32 %v7554, %v820
      %v8214 = vmul.f32 %v7555, %v821
      %v8215 = vmul.f32 %v7556, %v822
      %v8216 = vmul.f32 %v7557, %v823
      %v8217 = vmul.f32 %v7558, %v824
      %v8218 = vmul.f32 %v7559, %v825
      %v8219 = vmul.f32 %v7560, %v826
      %v8220 = vmul.f32 %v7561, %v827
      %v8221 = vmul.f32 %v7562, %v828
      %v8222 = vmul.f32 %v7563, %v829
      %v8223 = vmul.f32 %v7564, %v830
      %v8224 = vmul.f32 %v7565, %v831
      %v8225 = vmul.f32 %v7566, %v832
      %v8226 = vmul.f32 %v7910, %v833
      %v8227 = vmul.f32 %v7911, %v834
      %v8228 = vmul.f32 %v8196, %v835
      %v8229 = vmul.f32 %v8197, %v836
      %s8230 = scalar_lea.vmem %s7, 6
      %v8231 = vld [vmem:[%s8230] sm:$0x1]
      %v8233 = vlaneseq
      %v8234 = vshrl.u32 %v8233, 7
      %v8235 = vsub.s32 0, %v8234
      %v8236 = vrot.slane %v8231, %v8235
      %v8238 = vmul.f32 %v8198, %v8236
      %v8239 = vmul.f32 %v8199, %v8236
      %v8240 = vmul.f32 %v8200, %v8236
      %v8241 = vmul.f32 %v8201, %v8236
      %v8242 = vmul.f32 %v8202, %v8236
      %v8243 = vmul.f32 %v8203, %v8236
      %v8244 = vmul.f32 %v8204, %v8236
      %v8245 = vmul.f32 %v8205, %v8236
      %v8246 = vmul.f32 %v8206, %v8236
      %v8247 = vmul.f32 %v8207, %v8236
      %v8248 = vmul.f32 %v8208, %v8236
      %v8249 = vmul.f32 %v8209, %v8236
      %v8250 = vmul.f32 %v8210, %v8236
      %v8251 = vmul.f32 %v8211, %v8236
      %v8252 = vmul.f32 %v8212, %v8236
      %v8253 = vmul.f32 %v8213, %v8236
      %v8254 = vmul.f32 %v8214, %v8236
      %v8255 = vmul.f32 %v8215, %v8236
      %v8256 = vmul.f32 %v8216, %v8236
      %v8257 = vmul.f32 %v8217, %v8236
      %v8258 = vmul.f32 %v8218, %v8236
      %v8259 = vmul.f32 %v8219, %v8236
      %v8260 = vmul.f32 %v8220, %v8236
      %v8261 = vmul.f32 %v8221, %v8236
      %v8262 = vmul.f32 %v8222, %v8236
      %v8263 = vmul.f32 %v8223, %v8236
      %v8264 = vmul.f32 %v8224, %v8236
      %v8265 = vmul.f32 %v8225, %v8236
      %v8266 = vmul.f32 %v8226, %v8236
      %v8267 = vmul.f32 %v8227, %v8236
      %v8268 = vmul.f32 %v8228, %v8236
      %v8269 = vmul.f32 %v8229, %v8236
      %v8270 = vadd.f32 %v8164, %v8238
      %v8271 = vadd.f32 %v8165, %v8239
      %v8272 = vadd.f32 %v8166, %v8240
      %v8273 = vadd.f32 %v8167, %v8241
      %v8274 = vadd.f32 %v8168, %v8242
      %v8275 = vadd.f32 %v8169, %v8243
      %v8276 = vadd.f32 %v8170, %v8244
      %v8277 = vadd.f32 %v8171, %v8245
      %v8278 = vadd.f32 %v8172, %v8246
      %v8279 = vadd.f32 %v8173, %v8247
      %v8280 = vadd.f32 %v8174, %v8248
      %v8281 = vadd.f32 %v8175, %v8249
      %v8282 = vadd.f32 %v8176, %v8250
      %v8283 = vadd.f32 %v8177, %v8251
      %v8284 = vadd.f32 %v8178, %v8252
      %v8285 = vadd.f32 %v8179, %v8253
      %v8286 = vadd.f32 %v8180, %v8254
      %v8287 = vadd.f32 %v8181, %v8255
      %v8288 = vadd.f32 %v8182, %v8256
      %v8289 = vadd.f32 %v8183, %v8257
      %v8290 = vadd.f32 %v8184, %v8258
      %v8291 = vadd.f32 %v8185, %v8259
      %v8292 = vadd.f32 %v8186, %v8260
      %v8293 = vadd.f32 %v8187, %v8261
      %v8294 = vadd.f32 %v8188, %v8262
      %v8295 = vadd.f32 %v8189, %v8263
      %v8296 = vadd.f32 %v8190, %v8264
      %v8297 = vadd.f32 %v8191, %v8265
      %v8298 = vadd.f32 %v8192, %v8266
      %v8299 = vadd.f32 %v8193, %v8267
      %v8300 = vadd.f32 %v8194, %v8268
      %v8301 = vadd.f32 %v8195, %v8269
      %v8302 = vld [vmem:[#allocation3 + $0x118] sm:$0xff]
      %v8303 = vld [vmem:[#allocation3 + $0x120] sm:$0xff]
      %s8304 = scalar_lea.vmem %s7, 7
      %v8305 = vld [vmem:[%s8304] sm:$0x1]
      %v8307 = vlaneseq
      %v8308 = vshrl.u32 %v8307, 7
      %v8309 = vsub.s32 0, %v8308
      %v8310 = vrot.slane %v8305, %v8309
      %v8312 = vmul.f32 %v7674, %v8310
      %v8313 = vmul.f32 %v7675, %v8310
      %v8314 = vmul.f32 %v7676, %v8310
      %v8315 = vmul.f32 %v7677, %v8310
      %v8316 = vmul.f32 %v7678, %v8310
      %v8317 = vmul.f32 %v7679, %v8310
      %v8318 = vmul.f32 %v7680, %v8310
      %v8319 = vmul.f32 %v7681, %v8310
      %v8320 = vmul.f32 %v7682, %v8310
      %v8321 = vmul.f32 %v7683, %v8310
      %v8322 = vmul.f32 %v7684, %v8310
      %v8323 = vmul.f32 %v7685, %v8310
      %v8324 = vmul.f32 %v7686, %v8310
      %v8325 = vmul.f32 %v7687, %v8310
      %v8326 = vmul.f32 %v7688, %v8310
      %v8327 = vmul.f32 %v7689, %v8310
      %v8328 = vmul.f32 %v7690, %v8310
      %v8329 = vmul.f32 %v7691, %v8310
      %v8330 = vmul.f32 %v7692, %v8310
      %v8331 = vmul.f32 %v7693, %v8310
      %v8332 = vmul.f32 %v7694, %v8310
      %v8333 = vmul.f32 %v7695, %v8310
      %v8334 = vmul.f32 %v7696, %v8310
      %v8335 = vmul.f32 %v7697, %v8310
      %v8336 = vmul.f32 %v7698, %v8310
      %v8337 = vmul.f32 %v7699, %v8310
      %v8338 = vmul.f32 %v7700, %v8310
      %v8339 = vmul.f32 %v7701, %v8310
      %v8340 = vmul.f32 %v8016, %v8310
      %v8341 = vmul.f32 %v8017, %v8310
      %v8342 = vmul.f32 %v8302, %v8310
      %v8343 = vmul.f32 %v8303, %v8310
      %v8344 = vadd.f32 %v8270, %v8312
      %v8345 = vadd.f32 %v8271, %v8313
      %v8346 = vadd.f32 %v8272, %v8314
      %v8347 = vadd.f32 %v8273, %v8315
      %v8348 = vadd.f32 %v8274, %v8316
      %v8349 = vadd.f32 %v8275, %v8317
      %v8350 = vadd.f32 %v8276, %v8318
      %v8351 = vadd.f32 %v8277, %v8319
      %v8352 = vadd.f32 %v8278, %v8320
      %v8353 = vadd.f32 %v8279, %v8321
      %v8354 = vadd.f32 %v8280, %v8322
      %v8355 = vadd.f32 %v8281, %v8323
      %v8356 = vadd.f32 %v8282, %v8324
      %v8357 = vadd.f32 %v8283, %v8325
      %v8358 = vadd.f32 %v8284, %v8326
      %v8359 = vadd.f32 %v8285, %v8327
      %v8360 = vadd.f32 %v8286, %v8328
      %v8361 = vadd.f32 %v8287, %v8329
      %v8362 = vadd.f32 %v8288, %v8330
      %v8363 = vadd.f32 %v8289, %v8331
      %v8364 = vadd.f32 %v8290, %v8332
      %v8365 = vadd.f32 %v8291, %v8333
      %v8366 = vadd.f32 %v8292, %v8334
      %v8367 = vadd.f32 %v8293, %v8335
      %v8368 = vadd.f32 %v8294, %v8336
      %v8369 = vadd.f32 %v8295, %v8337
      %v8370 = vadd.f32 %v8296, %v8338
      %v8371 = vadd.f32 %v8297, %v8339
      %v8372 = vadd.f32 %v8298, %v8340
      %v8373 = vadd.f32 %v8299, %v8341
      %v8374 = vadd.f32 %v8300, %v8342
      %v8375 = vadd.f32 %v8301, %v8343
      %v8376 = vld [vmem:[#allocation3 + $0x119] sm:$0xff]
      %v8377 = vld [vmem:[#allocation3 + $0x121] sm:$0xff]
      %v8378 = vmul.f32 %v7778, %v901
      %v8379 = vmul.f32 %v7779, %v902
      %v8380 = vmul.f32 %v7780, %v903
      %v8381 = vmul.f32 %v7781, %v904
      %v8382 = vmul.f32 %v7782, %v905
      %v8383 = vmul.f32 %v7783, %v906
      %v8384 = vmul.f32 %v7784, %v907
      %v8385 = vmul.f32 %v7785, %v908
      %v8386 = vmul.f32 %v7786, %v909
      %v8387 = vmul.f32 %v7787, %v910
      %v8388 = vmul.f32 %v7788, %v911
      %v8389 = vmul.f32 %v7789, %v912
      %v8390 = vmul.f32 %v7790, %v913
      %v8391 = vmul.f32 %v7791, %v914
      %v8392 = vmul.f32 %v7792, %v915
      %v8393 = vmul.f32 %v7793, %v916
      %v8394 = vmul.f32 %v7794, %v917
      %v8395 = vmul.f32 %v7795, %v918
      %v8396 = vmul.f32 %v7796, %v919
      %v8397 = vmul.f32 %v7797, %v920
      %v8398 = vmul.f32 %v7798, %v921
      %v8399 = vmul.f32 %v7799, %v922
      %v8400 = vmul.f32 %v7800, %v923
      %v8401 = vmul.f32 %v7801, %v924
      %v8402 = vmul.f32 %v7802, %v925
      %v8403 = vmul.f32 %v7803, %v926
      %v8404 = vmul.f32 %v7804, %v927
      %v8405 = vmul.f32 %v7805, %v928
      %v8406 = vmul.f32 %v8090, %v929
      %v8407 = vmul.f32 %v8091, %v930
      %v8408 = vmul.f32 %v8376, %v931
      %v8409 = vmul.f32 %v8377, %v932
      %s8410 = scalar_lea.vmem %s7, 8
      %v8411 = vld [vmem:[%s8410] sm:$0x1]
      %v8413 = vlaneseq
      %v8414 = vshrl.u32 %v8413, 7
      %v8415 = vsub.s32 0, %v8414
      %v8416 = vrot.slane %v8411, %v8415
      %v8418 = vmul.f32 %v8378, %v8416
      %v8419 = vmul.f32 %v8379, %v8416
      %v8420 = vmul.f32 %v8380, %v8416
      %v8421 = vmul.f32 %v8381, %v8416
      %v8422 = vmul.f32 %v8382, %v8416
      %v8423 = vmul.f32 %v8383, %v8416
      %v8424 = vmul.f32 %v8384, %v8416
      %v8425 = vmul.f32 %v8385, %v8416
      %v8426 = vmul.f32 %v8386, %v8416
      %v8427 = vmul.f32 %v8387, %v8416
      %v8428 = vmul.f32 %v8388, %v8416
      %v8429 = vmul.f32 %v8389, %v8416
      %v8430 = vmul.f32 %v8390, %v8416
      %v8431 = vmul.f32 %v8391, %v8416
      %v8432 = vmul.f32 %v8392, %v8416
      %v8433 = vmul.f32 %v8393, %v8416
      %v8434 = vmul.f32 %v8394, %v8416
      %v8435 = vmul.f32 %v8395, %v8416
      %v8436 = vmul.f32 %v8396, %v8416
      %v8437 = vmul.f32 %v8397, %v8416
      %v8438 = vmul.f32 %v8398, %v8416
      %v8439 = vmul.f32 %v8399, %v8416
      %v8440 = vmul.f32 %v8400, %v8416
      %v8441 = vmul.f32 %v8401, %v8416
      %v8442 = vmul.f32 %v8402, %v8416
      %v8443 = vmul.f32 %v8403, %v8416
      %v8444 = vmul.f32 %v8404, %v8416
      %v8445 = vmul.f32 %v8405, %v8416
      %v8446 = vmul.f32 %v8406, %v8416
      %v8447 = vmul.f32 %v8407, %v8416
      %v8448 = vmul.f32 %v8408, %v8416
      %v8449 = vmul.f32 %v8409, %v8416
      %v8450 = vadd.f32 %v8344, %v8418
      %v8451 = vadd.f32 %v8345, %v8419
      %v8452 = vadd.f32 %v8346, %v8420
      %v8453 = vadd.f32 %v8347, %v8421
      %v8454 = vadd.f32 %v8348, %v8422
      %v8455 = vadd.f32 %v8349, %v8423
      %v8456 = vadd.f32 %v8350, %v8424
      %v8457 = vadd.f32 %v8351, %v8425
      %v8458 = vadd.f32 %v8352, %v8426
      %v8459 = vadd.f32 %v8353, %v8427
      %v8460 = vadd.f32 %v8354, %v8428
      %v8461 = vadd.f32 %v8355, %v8429
      %v8462 = vadd.f32 %v8356, %v8430
      %v8463 = vadd.f32 %v8357, %v8431
      %v8464 = vadd.f32 %v8358, %v8432
      %v8465 = vadd.f32 %v8359, %v8433
      %v8466 = vadd.f32 %v8360, %v8434
      %v8467 = vadd.f32 %v8361, %v8435
      %v8468 = vadd.f32 %v8362, %v8436
      %v8469 = vadd.f32 %v8363, %v8437
      %v8470 = vadd.f32 %v8364, %v8438
      %v8471 = vadd.f32 %v8365, %v8439
      %v8472 = vadd.f32 %v8366, %v8440
      %v8473 = vadd.f32 %v8367, %v8441
      %v8474 = vadd.f32 %v8368, %v8442
      %v8475 = vadd.f32 %v8369, %v8443
      %v8476 = vadd.f32 %v8370, %v8444
      %v8477 = vadd.f32 %v8371, %v8445
      %v8478 = vadd.f32 %v8372, %v8446
      %v8479 = vadd.f32 %v8373, %v8447
      %v8480 = vadd.f32 %v8374, %v8448
      %v8481 = vadd.f32 %v8375, %v8449
      %v8482 = vsel %vm317, %v8450, 0.0
      %8483 = vadd.xlane.f32.xlu0 %v8482
      %v8484 = vpop.xlane.xlu0 %8483
      %v8485 = vsel %vm317, %v8451, 0.0
      %8486 = vadd.xlane.f32.xlu0 %v8485
      %v8487 = vpop.xlane.xlu0 %8486
      %v8488 = vsel %vm317, %v8452, 0.0
      %8489 = vadd.xlane.f32.xlu0 %v8488
      %v8490 = vpop.xlane.xlu0 %8489
      %v8491 = vsel %vm317, %v8453, 0.0
      %8492 = vadd.xlane.f32.xlu0 %v8491
      %v8493 = vpop.xlane.xlu0 %8492
      %v8494 = vsel %vm317, %v8454, 0.0
      %8495 = vadd.xlane.f32.xlu0 %v8494
      %v8496 = vpop.xlane.xlu0 %8495
      %v8497 = vsel %vm317, %v8455, 0.0
      %8498 = vadd.xlane.f32.xlu0 %v8497
      %v8499 = vpop.xlane.xlu0 %8498
      %v8500 = vsel %vm317, %v8456, 0.0
      %8501 = vadd.xlane.f32.xlu0 %v8500
      %v8502 = vpop.xlane.xlu0 %8501
      %v8503 = vsel %vm317, %v8457, 0.0
      %8504 = vadd.xlane.f32.xlu0 %v8503
      %v8505 = vpop.xlane.xlu0 %8504
      %v8506 = vsel %vm317, %v8458, 0.0
      %8507 = vadd.xlane.f32.xlu0 %v8506
      %v8508 = vpop.xlane.xlu0 %8507
      %v8509 = vsel %vm317, %v8459, 0.0
      %8510 = vadd.xlane.f32.xlu0 %v8509
      %v8511 = vpop.xlane.xlu0 %8510
      %v8512 = vsel %vm317, %v8460, 0.0
      %8513 = vadd.xlane.f32.xlu0 %v8512
      %v8514 = vpop.xlane.xlu0 %8513
      %v8515 = vsel %vm317, %v8461, 0.0
      %8516 = vadd.xlane.f32.xlu0 %v8515
      %v8517 = vpop.xlane.xlu0 %8516
      %v8518 = vsel %vm317, %v8462, 0.0
      %8519 = vadd.xlane.f32.xlu0 %v8518
      %v8520 = vpop.xlane.xlu0 %8519
      %v8521 = vsel %vm317, %v8463, 0.0
      %8522 = vadd.xlane.f32.xlu0 %v8521
      %v8523 = vpop.xlane.xlu0 %8522
      %v8524 = vsel %vm317, %v8464, 0.0
      %8525 = vadd.xlane.f32.xlu0 %v8524
      %v8526 = vpop.xlane.xlu0 %8525
      %v8527 = vsel %vm317, %v8465, 0.0
      %8528 = vadd.xlane.f32.xlu0 %v8527
      %v8529 = vpop.xlane.xlu0 %8528
      %v8530 = vsel %vm317, %v8466, 0.0
      %8531 = vadd.xlane.f32.xlu0 %v8530
      %v8532 = vpop.xlane.xlu0 %8531
      %v8533 = vsel %vm317, %v8467, 0.0
      %8534 = vadd.xlane.f32.xlu0 %v8533
      %v8535 = vpop.xlane.xlu0 %8534
      %v8536 = vsel %vm317, %v8468, 0.0
      %8537 = vadd.xlane.f32.xlu0 %v8536
      %v8538 = vpop.xlane.xlu0 %8537
      %v8539 = vsel %vm317, %v8469, 0.0
      %8540 = vadd.xlane.f32.xlu0 %v8539
      %v8541 = vpop.xlane.xlu0 %8540
      %v8542 = vsel %vm317, %v8470, 0.0
      %8543 = vadd.xlane.f32.xlu0 %v8542
      %v8544 = vpop.xlane.xlu0 %8543
      %v8545 = vsel %vm317, %v8471, 0.0
      %8546 = vadd.xlane.f32.xlu0 %v8545
      %v8547 = vpop.xlane.xlu0 %8546
      %v8548 = vsel %vm317, %v8472, 0.0
      %8549 = vadd.xlane.f32.xlu0 %v8548
      %v8550 = vpop.xlane.xlu0 %8549
      %v8551 = vsel %vm317, %v8473, 0.0
      %8552 = vadd.xlane.f32.xlu0 %v8551
      %v8553 = vpop.xlane.xlu0 %8552
      %v8554 = vsel %vm317, %v8474, 0.0
      %8555 = vadd.xlane.f32.xlu0 %v8554
      %v8556 = vpop.xlane.xlu0 %8555
      %v8557 = vsel %vm317, %v8475, 0.0
      %8558 = vadd.xlane.f32.xlu0 %v8557
      %v8559 = vpop.xlane.xlu0 %8558
      %v8560 = vsel %vm317, %v8476, 0.0
      %8561 = vadd.xlane.f32.xlu0 %v8560
      %v8562 = vpop.xlane.xlu0 %8561
      %v8563 = vsel %vm317, %v8477, 0.0
      %8564 = vadd.xlane.f32.xlu0 %v8563
      %v8565 = vpop.xlane.xlu0 %8564
      %v8566 = vsel %vm317, %v8478, 0.0
      %8567 = vadd.xlane.f32.xlu0 %v8566
      %v8568 = vpop.xlane.xlu0 %8567
      %v8569 = vsel %vm317, %v8479, 0.0
      %8570 = vadd.xlane.f32.xlu0 %v8569
      %v8571 = vpop.xlane.xlu0 %8570
      %v8572 = vsel %vm317, %v8480, 0.0
      %8573 = vadd.xlane.f32.xlu0 %v8572
      %v8574 = vpop.xlane.xlu0 %8573
      %v8575 = vsel %vm317, %v8481, 0.0
      %8576 = vadd.xlane.f32.xlu0 %v8575
      %v8577 = vpop.xlane.xlu0 %8576
      %v8578 = vxor.u32 %v8484, 2147483648
      %v8579 = vxor.u32 %v8487, 2147483648
      %v8580 = vxor.u32 %v8490, 2147483648
      %v8581 = vxor.u32 %v8493, 2147483648
      %v8582 = vxor.u32 %v8496, 2147483648
      %v8583 = vxor.u32 %v8499, 2147483648
      %v8584 = vxor.u32 %v8502, 2147483648
      %v8585 = vxor.u32 %v8505, 2147483648
      %v8586 = vxor.u32 %v8508, 2147483648
      %v8587 = vxor.u32 %v8511, 2147483648
      %v8588 = vxor.u32 %v8514, 2147483648
      %v8589 = vxor.u32 %v8517, 2147483648
      %v8590 = vxor.u32 %v8520, 2147483648
      %v8591 = vxor.u32 %v8523, 2147483648
      %v8592 = vxor.u32 %v8526, 2147483648
      %v8593 = vxor.u32 %v8529, 2147483648
      %v8594 = vxor.u32 %v8532, 2147483648
      %v8595 = vxor.u32 %v8535, 2147483648
      %v8596 = vxor.u32 %v8538, 2147483648
      %v8597 = vxor.u32 %v8541, 2147483648
      %v8598 = vxor.u32 %v8544, 2147483648
      %v8599 = vxor.u32 %v8547, 2147483648
      %v8600 = vxor.u32 %v8550, 2147483648
      %v8601 = vxor.u32 %v8553, 2147483648
      %v8602 = vxor.u32 %v8556, 2147483648
      %v8603 = vxor.u32 %v8559, 2147483648
      %v8604 = vxor.u32 %v8562, 2147483648
      %v8605 = vxor.u32 %v8565, 2147483648
      %v8606 = vxor.u32 %v8568, 2147483648
      %v8607 = vxor.u32 %v8571, 2147483648
      %v8608 = vxor.u32 %v8574, 2147483648
      %v8609 = vxor.u32 %v8577, 2147483648
      %v8610 = vmul.f32 %v8578, 1.442695
      %v8611 = vpow.pop %v8610
      %v8612 = vmul.f32 %v8579, 1.442695
      %v8613 = vpow.pop %v8612
      %v8614 = vmul.f32 %v8580, 1.442695
      %v8615 = vpow.pop %v8614
      %v8616 = vmul.f32 %v8581, 1.442695
      %v8617 = vpow.pop %v8616
      %v8618 = vmul.f32 %v8582, 1.442695
      %v8619 = vpow.pop %v8618
      %v8620 = vmul.f32 %v8583, 1.442695
      %v8621 = vpow.pop %v8620
      %v8622 = vmul.f32 %v8584, 1.442695
      %v8623 = vpow.pop %v8622
      %v8624 = vmul.f32 %v8585, 1.442695
      %v8625 = vpow.pop %v8624
      %v8626 = vmul.f32 %v8586, 1.442695
      %v8627 = vpow.pop %v8626
      %v8628 = vmul.f32 %v8587, 1.442695
      %v8629 = vpow.pop %v8628
      %v8630 = vmul.f32 %v8588, 1.442695
      %v8631 = vpow.pop %v8630
      %v8632 = vmul.f32 %v8589, 1.442695
      %v8633 = vpow.pop %v8632
      %v8634 = vmul.f32 %v8590, 1.442695
      %v8635 = vpow.pop %v8634
      %v8636 = vmul.f32 %v8591, 1.442695
      %v8637 = vpow.pop %v8636
      %v8638 = vmul.f32 %v8592, 1.442695
      %v8639 = vpow.pop %v8638
      %v8640 = vmul.f32 %v8593, 1.442695
      %v8641 = vpow.pop %v8640
      %v8642 = vmul.f32 %v8594, 1.442695
      %v8643 = vpow.pop %v8642
      %v8644 = vmul.f32 %v8595, 1.442695
      %v8645 = vpow.pop %v8644
      %v8646 = vmul.f32 %v8596, 1.442695
      %v8647 = vpow.pop %v8646
      %v8648 = vmul.f32 %v8597, 1.442695
      %v8649 = vpow.pop %v8648
      %v8650 = vmul.f32 %v8598, 1.442695
      %v8651 = vpow.pop %v8650
      %v8652 = vmul.f32 %v8599, 1.442695
      %v8653 = vpow.pop %v8652
      %v8654 = vmul.f32 %v8600, 1.442695
      %v8655 = vpow.pop %v8654
      %v8656 = vmul.f32 %v8601, 1.442695
      %v8657 = vpow.pop %v8656
      %v8658 = vmul.f32 %v8602, 1.442695
      %v8659 = vpow.pop %v8658
      %v8660 = vmul.f32 %v8603, 1.442695
      %v8661 = vpow.pop %v8660
      %v8662 = vmul.f32 %v8604, 1.442695
      %v8663 = vpow.pop %v8662
      %v8664 = vmul.f32 %v8605, 1.442695
      %v8665 = vpow.pop %v8664
      %v8666 = vmul.f32 %v8606, 1.442695
      %v8667 = vpow.pop %v8666
      %v8668 = vmul.f32 %v8607, 1.442695
      %v8669 = vpow.pop %v8668
      %v8670 = vmul.f32 %v8608, 1.442695
      %v8671 = vpow.pop %v8670
      %v8672 = vmul.f32 %v8609, 1.442695
      %v8673 = vpow.pop %v8672
      %v8674 = vadd.f32 %v8611, 1.0
      %v8675 = vadd.f32 %v8613, 1.0
      %v8676 = vadd.f32 %v8615, 1.0
      %v8677 = vadd.f32 %v8617, 1.0
      %v8678 = vadd.f32 %v8619, 1.0
      %v8679 = vadd.f32 %v8621, 1.0
      %v8680 = vadd.f32 %v8623, 1.0
      %v8681 = vadd.f32 %v8625, 1.0
      %v8682 = vadd.f32 %v8627, 1.0
      %v8683 = vadd.f32 %v8629, 1.0
      %v8684 = vadd.f32 %v8631, 1.0
      %v8685 = vadd.f32 %v8633, 1.0
      %v8686 = vadd.f32 %v8635, 1.0
      %v8687 = vadd.f32 %v8637, 1.0
      %v8688 = vadd.f32 %v8639, 1.0
      %v8689 = vadd.f32 %v8641, 1.0
      %v8690 = vadd.f32 %v8643, 1.0
      %v8691 = vadd.f32 %v8645, 1.0
      %v8692 = vadd.f32 %v8647, 1.0
      %v8693 = vadd.f32 %v8649, 1.0
      %v8694 = vadd.f32 %v8651, 1.0
      %v8695 = vadd.f32 %v8653, 1.0
      %v8696 = vadd.f32 %v8655, 1.0
      %v8697 = vadd.f32 %v8657, 1.0
      %v8698 = vadd.f32 %v8659, 1.0
      %v8699 = vadd.f32 %v8661, 1.0
      %v8700 = vadd.f32 %v8663, 1.0
      %v8701 = vadd.f32 %v8665, 1.0
      %v8702 = vadd.f32 %v8667, 1.0
      %v8703 = vadd.f32 %v8669, 1.0
      %v8704 = vadd.f32 %v8671, 1.0
      %v8705 = vadd.f32 %v8673, 1.0
      %v8706 = vrcp.pop %v8674
      %v8707 = vmul.f32 1.0, %v8706
      %v8708 = vrcp.pop %v8675
      %v8709 = vmul.f32 1.0, %v8708
      %v8710 = vrcp.pop %v8676
      %v8711 = vmul.f32 1.0, %v8710
      %v8712 = vrcp.pop %v8677
      %v8713 = vmul.f32 1.0, %v8712
      %v8714 = vrcp.pop %v8678
      %v8715 = vmul.f32 1.0, %v8714
      %v8716 = vrcp.pop %v8679
      %v8717 = vmul.f32 1.0, %v8716
      %v8718 = vrcp.pop %v8680
      %v8719 = vmul.f32 1.0, %v8718
      %v8720 = vrcp.pop %v8681
      %v8721 = vmul.f32 1.0, %v8720
      %v8722 = vrcp.pop %v8682
      %v8723 = vmul.f32 1.0, %v8722
      %v8724 = vrcp.pop %v8683
      %v8725 = vmul.f32 1.0, %v8724
      %v8726 = vrcp.pop %v8684
      %v8727 = vmul.f32 1.0, %v8726
      %v8728 = vrcp.pop %v8685
      %v8729 = vmul.f32 1.0, %v8728
      %v8730 = vrcp.pop %v8686
      %v8731 = vmul.f32 1.0, %v8730
      %v8732 = vrcp.pop %v8687
      %v8733 = vmul.f32 1.0, %v8732
      %v8734 = vrcp.pop %v8688
      %v8735 = vmul.f32 1.0, %v8734
      %v8736 = vrcp.pop %v8689
      %v8737 = vmul.f32 1.0, %v8736
      %v8738 = vrcp.pop %v8690
      %v8739 = vmul.f32 1.0, %v8738
      %v8740 = vrcp.pop %v8691
      %v8741 = vmul.f32 1.0, %v8740
      %v8742 = vrcp.pop %v8692
      %v8743 = vmul.f32 1.0, %v8742
      %v8744 = vrcp.pop %v8693
      %v8745 = vmul.f32 1.0, %v8744
      %v8746 = vrcp.pop %v8694
      %v8747 = vmul.f32 1.0, %v8746
      %v8748 = vrcp.pop %v8695
      %v8749 = vmul.f32 1.0, %v8748
      %v8750 = vrcp.pop %v8696
      %v8751 = vmul.f32 1.0, %v8750
      %v8752 = vrcp.pop %v8697
      %v8753 = vmul.f32 1.0, %v8752
      %v8754 = vrcp.pop %v8698
      %v8755 = vmul.f32 1.0, %v8754
      %v8756 = vrcp.pop %v8699
      %v8757 = vmul.f32 1.0, %v8756
      %v8758 = vrcp.pop %v8700
      %v8759 = vmul.f32 1.0, %v8758
      %v8760 = vrcp.pop %v8701
      %v8761 = vmul.f32 1.0, %v8760
      %v8762 = vrcp.pop %v8702
      %v8763 = vmul.f32 1.0, %v8762
      %v8764 = vrcp.pop %v8703
      %v8765 = vmul.f32 1.0, %v8764
      %v8766 = vrcp.pop %v8704
      %v8767 = vmul.f32 1.0, %v8766
      %v8768 = vrcp.pop %v8705
      %v8769 = vmul.f32 1.0, %v8768
      %v8770 = vmul.f32 %v7213, %v8707
      %v8771 = vmul.f32 %v7214, %v8709
      %v8772 = vmul.f32 %v7215, %v8711
      %v8773 = vmul.f32 %v7216, %v8713
      %v8774 = vmul.f32 %v7217, %v8715
      %v8775 = vmul.f32 %v7218, %v8717
      %v8776 = vmul.f32 %v7219, %v8719
      %v8777 = vmul.f32 %v7220, %v8721
      %v8778 = vmul.f32 %v7221, %v8723
      %v8779 = vmul.f32 %v7222, %v8725
      %v8780 = vmul.f32 %v7223, %v8727
      %v8781 = vmul.f32 %v7224, %v8729
      %v8782 = vmul.f32 %v7225, %v8731
      %v8783 = vmul.f32 %v7226, %v8733
      %v8784 = vmul.f32 %v7227, %v8735
      %v8785 = vmul.f32 %v7228, %v8737
      %v8786 = vmul.f32 %v7229, %v8739
      %v8787 = vmul.f32 %v7230, %v8741
      %v8788 = vmul.f32 %v7231, %v8743
      %v8789 = vmul.f32 %v7232, %v8745
      %v8790 = vmul.f32 %v7233, %v8747
      %v8791 = vmul.f32 %v7234, %v8749
      %v8792 = vmul.f32 %v7235, %v8751
      %v8793 = vmul.f32 %v7236, %v8753
      %v8794 = vmul.f32 %v7237, %v8755
      %v8795 = vmul.f32 %v7238, %v8757
      %v8796 = vmul.f32 %v7239, %v8759
      %v8797 = vmul.f32 %v7240, %v8761
      %v8798 = vmul.f32 %v7241, %v8763
      %v8799 = vmul.f32 %v7242, %v8765
      %v8800 = vmul.f32 %v7243, %v8767
      %v8801 = vmul.f32 %v7244, %v8769
      %v8802 = vadd.f32 %v8770, %v933
      %v8803 = vadd.f32 %v8771, %v934
      %v8804 = vadd.f32 %v8772, %v935
      %v8805 = vadd.f32 %v8773, %v936
      %v8806 = vadd.f32 %v8774, %v937
      %v8807 = vadd.f32 %v8775, %v938
      %v8808 = vadd.f32 %v8776, %v939
      %v8809 = vadd.f32 %v8777, %v940
      %v8810 = vadd.f32 %v8778, %v941
      %v8811 = vadd.f32 %v8779, %v942
      %v8812 = vadd.f32 %v8780, %v943
      %v8813 = vadd.f32 %v8781, %v944
      %v8814 = vadd.f32 %v8782, %v945
      %v8815 = vadd.f32 %v8783, %v946
      %v8816 = vadd.f32 %v8784, %v947
      %v8817 = vadd.f32 %v8785, %v948
      %v8818 = vadd.f32 %v8786, %v949
      %v8819 = vadd.f32 %v8787, %v950
      %v8820 = vadd.f32 %v8788, %v951
      %v8821 = vadd.f32 %v8789, %v952
      %v8822 = vadd.f32 %v8790, %v953
      %v8823 = vadd.f32 %v8791, %v954
      %v8824 = vadd.f32 %v8792, %v955
      %v8825 = vadd.f32 %v8793, %v956
      %v8826 = vadd.f32 %v8794, %v957
      %v8827 = vadd.f32 %v8795, %v958
      %v8828 = vadd.f32 %v8796, %v959
      %v8829 = vadd.f32 %v8797, %v960
      %v8830 = vadd.f32 %v8798, %v961
      %v8831 = vadd.f32 %v8799, %v962
      %v8832 = vadd.f32 %v8800, %v963
      %v8833 = vadd.f32 %v8801, %v964
      %v8834 = vmax.f32 %v8802, 0.0
      %v8835 = vmax.f32 %v8803, 0.0
      %v8836 = vmax.f32 %v8804, 0.0
      %v8837 = vmax.f32 %v8805, 0.0
      %v8838 = vmax.f32 %v8806, 0.0
      %v8839 = vmax.f32 %v8807, 0.0
      %v8840 = vmax.f32 %v8808, 0.0
      %v8841 = vmax.f32 %v8809, 0.0
      %v8842 = vmax.f32 %v8810, 0.0
      %v8843 = vmax.f32 %v8811, 0.0
      %v8844 = vmax.f32 %v8812, 0.0
      %v8845 = vmax.f32 %v8813, 0.0
      %v8846 = vmax.f32 %v8814, 0.0
      %v8847 = vmax.f32 %v8815, 0.0
      %v8848 = vmax.f32 %v8816, 0.0
      %v8849 = vmax.f32 %v8817, 0.0
      %v8850 = vmax.f32 %v8818, 0.0
      %v8851 = vmax.f32 %v8819, 0.0
      %v8852 = vmax.f32 %v8820, 0.0
      %v8853 = vmax.f32 %v8821, 0.0
      %v8854 = vmax.f32 %v8822, 0.0
      %v8855 = vmax.f32 %v8823, 0.0
      %v8856 = vmax.f32 %v8824, 0.0
      %v8857 = vmax.f32 %v8825, 0.0
      %v8858 = vmax.f32 %v8826, 0.0
      %v8859 = vmax.f32 %v8827, 0.0
      %v8860 = vmax.f32 %v8828, 0.0
      %v8861 = vmax.f32 %v8829, 0.0
      %v8862 = vmax.f32 %v8830, 0.0
      %v8863 = vmax.f32 %v8831, 0.0
      %v8864 = vmax.f32 %v8832, 0.0
      %v8865 = vmax.f32 %v8833, 0.0
      %8866 = vst.msk [vmem:[%s307] sm:$0xff] %vm310, %v8834
      %8867 = vst.msk [vmem:[%s307 + $0x8] sm:$0xff] %vm310, %v8835
      %8868 = vst.msk [vmem:[%s307 + $0x10] sm:$0xff] %vm310, %v8836
      %8869 = vst.msk [vmem:[%s307 + $0x18] sm:$0xff] %vm310, %v8837
      %8870 = vst.msk [vmem:[%s307 + $0x20] sm:$0xff] %vm310, %v8838
      %8871 = vst.msk [vmem:[%s307 + $0x28] sm:$0xff] %vm310, %v8839
      %8872 = vst.msk [vmem:[%s307 + $0x30] sm:$0xff] %vm310, %v8840
      %8873 = vst.msk [vmem:[%s307 + $0x38] sm:$0xff] %vm310, %v8841
      %8874 = vst.msk [vmem:[%s307 + $0x40] sm:$0xff] %vm310, %v8842
      %8875 = vst.msk [vmem:[%s307 + $0x48] sm:$0xff] %vm310, %v8843
      %8876 = vst.msk [vmem:[%s307 + $0x50] sm:$0xff] %vm310, %v8844
      %8877 = vst.msk [vmem:[%s307 + $0x58] sm:$0xff] %vm310, %v8845
      %8878 = vst.msk [vmem:[%s307 + $0x60] sm:$0xff] %vm310, %v8846
      %8879 = vst.msk [vmem:[%s307 + $0x68] sm:$0xff] %vm310, %v8847
      %8880 = vst.msk [vmem:[%s307 + $0x70] sm:$0xff] %vm310, %v8848
      %8881 = vst.msk [vmem:[%s307 + $0x78] sm:$0xff] %vm310, %v8849
      %8882 = vst.msk [vmem:[%s307 + $0x80] sm:$0xff] %vm310, %v8850
      %8883 = vst.msk [vmem:[%s307 + $0x88] sm:$0xff] %vm310, %v8851
      %8884 = vst.msk [vmem:[%s307 + $0x90] sm:$0xff] %vm310, %v8852
      %8885 = vst.msk [vmem:[%s307 + $0x98] sm:$0xff] %vm310, %v8853
      %8886 = vst.msk [vmem:[%s307 + $0xa0] sm:$0xff] %vm310, %v8854
      %8887 = vst.msk [vmem:[%s307 + $0xa8] sm:$0xff] %vm310, %v8855
      %8888 = vst.msk [vmem:[%s307 + $0xb0] sm:$0xff] %vm310, %v8856
      %8889 = vst.msk [vmem:[%s307 + $0xb8] sm:$0xff] %vm310, %v8857
      %8890 = vst.msk [vmem:[%s307 + $0xc0] sm:$0xff] %vm310, %v8858
      %8891 = vst.msk [vmem:[%s307 + $0xc8] sm:$0xff] %vm310, %v8859
      %8892 = vst.msk [vmem:[%s307 + $0xd0] sm:$0xff] %vm310, %v8860
      %8893 = vst.msk [vmem:[%s307 + $0xd8] sm:$0xff] %vm310, %v8861
      %8894 = vst.msk [vmem:[%s307 + $0xe0] sm:$0xff] %vm310, %v8862
      %8895 = vst.msk [vmem:[%s307 + $0xe8] sm:$0xff] %vm310, %v8863
      %8896 = vst.msk [vmem:[%s307 + $0xf0] sm:$0xff] %vm310, %v8864
      %8897 = vst.msk [vmem:[%s307 + $0xf8] sm:$0xff] %vm310, %v8865
      %s8898 = smul.u32 32, %s19
      %p8899 = scmp.lt.s32.totalorder %s8898, 63
      %s8900 = scalar_select %p8899, %s8898, 63
      %s8901 = smul.addr %s8900, 8
      %s8902 = scalar_lea.vmem %s8, %s8901
      // Predicated region
      $region53: #{cbam_basic_block_pallas.1} parent=51 // pred_check
        %p8903 = pneg %p210
      $region54: #{cbam_basic_block_pallas.1} parent=51 // pred_check_branch
        %8905 = sbr.rel (%p8903) target = $region56
      $region55: #{cbam_basic_block_pallas.1} parent=51 // pred_region
        %s8906 = smul.u32 32, %s19
      $region56: #{cbam_basic_block_pallas.1} parent=51 // pred_fallthru
        _
    $region52: #{cbam_basic_block_pallas.1} parent=5 // pred_fallthru
      _
    %p8907 = scmp.le.s32.totalorder 2, %s14
    // Predicated region
    $region57: #{cbam_basic_block_pallas.1} parent=5 // pred_check
      %p8908 = pneg %p8907
    $region58: #{cbam_basic_block_pallas.1} parent=5 // pred_check_branch
      %8910 = sbr.rel (%p8908) target = $region60
    $region59: #{cbam_basic_block_pallas.1} parent=5 // pred_region
      %s8911 = ssub.s32 %s14, 2
      // Predicated region
      $region61: #{cbam_basic_block_pallas.1} parent=59 // pred_check
        %p8912 = pneg %p216
      $region62: #{cbam_basic_block_pallas.1} parent=59 // pred_check_branch
        %8914 = sbr.rel (%p8912) target = $region64
      $region63: #{cbam_basic_block_pallas.1} parent=59 // pred_region
        %s8915 = smul.u32 32, %s20
        %p8916 = scmp.lt.s32.totalorder %s8915, 63
        %s8917 = scalar_select %p8916, %s8915, 63
        %s8918 = smul.addr %s8917, 8
        %s8919 = scalar_lea.vmem %s8, %s8918
      $region64: #{cbam_basic_block_pallas.1} parent=59 // pred_fallthru
        _
    $region60: #{cbam_basic_block_pallas.1} parent=5 // pred_fallthru
      _
  $region6: #{cbam_basic_block_pallas.1} parent=0 // loop_footer
    %s18 = sadd.s32 1, %s14
  $region7: #{cbam_basic_block_pallas.1} parent=0 // loop_footer_branch
    %13 = sbr.rel target = $region3
  $region8: #{cbam_basic_block_pallas.1} parent=0 // loop_exit
    _

</llo_original>
